<compile_context>
chip_gen: v6e
topology: v6e:2x2x1
jax: 0.10.0
libtpu: 0.0.40
codegen_flags: <defaults>
</compile_context>

<pallas_src>
import functools

import jax
import jax.numpy as jnp
from jax.experimental import pallas as pl
from jax.experimental.pallas import tpu as pltpu

BN_EPS = 1e-5
LRELU_SLOPE = 0.2
LANE = 128
VMEM_LIMIT = 32 * 1024 * 1024


def _round_up(x, m):
    return ((x + m - 1) // m) * m


# ----------------------------------------------------------------------------
# Pallas kernels (one fused kernel per layer, single grid step)
# ----------------------------------------------------------------------------
def conv_bn_lrelu_kernel(p_ref, w_ref, gb_ref, o_ref, *, inv_m):
    """Fused: y = p @ w (bf16 in, f32 acc); batch-stat BN; LeakyReLU(0.2).

    p_ref : (Mp, Kp)  bf16 im2col patches (zero-padded rows/cols)
    w_ref : (Kp, Cp)  bf16 reshaped conv weight (zero-padded)
    gb_ref: (8,  Cp)  f32, row 0 = gamma, row 1 = beta (padded cols are 0)
    o_ref : (Mp, Cp)  bf16 output activations
    """
    y = jnp.dot(p_ref[...], w_ref[...], preferred_element_type=jnp.float32)

    # Training-mode batch statistics over the true M rows (padded rows are
    # exactly zero so they do not perturb the sums; we divide by the true M).
    mean = jnp.sum(y, axis=0, keepdims=True) * inv_m
    var = jnp.sum(y * y, axis=0, keepdims=True) * inv_m - mean * mean
    var = jnp.maximum(var, 0.0)                       # guard f32 cancellation

    gamma = gb_ref[0:1, :]
    beta = gb_ref[1:2, :]
    scale = gamma * jax.lax.rsqrt(var + BN_EPS)       # (1, Cp)
    shift = beta - mean * scale                       # (1, Cp)

    z = y * scale + shift
    o_ref[...] = jnp.where(z > 0, z, LRELU_SLOPE * z).astype(o_ref.dtype)


def conv_bias_sigmoid_kernel(p_ref, w_ref, b_ref, o_ref):
    """Final layer: y = p @ w + b -> sigmoid."""
    y = jnp.dot(p_ref[...], w_ref[...], preferred_element_type=jnp.float32)
    o_ref[...] = jax.nn.sigmoid(y + b_ref[0:1, :])


# ----------------------------------------------------------------------------
# Glue: im2col over NHWC activations (plain-JAX slicing, stays inside jit)
# ----------------------------------------------------------------------------
def im2col_nhwc(x, kh, kw, stride, pad):
    """x: (N, H, W, C) -> patches (N*OH*OW, kh*kw*C), feature order (kh, kw, c)."""
    n, h, w, c = x.shape
    xp = jnp.pad(x, ((0, 0), (pad, pad), (pad, pad), (0, 0)))
    oh = (h + 2 * pad - kh) // stride + 1
    ow = (w + 2 * pad - kw) // stride + 1
    cols = []
    for i in range(kh):
        for j in range(kw):
            cols.append(xp[:, i:i + stride * oh:stride, j:j + stride * ow:stride, :])
    p = jnp.stack(cols, axis=3)                     # (n, oh, ow, kh*kw, c)
    return p.reshape(n * oh * ow, kh * kw * c), oh, ow


def _pad_patches(p, mp, kp):
    m, k = p.shape
    if (mp, kp) == (m, k):
        return p
    return jnp.zeros((mp, kp), p.dtype).at[:m, :k].set(p)


def _pad_weight(w_oihw, kp, cp):
    c_out, _, kh, kw = w_oihw.shape
    wm = w_oihw.transpose(2, 3, 1, 0).reshape(kh * kw * w_oihw.shape[1], c_out)
    wm = wm.astype(jnp.bfloat16)
    k = wm.shape[0]
    if (kp, cp) == (k, c_out):
        return wm
    return jnp.zeros((kp, cp), jnp.bfloat16).at[:k, :c_out].set(wm)


# ----------------------------------------------------------------------------
# Layer wrappers
# ----------------------------------------------------------------------------
def conv_bn_lrelu_nhwc(x, w, gamma, beta, stride, pad):
    """x: (N,H,W,Cin) bf16 -> (N,OH,OW,Cout) bf16 (fused conv + BN + LeakyReLU)."""
    n = x.shape[0]
    c_out = w.shape[0]
    kh, kw = w.shape[2], w.shape[3]

    p, oh, ow = im2col_nhwc(x.astype(jnp.bfloat16), kh, kw, stride, pad)
    m, k = p.shape
    kp = _round_up(k, LANE)
    cp = _round_up(c_out, LANE)
    mp = _round_up(m, 8)

    p_pad = _pad_patches(p, mp, kp)
    wm = _pad_weight(w, kp, cp)
    gb = (jnp.zeros((8, cp), jnp.float32)
          .at[0, :c_out].set(gamma)
          .at[1, :c_out].set(beta))

    out = pl.pallas_call(
        functools.partial(conv_bn_lrelu_kernel, inv_m=1.0 / m),
        out_shape=jax.ShapeDtypeStruct((mp, cp), jnp.bfloat16),
        grid=(1,),
        in_specs=[pl.BlockSpec((mp, kp), lambda i: (0, 0)),
                  pl.BlockSpec((kp, cp), lambda i: (0, 0)),
                  pl.BlockSpec((8, cp), lambda i: (0, 0))],
        out_specs=pl.BlockSpec((mp, cp), lambda i: (0, 0)),
        compiler_params=pltpu.CompilerParams(
            dimension_semantics=("arbitrary",),
            vmem_limit_bytes=VMEM_LIMIT),
        cost_estimate=pl.CostEstimate(
            flops=2 * mp * kp * cp,
            transcendentals=0,
            bytes_accessed=mp * kp * 2 + kp * cp * 2 + 8 * cp * 4 + mp * cp * 2),
    )(p_pad, wm, gb)

    return out[:m, :c_out].reshape(n, oh, ow, c_out)


def conv_sigmoid_nhwc(x, w, bias, stride, pad):
    """Final 4x4/s1 conv + bias + sigmoid.  Output in f32."""
    n = x.shape[0]
    c_out = w.shape[0]
    kh, kw = w.shape[2], w.shape[3]

    p, oh, ow = im2col_nhwc(x.astype(jnp.bfloat16), kh, kw, stride, pad)
    m, k = p.shape
    kp = _round_up(k, LANE)
    cp = _round_up(c_out, LANE)
    mp = _round_up(m, 8)

    p_pad = _pad_patches(p, mp, kp)
    wm = _pad_weight(w, kp, cp)
    b = jnp.zeros((8, cp), jnp.float32).at[0, :c_out].set(bias)

    out = pl.pallas_call(
        conv_bias_sigmoid_kernel,
        out_shape=jax.ShapeDtypeStruct((mp, cp), jnp.float32),
        grid=(1,),
        in_specs=[pl.BlockSpec((mp, kp), lambda i: (0, 0)),
                  pl.BlockSpec((kp, cp), lambda i: (0, 0)),
                  pl.BlockSpec((8, cp), lambda i: (0, 0))],
        out_specs=pl.BlockSpec((mp, cp), lambda i: (0, 0)),
        compiler_params=pltpu.CompilerParams(
            dimension_semantics=("arbitrary",),
            vmem_limit_bytes=VMEM_LIMIT),
        cost_estimate=pl.CostEstimate(
            flops=2 * mp * kp * cp,
            transcendentals=mp * cp,
            bytes_accessed=mp * kp * 2 + kp * cp * 2 + 8 * cp * 4 + mp * cp * 4),
    )(p_pad, wm, b)

    return out[:m, :c_out].reshape(n, oh, ow, c_out)


# ----------------------------------------------------------------------------
# Parameters + full forward
# ----------------------------------------------------------------------------
def init_params(key, input_channels, ndf):
    chans = [(input_channels, ndf), (ndf, ndf * 2), (ndf * 2, ndf * 4), (ndf * 4, ndf * 8)]
    params = []
    for cin, cout in chans:
        key, k1, k2, k3 = jax.random.split(key, 4)
        w = 0.02 * jax.random.normal(k1, (cout, cin, 4, 4), jnp.float32)
        gamma = 1.0 + 0.02 * jax.random.normal(k2, (cout,), jnp.float32)
        beta = 0.02 * jax.random.normal(k3, (cout,), jnp.float32)
        params.append((w, gamma, beta))   # conv bias omitted: exactly cancelled by BN
    key, k1 = jax.random.split(key)
    w_last = 0.02 * jax.random.normal(k1, (1, ndf * 8, 4, 4), jnp.float32)
    b_last = jnp.zeros((1,), jnp.float32)
    return params, (w_last, b_last)


def discriminator_forward(x_nchw, params, last):
    x = jnp.transpose(x_nchw, (0, 2, 3, 1))                # NCHW -> NHWC once
    for w, gamma, beta in params:
        x = conv_bn_lrelu_nhwc(x, w, gamma, beta, stride=2, pad=1)
    w_last, b_last = last
    out = conv_sigmoid_nhwc(x, w_last, b_last, stride=1, pad=0)   # (N,1,1,1) f32
    return jnp.transpose(out, (0, 3, 1, 2))                # back to NCHW


# ----------------------------------------------------------------------------
# Pure-JAX f32 reference (training-mode BatchNorm, biased variance)
# ----------------------------------------------------------------------------
def _ref_forward(x_nchw, params, last):
    dn = ("NCHW", "OIHW", "NCHW")
    x = x_nchw
    for w, gamma, beta in params:
        y = jax.lax.conv_general_dilated(x, w, (2, 2), ((1, 1), (1, 1)),
                                         dimension_numbers=dn)
        mean = jnp.mean(y, axis=(0, 2, 3), keepdims=True)
        var = jnp.var(y, axis=(0, 2, 3), keepdims=True)
        z = ((y - mean) * jax.lax.rsqrt(var + BN_EPS)
             * gamma.reshape(1, -1, 1, 1) + beta.reshape(1, -1, 1, 1))
        x = jnp.where(z > 0, z, LRELU_SLOPE * z)
    w_last, b_last = last
    y = jax.lax.conv_general_dilated(x, w_last, (1, 1), ((0, 0), (0, 0)),
                                     dimension_numbers=dn)
    return jax.nn.sigmoid(y + b_last.reshape(1, -1, 1, 1))


# ----------------------------------------------------------------------------
if __name__ == "__main__":
    key = jax.random.PRNGKey(0)
    k_x, k_p = jax.random.split(key)

    batch = 2
    input_channels = 3
    num_disc_features = 8
    spatial = 64   # DCGAN discriminator needs 64x64 input to reach the 4x4 final conv

    x = jax.random.normal(k_x, (batch, input_channels, spatial, spatial), jnp.float32)
    params, last = init_params(k_p, input_channels, num_disc_features)

    forward = jax.jit(discriminator_forward)
    out = jax.block_until_ready(forward(x, params, last))

    assert out.shape == (batch, 1, 1, 1), out.shape
    assert bool(jnp.all((out >= 0.0) & (out <= 1.0)))

    # Tolerance-checked pure-JAX reference (bf16 MXU path vs f32 conv).
    ref = _ref_forward(x, params, last)
    max_err = float(jnp.max(jnp.abs(out - ref)))
    assert max_err < 5e-2, max_err

    print("KERNEL_OK")
</pallas_src>

<mosaic_0001>
module attributes {stable_mosaic.version = 11 : i64} {
  func.func @conv_bn_lrelu_kernel(%arg0: i32, %arg1: memref<2048x128xbf16, #tpu.memory_space<vmem>>, %arg2: memref<128x128xbf16, #tpu.memory_space<vmem>>, %arg3: memref<8x128xf32, #tpu.memory_space<vmem>>, %arg4: memref<2048x128xbf16, #tpu.memory_space<vmem>>) attributes {dimension_semantics = [#tpu.dimension_semantics<arbitrary>], iteration_bounds = array<i64: 1>, scalar_prefetch = 0 : i64, scratch_operands = 0 : i64, tpu.core_type = #tpu.core_type<tc>, window_params = [{pipeline_mode = #tpu.pipeline_mode<synchronous>, transform_indices = @transform_0, window_bounds = array<i64: 2048, 128>}, {pipeline_mode = #tpu.pipeline_mode<synchronous>, transform_indices = @transform_1, window_bounds = array<i64: 128, 128>}, {pipeline_mode = #tpu.pipeline_mode<synchronous>, transform_indices = @transform_2, window_bounds = array<i64: 8, 128>}, {pipeline_mode = #tpu.pipeline_mode<synchronous>, transform_indices = @transform_3, window_bounds = array<i64: 2048, 128>}]} {
    %c0 = arith.constant 0 : index
    %c0_0 = arith.constant 0 : index
    %0 = vector.load %arg1[%c0, %c0_0] : memref<2048x128xbf16, #tpu.memory_space<vmem>>, vector<2048x128xbf16>
    %c0_1 = arith.constant 0 : index
    %c0_2 = arith.constant 0 : index
    %1 = vector.load %arg2[%c0_1, %c0_2] : memref<128x128xbf16, #tpu.memory_space<vmem>>, vector<128x128xbf16>
    %cst = arith.constant dense<0.000000e+00> : vector<2048x128xf32>
    %2 = tpu.matmul %0, %1, %cst {dimension_numbers = #tpu.dot_dimension_numbers<[1], [0], [0], [1], [0, 0, 1, 1], [], []>} : vector<2048x128xbf16>, vector<128x128xbf16>, vector<2048x128xf32> -> vector<2048x128xf32>
    %cst_3 = arith.constant dense<0.000000e+00> : vector<128xf32>
    %3 = vector.multi_reduction <add>, %2, %cst_3 [0] : vector<2048x128xf32> to vector<128xf32>
    %4 = vector.shape_cast %3 : vector<128xf32> to vector<1x128xf32>
    %cst_4 = arith.constant 4.8828125E-4 : f32
    %5 = vector.broadcast %cst_4 : f32 to vector<1x128xf32>
    %6 = arith.mulf %4, %5 : vector<1x128xf32>
    %7 = arith.mulf %2, %2 : vector<2048x128xf32>
    %cst_5 = arith.constant dense<0.000000e+00> : vector<128xf32>
    %8 = vector.multi_reduction <add>, %7, %cst_5 [0] : vector<2048x128xf32> to vector<128xf32>
    %9 = vector.shape_cast %8 : vector<128xf32> to vector<1x128xf32>
    %cst_6 = arith.constant 4.8828125E-4 : f32
    %10 = vector.broadcast %cst_6 : f32 to vector<1x128xf32>
    %11 = arith.mulf %9, %10 : vector<1x128xf32>
    %12 = arith.mulf %6, %6 : vector<1x128xf32>
    %13 = arith.subf %11, %12 : vector<1x128xf32>
    %cst_7 = arith.constant 0.000000e+00 : f32
    %14 = vector.broadcast %cst_7 : f32 to vector<1x128xf32>
    %15 = arith.maximumf %13, %14 : vector<1x128xf32>
    %c0_8 = arith.constant 0 : index
    %c0_9 = arith.constant 0 : index
    %16 = vector.load %arg3[%c0_8, %c0_9] : memref<8x128xf32, #tpu.memory_space<vmem>>, vector<1x128xf32>
    %c1 = arith.constant 1 : index
    %c0_10 = arith.constant 0 : index
    %17 = vector.load %arg3[%c1, %c0_10] : memref<8x128xf32, #tpu.memory_space<vmem>>, vector<1x128xf32>
    %cst_11 = arith.constant 9.99999974E-6 : f32
    %18 = vector.broadcast %cst_11 : f32 to vector<1x128xf32>
    %19 = arith.addf %15, %18 : vector<1x128xf32>
    %20 = math.rsqrt %19 : vector<1x128xf32>
    %21 = arith.mulf %16, %20 : vector<1x128xf32>
    %22 = arith.mulf %6, %21 : vector<1x128xf32>
    %23 = arith.subf %17, %22 : vector<1x128xf32>
    %24 = vector.broadcast %21 : vector<1x128xf32> to vector<2048x128xf32>
    %25 = arith.mulf %2, %24 : vector<2048x128xf32>
    %26 = vector.broadcast %23 : vector<1x128xf32> to vector<2048x128xf32>
    %27 = arith.addf %25, %26 : vector<2048x128xf32>
    %cst_12 = arith.constant 0.000000e+00 : f32
    %28 = vector.broadcast %cst_12 : f32 to vector<2048x128xf32>
    %29 = arith.cmpf ogt, %27, %28 : vector<2048x128xf32>
    %cst_13 = arith.constant 2.000000e-01 : f32
    %30 = vector.broadcast %cst_13 : f32 to vector<2048x128xf32>
    %31 = arith.mulf %30, %27 : vector<2048x128xf32>
    %32 = arith.select %29, %27, %31 : vector<2048x128xi1>, vector<2048x128xf32>
    %33 = arith.truncf %32 : vector<2048x128xf32> to vector<2048x128xbf16>
    %c0_14 = arith.constant 0 : index
    %c0_15 = arith.constant 0 : index
    %34 = vector.load %arg4[%c0_14, %c0_15] : memref<2048x128xbf16, #tpu.memory_space<vmem>>, vector<2048x128xbf16>
    tpu.vector_store %arg4[%c0_14, %c0_15], %33 {strides = array<i32>} : memref<2048x128xbf16, #tpu.memory_space<vmem>>, vector<2048x128xbf16>,
    return
  }
  func.func @transform_0(%arg0: i32) -> (i32, i32) {
    %c0_i32 = arith.constant 0 : i32
    %c0_i32_0 = arith.constant 0 : i32
    %c0_i32_1 = arith.constant 0 : i32
    return %c0_i32, %c0_i32_0 : i32, i32
  }
  func.func @transform_1(%arg0: i32) -> (i32, i32) {
    %c0_i32 = arith.constant 0 : i32
    %c0_i32_0 = arith.constant 0 : i32
    %c0_i32_1 = arith.constant 0 : i32
    return %c0_i32, %c0_i32_0 : i32, i32
  }
  func.func @transform_2(%arg0: i32) -> (i32, i32) {
    %c0_i32 = arith.constant 0 : i32
    %c0_i32_0 = arith.constant 0 : i32
    %c0_i32_1 = arith.constant 0 : i32
    return %c0_i32, %c0_i32_0 : i32, i32
  }
  func.func @transform_3(%arg0: i32) -> (i32, i32) {
    %c0_i32 = arith.constant 0 : i32
    %c0_i32_0 = arith.constant 0 : i32
    %c0_i32_1 = arith.constant 0 : i32
    return %c0_i32, %c0_i32_0 : i32, i32
  }
}

module attributes {stable_mosaic.version = 11 : i64} {
  func.func @conv_bn_lrelu_kernel(%arg0: i32, %arg1: memref<512x128xbf16, #tpu.memory_space<vmem>>, %arg2: memref<128x128xbf16, #tpu.memory_space<vmem>>, %arg3: memref<8x128xf32, #tpu.memory_space<vmem>>, %arg4: memref<512x128xbf16, #tpu.memory_space<vmem>>) attributes {dimension_semantics = [#tpu.dimension_semantics<arbitrary>], iteration_bounds = array<i64: 1>, scalar_prefetch = 0 : i64, scratch_operands = 0 : i64, tpu.core_type = #tpu.core_type<tc>, window_params = [{pipeline_mode = #tpu.pipeline_mode<synchronous>, transform_indices = @transform_0, window_bounds = array<i64: 512, 128>}, {pipeline_mode = #tpu.pipeline_mode<synchronous>, transform_indices = @transform_1, window_bounds = array<i64: 128, 128>}, {pipeline_mode = #tpu.pipeline_mode<synchronous>, transform_indices = @transform_2, window_bounds = array<i64: 8, 128>}, {pipeline_mode = #tpu.pipeline_mode<synchronous>, transform_indices = @transform_3, window_bounds = array<i64: 512, 128>}]} {
    %c0 = arith.constant 0 : index
    %c0_0 = arith.constant 0 : index
    %0 = vector.load %arg1[%c0, %c0_0] : memref<512x128xbf16, #tpu.memory_space<vmem>>, vector<512x128xbf16>
    %c0_1 = arith.constant 0 : index
    %c0_2 = arith.constant 0 : index
    %1 = vector.load %arg2[%c0_1, %c0_2] : memref<128x128xbf16, #tpu.memory_space<vmem>>, vector<128x128xbf16>
    %cst = arith.constant dense<0.000000e+00> : vector<512x128xf32>
    %2 = tpu.matmul %0, %1, %cst {dimension_numbers = #tpu.dot_dimension_numbers<[1], [0], [0], [1], [0, 0, 1, 1], [], []>} : vector<512x128xbf16>, vector<128x128xbf16>, vector<512x128xf32> -> vector<512x128xf32>
    %cst_3 = arith.constant dense<0.000000e+00> : vector<128xf32>
    %3 = vector.multi_reduction <add>, %2, %cst_3 [0] : vector<512x128xf32> to vector<128xf32>
    %4 = vector.shape_cast %3 : vector<128xf32> to vector<1x128xf32>
    %cst_4 = arith.constant 0.001953125 : f32
    %5 = vector.broadcast %cst_4 : f32 to vector<1x128xf32>
    %6 = arith.mulf %4, %5 : vector<1x128xf32>
    %7 = arith.mulf %2, %2 : vector<512x128xf32>
    %cst_5 = arith.constant dense<0.000000e+00> : vector<128xf32>
    %8 = vector.multi_reduction <add>, %7, %cst_5 [0] : vector<512x128xf32> to vector<128xf32>
    %9 = vector.shape_cast %8 : vector<128xf32> to vector<1x128xf32>
    %cst_6 = arith.constant 0.001953125 : f32
    %10 = vector.broadcast %cst_6 : f32 to vector<1x128xf32>
    %11 = arith.mulf %9, %10 : vector<1x128xf32>
    %12 = arith.mulf %6, %6 : vector<1x128xf32>
    %13 = arith.subf %11, %12 : vector<1x128xf32>
    %cst_7 = arith.constant 0.000000e+00 : f32
    %14 = vector.broadcast %cst_7 : f32 to vector<1x128xf32>
    %15 = arith.maximumf %13, %14 : vector<1x128xf32>
    %c0_8 = arith.constant 0 : index
    %c0_9 = arith.constant 0 : index
    %16 = vector.load %arg3[%c0_8, %c0_9] : memref<8x128xf32, #tpu.memory_space<vmem>>, vector<1x128xf32>
    %c1 = arith.constant 1 : index
    %c0_10 = arith.constant 0 : index
    %17 = vector.load %arg3[%c1, %c0_10] : memref<8x128xf32, #tpu.memory_space<vmem>>, vector<1x128xf32>
    %cst_11 = arith.constant 9.99999974E-6 : f32
    %18 = vector.broadcast %cst_11 : f32 to vector<1x128xf32>
    %19 = arith.addf %15, %18 : vector<1x128xf32>
    %20 = math.rsqrt %19 : vector<1x128xf32>
    %21 = arith.mulf %16, %20 : vector<1x128xf32>
    %22 = arith.mulf %6, %21 : vector<1x128xf32>
    %23 = arith.subf %17, %22 : vector<1x128xf32>
    %24 = vector.broadcast %21 : vector<1x128xf32> to vector<512x128xf32>
    %25 = arith.mulf %2, %24 : vector<512x128xf32>
    %26 = vector.broadcast %23 : vector<1x128xf32> to vector<512x128xf32>
    %27 = arith.addf %25, %26 : vector<512x128xf32>
    %cst_12 = arith.constant 0.000000e+00 : f32
    %28 = vector.broadcast %cst_12 : f32 to vector<512x128xf32>
    %29 = arith.cmpf ogt, %27, %28 : vector<512x128xf32>
    %cst_13 = arith.constant 2.000000e-01 : f32
    %30 = vector.broadcast %cst_13 : f32 to vector<512x128xf32>
    %31 = arith.mulf %30, %27 : vector<512x128xf32>
    %32 = arith.select %29, %27, %31 : vector<512x128xi1>, vector<512x128xf32>
    %33 = arith.truncf %32 : vector<512x128xf32> to vector<512x128xbf16>
    %c0_14 = arith.constant 0 : index
    %c0_15 = arith.constant 0 : index
    %34 = vector.load %arg4[%c0_14, %c0_15] : memref<512x128xbf16, #tpu.memory_space<vmem>>, vector<512x128xbf16>
    tpu.vector_store %arg4[%c0_14, %c0_15], %33 {strides = array<i32>} : memref<512x128xbf16, #tpu.memory_space<vmem>>, vector<512x128xbf16>,
    return
  }
  func.func @transform_0(%arg0: i32) -> (i32, i32) {
    %c0_i32 = arith.constant 0 : i32
    %c0_i32_0 = arith.constant 0 : i32
    %c0_i32_1 = arith.constant 0 : i32
    return %c0_i32, %c0_i32_0 : i32, i32
  }
  func.func @transform_1(%arg0: i32) -> (i32, i32) {
    %c0_i32 = arith.constant 0 : i32
    %c0_i32_0 = arith.constant 0 : i32
    %c0_i32_1 = arith.constant 0 : i32
    return %c0_i32, %c0_i32_0 : i32, i32
  }
  func.func @transform_2(%arg0: i32) -> (i32, i32) {
    %c0_i32 = arith.constant 0 : i32
    %c0_i32_0 = arith.constant 0 : i32
    %c0_i32_1 = arith.constant 0 : i32
    return %c0_i32, %c0_i32_0 : i32, i32
  }
  func.func @transform_3(%arg0: i32) -> (i32, i32) {
    %c0_i32 = arith.constant 0 : i32
    %c0_i32_0 = arith.constant 0 : i32
    %c0_i32_1 = arith.constant 0 : i32
    return %c0_i32, %c0_i32_0 : i32, i32
  }
}

module attributes {stable_mosaic.version = 11 : i64} {
  func.func @conv_bn_lrelu_kernel(%arg0: i32, %arg1: memref<128x256xbf16, #tpu.memory_space<vmem>>, %arg2: memref<256x128xbf16, #tpu.memory_space<vmem>>, %arg3: memref<8x128xf32, #tpu.memory_space<vmem>>, %arg4: memref<128x128xbf16, #tpu.memory_space<vmem>>) attributes {dimension_semantics = [#tpu.dimension_semantics<arbitrary>], iteration_bounds = array<i64: 1>, scalar_prefetch = 0 : i64, scratch_operands = 0 : i64, tpu.core_type = #tpu.core_type<tc>, window_params = [{pipeline_mode = #tpu.pipeline_mode<synchronous>, transform_indices = @transform_0, window_bounds = array<i64: 128, 256>}, {pipeline_mode = #tpu.pipeline_mode<synchronous>, transform_indices = @transform_1, window_bounds = array<i64: 256, 128>}, {pipeline_mode = #tpu.pipeline_mode<synchronous>, transform_indices = @transform_2, window_bounds = array<i64: 8, 128>}, {pipeline_mode = #tpu.pipeline_mode<synchronous>, transform_indices = @transform_3, window_bounds = array<i64: 128, 128>}]} {
    %c0 = arith.constant 0 : index
    %c0_0 = arith.constant 0 : index
    %0 = vector.load %arg1[%c0, %c0_0] : memref<128x256xbf16, #tpu.memory_space<vmem>>, vector<128x256xbf16>
    %c0_1 = arith.constant 0 : index
    %c0_2 = arith.constant 0 : index
    %1 = vector.load %arg2[%c0_1, %c0_2] : memref<256x128xbf16, #tpu.memory_space<vmem>>, vector<256x128xbf16>
    %cst = arith.constant dense<0.000000e+00> : vector<128x128xf32>
    %2 = tpu.matmul %0, %1, %cst {dimension_numbers = #tpu.dot_dimension_numbers<[1], [0], [0], [1], [0, 0, 1, 1], [], []>} : vector<128x256xbf16>, vector<256x128xbf16>, vector<128x128xf32> -> vector<128x128xf32>
    %cst_3 = arith.constant dense<0.000000e+00> : vector<128xf32>
    %3 = vector.multi_reduction <add>, %2, %cst_3 [0] : vector<128x128xf32> to vector<128xf32>
    %4 = vector.shape_cast %3 : vector<128xf32> to vector<1x128xf32>
    %cst_4 = arith.constant 7.812500e-03 : f32
    %5 = vector.broadcast %cst_4 : f32 to vector<1x128xf32>
    %6 = arith.mulf %4, %5 : vector<1x128xf32>
    %7 = arith.mulf %2, %2 : vector<128x128xf32>
    %cst_5 = arith.constant dense<0.000000e+00> : vector<128xf32>
    %8 = vector.multi_reduction <add>, %7, %cst_5 [0] : vector<128x128xf32> to vector<128xf32>
    %9 = vector.shape_cast %8 : vector<128xf32> to vector<1x128xf32>
    %cst_6 = arith.constant 7.812500e-03 : f32
    %10 = vector.broadcast %cst_6 : f32 to vector<1x128xf32>
    %11 = arith.mulf %9, %10 : vector<1x128xf32>
    %12 = arith.mulf %6, %6 : vector<1x128xf32>
    %13 = arith.subf %11, %12 : vector<1x128xf32>
    %cst_7 = arith.constant 0.000000e+00 : f32
    %14 = vector.broadcast %cst_7 : f32 to vector<1x128xf32>
    %15 = arith.maximumf %13, %14 : vector<1x128xf32>
    %c0_8 = arith.constant 0 : index
    %c0_9 = arith.constant 0 : index
    %16 = vector.load %arg3[%c0_8, %c0_9] : memref<8x128xf32, #tpu.memory_space<vmem>>, vector<1x128xf32>
    %c1 = arith.constant 1 : index
    %c0_10 = arith.constant 0 : index
    %17 = vector.load %arg3[%c1, %c0_10] : memref<8x128xf32, #tpu.memory_space<vmem>>, vector<1x128xf32>
    %cst_11 = arith.constant 9.99999974E-6 : f32
    %18 = vector.broadcast %cst_11 : f32 to vector<1x128xf32>
    %19 = arith.addf %15, %18 : vector<1x128xf32>
    %20 = math.rsqrt %19 : vector<1x128xf32>
    %21 = arith.mulf %16, %20 : vector<1x128xf32>
    %22 = arith.mulf %6, %21 : vector<1x128xf32>
    %23 = arith.subf %17, %22 : vector<1x128xf32>
    %24 = vector.broadcast %21 : vector<1x128xf32> to vector<128x128xf32>
    %25 = arith.mulf %2, %24 : vector<128x128xf32>
    %26 = vector.broadcast %23 : vector<1x128xf32> to vector<128x128xf32>
    %27 = arith.addf %25, %26 : vector<128x128xf32>
    %cst_12 = arith.constant 0.000000e+00 : f32
    %28 = vector.broadcast %cst_12 : f32 to vector<128x128xf32>
    %29 = arith.cmpf ogt, %27, %28 : vector<128x128xf32>
    %cst_13 = arith.constant 2.000000e-01 : f32
    %30 = vector.broadcast %cst_13 : f32 to vector<128x128xf32>
    %31 = arith.mulf %30, %27 : vector<128x128xf32>
    %32 = arith.select %29, %27, %31 : vector<128x128xi1>, vector<128x128xf32>
    %33 = arith.truncf %32 : vector<128x128xf32> to vector<128x128xbf16>
    %c0_14 = arith.constant 0 : index
    %c0_15 = arith.constant 0 : index
    %34 = vector.load %arg4[%c0_14, %c0_15] : memref<128x128xbf16, #tpu.memory_space<vmem>>, vector<128x128xbf16>
    tpu.vector_store %arg4[%c0_14, %c0_15], %33 {strides = array<i32>} : memref<128x128xbf16, #tpu.memory_space<vmem>>, vector<128x128xbf16>,
    return
  }
  func.func @transform_0(%arg0: i32) -> (i32, i32) {
    %c0_i32 = arith.constant 0 : i32
    %c0_i32_0 = arith.constant 0 : i32
    %c0_i32_1 = arith.constant 0 : i32
    return %c0_i32, %c0_i32_0 : i32, i32
  }
  func.func @transform_1(%arg0: i32) -> (i32, i32) {
    %c0_i32 = arith.constant 0 : i32
    %c0_i32_0 = arith.constant 0 : i32
    %c0_i32_1 = arith.constant 0 : i32
    return %c0_i32, %c0_i32_0 : i32, i32
  }
  func.func @transform_2(%arg0: i32) -> (i32, i32) {
    %c0_i32 = arith.constant 0 : i32
    %c0_i32_0 = arith.constant 0 : i32
    %c0_i32_1 = arith.constant 0 : i32
    return %c0_i32, %c0_i32_0 : i32, i32
  }
  func.func @transform_3(%arg0: i32) -> (i32, i32) {
    %c0_i32 = arith.constant 0 : i32
    %c0_i32_0 = arith.constant 0 : i32
    %c0_i32_1 = arith.constant 0 : i32
    return %c0_i32, %c0_i32_0 : i32, i32
  }
}

module attributes {stable_mosaic.version = 11 : i64} {
  func.func @conv_bn_lrelu_kernel(%arg0: i32, %arg1: memref<32x512xbf16, #tpu.memory_space<vmem>>, %arg2: memref<512x128xbf16, #tpu.memory_space<vmem>>, %arg3: memref<8x128xf32, #tpu.memory_space<vmem>>, %arg4: memref<32x128xbf16, #tpu.memory_space<vmem>>) attributes {dimension_semantics = [#tpu.dimension_semantics<arbitrary>], iteration_bounds = array<i64: 1>, scalar_prefetch = 0 : i64, scratch_operands = 0 : i64, tpu.core_type = #tpu.core_type<tc>, window_params = [{pipeline_mode = #tpu.pipeline_mode<synchronous>, transform_indices = @transform_0, window_bounds = array<i64: 32, 512>}, {pipeline_mode = #tpu.pipeline_mode<synchronous>, transform_indices = @transform_1, window_bounds = array<i64: 512, 128>}, {pipeline_mode = #tpu.pipeline_mode<synchronous>, transform_indices = @transform_2, window_bounds = array<i64: 8, 128>}, {pipeline_mode = #tpu.pipeline_mode<synchronous>, transform_indices = @transform_3, window_bounds = array<i64: 32, 128>}]} {
    %c0 = arith.constant 0 : index
    %c0_0 = arith.constant 0 : index
    %0 = vector.load %arg1[%c0, %c0_0] : memref<32x512xbf16, #tpu.memory_space<vmem>>, vector<32x512xbf16>
    %c0_1 = arith.constant 0 : index
    %c0_2 = arith.constant 0 : index
    %1 = vector.load %arg2[%c0_1, %c0_2] : memref<512x128xbf16, #tpu.memory_space<vmem>>, vector<512x128xbf16>
    %cst = arith.constant dense<0.000000e+00> : vector<32x128xf32>
    %2 = tpu.matmul %0, %1, %cst {dimension_numbers = #tpu.dot_dimension_numbers<[1], [0], [0], [1], [0, 0, 1, 1], [], []>} : vector<32x512xbf16>, vector<512x128xbf16>, vector<32x128xf32> -> vector<32x128xf32>
    %cst_3 = arith.constant dense<0.000000e+00> : vector<128xf32>
    %3 = vector.multi_reduction <add>, %2, %cst_3 [0] : vector<32x128xf32> to vector<128xf32>
    %4 = vector.shape_cast %3 : vector<128xf32> to vector<1x128xf32>
    %cst_4 = arith.constant 3.125000e-02 : f32
    %5 = vector.broadcast %cst_4 : f32 to vector<1x128xf32>
    %6 = arith.mulf %4, %5 : vector<1x128xf32>
    %7 = arith.mulf %2, %2 : vector<32x128xf32>
    %cst_5 = arith.constant dense<0.000000e+00> : vector<128xf32>
    %8 = vector.multi_reduction <add>, %7, %cst_5 [0] : vector<32x128xf32> to vector<128xf32>
    %9 = vector.shape_cast %8 : vector<128xf32> to vector<1x128xf32>
    %cst_6 = arith.constant 3.125000e-02 : f32
    %10 = vector.broadcast %cst_6 : f32 to vector<1x128xf32>
    %11 = arith.mulf %9, %10 : vector<1x128xf32>
    %12 = arith.mulf %6, %6 : vector<1x128xf32>
    %13 = arith.subf %11, %12 : vector<1x128xf32>
    %cst_7 = arith.constant 0.000000e+00 : f32
    %14 = vector.broadcast %cst_7 : f32 to vector<1x128xf32>
    %15 = arith.maximumf %13, %14 : vector<1x128xf32>
    %c0_8 = arith.constant 0 : index
    %c0_9 = arith.constant 0 : index
    %16 = vector.load %arg3[%c0_8, %c0_9] : memref<8x128xf32, #tpu.memory_space<vmem>>, vector<1x128xf32>
    %c1 = arith.constant 1 : index
    %c0_10 = arith.constant 0 : index
    %17 = vector.load %arg3[%c1, %c0_10] : memref<8x128xf32, #tpu.memory_space<vmem>>, vector<1x128xf32>
    %cst_11 = arith.constant 9.99999974E-6 : f32
    %18 = vector.broadcast %cst_11 : f32 to vector<1x128xf32>
    %19 = arith.addf %15, %18 : vector<1x128xf32>
    %20 = math.rsqrt %19 : vector<1x128xf32>
    %21 = arith.mulf %16, %20 : vector<1x128xf32>
    %22 = arith.mulf %6, %21 : vector<1x128xf32>
    %23 = arith.subf %17, %22 : vector<1x128xf32>
    %24 = vector.broadcast %21 : vector<1x128xf32> to vector<32x128xf32>
    %25 = arith.mulf %2, %24 : vector<32x128xf32>
    %26 = vector.broadcast %23 : vector<1x128xf32> to vector<32x128xf32>
    %27 = arith.addf %25, %26 : vector<32x128xf32>
    %cst_12 = arith.constant 0.000000e+00 : f32
    %28 = vector.broadcast %cst_12 : f32 to vector<32x128xf32>
    %29 = arith.cmpf ogt, %27, %28 : vector<32x128xf32>
    %cst_13 = arith.constant 2.000000e-01 : f32
    %30 = vector.broadcast %cst_13 : f32 to vector<32x128xf32>
    %31 = arith.mulf %30, %27 : vector<32x128xf32>
    %32 = arith.select %29, %27, %31 : vector<32x128xi1>, vector<32x128xf32>
    %33 = arith.truncf %32 : vector<32x128xf32> to vector<32x128xbf16>
    %c0_14 = arith.constant 0 : index
    %c0_15 = arith.constant 0 : index
    %34 = vector.load %arg4[%c0_14, %c0_15] : memref<32x128xbf16, #tpu.memory_space<vmem>>, vector<32x128xbf16>
    tpu.vector_store %arg4[%c0_14, %c0_15], %33 {strides = array<i32>} : memref<32x128xbf16, #tpu.memory_space<vmem>>, vector<32x128xbf16>,
    return
  }
  func.func @transform_0(%arg0: i32) -> (i32, i32) {
    %c0_i32 = arith.constant 0 : i32
    %c0_i32_0 = arith.constant 0 : i32
    %c0_i32_1 = arith.constant 0 : i32
    return %c0_i32, %c0_i32_0 : i32, i32
  }
  func.func @transform_1(%arg0: i32) -> (i32, i32) {
    %c0_i32 = arith.constant 0 : i32
    %c0_i32_0 = arith.constant 0 : i32
    %c0_i32_1 = arith.constant 0 : i32
    return %c0_i32, %c0_i32_0 : i32, i32
  }
  func.func @transform_2(%arg0: i32) -> (i32, i32) {
    %c0_i32 = arith.constant 0 : i32
    %c0_i32_0 = arith.constant 0 : i32
    %c0_i32_1 = arith.constant 0 : i32
    return %c0_i32, %c0_i32_0 : i32, i32
  }
  func.func @transform_3(%arg0: i32) -> (i32, i32) {
    %c0_i32 = arith.constant 0 : i32
    %c0_i32_0 = arith.constant 0 : i32
    %c0_i32_1 = arith.constant 0 : i32
    return %c0_i32, %c0_i32_0 : i32, i32
  }
}

module attributes {stable_mosaic.version = 11 : i64} {
  func.func @conv_bias_sigmoid_kernel(%arg0: i32, %arg1: memref<8x1024xbf16, #tpu.memory_space<vmem>>, %arg2: memref<1024x128xbf16, #tpu.memory_space<vmem>>, %arg3: memref<8x128xf32, #tpu.memory_space<vmem>>, %arg4: memref<8x128xf32, #tpu.memory_space<vmem>>) attributes {dimension_semantics = [#tpu.dimension_semantics<arbitrary>], iteration_bounds = array<i64: 1>, scalar_prefetch = 0 : i64, scratch_operands = 0 : i64, tpu.core_type = #tpu.core_type<tc>, window_params = [{pipeline_mode = #tpu.pipeline_mode<synchronous>, transform_indices = @transform_0, window_bounds = array<i64: 8, 1024>}, {pipeline_mode = #tpu.pipeline_mode<synchronous>, transform_indices = @transform_1, window_bounds = array<i64: 1024, 128>}, {pipeline_mode = #tpu.pipeline_mode<synchronous>, transform_indices = @transform_2, window_bounds = array<i64: 8, 128>}, {pipeline_mode = #tpu.pipeline_mode<synchronous>, transform_indices = @transform_3, window_bounds = array<i64: 8, 128>}]} {
    %c0 = arith.constant 0 : index
    %c0_0 = arith.constant 0 : index
    %0 = vector.load %arg1[%c0, %c0_0] : memref<8x1024xbf16, #tpu.memory_space<vmem>>, vector<8x1024xbf16>
    %c0_1 = arith.constant 0 : index
    %c0_2 = arith.constant 0 : index
    %1 = vector.load %arg2[%c0_1, %c0_2] : memref<1024x128xbf16, #tpu.memory_space<vmem>>, vector<1024x128xbf16>
    %cst = arith.constant dense<0.000000e+00> : vector<8x128xf32>
    %2 = tpu.matmul %0, %1, %cst {dimension_numbers = #tpu.dot_dimension_numbers<[1], [0], [0], [1], [0, 0, 1, 1], [], []>} : vector<8x1024xbf16>, vector<1024x128xbf16>, vector<8x128xf32> -> vector<8x128xf32>
    %c0_3 = arith.constant 0 : index
    %c0_4 = arith.constant 0 : index
    %3 = vector.load %arg3[%c0_3, %c0_4] : memref<8x128xf32, #tpu.memory_space<vmem>>, vector<1x128xf32>
    %4 = vector.broadcast %3 : vector<1x128xf32> to vector<8x128xf32>
    %5 = arith.addf %2, %4 : vector<8x128xf32>
    %6 = arith.negf %5 : vector<8x128xf32>
    %7 = math.exp %6 : vector<8x128xf32>
    %cst_5 = arith.constant 1.000000e+00 : f32
    %8 = vector.broadcast %cst_5 : f32 to vector<8x128xf32>
    %9 = arith.addf %8, %7 : vector<8x128xf32>
    %10 = arith.divf %8, %9 : vector<8x128xf32>
    %c0_6 = arith.constant 0 : index
    %c0_7 = arith.constant 0 : index
    %11 = vector.load %arg4[%c0_6, %c0_7] : memref<8x128xf32, #tpu.memory_space<vmem>>, vector<8x128xf32>
    tpu.vector_store %arg4[%c0_6, %c0_7], %10 {strides = array<i32>} : memref<8x128xf32, #tpu.memory_space<vmem>>, vector<8x128xf32>,
    return
  }
  func.func @transform_0(%arg0: i32) -> (i32, i32) {
    %c0_i32 = arith.constant 0 : i32
    %c0_i32_0 = arith.constant 0 : i32
    %c0_i32_1 = arith.constant 0 : i32
    return %c0_i32, %c0_i32_0 : i32, i32
  }
  func.func @transform_1(%arg0: i32) -> (i32, i32) {
    %c0_i32 = arith.constant 0 : i32
    %c0_i32_0 = arith.constant 0 : i32
    %c0_i32_1 = arith.constant 0 : i32
    return %c0_i32, %c0_i32_0 : i32, i32
  }
  func.func @transform_2(%arg0: i32) -> (i32, i32) {
    %c0_i32 = arith.constant 0 : i32
    %c0_i32_0 = arith.constant 0 : i32
    %c0_i32_1 = arith.constant 0 : i32
    return %c0_i32, %c0_i32_0 : i32, i32
  }
  func.func @transform_3(%arg0: i32) -> (i32, i32) {
    %c0_i32 = arith.constant 0 : i32
    %c0_i32_0 = arith.constant 0 : i32
    %c0_i32_1 = arith.constant 0 : i32
    return %c0_i32, %c0_i32_0 : i32, i32
  }
}

</mosaic_0001>

<llo_original>
// kernel: discriminator_forward.5
$region0: #{discriminator_forward.5}
  #allocation0 [shape = 'u32[]', space=smem, size = 0x4, offset = 0x4, fixed_abs, tag = 'smem constant byte address 0x4 - core index']
  #allocation1 [shape = 'u32[144,128]{1,0:T(1,128)}', space=vmem, size = 0x12000, scoped, tag = 'internal scratch']
  %s0 = inlined_call_operand.vmem [shape: bf16[2048,128], index: 0, kind: input, shape index: {}]
  %s1 = inlined_call_operand.vmem [shape: bf16[128,128], index: 1, kind: input, shape index: {}]
  %s2 = inlined_call_operand.vmem [shape: f32[8,128], index: 2, kind: input, shape index: {}]
  %s3 = inlined_call_operand.vmem [shape: bf16[2048,128], index: 3, kind: output, shape index: {}]
  %s4 = sld [smem:[#allocation0]]
  $region22: #{discriminator_forward.5} parent=0
    _
  %s6 = ssub.s32 1, %s4
  %s7 = scalar_select 0, %s6, %s4
  // Predicated region
  $region2: #{discriminator_forward.5} parent=0 // pred_check
    _
  $region3: #{discriminator_forward.5} parent=0 // pred_check_branch
    %9 = sbr.rel (0) target = $region5
  $region4: #{discriminator_forward.5} parent=0 // pred_region
    _
  $region5: #{discriminator_forward.5} parent=0 // pred_fallthru
    _
  // Predicated region
  $region6: #{discriminator_forward.5} parent=0 // pred_check
    _
  $region7: #{discriminator_forward.5} parent=0 // pred_check_branch
    %11 = sbr.rel (0) target = $region9
  $region8: #{discriminator_forward.5} parent=0 // pred_region
    _
  $region9: #{discriminator_forward.5} parent=0 // pred_fallthru
    _
  // Predicated region
  $region10: #{discriminator_forward.5} parent=0 // pred_check
    _
  $region11: #{discriminator_forward.5} parent=0 // pred_check_branch
    %13 = sbr.rel (0) target = $region13
  $region12: #{discriminator_forward.5} parent=0 // pred_region
    _
  $region13: #{discriminator_forward.5} parent=0 // pred_fallthru
    _
  %v15 = vld [vmem:[%s0] sm:$0xf]
  %v16 = vld [vmem:[%s0 + $0x4] sm:$0xf]
  %v17 = vld [vmem:[%s0 + $0x8] sm:$0xf]
  %v18 = vld [vmem:[%s0 + $0xc] sm:$0xf]
  %v19 = vld [vmem:[%s0 + $0x10] sm:$0xf]
  %v20 = vld [vmem:[%s0 + $0x14] sm:$0xf]
  %v21 = vld [vmem:[%s0 + $0x18] sm:$0xf]
  %v22 = vld [vmem:[%s0 + $0x1c] sm:$0xf]
  %v23 = vld [vmem:[%s0 + $0x20] sm:$0xf]
  %v24 = vld [vmem:[%s0 + $0x24] sm:$0xf]
  %v25 = vld [vmem:[%s0 + $0x28] sm:$0xf]
  %v26 = vld [vmem:[%s0 + $0x2c] sm:$0xf]
  %v27 = vld [vmem:[%s0 + $0x30] sm:$0xf]
  %v28 = vld [vmem:[%s0 + $0x34] sm:$0xf]
  %v29 = vld [vmem:[%s0 + $0x38] sm:$0xf]
  %v30 = vld [vmem:[%s0 + $0x3c] sm:$0xf]
  %v31 = vld [vmem:[%s0 + $0x40] sm:$0xf]
  %v32 = vld [vmem:[%s0 + $0x44] sm:$0xf]
  %v33 = vld [vmem:[%s0 + $0x48] sm:$0xf]
  %v34 = vld [vmem:[%s0 + $0x4c] sm:$0xf]
  %v35 = vld [vmem:[%s0 + $0x50] sm:$0xf]
  %v36 = vld [vmem:[%s0 + $0x54] sm:$0xf]
  %v37 = vld [vmem:[%s0 + $0x58] sm:$0xf]
  %v38 = vld [vmem:[%s0 + $0x5c] sm:$0xf]
  %v39 = vld [vmem:[%s0 + $0x60] sm:$0xf]
  %v40 = vld [vmem:[%s0 + $0x64] sm:$0xf]
  %v41 = vld [vmem:[%s0 + $0x68] sm:$0xf]
  %v42 = vld [vmem:[%s0 + $0x6c] sm:$0xf]
  %v43 = vld [vmem:[%s0 + $0x70] sm:$0xf]
  %v44 = vld [vmem:[%s0 + $0x74] sm:$0xf]
  %v45 = vld [vmem:[%s0 + $0x78] sm:$0xf]
  %v46 = vld [vmem:[%s0 + $0x7c] sm:$0xf]
  %v47 = vld [vmem:[%s0 + $0x80] sm:$0xf]
  %v48 = vld [vmem:[%s0 + $0x84] sm:$0xf]
  %v49 = vld [vmem:[%s0 + $0x88] sm:$0xf]
  %v50 = vld [vmem:[%s0 + $0x8c] sm:$0xf]
  %v51 = vld [vmem:[%s0 + $0x90] sm:$0xf]
  %v52 = vld [vmem:[%s0 + $0x94] sm:$0xf]
  %v53 = vld [vmem:[%s0 + $0x98] sm:$0xf]
  %v54 = vld [vmem:[%s0 + $0x9c] sm:$0xf]
  %v55 = vld [vmem:[%s0 + $0xa0] sm:$0xf]
  %v56 = vld [vmem:[%s0 + $0xa4] sm:$0xf]
  %v57 = vld [vmem:[%s0 + $0xa8] sm:$0xf]
  %v58 = vld [vmem:[%s0 + $0xac] sm:$0xf]
  %v59 = vld [vmem:[%s0 + $0xb0] sm:$0xf]
  %v60 = vld [vmem:[%s0 + $0xb4] sm:$0xf]
  %v61 = vld [vmem:[%s0 + $0xb8] sm:$0xf]
  %v62 = vld [vmem:[%s0 + $0xbc] sm:$0xf]
  %v63 = vld [vmem:[%s0 + $0xc0] sm:$0xf]
  %v64 = vld [vmem:[%s0 + $0xc4] sm:$0xf]
  %v65 = vld [vmem:[%s0 + $0xc8] sm:$0xf]
  %v66 = vld [vmem:[%s0 + $0xcc] sm:$0xf]
  %v67 = vld [vmem:[%s0 + $0xd0] sm:$0xf]
  %v68 = vld [vmem:[%s0 + $0xd4] sm:$0xf]
  %v69 = vld [vmem:[%s0 + $0xd8] sm:$0xf]
  %v70 = vld [vmem:[%s0 + $0xdc] sm:$0xf]
  %v71 = vld [vmem:[%s0 + $0xe0] sm:$0xf]
  %v72 = vld [vmem:[%s0 + $0xe4] sm:$0xf]
  %v73 = vld [vmem:[%s0 + $0xe8] sm:$0xf]
  %v74 = vld [vmem:[%s0 + $0xec] sm:$0xf]
  %v75 = vld [vmem:[%s0 + $0xf0] sm:$0xf]
  %v76 = vld [vmem:[%s0 + $0xf4] sm:$0xf]
  %v77 = vld [vmem:[%s0 + $0xf8] sm:$0xf]
  %v78 = vld [vmem:[%s0 + $0xfc] sm:$0xf]
  %v79 = vld [vmem:[%s0 + $0x100] sm:$0xf]
  %v80 = vld [vmem:[%s0 + $0x104] sm:$0xf]
  %v81 = vld [vmem:[%s0 + $0x108] sm:$0xf]
  %v82 = vld [vmem:[%s0 + $0x10c] sm:$0xf]
  %v83 = vld [vmem:[%s0 + $0x110] sm:$0xf]
  %v84 = vld [vmem:[%s0 + $0x114] sm:$0xf]
  %v85 = vld [vmem:[%s0 + $0x118] sm:$0xf]
  %v86 = vld [vmem:[%s0 + $0x11c] sm:$0xf]
  %v87 = vld [vmem:[%s0 + $0x120] sm:$0xf]
  %v88 = vld [vmem:[%s0 + $0x124] sm:$0xf]
  %v89 = vld [vmem:[%s0 + $0x128] sm:$0xf]
  %v90 = vld [vmem:[%s0 + $0x12c] sm:$0xf]
  %v91 = vld [vmem:[%s0 + $0x130] sm:$0xf]
  %v92 = vld [vmem:[%s0 + $0x134] sm:$0xf]
  %v93 = vld [vmem:[%s0 + $0x138] sm:$0xf]
  %v94 = vld [vmem:[%s0 + $0x13c] sm:$0xf]
  %v95 = vld [vmem:[%s0 + $0x140] sm:$0xf]
  %v96 = vld [vmem:[%s0 + $0x144] sm:$0xf]
  %v97 = vld [vmem:[%s0 + $0x148] sm:$0xf]
  %v98 = vld [vmem:[%s0 + $0x14c] sm:$0xf]
  %v99 = vld [vmem:[%s0 + $0x150] sm:$0xf]
  %v100 = vld [vmem:[%s0 + $0x154] sm:$0xf]
  %v101 = vld [vmem:[%s0 + $0x158] sm:$0xf]
  %v102 = vld [vmem:[%s0 + $0x15c] sm:$0xf]
  %v103 = vld [vmem:[%s0 + $0x160] sm:$0xf]
  %v104 = vld [vmem:[%s0 + $0x164] sm:$0xf]
  %v105 = vld [vmem:[%s0 + $0x168] sm:$0xf]
  %v106 = vld [vmem:[%s0 + $0x16c] sm:$0xf]
  %v107 = vld [vmem:[%s0 + $0x170] sm:$0xf]
  %v108 = vld [vmem:[%s0 + $0x174] sm:$0xf]
  %v109 = vld [vmem:[%s0 + $0x178] sm:$0xf]
  %v110 = vld [vmem:[%s0 + $0x17c] sm:$0xf]
  %v111 = vld [vmem:[%s0 + $0x180] sm:$0xf]
  %v112 = vld [vmem:[%s0 + $0x184] sm:$0xf]
  %v113 = vld [vmem:[%s0 + $0x188] sm:$0xf]
  %v114 = vld [vmem:[%s0 + $0x18c] sm:$0xf]
  %v115 = vld [vmem:[%s0 + $0x190] sm:$0xf]
  %v116 = vld [vmem:[%s0 + $0x194] sm:$0xf]
  %v117 = vld [vmem:[%s0 + $0x198] sm:$0xf]
  %v118 = vld [vmem:[%s0 + $0x19c] sm:$0xf]
  %v119 = vld [vmem:[%s0 + $0x1a0] sm:$0xf]
  %v120 = vld [vmem:[%s0 + $0x1a4] sm:$0xf]
  %v121 = vld [vmem:[%s0 + $0x1a8] sm:$0xf]
  %v122 = vld [vmem:[%s0 + $0x1ac] sm:$0xf]
  %v123 = vld [vmem:[%s0 + $0x1b0] sm:$0xf]
  %v124 = vld [vmem:[%s0 + $0x1b4] sm:$0xf]
  %v125 = vld [vmem:[%s0 + $0x1b8] sm:$0xf]
  %v126 = vld [vmem:[%s0 + $0x1bc] sm:$0xf]
  %v127 = vld [vmem:[%s0 + $0x1c0] sm:$0xf]
  %v128 = vld [vmem:[%s0 + $0x1c4] sm:$0xf]
  %v129 = vld [vmem:[%s0 + $0x1c8] sm:$0xf]
  %v130 = vld [vmem:[%s0 + $0x1cc] sm:$0xf]
  %v131 = vld [vmem:[%s0 + $0x1d0] sm:$0xf]
  %v132 = vld [vmem:[%s0 + $0x1d4] sm:$0xf]
  %v133 = vld [vmem:[%s0 + $0x1d8] sm:$0xf]
  %v134 = vld [vmem:[%s0 + $0x1dc] sm:$0xf]
  %v135 = vld [vmem:[%s0 + $0x1e0] sm:$0xf]
  %v136 = vld [vmem:[%s0 + $0x1e4] sm:$0xf]
  %v137 = vld [vmem:[%s0 + $0x1e8] sm:$0xf]
  %v138 = vld [vmem:[%s0 + $0x1ec] sm:$0xf]
  %v139 = vld [vmem:[%s0 + $0x1f0] sm:$0xf]
  %v140 = vld [vmem:[%s0 + $0x1f4] sm:$0xf]
  %v141 = vld [vmem:[%s0 + $0x1f8] sm:$0xf]
  %v142 = vld [vmem:[%s0 + $0x1fc] sm:$0xf]
  %v143 = vld [vmem:[%s0 + $0x200] sm:$0xf]
  %v144 = vld [vmem:[%s0 + $0x204] sm:$0xf]
  %v145 = vld [vmem:[%s0 + $0x208] sm:$0xf]
  %v146 = vld [vmem:[%s0 + $0x20c] sm:$0xf]
  %v147 = vld [vmem:[%s0 + $0x210] sm:$0xf]
  %v148 = vld [vmem:[%s0 + $0x214] sm:$0xf]
  %v149 = vld [vmem:[%s0 + $0x218] sm:$0xf]
  %v150 = vld [vmem:[%s0 + $0x21c] sm:$0xf]
  %v151 = vld [vmem:[%s0 + $0x220] sm:$0xf]
  %v152 = vld [vmem:[%s0 + $0x224] sm:$0xf]
  %v153 = vld [vmem:[%s0 + $0x228] sm:$0xf]
  %v154 = vld [vmem:[%s0 + $0x22c] sm:$0xf]
  %v155 = vld [vmem:[%s0 + $0x230] sm:$0xf]
  %v156 = vld [vmem:[%s0 + $0x234] sm:$0xf]
  %v157 = vld [vmem:[%s0 + $0x238] sm:$0xf]
  %v158 = vld [vmem:[%s0 + $0x23c] sm:$0xf]
  %v159 = vld [vmem:[%s0 + $0x240] sm:$0xf]
  %v160 = vld [vmem:[%s0 + $0x244] sm:$0xf]
  %v161 = vld [vmem:[%s0 + $0x248] sm:$0xf]
  %v162 = vld [vmem:[%s0 + $0x24c] sm:$0xf]
  %v163 = vld [vmem:[%s0 + $0x250] sm:$0xf]
  %v164 = vld [vmem:[%s0 + $0x254] sm:$0xf]
  %v165 = vld [vmem:[%s0 + $0x258] sm:$0xf]
  %v166 = vld [vmem:[%s0 + $0x25c] sm:$0xf]
  %v167 = vld [vmem:[%s0 + $0x260] sm:$0xf]
  %v168 = vld [vmem:[%s0 + $0x264] sm:$0xf]
  %v169 = vld [vmem:[%s0 + $0x268] sm:$0xf]
  %v170 = vld [vmem:[%s0 + $0x26c] sm:$0xf]
  %v171 = vld [vmem:[%s0 + $0x270] sm:$0xf]
  %v172 = vld [vmem:[%s0 + $0x274] sm:$0xf]
  %v173 = vld [vmem:[%s0 + $0x278] sm:$0xf]
  %v174 = vld [vmem:[%s0 + $0x27c] sm:$0xf]
  %v175 = vld [vmem:[%s0 + $0x280] sm:$0xf]
  %v176 = vld [vmem:[%s0 + $0x284] sm:$0xf]
  %v177 = vld [vmem:[%s0 + $0x288] sm:$0xf]
  %v178 = vld [vmem:[%s0 + $0x28c] sm:$0xf]
  %v179 = vld [vmem:[%s0 + $0x290] sm:$0xf]
  %v180 = vld [vmem:[%s0 + $0x294] sm:$0xf]
  %v181 = vld [vmem:[%s0 + $0x298] sm:$0xf]
  %v182 = vld [vmem:[%s0 + $0x29c] sm:$0xf]
  %v183 = vld [vmem:[%s0 + $0x2a0] sm:$0xf]
  %v184 = vld [vmem:[%s0 + $0x2a4] sm:$0xf]
  %v185 = vld [vmem:[%s0 + $0x2a8] sm:$0xf]
  %v186 = vld [vmem:[%s0 + $0x2ac] sm:$0xf]
  %v187 = vld [vmem:[%s0 + $0x2b0] sm:$0xf]
  %v188 = vld [vmem:[%s0 + $0x2b4] sm:$0xf]
  %v189 = vld [vmem:[%s0 + $0x2b8] sm:$0xf]
  %v190 = vld [vmem:[%s0 + $0x2bc] sm:$0xf]
  %v191 = vld [vmem:[%s0 + $0x2c0] sm:$0xf]
  %v192 = vld [vmem:[%s0 + $0x2c4] sm:$0xf]
  %v193 = vld [vmem:[%s0 + $0x2c8] sm:$0xf]
  %v194 = vld [vmem:[%s0 + $0x2cc] sm:$0xf]
  %v195 = vld [vmem:[%s0 + $0x2d0] sm:$0xf]
  %v196 = vld [vmem:[%s0 + $0x2d4] sm:$0xf]
  %v197 = vld [vmem:[%s0 + $0x2d8] sm:$0xf]
  %v198 = vld [vmem:[%s0 + $0x2dc] sm:$0xf]
  %v199 = vld [vmem:[%s0 + $0x2e0] sm:$0xf]
  %v200 = vld [vmem:[%s0 + $0x2e4] sm:$0xf]
  %v201 = vld [vmem:[%s0 + $0x2e8] sm:$0xf]
  %v202 = vld [vmem:[%s0 + $0x2ec] sm:$0xf]
  %v203 = vld [vmem:[%s0 + $0x2f0] sm:$0xf]
  %v204 = vld [vmem:[%s0 + $0x2f4] sm:$0xf]
  %v205 = vld [vmem:[%s0 + $0x2f8] sm:$0xf]
  %v206 = vld [vmem:[%s0 + $0x2fc] sm:$0xf]
  %v207 = vld [vmem:[%s0 + $0x300] sm:$0xf]
  %v208 = vld [vmem:[%s0 + $0x304] sm:$0xf]
  %v209 = vld [vmem:[%s0 + $0x308] sm:$0xf]
  %v210 = vld [vmem:[%s0 + $0x30c] sm:$0xf]
  %v211 = vld [vmem:[%s0 + $0x310] sm:$0xf]
  %v212 = vld [vmem:[%s0 + $0x314] sm:$0xf]
  %v213 = vld [vmem:[%s0 + $0x318] sm:$0xf]
  %v214 = vld [vmem:[%s0 + $0x31c] sm:$0xf]
  %v215 = vld [vmem:[%s0 + $0x320] sm:$0xf]
  %v216 = vld [vmem:[%s0 + $0x324] sm:$0xf]
  %v217 = vld [vmem:[%s0 + $0x328] sm:$0xf]
  %v218 = vld [vmem:[%s0 + $0x32c] sm:$0xf]
  %v219 = vld [vmem:[%s0 + $0x330] sm:$0xf]
  %v220 = vld [vmem:[%s0 + $0x334] sm:$0xf]
  %v221 = vld [vmem:[%s0 + $0x338] sm:$0xf]
  %v222 = vld [vmem:[%s0 + $0x33c] sm:$0xf]
  %v223 = vld [vmem:[%s0 + $0x340] sm:$0xf]
  %v224 = vld [vmem:[%s0 + $0x344] sm:$0xf]
  %v225 = vld [vmem:[%s0 + $0x348] sm:$0xf]
  %v226 = vld [vmem:[%s0 + $0x34c] sm:$0xf]
  %v227 = vld [vmem:[%s0 + $0x350] sm:$0xf]
  %v228 = vld [vmem:[%s0 + $0x354] sm:$0xf]
  %v229 = vld [vmem:[%s0 + $0x358] sm:$0xf]
  %v230 = vld [vmem:[%s0 + $0x35c] sm:$0xf]
  %v231 = vld [vmem:[%s0 + $0x360] sm:$0xf]
  %v232 = vld [vmem:[%s0 + $0x364] sm:$0xf]
  %v233 = vld [vmem:[%s0 + $0x368] sm:$0xf]
  %v234 = vld [vmem:[%s0 + $0x36c] sm:$0xf]
  %v235 = vld [vmem:[%s0 + $0x370] sm:$0xf]
  %v236 = vld [vmem:[%s0 + $0x374] sm:$0xf]
  %v237 = vld [vmem:[%s0 + $0x378] sm:$0xf]
  %v238 = vld [vmem:[%s0 + $0x37c] sm:$0xf]
  %v239 = vld [vmem:[%s0 + $0x380] sm:$0xf]
  %v240 = vld [vmem:[%s0 + $0x384] sm:$0xf]
  %v241 = vld [vmem:[%s0 + $0x388] sm:$0xf]
  %v242 = vld [vmem:[%s0 + $0x38c] sm:$0xf]
  %v243 = vld [vmem:[%s0 + $0x390] sm:$0xf]
  %v244 = vld [vmem:[%s0 + $0x394] sm:$0xf]
  %v245 = vld [vmem:[%s0 + $0x398] sm:$0xf]
  %v246 = vld [vmem:[%s0 + $0x39c] sm:$0xf]
  %v247 = vld [vmem:[%s0 + $0x3a0] sm:$0xf]
  %v248 = vld [vmem:[%s0 + $0x3a4] sm:$0xf]
  %v249 = vld [vmem:[%s0 + $0x3a8] sm:$0xf]
  %v250 = vld [vmem:[%s0 + $0x3ac] sm:$0xf]
  %v251 = vld [vmem:[%s0 + $0x3b0] sm:$0xf]
  %v252 = vld [vmem:[%s0 + $0x3b4] sm:$0xf]
  %v253 = vld [vmem:[%s0 + $0x3b8] sm:$0xf]
  %v254 = vld [vmem:[%s0 + $0x3bc] sm:$0xf]
  %v255 = vld [vmem:[%s0 + $0x3c0] sm:$0xf]
  %v256 = vld [vmem:[%s0 + $0x3c4] sm:$0xf]
  %v257 = vld [vmem:[%s0 + $0x3c8] sm:$0xf]
  %v258 = vld [vmem:[%s0 + $0x3cc] sm:$0xf]
  %v259 = vld [vmem:[%s0 + $0x3d0] sm:$0xf]
  %v260 = vld [vmem:[%s0 + $0x3d4] sm:$0xf]
  %v261 = vld [vmem:[%s0 + $0x3d8] sm:$0xf]
  %v262 = vld [vmem:[%s0 + $0x3dc] sm:$0xf]
  %v263 = vld [vmem:[%s0 + $0x3e0] sm:$0xf]
  %v264 = vld [vmem:[%s0 + $0x3e4] sm:$0xf]
  %v265 = vld [vmem:[%s0 + $0x3e8] sm:$0xf]
  %v266 = vld [vmem:[%s0 + $0x3ec] sm:$0xf]
  %v267 = vld [vmem:[%s0 + $0x3f0] sm:$0xf]
  %v268 = vld [vmem:[%s0 + $0x3f4] sm:$0xf]
  %v269 = vld [vmem:[%s0 + $0x3f8] sm:$0xf]
  %v270 = vld [vmem:[%s0 + $0x3fc] sm:$0xf]
  %v271 = vld [vmem:[%s1] sm:$0xf]
  %v272 = vld [vmem:[%s1 + $0x4] sm:$0xf]
  %v273 = vld [vmem:[%s1 + $0x8] sm:$0xf]
  %v274 = vld [vmem:[%s1 + $0xc] sm:$0xf]
  %v275 = vld [vmem:[%s1 + $0x10] sm:$0xf]
  %v276 = vld [vmem:[%s1 + $0x14] sm:$0xf]
  %v277 = vld [vmem:[%s1 + $0x18] sm:$0xf]
  %v278 = vld [vmem:[%s1 + $0x1c] sm:$0xf]
  %v279 = vld [vmem:[%s1 + $0x20] sm:$0xf]
  %v280 = vld [vmem:[%s1 + $0x24] sm:$0xf]
  %v281 = vld [vmem:[%s1 + $0x28] sm:$0xf]
  %v282 = vld [vmem:[%s1 + $0x2c] sm:$0xf]
  %v283 = vld [vmem:[%s1 + $0x30] sm:$0xf]
  %v284 = vld [vmem:[%s1 + $0x34] sm:$0xf]
  %v285 = vld [vmem:[%s1 + $0x38] sm:$0xf]
  %v286 = vld [vmem:[%s1 + $0x3c] sm:$0xf]
  %v543 = vunpack.c.l.b16 %v15
  %v544 = vunpack.c.l.b16 %v16
  %v545 = vunpack.c.l.b16 %v17
  %v546 = vunpack.c.l.b16 %v18
  %v547 = vunpack.c.l.b16 %v19
  %v548 = vunpack.c.l.b16 %v20
  %v549 = vunpack.c.l.b16 %v21
  %v550 = vunpack.c.l.b16 %v22
  %v551 = vunpack.c.l.b16 %v23
  %v552 = vunpack.c.l.b16 %v24
  %v553 = vunpack.c.l.b16 %v25
  %v554 = vunpack.c.l.b16 %v26
  %v555 = vunpack.c.l.b16 %v27
  %v556 = vunpack.c.l.b16 %v28
  %v557 = vunpack.c.l.b16 %v29
  %v558 = vunpack.c.l.b16 %v30
  %v559 = vunpack.c.l.b16 %v31
  %v560 = vunpack.c.l.b16 %v32
  %v561 = vunpack.c.l.b16 %v33
  %v562 = vunpack.c.l.b16 %v34
  %v563 = vunpack.c.l.b16 %v35
  %v564 = vunpack.c.l.b16 %v36
  %v565 = vunpack.c.l.b16 %v37
  %v566 = vunpack.c.l.b16 %v38
  %v567 = vunpack.c.l.b16 %v39
  %v568 = vunpack.c.l.b16 %v40
  %v569 = vunpack.c.l.b16 %v41
  %v570 = vunpack.c.l.b16 %v42
  %v571 = vunpack.c.l.b16 %v43
  %v572 = vunpack.c.l.b16 %v44
  %v573 = vunpack.c.l.b16 %v45
  %v574 = vunpack.c.l.b16 %v46
  %v575 = vunpack.c.l.b16 %v47
  %v576 = vunpack.c.l.b16 %v48
  %v577 = vunpack.c.l.b16 %v49
  %v578 = vunpack.c.l.b16 %v50
  %v579 = vunpack.c.l.b16 %v51
  %v580 = vunpack.c.l.b16 %v52
  %v581 = vunpack.c.l.b16 %v53
  %v582 = vunpack.c.l.b16 %v54
  %v583 = vunpack.c.l.b16 %v55
  %v584 = vunpack.c.l.b16 %v56
  %v585 = vunpack.c.l.b16 %v57
  %v586 = vunpack.c.l.b16 %v58
  %v587 = vunpack.c.l.b16 %v59
  %v588 = vunpack.c.l.b16 %v60
  %v589 = vunpack.c.l.b16 %v61
  %v590 = vunpack.c.l.b16 %v62
  %v591 = vunpack.c.l.b16 %v63
  %v592 = vunpack.c.l.b16 %v64
  %v593 = vunpack.c.l.b16 %v65
  %v594 = vunpack.c.l.b16 %v66
  %v595 = vunpack.c.l.b16 %v67
  %v596 = vunpack.c.l.b16 %v68
  %v597 = vunpack.c.l.b16 %v69
  %v598 = vunpack.c.l.b16 %v70
  %v599 = vunpack.c.l.b16 %v71
  %v600 = vunpack.c.l.b16 %v72
  %v601 = vunpack.c.l.b16 %v73
  %v602 = vunpack.c.l.b16 %v74
  %v603 = vunpack.c.l.b16 %v75
  %v604 = vunpack.c.l.b16 %v76
  %v605 = vunpack.c.l.b16 %v77
  %v606 = vunpack.c.l.b16 %v78
  %v607 = vunpack.c.l.b16 %v79
  %v608 = vunpack.c.l.b16 %v80
  %v609 = vunpack.c.l.b16 %v81
  %v610 = vunpack.c.l.b16 %v82
  %v611 = vunpack.c.l.b16 %v83
  %v612 = vunpack.c.l.b16 %v84
  %v613 = vunpack.c.l.b16 %v85
  %v614 = vunpack.c.l.b16 %v86
  %v615 = vunpack.c.l.b16 %v87
  %v616 = vunpack.c.l.b16 %v88
  %v617 = vunpack.c.l.b16 %v89
  %v618 = vunpack.c.l.b16 %v90
  %v619 = vunpack.c.l.b16 %v91
  %v620 = vunpack.c.l.b16 %v92
  %v621 = vunpack.c.l.b16 %v93
  %v622 = vunpack.c.l.b16 %v94
  %v623 = vunpack.c.l.b16 %v95
  %v624 = vunpack.c.l.b16 %v96
  %v625 = vunpack.c.l.b16 %v97
  %v626 = vunpack.c.l.b16 %v98
  %v627 = vunpack.c.l.b16 %v99
  %v628 = vunpack.c.l.b16 %v100
  %v629 = vunpack.c.l.b16 %v101
  %v630 = vunpack.c.l.b16 %v102
  %v631 = vunpack.c.l.b16 %v103
  %v632 = vunpack.c.l.b16 %v104
  %v633 = vunpack.c.l.b16 %v105
  %v634 = vunpack.c.l.b16 %v106
  %v635 = vunpack.c.l.b16 %v107
  %v636 = vunpack.c.l.b16 %v108
  %v637 = vunpack.c.l.b16 %v109
  %v638 = vunpack.c.l.b16 %v110
  %v639 = vunpack.c.l.b16 %v111
  %v640 = vunpack.c.l.b16 %v112
  %v641 = vunpack.c.l.b16 %v113
  %v642 = vunpack.c.l.b16 %v114
  %v643 = vunpack.c.l.b16 %v115
  %v644 = vunpack.c.l.b16 %v116
  %v645 = vunpack.c.l.b16 %v117
  %v646 = vunpack.c.l.b16 %v118
  %v647 = vunpack.c.l.b16 %v119
  %v648 = vunpack.c.l.b16 %v120
  %v649 = vunpack.c.l.b16 %v121
  %v650 = vunpack.c.l.b16 %v122
  %v651 = vunpack.c.l.b16 %v123
  %v652 = vunpack.c.l.b16 %v124
  %v653 = vunpack.c.l.b16 %v125
  %v654 = vunpack.c.l.b16 %v126
  %v655 = vunpack.c.l.b16 %v127
  %v656 = vunpack.c.l.b16 %v128
  %v657 = vunpack.c.l.b16 %v129
  %v658 = vunpack.c.l.b16 %v130
  %v659 = vunpack.c.l.b16 %v131
  %v660 = vunpack.c.l.b16 %v132
  %v661 = vunpack.c.l.b16 %v133
  %v662 = vunpack.c.l.b16 %v134
  %v663 = vunpack.c.l.b16 %v135
  %v664 = vunpack.c.l.b16 %v136
  %v665 = vunpack.c.l.b16 %v137
  %v666 = vunpack.c.l.b16 %v138
  %v667 = vunpack.c.l.b16 %v139
  %v668 = vunpack.c.l.b16 %v140
  %v669 = vunpack.c.l.b16 %v141
  %v670 = vunpack.c.l.b16 %v142
  %v671 = vunpack.c.l.b16 %v143
  %v672 = vunpack.c.l.b16 %v144
  %v673 = vunpack.c.l.b16 %v145
  %v674 = vunpack.c.l.b16 %v146
  %v675 = vunpack.c.l.b16 %v147
  %v676 = vunpack.c.l.b16 %v148
  %v677 = vunpack.c.l.b16 %v149
  %v678 = vunpack.c.l.b16 %v150
  %v679 = vunpack.c.l.b16 %v151
  %v680 = vunpack.c.l.b16 %v152
  %v681 = vunpack.c.l.b16 %v153
  %v682 = vunpack.c.l.b16 %v154
  %v683 = vunpack.c.l.b16 %v155
  %v684 = vunpack.c.l.b16 %v156
  %v685 = vunpack.c.l.b16 %v157
  %v686 = vunpack.c.l.b16 %v158
  %v687 = vunpack.c.l.b16 %v159
  %v688 = vunpack.c.l.b16 %v160
  %v689 = vunpack.c.l.b16 %v161
  %v690 = vunpack.c.l.b16 %v162
  %v691 = vunpack.c.l.b16 %v163
  %v692 = vunpack.c.l.b16 %v164
  %v693 = vunpack.c.l.b16 %v165
  %v694 = vunpack.c.l.b16 %v166
  %v695 = vunpack.c.l.b16 %v167
  %v696 = vunpack.c.l.b16 %v168
  %v697 = vunpack.c.l.b16 %v169
  %v698 = vunpack.c.l.b16 %v170
  %v699 = vunpack.c.l.b16 %v171
  %v700 = vunpack.c.l.b16 %v172
  %v701 = vunpack.c.l.b16 %v173
  %v702 = vunpack.c.l.b16 %v174
  %v703 = vunpack.c.l.b16 %v175
  %v704 = vunpack.c.l.b16 %v176
  %v705 = vunpack.c.l.b16 %v177
  %v706 = vunpack.c.l.b16 %v178
  %v707 = vunpack.c.l.b16 %v179
  %v708 = vunpack.c.l.b16 %v180
  %v709 = vunpack.c.l.b16 %v181
  %v710 = vunpack.c.l.b16 %v182
  %v711 = vunpack.c.l.b16 %v183
  %v712 = vunpack.c.l.b16 %v184
  %v713 = vunpack.c.l.b16 %v185
  %v714 = vunpack.c.l.b16 %v186
  %v715 = vunpack.c.l.b16 %v187
  %v716 = vunpack.c.l.b16 %v188
  %v717 = vunpack.c.l.b16 %v189
  %v718 = vunpack.c.l.b16 %v190
  %v719 = vunpack.c.l.b16 %v191
  %v720 = vunpack.c.l.b16 %v192
  %v721 = vunpack.c.l.b16 %v193
  %v722 = vunpack.c.l.b16 %v194
  %v723 = vunpack.c.l.b16 %v195
  %v724 = vunpack.c.l.b16 %v196
  %v725 = vunpack.c.l.b16 %v197
  %v726 = vunpack.c.l.b16 %v198
  %v727 = vunpack.c.l.b16 %v199
  %v728 = vunpack.c.l.b16 %v200
  %v729 = vunpack.c.l.b16 %v201
  %v730 = vunpack.c.l.b16 %v202
  %v731 = vunpack.c.l.b16 %v203
  %v732 = vunpack.c.l.b16 %v204
  %v733 = vunpack.c.l.b16 %v205
  %v734 = vunpack.c.l.b16 %v206
  %v735 = vunpack.c.l.b16 %v207
  %v736 = vunpack.c.l.b16 %v208
  %v737 = vunpack.c.l.b16 %v209
  %v738 = vunpack.c.l.b16 %v210
  %v739 = vunpack.c.l.b16 %v211
  %v740 = vunpack.c.l.b16 %v212
  %v741 = vunpack.c.l.b16 %v213
  %v742 = vunpack.c.l.b16 %v214
  %v743 = vunpack.c.l.b16 %v215
  %v744 = vunpack.c.l.b16 %v216
  %v745 = vunpack.c.l.b16 %v217
  %v746 = vunpack.c.l.b16 %v218
  %v747 = vunpack.c.l.b16 %v219
  %v748 = vunpack.c.l.b16 %v220
  %v749 = vunpack.c.l.b16 %v221
  %v750 = vunpack.c.l.b16 %v222
  %v751 = vunpack.c.l.b16 %v223
  %v752 = vunpack.c.l.b16 %v224
  %v753 = vunpack.c.l.b16 %v225
  %v754 = vunpack.c.l.b16 %v226
  %v755 = vunpack.c.l.b16 %v227
  %v756 = vunpack.c.l.b16 %v228
  %v757 = vunpack.c.l.b16 %v229
  %v758 = vunpack.c.l.b16 %v230
  %v759 = vunpack.c.l.b16 %v231
  %v760 = vunpack.c.l.b16 %v232
  %v761 = vunpack.c.l.b16 %v233
  %v762 = vunpack.c.l.b16 %v234
  %v763 = vunpack.c.l.b16 %v235
  %v764 = vunpack.c.l.b16 %v236
  %v765 = vunpack.c.l.b16 %v237
  %v766 = vunpack.c.l.b16 %v238
  %v767 = vunpack.c.l.b16 %v239
  %v768 = vunpack.c.l.b16 %v240
  %v769 = vunpack.c.l.b16 %v241
  %v770 = vunpack.c.l.b16 %v242
  %v771 = vunpack.c.l.b16 %v243
  %v772 = vunpack.c.l.b16 %v244
  %v773 = vunpack.c.l.b16 %v245
  %v774 = vunpack.c.l.b16 %v246
  %v775 = vunpack.c.l.b16 %v247
  %v776 = vunpack.c.l.b16 %v248
  %v777 = vunpack.c.l.b16 %v249
  %v778 = vunpack.c.l.b16 %v250
  %v779 = vunpack.c.l.b16 %v251
  %v780 = vunpack.c.l.b16 %v252
  %v781 = vunpack.c.l.b16 %v253
  %v782 = vunpack.c.l.b16 %v254
  %v783 = vunpack.c.l.b16 %v255
  %v784 = vunpack.c.l.b16 %v256
  %v785 = vunpack.c.l.b16 %v257
  %v786 = vunpack.c.l.b16 %v258
  %v787 = vunpack.c.l.b16 %v259
  %v788 = vunpack.c.l.b16 %v260
  %v789 = vunpack.c.l.b16 %v261
  %v790 = vunpack.c.l.b16 %v262
  %v791 = vunpack.c.l.b16 %v263
  %v792 = vunpack.c.l.b16 %v264
  %v793 = vunpack.c.l.b16 %v265
  %v794 = vunpack.c.l.b16 %v266
  %v795 = vunpack.c.l.b16 %v267
  %v796 = vunpack.c.l.b16 %v268
  %v797 = vunpack.c.l.b16 %v269
  %v798 = vunpack.c.l.b16 %v270
  %v799 = vpack.c.b16 %v544, %v543
  %v800 = vpack.c.b16 %v546, %v545
  %v801 = vpack.c.b16 %v548, %v547
  %v802 = vpack.c.b16 %v550, %v549
  %v803 = vpack.c.b16 %v552, %v551
  %v804 = vpack.c.b16 %v554, %v553
  %v805 = vpack.c.b16 %v556, %v555
  %v806 = vpack.c.b16 %v558, %v557
  %v807 = vpack.c.b16 %v560, %v559
  %v808 = vpack.c.b16 %v562, %v561
  %v809 = vpack.c.b16 %v564, %v563
  %v810 = vpack.c.b16 %v566, %v565
  %v811 = vpack.c.b16 %v568, %v567
  %v812 = vpack.c.b16 %v570, %v569
  %v813 = vpack.c.b16 %v572, %v571
  %v814 = vpack.c.b16 %v574, %v573
  %v815 = vpack.c.b16 %v576, %v575
  %v816 = vpack.c.b16 %v578, %v577
  %v817 = vpack.c.b16 %v580, %v579
  %v818 = vpack.c.b16 %v582, %v581
  %v819 = vpack.c.b16 %v584, %v583
  %v820 = vpack.c.b16 %v586, %v585
  %v821 = vpack.c.b16 %v588, %v587
  %v822 = vpack.c.b16 %v590, %v589
  %v823 = vpack.c.b16 %v592, %v591
  %v824 = vpack.c.b16 %v594, %v593
  %v825 = vpack.c.b16 %v596, %v595
  %v826 = vpack.c.b16 %v598, %v597
  %v827 = vpack.c.b16 %v600, %v599
  %v828 = vpack.c.b16 %v602, %v601
  %v829 = vpack.c.b16 %v604, %v603
  %v830 = vpack.c.b16 %v606, %v605
  %v831 = vpack.c.b16 %v608, %v607
  %v832 = vpack.c.b16 %v610, %v609
  %v833 = vpack.c.b16 %v612, %v611
  %v834 = vpack.c.b16 %v614, %v613
  %v835 = vpack.c.b16 %v616, %v615
  %v836 = vpack.c.b16 %v618, %v617
  %v837 = vpack.c.b16 %v620, %v619
  %v838 = vpack.c.b16 %v622, %v621
  %v839 = vpack.c.b16 %v624, %v623
  %v840 = vpack.c.b16 %v626, %v625
  %v841 = vpack.c.b16 %v628, %v627
  %v842 = vpack.c.b16 %v630, %v629
  %v843 = vpack.c.b16 %v632, %v631
  %v844 = vpack.c.b16 %v634, %v633
  %v845 = vpack.c.b16 %v636, %v635
  %v846 = vpack.c.b16 %v638, %v637
  %v847 = vpack.c.b16 %v640, %v639
  %v848 = vpack.c.b16 %v642, %v641
  %v849 = vpack.c.b16 %v644, %v643
  %v850 = vpack.c.b16 %v646, %v645
  %v851 = vpack.c.b16 %v648, %v647
  %v852 = vpack.c.b16 %v650, %v649
  %v853 = vpack.c.b16 %v652, %v651
  %v854 = vpack.c.b16 %v654, %v653
  %v855 = vpack.c.b16 %v656, %v655
  %v856 = vpack.c.b16 %v658, %v657
  %v857 = vpack.c.b16 %v660, %v659
  %v858 = vpack.c.b16 %v662, %v661
  %v859 = vpack.c.b16 %v664, %v663
  %v860 = vpack.c.b16 %v666, %v665
  %v861 = vpack.c.b16 %v668, %v667
  %v862 = vpack.c.b16 %v670, %v669
  %v863 = vpack.c.b16 %v672, %v671
  %v864 = vpack.c.b16 %v674, %v673
  %v865 = vpack.c.b16 %v676, %v675
  %v866 = vpack.c.b16 %v678, %v677
  %v867 = vpack.c.b16 %v680, %v679
  %v868 = vpack.c.b16 %v682, %v681
  %v869 = vpack.c.b16 %v684, %v683
  %v870 = vpack.c.b16 %v686, %v685
  %v871 = vpack.c.b16 %v688, %v687
  %v872 = vpack.c.b16 %v690, %v689
  %v873 = vpack.c.b16 %v692, %v691
  %v874 = vpack.c.b16 %v694, %v693
  %v875 = vpack.c.b16 %v696, %v695
  %v876 = vpack.c.b16 %v698, %v697
  %v877 = vpack.c.b16 %v700, %v699
  %v878 = vpack.c.b16 %v702, %v701
  %v879 = vpack.c.b16 %v704, %v703
  %v880 = vpack.c.b16 %v706, %v705
  %v881 = vpack.c.b16 %v708, %v707
  %v882 = vpack.c.b16 %v710, %v709
  %v883 = vpack.c.b16 %v712, %v711
  %v884 = vpack.c.b16 %v714, %v713
  %v885 = vpack.c.b16 %v716, %v715
  %v886 = vpack.c.b16 %v718, %v717
  %v887 = vpack.c.b16 %v720, %v719
  %v888 = vpack.c.b16 %v722, %v721
  %v889 = vpack.c.b16 %v724, %v723
  %v890 = vpack.c.b16 %v726, %v725
  %v891 = vpack.c.b16 %v728, %v727
  %v892 = vpack.c.b16 %v730, %v729
  %v893 = vpack.c.b16 %v732, %v731
  %v894 = vpack.c.b16 %v734, %v733
  %v895 = vpack.c.b16 %v736, %v735
  %v896 = vpack.c.b16 %v738, %v737
  %v897 = vpack.c.b16 %v740, %v739
  %v898 = vpack.c.b16 %v742, %v741
  %v899 = vpack.c.b16 %v744, %v743
  %v900 = vpack.c.b16 %v746, %v745
  %v901 = vpack.c.b16 %v748, %v747
  %v902 = vpack.c.b16 %v750, %v749
  %v903 = vpack.c.b16 %v752, %v751
  %v904 = vpack.c.b16 %v754, %v753
  %v905 = vpack.c.b16 %v756, %v755
  %v906 = vpack.c.b16 %v758, %v757
  %v907 = vpack.c.b16 %v760, %v759
  %v908 = vpack.c.b16 %v762, %v761
  %v909 = vpack.c.b16 %v764, %v763
  %v910 = vpack.c.b16 %v766, %v765
  %v911 = vpack.c.b16 %v768, %v767
  %v912 = vpack.c.b16 %v770, %v769
  %v913 = vpack.c.b16 %v772, %v771
  %v914 = vpack.c.b16 %v774, %v773
  %v915 = vpack.c.b16 %v776, %v775
  %v916 = vpack.c.b16 %v778, %v777
  %v917 = vpack.c.b16 %v780, %v779
  %v918 = vpack.c.b16 %v782, %v781
  %v919 = vpack.c.b16 %v784, %v783
  %v920 = vpack.c.b16 %v786, %v785
  %v921 = vpack.c.b16 %v788, %v787
  %v922 = vpack.c.b16 %v790, %v789
  %v923 = vpack.c.b16 %v792, %v791
  %v924 = vpack.c.b16 %v794, %v793
  %v925 = vpack.c.b16 %v796, %v795
  %v926 = vpack.c.b16 %v798, %v797
  %v1071 = vunpack.c.l.b16 %v271
  %v1072 = vunpack.c.l.b16 %v272
  %v1073 = vunpack.c.l.b16 %v273
  %v1074 = vunpack.c.l.b16 %v274
  %v1075 = vunpack.c.l.b16 %v275
  %v1076 = vunpack.c.l.b16 %v276
  %v1077 = vunpack.c.l.b16 %v277
  %v1078 = vunpack.c.l.b16 %v278
  %v1079 = vunpack.c.l.b16 %v279
  %v1080 = vunpack.c.l.b16 %v280
  %v1081 = vunpack.c.l.b16 %v281
  %v1082 = vunpack.c.l.b16 %v282
  %v1083 = vunpack.c.l.b16 %v283
  %v1084 = vunpack.c.l.b16 %v284
  %v1085 = vunpack.c.l.b16 %v285
  %v1086 = vunpack.c.l.b16 %v286
  %v1087 = vpack.c.b16 %v1072, %v1071
  %v1088 = vpack.c.b16 %v1074, %v1073
  %v1089 = vpack.c.b16 %v1076, %v1075
  %v1090 = vpack.c.b16 %v1078, %v1077
  %v1091 = vpack.c.b16 %v1080, %v1079
  %v1092 = vpack.c.b16 %v1082, %v1081
  %v1093 = vpack.c.b16 %v1084, %v1083
  %v1094 = vpack.c.b16 %v1086, %v1085
  %1103 = vmatprep.subr.bf16.mxu0 0
  %1104 = vmatpush1.bf16.msra.mxu0 %v1094
  %1105 = vmatprep.subr.bf16.mxu0 0
  %1106 = vmatpush1.bf16.msra.mxu0 %v1093
  %1107 = vmatprep.subr.bf16.mxu0 0
  %1108 = vmatpush1.bf16.msra.mxu0 %v1092
  %1109 = vmatprep.subr.bf16.mxu0 0
  %1110 = vmatpush1.bf16.msra.mxu0 %v1091
  %1111 = vmatprep.subr.bf16.mxu0 0
  %1112 = vmatpush1.bf16.msra.mxu0 %v1090
  %1113 = vmatprep.subr.bf16.mxu0 0
  %1114 = vmatpush1.bf16.msra.mxu0 %v1089
  %1115 = vmatprep.subr.bf16.mxu0 0
  %1116 = vmatpush1.bf16.msra.mxu0 %v1088
  %1117 = vmatprep.subr.bf16.mxu0 0
  %1118 = vmatpush1.bf16.msra.mxu0 %v1087
  %1119 = vmatprep.subr.bf16.mxu0 0
  %1120 = vmatpush2.bf16.msra.mxu0 0
  %1121 = vmatprep.subr.bf16.mxu0 0
  %1122 = vmatpush2.bf16.msra.mxu0 0
  %1123 = vmatprep.subr.bf16.mxu0 0
  %1124 = vmatpush2.bf16.msra.mxu0 0
  %1125 = vmatprep.subr.bf16.mxu0 0
  %1126 = vmatpush2.bf16.msra.mxu0 0
  %1127 = vmatprep.subr.bf16.mxu0 0
  %1128 = vmatpush2.bf16.msra.mxu0 0
  %1129 = vmatprep.subr.bf16.mxu0 0
  %1130 = vmatpush2.bf16.msra.mxu0 0
  %1131 = vmatprep.subr.bf16.mxu0 0
  %1132 = vmatpush2.bf16.msra.mxu0 0
  %1133 = vmatprep.subr.bf16.mxu0 0
  %1134 = vmatpush2.bf16.msra.mxu0 0
  %1135 = vmatprep.mubr.bf16.mxu0 0
  %1136 = vmatmul.mubr.bf16.gmra.mxu0 %v799
  %v1137 = vpop.f32.mrf.mxu0
  %v1138 = vadd.f32 0.0, %v1137
  %v1139 = vpop.f32.mrf.mxu0
  %v1140 = vpop.f32.mrf.mxu0
  %v1141 = vadd.f32 0.0, %v1140
  %v1142 = vpop.f32.mrf.mxu0
  %1143 = vmatprep.mubr.bf16.mxu0 0
  %1144 = vmatmul.mubr.bf16.gmra.mxu0 %v800
  %v1145 = vpop.f32.mrf.mxu0
  %v1146 = vadd.f32 0.0, %v1145
  %v1147 = vpop.f32.mrf.mxu0
  %v1148 = vpop.f32.mrf.mxu0
  %v1149 = vadd.f32 0.0, %v1148
  %v1150 = vpop.f32.mrf.mxu0
  %1151 = vmatprep.mubr.bf16.mxu0 0
  %1152 = vmatmul.mubr.bf16.gmra.mxu0 %v801
  %v1153 = vpop.f32.mrf.mxu0
  %v1154 = vadd.f32 0.0, %v1153
  %v1155 = vpop.f32.mrf.mxu0
  %v1156 = vpop.f32.mrf.mxu0
  %v1157 = vadd.f32 0.0, %v1156
  %v1158 = vpop.f32.mrf.mxu0
  %1159 = vmatprep.mubr.bf16.mxu0 0
  %1160 = vmatmul.mubr.bf16.gmra.mxu0 %v802
  %v1161 = vpop.f32.mrf.mxu0
  %v1162 = vadd.f32 0.0, %v1161
  %v1163 = vpop.f32.mrf.mxu0
  %v1164 = vpop.f32.mrf.mxu0
  %v1165 = vadd.f32 0.0, %v1164
  %v1166 = vpop.f32.mrf.mxu0
  %1167 = vmatprep.mubr.bf16.mxu0 0
  %1168 = vmatmul.mubr.bf16.gmra.mxu0 %v803
  %v1169 = vpop.f32.mrf.mxu0
  %v1170 = vadd.f32 0.0, %v1169
  %v1171 = vpop.f32.mrf.mxu0
  %v1172 = vpop.f32.mrf.mxu0
  %v1173 = vadd.f32 0.0, %v1172
  %v1174 = vpop.f32.mrf.mxu0
  %1175 = vmatprep.mubr.bf16.mxu0 0
  %1176 = vmatmul.mubr.bf16.gmra.mxu0 %v804
  %v1177 = vpop.f32.mrf.mxu0
  %v1178 = vadd.f32 0.0, %v1177
  %v1179 = vpop.f32.mrf.mxu0
  %v1180 = vpop.f32.mrf.mxu0
  %v1181 = vadd.f32 0.0, %v1180
  %v1182 = vpop.f32.mrf.mxu0
  %1183 = vmatprep.mubr.bf16.mxu0 0
  %1184 = vmatmul.mubr.bf16.gmra.mxu0 %v805
  %v1185 = vpop.f32.mrf.mxu0
  %v1186 = vadd.f32 0.0, %v1185
  %v1187 = vpop.f32.mrf.mxu0
  %v1188 = vpop.f32.mrf.mxu0
  %v1189 = vadd.f32 0.0, %v1188
  %v1190 = vpop.f32.mrf.mxu0
  %1191 = vmatprep.mubr.bf16.mxu0 0
  %1192 = vmatmul.mubr.bf16.gmra.mxu0 %v806
  %v1193 = vpop.f32.mrf.mxu0
  %v1194 = vadd.f32 0.0, %v1193
  %v1195 = vpop.f32.mrf.mxu0
  %v1196 = vpop.f32.mrf.mxu0
  %v1197 = vadd.f32 0.0, %v1196
  %v1198 = vpop.f32.mrf.mxu0
  %1199 = vmatprep.mubr.bf16.mxu0 0
  %1200 = vmatmul.mubr.bf16.gmra.mxu0 %v807
  %v1201 = vpop.f32.mrf.mxu0
  %v1202 = vadd.f32 0.0, %v1201
  %v1203 = vpop.f32.mrf.mxu0
  %v1204 = vpop.f32.mrf.mxu0
  %v1205 = vadd.f32 0.0, %v1204
  %v1206 = vpop.f32.mrf.mxu0
  %1207 = vmatprep.mubr.bf16.mxu0 0
  %1208 = vmatmul.mubr.bf16.gmra.mxu0 %v808
  %v1209 = vpop.f32.mrf.mxu0
  %v1210 = vadd.f32 0.0, %v1209
  %v1211 = vpop.f32.mrf.mxu0
  %v1212 = vpop.f32.mrf.mxu0
  %v1213 = vadd.f32 0.0, %v1212
  %v1214 = vpop.f32.mrf.mxu0
  %1215 = vmatprep.mubr.bf16.mxu0 0
  %1216 = vmatmul.mubr.bf16.gmra.mxu0 %v809
  %v1217 = vpop.f32.mrf.mxu0
  %v1218 = vadd.f32 0.0, %v1217
  %v1219 = vpop.f32.mrf.mxu0
  %v1220 = vpop.f32.mrf.mxu0
  %v1221 = vadd.f32 0.0, %v1220
  %v1222 = vpop.f32.mrf.mxu0
  %1223 = vmatprep.mubr.bf16.mxu0 0
  %1224 = vmatmul.mubr.bf16.gmra.mxu0 %v810
  %v1225 = vpop.f32.mrf.mxu0
  %v1226 = vadd.f32 0.0, %v1225
  %v1227 = vpop.f32.mrf.mxu0
  %v1228 = vpop.f32.mrf.mxu0
  %v1229 = vadd.f32 0.0, %v1228
  %v1230 = vpop.f32.mrf.mxu0
  %1231 = vmatprep.mubr.bf16.mxu0 0
  %1232 = vmatmul.mubr.bf16.gmra.mxu0 %v811
  %v1233 = vpop.f32.mrf.mxu0
  %v1234 = vadd.f32 0.0, %v1233
  %v1235 = vpop.f32.mrf.mxu0
  %v1236 = vpop.f32.mrf.mxu0
  %v1237 = vadd.f32 0.0, %v1236
  %v1238 = vpop.f32.mrf.mxu0
  %1239 = vmatprep.mubr.bf16.mxu0 0
  %1240 = vmatmul.mubr.bf16.gmra.mxu0 %v812
  %v1241 = vpop.f32.mrf.mxu0
  %v1242 = vadd.f32 0.0, %v1241
  %v1243 = vpop.f32.mrf.mxu0
  %v1244 = vpop.f32.mrf.mxu0
  %v1245 = vadd.f32 0.0, %v1244
  %v1246 = vpop.f32.mrf.mxu0
  %1247 = vmatprep.mubr.bf16.mxu0 0
  %1248 = vmatmul.mubr.bf16.gmra.mxu0 %v813
  %v1249 = vpop.f32.mrf.mxu0
  %v1250 = vadd.f32 0.0, %v1249
  %v1251 = vpop.f32.mrf.mxu0
  %v1252 = vpop.f32.mrf.mxu0
  %v1253 = vadd.f32 0.0, %v1252
  %v1254 = vpop.f32.mrf.mxu0
  %1255 = vmatprep.mubr.bf16.mxu0 0
  %1256 = vmatmul.mubr.bf16.gmra.mxu0 %v814
  %v1257 = vpop.f32.mrf.mxu0
  %v1258 = vadd.f32 0.0, %v1257
  %v1259 = vpop.f32.mrf.mxu0
  %v1260 = vpop.f32.mrf.mxu0
  %v1261 = vadd.f32 0.0, %v1260
  %v1262 = vpop.f32.mrf.mxu0
  %1263 = vmatprep.mubr.bf16.mxu0 0
  %1264 = vmatmul.mubr.bf16.gmra.mxu0 %v815
  %v1265 = vpop.f32.mrf.mxu0
  %v1266 = vadd.f32 0.0, %v1265
  %v1267 = vpop.f32.mrf.mxu0
  %v1268 = vpop.f32.mrf.mxu0
  %v1269 = vadd.f32 0.0, %v1268
  %v1270 = vpop.f32.mrf.mxu0
  %1271 = vmatprep.mubr.bf16.mxu0 0
  %1272 = vmatmul.mubr.bf16.gmra.mxu0 %v816
  %v1273 = vpop.f32.mrf.mxu0
  %v1274 = vadd.f32 0.0, %v1273
  %v1275 = vpop.f32.mrf.mxu0
  %v1276 = vpop.f32.mrf.mxu0
  %v1277 = vadd.f32 0.0, %v1276
  %v1278 = vpop.f32.mrf.mxu0
  %1279 = vmatprep.mubr.bf16.mxu0 0
  %1280 = vmatmul.mubr.bf16.gmra.mxu0 %v817
  %v1281 = vpop.f32.mrf.mxu0
  %v1282 = vadd.f32 0.0, %v1281
  %v1283 = vpop.f32.mrf.mxu0
  %v1284 = vpop.f32.mrf.mxu0
  %v1285 = vadd.f32 0.0, %v1284
  %v1286 = vpop.f32.mrf.mxu0
  %1287 = vmatprep.mubr.bf16.mxu0 0
  %1288 = vmatmul.mubr.bf16.gmra.mxu0 %v818
  %v1289 = vpop.f32.mrf.mxu0
  %v1290 = vadd.f32 0.0, %v1289
  %v1291 = vpop.f32.mrf.mxu0
  %v1292 = vpop.f32.mrf.mxu0
  %v1293 = vadd.f32 0.0, %v1292
  %v1294 = vpop.f32.mrf.mxu0
  %1295 = vmatprep.mubr.bf16.mxu0 0
  %1296 = vmatmul.mubr.bf16.gmra.mxu0 %v819
  %v1297 = vpop.f32.mrf.mxu0
  %v1298 = vadd.f32 0.0, %v1297
  %v1299 = vpop.f32.mrf.mxu0
  %v1300 = vpop.f32.mrf.mxu0
  %v1301 = vadd.f32 0.0, %v1300
  %v1302 = vpop.f32.mrf.mxu0
  %1303 = vmatprep.mubr.bf16.mxu0 0
  %1304 = vmatmul.mubr.bf16.gmra.mxu0 %v820
  %v1305 = vpop.f32.mrf.mxu0
  %v1306 = vadd.f32 0.0, %v1305
  %v1307 = vpop.f32.mrf.mxu0
  %v1308 = vpop.f32.mrf.mxu0
  %v1309 = vadd.f32 0.0, %v1308
  %v1310 = vpop.f32.mrf.mxu0
  %1311 = vmatprep.mubr.bf16.mxu0 0
  %1312 = vmatmul.mubr.bf16.gmra.mxu0 %v821
  %v1313 = vpop.f32.mrf.mxu0
  %v1314 = vadd.f32 0.0, %v1313
  %v1315 = vpop.f32.mrf.mxu0
  %v1316 = vpop.f32.mrf.mxu0
  %v1317 = vadd.f32 0.0, %v1316
  %v1318 = vpop.f32.mrf.mxu0
  %1319 = vmatprep.mubr.bf16.mxu0 0
  %1320 = vmatmul.mubr.bf16.gmra.mxu0 %v822
  %v1321 = vpop.f32.mrf.mxu0
  %v1322 = vadd.f32 0.0, %v1321
  %v1323 = vpop.f32.mrf.mxu0
  %v1324 = vpop.f32.mrf.mxu0
  %v1325 = vadd.f32 0.0, %v1324
  %v1326 = vpop.f32.mrf.mxu0
  %1327 = vmatprep.mubr.bf16.mxu0 0
  %1328 = vmatmul.mubr.bf16.gmra.mxu0 %v823
  %v1329 = vpop.f32.mrf.mxu0
  %v1330 = vadd.f32 0.0, %v1329
  %v1331 = vpop.f32.mrf.mxu0
  %v1332 = vpop.f32.mrf.mxu0
  %v1333 = vadd.f32 0.0, %v1332
  %v1334 = vpop.f32.mrf.mxu0
  %1335 = vmatprep.mubr.bf16.mxu0 0
  %1336 = vmatmul.mubr.bf16.gmra.mxu0 %v824
  %v1337 = vpop.f32.mrf.mxu0
  %v1338 = vadd.f32 0.0, %v1337
  %v1339 = vpop.f32.mrf.mxu0
  %v1340 = vpop.f32.mrf.mxu0
  %v1341 = vadd.f32 0.0, %v1340
  %v1342 = vpop.f32.mrf.mxu0
  %1343 = vmatprep.mubr.bf16.mxu0 0
  %1344 = vmatmul.mubr.bf16.gmra.mxu0 %v825
  %v1345 = vpop.f32.mrf.mxu0
  %v1346 = vadd.f32 0.0, %v1345
  %v1347 = vpop.f32.mrf.mxu0
  %v1348 = vpop.f32.mrf.mxu0
  %v1349 = vadd.f32 0.0, %v1348
  %v1350 = vpop.f32.mrf.mxu0
  %1351 = vmatprep.mubr.bf16.mxu0 0
  %1352 = vmatmul.mubr.bf16.gmra.mxu0 %v826
  %v1353 = vpop.f32.mrf.mxu0
  %v1354 = vadd.f32 0.0, %v1353
  %v1355 = vpop.f32.mrf.mxu0
  %v1356 = vpop.f32.mrf.mxu0
  %v1357 = vadd.f32 0.0, %v1356
  %v1358 = vpop.f32.mrf.mxu0
  %1359 = vmatprep.mubr.bf16.mxu0 0
  %1360 = vmatmul.mubr.bf16.gmra.mxu0 %v827
  %v1361 = vpop.f32.mrf.mxu0
  %v1362 = vadd.f32 0.0, %v1361
  %v1363 = vpop.f32.mrf.mxu0
  %v1364 = vpop.f32.mrf.mxu0
  %v1365 = vadd.f32 0.0, %v1364
  %v1366 = vpop.f32.mrf.mxu0
  %1367 = vmatprep.mubr.bf16.mxu0 0
  %1368 = vmatmul.mubr.bf16.gmra.mxu0 %v828
  %v1369 = vpop.f32.mrf.mxu0
  %v1370 = vadd.f32 0.0, %v1369
  %v1371 = vpop.f32.mrf.mxu0
  %v1372 = vpop.f32.mrf.mxu0
  %v1373 = vadd.f32 0.0, %v1372
  %v1374 = vpop.f32.mrf.mxu0
  %1375 = vmatprep.mubr.bf16.mxu0 0
  %1376 = vmatmul.mubr.bf16.gmra.mxu0 %v829
  %v1377 = vpop.f32.mrf.mxu0
  %v1378 = vadd.f32 0.0, %v1377
  %v1379 = vpop.f32.mrf.mxu0
  %v1380 = vpop.f32.mrf.mxu0
  %v1381 = vadd.f32 0.0, %v1380
  %v1382 = vpop.f32.mrf.mxu0
  %1383 = vmatprep.mubr.bf16.mxu0 0
  %1384 = vmatmul.mubr.bf16.gmra.mxu0 %v830
  %v1385 = vpop.f32.mrf.mxu0
  %v1386 = vadd.f32 0.0, %v1385
  %v1387 = vpop.f32.mrf.mxu0
  %v1388 = vpop.f32.mrf.mxu0
  %v1389 = vadd.f32 0.0, %v1388
  %v1390 = vpop.f32.mrf.mxu0
  %1391 = vmatprep.mubr.bf16.mxu0 0
  %1392 = vmatmul.mubr.bf16.gmra.mxu0 %v831
  %v1393 = vpop.f32.mrf.mxu0
  %v1394 = vadd.f32 0.0, %v1393
  %v1395 = vpop.f32.mrf.mxu0
  %v1396 = vpop.f32.mrf.mxu0
  %v1397 = vadd.f32 0.0, %v1396
  %v1398 = vpop.f32.mrf.mxu0
  %1399 = vmatprep.mubr.bf16.mxu0 0
  %1400 = vmatmul.mubr.bf16.gmra.mxu0 %v832
  %v1401 = vpop.f32.mrf.mxu0
  %v1402 = vadd.f32 0.0, %v1401
  %v1403 = vpop.f32.mrf.mxu0
  %v1404 = vpop.f32.mrf.mxu0
  %v1405 = vadd.f32 0.0, %v1404
  %v1406 = vpop.f32.mrf.mxu0
  %1407 = vmatprep.mubr.bf16.mxu0 0
  %1408 = vmatmul.mubr.bf16.gmra.mxu0 %v833
  %v1409 = vpop.f32.mrf.mxu0
  %v1410 = vadd.f32 0.0, %v1409
  %v1411 = vpop.f32.mrf.mxu0
  %v1412 = vpop.f32.mrf.mxu0
  %v1413 = vadd.f32 0.0, %v1412
  %v1414 = vpop.f32.mrf.mxu0
  %1415 = vmatprep.mubr.bf16.mxu0 0
  %1416 = vmatmul.mubr.bf16.gmra.mxu0 %v834
  %v1417 = vpop.f32.mrf.mxu0
  %v1418 = vadd.f32 0.0, %v1417
  %v1419 = vpop.f32.mrf.mxu0
  %v1420 = vpop.f32.mrf.mxu0
  %v1421 = vadd.f32 0.0, %v1420
  %v1422 = vpop.f32.mrf.mxu0
  %1423 = vmatprep.mubr.bf16.mxu0 0
  %1424 = vmatmul.mubr.bf16.gmra.mxu0 %v835
  %v1425 = vpop.f32.mrf.mxu0
  %v1426 = vadd.f32 0.0, %v1425
  %v1427 = vpop.f32.mrf.mxu0
  %v1428 = vpop.f32.mrf.mxu0
  %v1429 = vadd.f32 0.0, %v1428
  %v1430 = vpop.f32.mrf.mxu0
  %1431 = vmatprep.mubr.bf16.mxu0 0
  %1432 = vmatmul.mubr.bf16.gmra.mxu0 %v836
  %v1433 = vpop.f32.mrf.mxu0
  %v1434 = vadd.f32 0.0, %v1433
  %v1435 = vpop.f32.mrf.mxu0
  %v1436 = vpop.f32.mrf.mxu0
  %v1437 = vadd.f32 0.0, %v1436
  %v1438 = vpop.f32.mrf.mxu0
  %1439 = vmatprep.mubr.bf16.mxu0 0
  %1440 = vmatmul.mubr.bf16.gmra.mxu0 %v837
  %v1441 = vpop.f32.mrf.mxu0
  %v1442 = vadd.f32 0.0, %v1441
  %v1443 = vpop.f32.mrf.mxu0
  %v1444 = vpop.f32.mrf.mxu0
  %v1445 = vadd.f32 0.0, %v1444
  %v1446 = vpop.f32.mrf.mxu0
  %1447 = vmatprep.mubr.bf16.mxu0 0
  %1448 = vmatmul.mubr.bf16.gmra.mxu0 %v838
  %v1449 = vpop.f32.mrf.mxu0
  %v1450 = vadd.f32 0.0, %v1449
  %v1451 = vpop.f32.mrf.mxu0
  %v1452 = vpop.f32.mrf.mxu0
  %v1453 = vadd.f32 0.0, %v1452
  %v1454 = vpop.f32.mrf.mxu0
  %1455 = vmatprep.mubr.bf16.mxu0 0
  %1456 = vmatmul.mubr.bf16.gmra.mxu0 %v839
  %v1457 = vpop.f32.mrf.mxu0
  %v1458 = vadd.f32 0.0, %v1457
  %v1459 = vpop.f32.mrf.mxu0
  %v1460 = vpop.f32.mrf.mxu0
  %v1461 = vadd.f32 0.0, %v1460
  %v1462 = vpop.f32.mrf.mxu0
  %1463 = vmatprep.mubr.bf16.mxu0 0
  %1464 = vmatmul.mubr.bf16.gmra.mxu0 %v840
  %v1465 = vpop.f32.mrf.mxu0
  %v1466 = vadd.f32 0.0, %v1465
  %v1467 = vpop.f32.mrf.mxu0
  %v1468 = vpop.f32.mrf.mxu0
  %v1469 = vadd.f32 0.0, %v1468
  %v1470 = vpop.f32.mrf.mxu0
  %1471 = vmatprep.mubr.bf16.mxu0 0
  %1472 = vmatmul.mubr.bf16.gmra.mxu0 %v841
  %v1473 = vpop.f32.mrf.mxu0
  %v1474 = vadd.f32 0.0, %v1473
  %v1475 = vpop.f32.mrf.mxu0
  %v1476 = vpop.f32.mrf.mxu0
  %v1477 = vadd.f32 0.0, %v1476
  %v1478 = vpop.f32.mrf.mxu0
  %1479 = vmatprep.mubr.bf16.mxu0 0
  %1480 = vmatmul.mubr.bf16.gmra.mxu0 %v842
  %v1481 = vpop.f32.mrf.mxu0
  %v1482 = vadd.f32 0.0, %v1481
  %v1483 = vpop.f32.mrf.mxu0
  %v1484 = vpop.f32.mrf.mxu0
  %v1485 = vadd.f32 0.0, %v1484
  %v1486 = vpop.f32.mrf.mxu0
  %1487 = vmatprep.mubr.bf16.mxu0 0
  %1488 = vmatmul.mubr.bf16.gmra.mxu0 %v843
  %v1489 = vpop.f32.mrf.mxu0
  %v1490 = vadd.f32 0.0, %v1489
  %v1491 = vpop.f32.mrf.mxu0
  %v1492 = vpop.f32.mrf.mxu0
  %v1493 = vadd.f32 0.0, %v1492
  %v1494 = vpop.f32.mrf.mxu0
  %1495 = vmatprep.mubr.bf16.mxu0 0
  %1496 = vmatmul.mubr.bf16.gmra.mxu0 %v844
  %v1497 = vpop.f32.mrf.mxu0
  %v1498 = vadd.f32 0.0, %v1497
  %v1499 = vpop.f32.mrf.mxu0
  %v1500 = vpop.f32.mrf.mxu0
  %v1501 = vadd.f32 0.0, %v1500
  %v1502 = vpop.f32.mrf.mxu0
  %1503 = vmatprep.mubr.bf16.mxu0 0
  %1504 = vmatmul.mubr.bf16.gmra.mxu0 %v845
  %v1505 = vpop.f32.mrf.mxu0
  %v1506 = vadd.f32 0.0, %v1505
  %v1507 = vpop.f32.mrf.mxu0
  %v1508 = vpop.f32.mrf.mxu0
  %v1509 = vadd.f32 0.0, %v1508
  %v1510 = vpop.f32.mrf.mxu0
  %1511 = vmatprep.mubr.bf16.mxu0 0
  %1512 = vmatmul.mubr.bf16.gmra.mxu0 %v846
  %v1513 = vpop.f32.mrf.mxu0
  %v1514 = vadd.f32 0.0, %v1513
  %v1515 = vpop.f32.mrf.mxu0
  %v1516 = vpop.f32.mrf.mxu0
  %v1517 = vadd.f32 0.0, %v1516
  %v1518 = vpop.f32.mrf.mxu0
  %1519 = vmatprep.mubr.bf16.mxu0 0
  %1520 = vmatmul.mubr.bf16.gmra.mxu0 %v847
  %v1521 = vpop.f32.mrf.mxu0
  %v1522 = vadd.f32 0.0, %v1521
  %v1523 = vpop.f32.mrf.mxu0
  %v1524 = vpop.f32.mrf.mxu0
  %v1525 = vadd.f32 0.0, %v1524
  %v1526 = vpop.f32.mrf.mxu0
  %1527 = vmatprep.mubr.bf16.mxu0 0
  %1528 = vmatmul.mubr.bf16.gmra.mxu0 %v848
  %v1529 = vpop.f32.mrf.mxu0
  %v1530 = vadd.f32 0.0, %v1529
  %v1531 = vpop.f32.mrf.mxu0
  %v1532 = vpop.f32.mrf.mxu0
  %v1533 = vadd.f32 0.0, %v1532
  %v1534 = vpop.f32.mrf.mxu0
  %1535 = vmatprep.mubr.bf16.mxu0 0
  %1536 = vmatmul.mubr.bf16.gmra.mxu0 %v849
  %v1537 = vpop.f32.mrf.mxu0
  %v1538 = vadd.f32 0.0, %v1537
  %v1539 = vpop.f32.mrf.mxu0
  %v1540 = vpop.f32.mrf.mxu0
  %v1541 = vadd.f32 0.0, %v1540
  %v1542 = vpop.f32.mrf.mxu0
  %1543 = vmatprep.mubr.bf16.mxu0 0
  %1544 = vmatmul.mubr.bf16.gmra.mxu0 %v850
  %v1545 = vpop.f32.mrf.mxu0
  %v1546 = vadd.f32 0.0, %v1545
  %v1547 = vpop.f32.mrf.mxu0
  %v1548 = vpop.f32.mrf.mxu0
  %v1549 = vadd.f32 0.0, %v1548
  %v1550 = vpop.f32.mrf.mxu0
  %1551 = vmatprep.mubr.bf16.mxu0 0
  %1552 = vmatmul.mubr.bf16.gmra.mxu0 %v851
  %v1553 = vpop.f32.mrf.mxu0
  %v1554 = vadd.f32 0.0, %v1553
  %v1555 = vpop.f32.mrf.mxu0
  %v1556 = vpop.f32.mrf.mxu0
  %v1557 = vadd.f32 0.0, %v1556
  %v1558 = vpop.f32.mrf.mxu0
  %1559 = vmatprep.mubr.bf16.mxu0 0
  %1560 = vmatmul.mubr.bf16.gmra.mxu0 %v852
  %v1561 = vpop.f32.mrf.mxu0
  %v1562 = vadd.f32 0.0, %v1561
  %v1563 = vpop.f32.mrf.mxu0
  %v1564 = vpop.f32.mrf.mxu0
  %v1565 = vadd.f32 0.0, %v1564
  %v1566 = vpop.f32.mrf.mxu0
  %1567 = vmatprep.mubr.bf16.mxu0 0
  %1568 = vmatmul.mubr.bf16.gmra.mxu0 %v853
  %v1569 = vpop.f32.mrf.mxu0
  %v1570 = vadd.f32 0.0, %v1569
  %v1571 = vpop.f32.mrf.mxu0
  %v1572 = vpop.f32.mrf.mxu0
  %v1573 = vadd.f32 0.0, %v1572
  %v1574 = vpop.f32.mrf.mxu0
  %1575 = vmatprep.mubr.bf16.mxu0 0
  %1576 = vmatmul.mubr.bf16.gmra.mxu0 %v854
  %v1577 = vpop.f32.mrf.mxu0
  %v1578 = vadd.f32 0.0, %v1577
  %v1579 = vpop.f32.mrf.mxu0
  %v1580 = vpop.f32.mrf.mxu0
  %v1581 = vadd.f32 0.0, %v1580
  %v1582 = vpop.f32.mrf.mxu0
  %1583 = vmatprep.mubr.bf16.mxu0 0
  %1584 = vmatmul.mubr.bf16.gmra.mxu0 %v855
  %v1585 = vpop.f32.mrf.mxu0
  %v1586 = vadd.f32 0.0, %v1585
  %v1587 = vpop.f32.mrf.mxu0
  %v1588 = vpop.f32.mrf.mxu0
  %v1589 = vadd.f32 0.0, %v1588
  %v1590 = vpop.f32.mrf.mxu0
  %1591 = vmatprep.mubr.bf16.mxu0 0
  %1592 = vmatmul.mubr.bf16.gmra.mxu0 %v856
  %v1593 = vpop.f32.mrf.mxu0
  %v1594 = vadd.f32 0.0, %v1593
  %v1595 = vpop.f32.mrf.mxu0
  %v1596 = vpop.f32.mrf.mxu0
  %v1597 = vadd.f32 0.0, %v1596
  %v1598 = vpop.f32.mrf.mxu0
  %1599 = vmatprep.mubr.bf16.mxu0 0
  %1600 = vmatmul.mubr.bf16.gmra.mxu0 %v857
  %v1601 = vpop.f32.mrf.mxu0
  %v1602 = vadd.f32 0.0, %v1601
  %v1603 = vpop.f32.mrf.mxu0
  %v1604 = vpop.f32.mrf.mxu0
  %v1605 = vadd.f32 0.0, %v1604
  %v1606 = vpop.f32.mrf.mxu0
  %1607 = vmatprep.mubr.bf16.mxu0 0
  %1608 = vmatmul.mubr.bf16.gmra.mxu0 %v858
  %v1609 = vpop.f32.mrf.mxu0
  %v1610 = vadd.f32 0.0, %v1609
  %v1611 = vpop.f32.mrf.mxu0
  %v1612 = vpop.f32.mrf.mxu0
  %v1613 = vadd.f32 0.0, %v1612
  %v1614 = vpop.f32.mrf.mxu0
  %1615 = vmatprep.mubr.bf16.mxu0 0
  %1616 = vmatmul.mubr.bf16.gmra.mxu0 %v859
  %v1617 = vpop.f32.mrf.mxu0
  %v1618 = vadd.f32 0.0, %v1617
  %v1619 = vpop.f32.mrf.mxu0
  %v1620 = vpop.f32.mrf.mxu0
  %v1621 = vadd.f32 0.0, %v1620
  %v1622 = vpop.f32.mrf.mxu0
  %1623 = vmatprep.mubr.bf16.mxu0 0
  %1624 = vmatmul.mubr.bf16.gmra.mxu0 %v860
  %v1625 = vpop.f32.mrf.mxu0
  %v1626 = vadd.f32 0.0, %v1625
  %v1627 = vpop.f32.mrf.mxu0
  %v1628 = vpop.f32.mrf.mxu0
  %v1629 = vadd.f32 0.0, %v1628
  %v1630 = vpop.f32.mrf.mxu0
  %1631 = vmatprep.mubr.bf16.mxu0 0
  %1632 = vmatmul.mubr.bf16.gmra.mxu0 %v861
  %v1633 = vpop.f32.mrf.mxu0
  %v1634 = vadd.f32 0.0, %v1633
  %v1635 = vpop.f32.mrf.mxu0
  %v1636 = vpop.f32.mrf.mxu0
  %v1637 = vadd.f32 0.0, %v1636
  %v1638 = vpop.f32.mrf.mxu0
  %1639 = vmatprep.mubr.bf16.mxu0 0
  %1640 = vmatmul.mubr.bf16.gmra.mxu0 %v862
  %v1641 = vpop.f32.mrf.mxu0
  %v1642 = vadd.f32 0.0, %v1641
  %v1643 = vpop.f32.mrf.mxu0
  %v1644 = vpop.f32.mrf.mxu0
  %v1645 = vadd.f32 0.0, %v1644
  %v1646 = vpop.f32.mrf.mxu0
  %1647 = vmatprep.mubr.bf16.mxu0 0
  %1648 = vmatmul.mubr.bf16.gmra.mxu0 %v863
  %v1649 = vpop.f32.mrf.mxu0
  %v1650 = vadd.f32 0.0, %v1649
  %v1651 = vpop.f32.mrf.mxu0
  %v1652 = vpop.f32.mrf.mxu0
  %v1653 = vadd.f32 0.0, %v1652
  %v1654 = vpop.f32.mrf.mxu0
  %1655 = vmatprep.mubr.bf16.mxu0 0
  %1656 = vmatmul.mubr.bf16.gmra.mxu0 %v864
  %v1657 = vpop.f32.mrf.mxu0
  %v1658 = vadd.f32 0.0, %v1657
  %v1659 = vpop.f32.mrf.mxu0
  %v1660 = vpop.f32.mrf.mxu0
  %v1661 = vadd.f32 0.0, %v1660
  %v1662 = vpop.f32.mrf.mxu0
  %1663 = vmatprep.mubr.bf16.mxu0 0
  %1664 = vmatmul.mubr.bf16.gmra.mxu0 %v865
  %v1665 = vpop.f32.mrf.mxu0
  %v1666 = vadd.f32 0.0, %v1665
  %v1667 = vpop.f32.mrf.mxu0
  %v1668 = vpop.f32.mrf.mxu0
  %v1669 = vadd.f32 0.0, %v1668
  %v1670 = vpop.f32.mrf.mxu0
  %1671 = vmatprep.mubr.bf16.mxu0 0
  %1672 = vmatmul.mubr.bf16.gmra.mxu0 %v866
  %v1673 = vpop.f32.mrf.mxu0
  %v1674 = vadd.f32 0.0, %v1673
  %v1675 = vpop.f32.mrf.mxu0
  %v1676 = vpop.f32.mrf.mxu0
  %v1677 = vadd.f32 0.0, %v1676
  %v1678 = vpop.f32.mrf.mxu0
  %1679 = vmatprep.mubr.bf16.mxu0 0
  %1680 = vmatmul.mubr.bf16.gmra.mxu0 %v867
  %v1681 = vpop.f32.mrf.mxu0
  %v1682 = vadd.f32 0.0, %v1681
  %v1683 = vpop.f32.mrf.mxu0
  %v1684 = vpop.f32.mrf.mxu0
  %v1685 = vadd.f32 0.0, %v1684
  %v1686 = vpop.f32.mrf.mxu0
  %1687 = vmatprep.mubr.bf16.mxu0 0
  %1688 = vmatmul.mubr.bf16.gmra.mxu0 %v868
  %v1689 = vpop.f32.mrf.mxu0
  %v1690 = vadd.f32 0.0, %v1689
  %v1691 = vpop.f32.mrf.mxu0
  %v1692 = vpop.f32.mrf.mxu0
  %v1693 = vadd.f32 0.0, %v1692
  %v1694 = vpop.f32.mrf.mxu0
  %1695 = vmatprep.mubr.bf16.mxu0 0
  %1696 = vmatmul.mubr.bf16.gmra.mxu0 %v869
  %v1697 = vpop.f32.mrf.mxu0
  %v1698 = vadd.f32 0.0, %v1697
  %v1699 = vpop.f32.mrf.mxu0
  %v1700 = vpop.f32.mrf.mxu0
  %v1701 = vadd.f32 0.0, %v1700
  %v1702 = vpop.f32.mrf.mxu0
  %1703 = vmatprep.mubr.bf16.mxu0 0
  %1704 = vmatmul.mubr.bf16.gmra.mxu0 %v870
  %v1705 = vpop.f32.mrf.mxu0
  %v1706 = vadd.f32 0.0, %v1705
  %v1707 = vpop.f32.mrf.mxu0
  %v1708 = vpop.f32.mrf.mxu0
  %v1709 = vadd.f32 0.0, %v1708
  %v1710 = vpop.f32.mrf.mxu0
  %1711 = vmatprep.mubr.bf16.mxu0 0
  %1712 = vmatmul.mubr.bf16.gmra.mxu0 %v871
  %v1713 = vpop.f32.mrf.mxu0
  %v1714 = vadd.f32 0.0, %v1713
  %v1715 = vpop.f32.mrf.mxu0
  %v1716 = vpop.f32.mrf.mxu0
  %v1717 = vadd.f32 0.0, %v1716
  %v1718 = vpop.f32.mrf.mxu0
  %1719 = vmatprep.mubr.bf16.mxu0 0
  %1720 = vmatmul.mubr.bf16.gmra.mxu0 %v872
  %v1721 = vpop.f32.mrf.mxu0
  %v1722 = vadd.f32 0.0, %v1721
  %v1723 = vpop.f32.mrf.mxu0
  %v1724 = vpop.f32.mrf.mxu0
  %v1725 = vadd.f32 0.0, %v1724
  %v1726 = vpop.f32.mrf.mxu0
  %1727 = vmatprep.mubr.bf16.mxu0 0
  %1728 = vmatmul.mubr.bf16.gmra.mxu0 %v873
  %v1729 = vpop.f32.mrf.mxu0
  %v1730 = vadd.f32 0.0, %v1729
  %v1731 = vpop.f32.mrf.mxu0
  %v1732 = vpop.f32.mrf.mxu0
  %v1733 = vadd.f32 0.0, %v1732
  %v1734 = vpop.f32.mrf.mxu0
  %1735 = vmatprep.mubr.bf16.mxu0 0
  %1736 = vmatmul.mubr.bf16.gmra.mxu0 %v874
  %v1737 = vpop.f32.mrf.mxu0
  %v1738 = vadd.f32 0.0, %v1737
  %v1739 = vpop.f32.mrf.mxu0
  %v1740 = vpop.f32.mrf.mxu0
  %v1741 = vadd.f32 0.0, %v1740
  %v1742 = vpop.f32.mrf.mxu0
  %1743 = vmatprep.mubr.bf16.mxu0 0
  %1744 = vmatmul.mubr.bf16.gmra.mxu0 %v875
  %v1745 = vpop.f32.mrf.mxu0
  %v1746 = vadd.f32 0.0, %v1745
  %v1747 = vpop.f32.mrf.mxu0
  %v1748 = vpop.f32.mrf.mxu0
  %v1749 = vadd.f32 0.0, %v1748
  %v1750 = vpop.f32.mrf.mxu0
  %1751 = vmatprep.mubr.bf16.mxu0 0
  %1752 = vmatmul.mubr.bf16.gmra.mxu0 %v876
  %v1753 = vpop.f32.mrf.mxu0
  %v1754 = vadd.f32 0.0, %v1753
  %v1755 = vpop.f32.mrf.mxu0
  %v1756 = vpop.f32.mrf.mxu0
  %v1757 = vadd.f32 0.0, %v1756
  %v1758 = vpop.f32.mrf.mxu0
  %1759 = vmatprep.mubr.bf16.mxu0 0
  %1760 = vmatmul.mubr.bf16.gmra.mxu0 %v877
  %v1761 = vpop.f32.mrf.mxu0
  %v1762 = vadd.f32 0.0, %v1761
  %v1763 = vpop.f32.mrf.mxu0
  %v1764 = vpop.f32.mrf.mxu0
  %v1765 = vadd.f32 0.0, %v1764
  %v1766 = vpop.f32.mrf.mxu0
  %1767 = vmatprep.mubr.bf16.mxu0 0
  %1768 = vmatmul.mubr.bf16.gmra.mxu0 %v878
  %v1769 = vpop.f32.mrf.mxu0
  %v1770 = vadd.f32 0.0, %v1769
  %v1771 = vpop.f32.mrf.mxu0
  %v1772 = vpop.f32.mrf.mxu0
  %v1773 = vadd.f32 0.0, %v1772
  %v1774 = vpop.f32.mrf.mxu0
  %1775 = vmatprep.mubr.bf16.mxu0 0
  %1776 = vmatmul.mubr.bf16.gmra.mxu0 %v879
  %v1777 = vpop.f32.mrf.mxu0
  %v1778 = vadd.f32 0.0, %v1777
  %v1779 = vpop.f32.mrf.mxu0
  %v1780 = vpop.f32.mrf.mxu0
  %v1781 = vadd.f32 0.0, %v1780
  %v1782 = vpop.f32.mrf.mxu0
  %1783 = vmatprep.mubr.bf16.mxu0 0
  %1784 = vmatmul.mubr.bf16.gmra.mxu0 %v880
  %v1785 = vpop.f32.mrf.mxu0
  %v1786 = vadd.f32 0.0, %v1785
  %v1787 = vpop.f32.mrf.mxu0
  %v1788 = vpop.f32.mrf.mxu0
  %v1789 = vadd.f32 0.0, %v1788
  %v1790 = vpop.f32.mrf.mxu0
  %1791 = vmatprep.mubr.bf16.mxu0 0
  %1792 = vmatmul.mubr.bf16.gmra.mxu0 %v881
  %v1793 = vpop.f32.mrf.mxu0
  %v1794 = vadd.f32 0.0, %v1793
  %v1795 = vpop.f32.mrf.mxu0
  %v1796 = vpop.f32.mrf.mxu0
  %v1797 = vadd.f32 0.0, %v1796
  %v1798 = vpop.f32.mrf.mxu0
  %1799 = vmatprep.mubr.bf16.mxu0 0
  %1800 = vmatmul.mubr.bf16.gmra.mxu0 %v882
  %v1801 = vpop.f32.mrf.mxu0
  %v1802 = vadd.f32 0.0, %v1801
  %v1803 = vpop.f32.mrf.mxu0
  %v1804 = vpop.f32.mrf.mxu0
  %v1805 = vadd.f32 0.0, %v1804
  %v1806 = vpop.f32.mrf.mxu0
  %1807 = vmatprep.mubr.bf16.mxu0 0
  %1808 = vmatmul.mubr.bf16.gmra.mxu0 %v883
  %v1809 = vpop.f32.mrf.mxu0
  %v1810 = vadd.f32 0.0, %v1809
  %v1811 = vpop.f32.mrf.mxu0
  %v1812 = vpop.f32.mrf.mxu0
  %v1813 = vadd.f32 0.0, %v1812
  %v1814 = vpop.f32.mrf.mxu0
  %1815 = vmatprep.mubr.bf16.mxu0 0
  %1816 = vmatmul.mubr.bf16.gmra.mxu0 %v884
  %v1817 = vpop.f32.mrf.mxu0
  %v1818 = vadd.f32 0.0, %v1817
  %v1819 = vpop.f32.mrf.mxu0
  %v1820 = vpop.f32.mrf.mxu0
  %v1821 = vadd.f32 0.0, %v1820
  %v1822 = vpop.f32.mrf.mxu0
  %1823 = vmatprep.mubr.bf16.mxu0 0
  %1824 = vmatmul.mubr.bf16.gmra.mxu0 %v885
  %v1825 = vpop.f32.mrf.mxu0
  %v1826 = vadd.f32 0.0, %v1825
  %v1827 = vpop.f32.mrf.mxu0
  %v1828 = vpop.f32.mrf.mxu0
  %v1829 = vadd.f32 0.0, %v1828
  %v1830 = vpop.f32.mrf.mxu0
  %1831 = vmatprep.mubr.bf16.mxu0 0
  %1832 = vmatmul.mubr.bf16.gmra.mxu0 %v886
  %v1833 = vpop.f32.mrf.mxu0
  %v1834 = vadd.f32 0.0, %v1833
  %v1835 = vpop.f32.mrf.mxu0
  %v1836 = vpop.f32.mrf.mxu0
  %v1837 = vadd.f32 0.0, %v1836
  %v1838 = vpop.f32.mrf.mxu0
  %1839 = vmatprep.mubr.bf16.mxu0 0
  %1840 = vmatmul.mubr.bf16.gmra.mxu0 %v887
  %v1841 = vpop.f32.mrf.mxu0
  %v1842 = vadd.f32 0.0, %v1841
  %v1843 = vpop.f32.mrf.mxu0
  %v1844 = vpop.f32.mrf.mxu0
  %v1845 = vadd.f32 0.0, %v1844
  %v1846 = vpop.f32.mrf.mxu0
  %1847 = vmatprep.mubr.bf16.mxu0 0
  %1848 = vmatmul.mubr.bf16.gmra.mxu0 %v888
  %v1849 = vpop.f32.mrf.mxu0
  %v1850 = vadd.f32 0.0, %v1849
  %v1851 = vpop.f32.mrf.mxu0
  %v1852 = vpop.f32.mrf.mxu0
  %v1853 = vadd.f32 0.0, %v1852
  %v1854 = vpop.f32.mrf.mxu0
  %1855 = vmatprep.mubr.bf16.mxu0 0
  %1856 = vmatmul.mubr.bf16.gmra.mxu0 %v889
  %v1857 = vpop.f32.mrf.mxu0
  %v1858 = vadd.f32 0.0, %v1857
  %v1859 = vpop.f32.mrf.mxu0
  %v1860 = vpop.f32.mrf.mxu0
  %v1861 = vadd.f32 0.0, %v1860
  %v1862 = vpop.f32.mrf.mxu0
  %1863 = vmatprep.mubr.bf16.mxu0 0
  %1864 = vmatmul.mubr.bf16.gmra.mxu0 %v890
  %v1865 = vpop.f32.mrf.mxu0
  %v1866 = vadd.f32 0.0, %v1865
  %v1867 = vpop.f32.mrf.mxu0
  %v1868 = vpop.f32.mrf.mxu0
  %v1869 = vadd.f32 0.0, %v1868
  %v1870 = vpop.f32.mrf.mxu0
  %1871 = vmatprep.mubr.bf16.mxu0 0
  %1872 = vmatmul.mubr.bf16.gmra.mxu0 %v891
  %v1873 = vpop.f32.mrf.mxu0
  %v1874 = vadd.f32 0.0, %v1873
  %v1875 = vpop.f32.mrf.mxu0
  %v1876 = vpop.f32.mrf.mxu0
  %v1877 = vadd.f32 0.0, %v1876
  %v1878 = vpop.f32.mrf.mxu0
  %1879 = vmatprep.mubr.bf16.mxu0 0
  %1880 = vmatmul.mubr.bf16.gmra.mxu0 %v892
  %v1881 = vpop.f32.mrf.mxu0
  %v1882 = vadd.f32 0.0, %v1881
  %v1883 = vpop.f32.mrf.mxu0
  %v1884 = vpop.f32.mrf.mxu0
  %v1885 = vadd.f32 0.0, %v1884
  %v1886 = vpop.f32.mrf.mxu0
  %1887 = vmatprep.mubr.bf16.mxu0 0
  %1888 = vmatmul.mubr.bf16.gmra.mxu0 %v893
  %v1889 = vpop.f32.mrf.mxu0
  %v1890 = vadd.f32 0.0, %v1889
  %v1891 = vpop.f32.mrf.mxu0
  %v1892 = vpop.f32.mrf.mxu0
  %v1893 = vadd.f32 0.0, %v1892
  %v1894 = vpop.f32.mrf.mxu0
  %1895 = vmatprep.mubr.bf16.mxu0 0
  %1896 = vmatmul.mubr.bf16.gmra.mxu0 %v894
  %v1897 = vpop.f32.mrf.mxu0
  %v1898 = vadd.f32 0.0, %v1897
  %v1899 = vpop.f32.mrf.mxu0
  %v1900 = vpop.f32.mrf.mxu0
  %v1901 = vadd.f32 0.0, %v1900
  %v1902 = vpop.f32.mrf.mxu0
  %1903 = vmatprep.mubr.bf16.mxu0 0
  %1904 = vmatmul.mubr.bf16.gmra.mxu0 %v895
  %v1905 = vpop.f32.mrf.mxu0
  %v1906 = vadd.f32 0.0, %v1905
  %v1907 = vpop.f32.mrf.mxu0
  %v1908 = vpop.f32.mrf.mxu0
  %v1909 = vadd.f32 0.0, %v1908
  %v1910 = vpop.f32.mrf.mxu0
  %1911 = vmatprep.mubr.bf16.mxu0 0
  %1912 = vmatmul.mubr.bf16.gmra.mxu0 %v896
  %v1913 = vpop.f32.mrf.mxu0
  %v1914 = vadd.f32 0.0, %v1913
  %v1915 = vpop.f32.mrf.mxu0
  %v1916 = vpop.f32.mrf.mxu0
  %v1917 = vadd.f32 0.0, %v1916
  %v1918 = vpop.f32.mrf.mxu0
  %1919 = vmatprep.mubr.bf16.mxu0 0
  %1920 = vmatmul.mubr.bf16.gmra.mxu0 %v897
  %v1921 = vpop.f32.mrf.mxu0
  %v1922 = vadd.f32 0.0, %v1921
  %v1923 = vpop.f32.mrf.mxu0
  %v1924 = vpop.f32.mrf.mxu0
  %v1925 = vadd.f32 0.0, %v1924
  %v1926 = vpop.f32.mrf.mxu0
  %1927 = vmatprep.mubr.bf16.mxu0 0
  %1928 = vmatmul.mubr.bf16.gmra.mxu0 %v898
  %v1929 = vpop.f32.mrf.mxu0
  %v1930 = vadd.f32 0.0, %v1929
  %v1931 = vpop.f32.mrf.mxu0
  %v1932 = vpop.f32.mrf.mxu0
  %v1933 = vadd.f32 0.0, %v1932
  %v1934 = vpop.f32.mrf.mxu0
  %1935 = vmatprep.mubr.bf16.mxu0 0
  %1936 = vmatmul.mubr.bf16.gmra.mxu0 %v899
  %v1937 = vpop.f32.mrf.mxu0
  %v1938 = vadd.f32 0.0, %v1937
  %v1939 = vpop.f32.mrf.mxu0
  %v1940 = vpop.f32.mrf.mxu0
  %v1941 = vadd.f32 0.0, %v1940
  %v1942 = vpop.f32.mrf.mxu0
  %1943 = vmatprep.mubr.bf16.mxu0 0
  %1944 = vmatmul.mubr.bf16.gmra.mxu0 %v900
  %v1945 = vpop.f32.mrf.mxu0
  %v1946 = vadd.f32 0.0, %v1945
  %v1947 = vpop.f32.mrf.mxu0
  %v1948 = vpop.f32.mrf.mxu0
  %v1949 = vadd.f32 0.0, %v1948
  %v1950 = vpop.f32.mrf.mxu0
  %1951 = vmatprep.mubr.bf16.mxu0 0
  %1952 = vmatmul.mubr.bf16.gmra.mxu0 %v901
  %v1953 = vpop.f32.mrf.mxu0
  %v1954 = vadd.f32 0.0, %v1953
  %v1955 = vpop.f32.mrf.mxu0
  %v1956 = vpop.f32.mrf.mxu0
  %v1957 = vadd.f32 0.0, %v1956
  %v1958 = vpop.f32.mrf.mxu0
  %1959 = vmatprep.mubr.bf16.mxu0 0
  %1960 = vmatmul.mubr.bf16.gmra.mxu0 %v902
  %v1961 = vpop.f32.mrf.mxu0
  %v1962 = vadd.f32 0.0, %v1961
  %v1963 = vpop.f32.mrf.mxu0
  %v1964 = vpop.f32.mrf.mxu0
  %v1965 = vadd.f32 0.0, %v1964
  %v1966 = vpop.f32.mrf.mxu0
  %1967 = vmatprep.mubr.bf16.mxu0 0
  %1968 = vmatmul.mubr.bf16.gmra.mxu0 %v903
  %v1969 = vpop.f32.mrf.mxu0
  %v1970 = vadd.f32 0.0, %v1969
  %v1971 = vpop.f32.mrf.mxu0
  %v1972 = vpop.f32.mrf.mxu0
  %v1973 = vadd.f32 0.0, %v1972
  %v1974 = vpop.f32.mrf.mxu0
  %1975 = vmatprep.mubr.bf16.mxu0 0
  %1976 = vmatmul.mubr.bf16.gmra.mxu0 %v904
  %v1977 = vpop.f32.mrf.mxu0
  %v1978 = vadd.f32 0.0, %v1977
  %v1979 = vpop.f32.mrf.mxu0
  %v1980 = vpop.f32.mrf.mxu0
  %v1981 = vadd.f32 0.0, %v1980
  %v1982 = vpop.f32.mrf.mxu0
  %1983 = vmatprep.mubr.bf16.mxu0 0
  %1984 = vmatmul.mubr.bf16.gmra.mxu0 %v905
  %v1985 = vpop.f32.mrf.mxu0
  %v1986 = vadd.f32 0.0, %v1985
  %v1987 = vpop.f32.mrf.mxu0
  %v1988 = vpop.f32.mrf.mxu0
  %v1989 = vadd.f32 0.0, %v1988
  %v1990 = vpop.f32.mrf.mxu0
  %1991 = vmatprep.mubr.bf16.mxu0 0
  %1992 = vmatmul.mubr.bf16.gmra.mxu0 %v906
  %v1993 = vpop.f32.mrf.mxu0
  %v1994 = vadd.f32 0.0, %v1993
  %v1995 = vpop.f32.mrf.mxu0
  %v1996 = vpop.f32.mrf.mxu0
  %v1997 = vadd.f32 0.0, %v1996
  %v1998 = vpop.f32.mrf.mxu0
  %1999 = vmatprep.mubr.bf16.mxu0 0
  %2000 = vmatmul.mubr.bf16.gmra.mxu0 %v907
  %v2001 = vpop.f32.mrf.mxu0
  %v2002 = vadd.f32 0.0, %v2001
  %v2003 = vpop.f32.mrf.mxu0
  %v2004 = vpop.f32.mrf.mxu0
  %v2005 = vadd.f32 0.0, %v2004
  %v2006 = vpop.f32.mrf.mxu0
  %2007 = vmatprep.mubr.bf16.mxu0 0
  %2008 = vmatmul.mubr.bf16.gmra.mxu0 %v908
  %v2009 = vpop.f32.mrf.mxu0
  %v2010 = vadd.f32 0.0, %v2009
  %v2011 = vpop.f32.mrf.mxu0
  %v2012 = vpop.f32.mrf.mxu0
  %v2013 = vadd.f32 0.0, %v2012
  %v2014 = vpop.f32.mrf.mxu0
  %2015 = vmatprep.mubr.bf16.mxu0 0
  %2016 = vmatmul.mubr.bf16.gmra.mxu0 %v909
  %v2017 = vpop.f32.mrf.mxu0
  %v2018 = vadd.f32 0.0, %v2017
  %v2019 = vpop.f32.mrf.mxu0
  %v2020 = vpop.f32.mrf.mxu0
  %v2021 = vadd.f32 0.0, %v2020
  %v2022 = vpop.f32.mrf.mxu0
  %2023 = vmatprep.mubr.bf16.mxu0 0
  %2024 = vmatmul.mubr.bf16.gmra.mxu0 %v910
  %v2025 = vpop.f32.mrf.mxu0
  %v2026 = vadd.f32 0.0, %v2025
  %v2027 = vpop.f32.mrf.mxu0
  %v2028 = vpop.f32.mrf.mxu0
  %v2029 = vadd.f32 0.0, %v2028
  %v2030 = vpop.f32.mrf.mxu0
  %2031 = vmatprep.mubr.bf16.mxu0 0
  %2032 = vmatmul.mubr.bf16.gmra.mxu0 %v911
  %v2033 = vpop.f32.mrf.mxu0
  %v2034 = vadd.f32 0.0, %v2033
  %v2035 = vpop.f32.mrf.mxu0
  %v2036 = vpop.f32.mrf.mxu0
  %v2037 = vadd.f32 0.0, %v2036
  %v2038 = vpop.f32.mrf.mxu0
  %2039 = vmatprep.mubr.bf16.mxu0 0
  %2040 = vmatmul.mubr.bf16.gmra.mxu0 %v912
  %v2041 = vpop.f32.mrf.mxu0
  %v2042 = vadd.f32 0.0, %v2041
  %v2043 = vpop.f32.mrf.mxu0
  %v2044 = vpop.f32.mrf.mxu0
  %v2045 = vadd.f32 0.0, %v2044
  %v2046 = vpop.f32.mrf.mxu0
  %2047 = vmatprep.mubr.bf16.mxu0 0
  %2048 = vmatmul.mubr.bf16.gmra.mxu0 %v913
  %v2049 = vpop.f32.mrf.mxu0
  %v2050 = vadd.f32 0.0, %v2049
  %v2051 = vpop.f32.mrf.mxu0
  %v2052 = vpop.f32.mrf.mxu0
  %v2053 = vadd.f32 0.0, %v2052
  %v2054 = vpop.f32.mrf.mxu0
  %2055 = vmatprep.mubr.bf16.mxu0 0
  %2056 = vmatmul.mubr.bf16.gmra.mxu0 %v914
  %v2057 = vpop.f32.mrf.mxu0
  %v2058 = vadd.f32 0.0, %v2057
  %v2059 = vpop.f32.mrf.mxu0
  %v2060 = vpop.f32.mrf.mxu0
  %v2061 = vadd.f32 0.0, %v2060
  %v2062 = vpop.f32.mrf.mxu0
  %2063 = vmatprep.mubr.bf16.mxu0 0
  %2064 = vmatmul.mubr.bf16.gmra.mxu0 %v915
  %v2065 = vpop.f32.mrf.mxu0
  %v2066 = vadd.f32 0.0, %v2065
  %v2067 = vpop.f32.mrf.mxu0
  %v2068 = vpop.f32.mrf.mxu0
  %v2069 = vadd.f32 0.0, %v2068
  %v2070 = vpop.f32.mrf.mxu0
  %2071 = vmatprep.mubr.bf16.mxu0 0
  %2072 = vmatmul.mubr.bf16.gmra.mxu0 %v916
  %v2073 = vpop.f32.mrf.mxu0
  %v2074 = vadd.f32 0.0, %v2073
  %v2075 = vpop.f32.mrf.mxu0
  %v2076 = vpop.f32.mrf.mxu0
  %v2077 = vadd.f32 0.0, %v2076
  %v2078 = vpop.f32.mrf.mxu0
  %2079 = vmatprep.mubr.bf16.mxu0 0
  %2080 = vmatmul.mubr.bf16.gmra.mxu0 %v917
  %v2081 = vpop.f32.mrf.mxu0
  %v2082 = vadd.f32 0.0, %v2081
  %v2083 = vpop.f32.mrf.mxu0
  %v2084 = vpop.f32.mrf.mxu0
  %v2085 = vadd.f32 0.0, %v2084
  %v2086 = vpop.f32.mrf.mxu0
  %2087 = vmatprep.mubr.bf16.mxu0 0
  %2088 = vmatmul.mubr.bf16.gmra.mxu0 %v918
  %v2089 = vpop.f32.mrf.mxu0
  %v2090 = vadd.f32 0.0, %v2089
  %v2091 = vpop.f32.mrf.mxu0
  %v2092 = vpop.f32.mrf.mxu0
  %v2093 = vadd.f32 0.0, %v2092
  %v2094 = vpop.f32.mrf.mxu0
  %2095 = vmatprep.mubr.bf16.mxu0 0
  %2096 = vmatmul.mubr.bf16.gmra.mxu0 %v919
  %v2097 = vpop.f32.mrf.mxu0
  %v2098 = vadd.f32 0.0, %v2097
  %v2099 = vpop.f32.mrf.mxu0
  %v2100 = vpop.f32.mrf.mxu0
  %v2101 = vadd.f32 0.0, %v2100
  %v2102 = vpop.f32.mrf.mxu0
  %2103 = vmatprep.mubr.bf16.mxu0 0
  %2104 = vmatmul.mubr.bf16.gmra.mxu0 %v920
  %v2105 = vpop.f32.mrf.mxu0
  %v2106 = vadd.f32 0.0, %v2105
  %v2107 = vpop.f32.mrf.mxu0
  %v2108 = vpop.f32.mrf.mxu0
  %v2109 = vadd.f32 0.0, %v2108
  %v2110 = vpop.f32.mrf.mxu0
  %2111 = vmatprep.mubr.bf16.mxu0 0
  %2112 = vmatmul.mubr.bf16.gmra.mxu0 %v921
  %v2113 = vpop.f32.mrf.mxu0
  %v2114 = vadd.f32 0.0, %v2113
  %v2115 = vpop.f32.mrf.mxu0
  %v2116 = vpop.f32.mrf.mxu0
  %v2117 = vadd.f32 0.0, %v2116
  %v2118 = vpop.f32.mrf.mxu0
  %2119 = vmatprep.mubr.bf16.mxu0 0
  %2120 = vmatmul.mubr.bf16.gmra.mxu0 %v922
  %v2121 = vpop.f32.mrf.mxu0
  %v2122 = vadd.f32 0.0, %v2121
  %v2123 = vpop.f32.mrf.mxu0
  %v2124 = vpop.f32.mrf.mxu0
  %v2125 = vadd.f32 0.0, %v2124
  %v2126 = vpop.f32.mrf.mxu0
  %2127 = vmatprep.mubr.bf16.mxu0 0
  %2128 = vmatmul.mubr.bf16.gmra.mxu0 %v923
  %v2129 = vpop.f32.mrf.mxu0
  %v2130 = vadd.f32 0.0, %v2129
  %v2131 = vpop.f32.mrf.mxu0
  %v2132 = vpop.f32.mrf.mxu0
  %v2133 = vadd.f32 0.0, %v2132
  %v2134 = vpop.f32.mrf.mxu0
  %2135 = vmatprep.mubr.bf16.mxu0 0
  %2136 = vmatmul.mubr.bf16.gmra.mxu0 %v924
  %v2137 = vpop.f32.mrf.mxu0
  %v2138 = vadd.f32 0.0, %v2137
  %v2139 = vpop.f32.mrf.mxu0
  %v2140 = vpop.f32.mrf.mxu0
  %v2141 = vadd.f32 0.0, %v2140
  %v2142 = vpop.f32.mrf.mxu0
  %2143 = vmatprep.mubr.bf16.mxu0 0
  %2144 = vmatmul.mubr.bf16.gmra.mxu0 %v925
  %v2145 = vpop.f32.mrf.mxu0
  %v2146 = vadd.f32 0.0, %v2145
  %v2147 = vpop.f32.mrf.mxu0
  %v2148 = vpop.f32.mrf.mxu0
  %v2149 = vadd.f32 0.0, %v2148
  %v2150 = vpop.f32.mrf.mxu0
  %2151 = vmatprep.mubr.bf16.mxu0 0
  %2152 = vmatmul.mubr.bf16.gmra.mxu0 %v926
  %v2153 = vpop.f32.mrf.mxu0
  %v2154 = vadd.f32 0.0, %v2153
  %v2155 = vpop.f32.mrf.mxu0
  %v2156 = vpop.f32.mrf.mxu0
  %v2157 = vadd.f32 0.0, %v2156
  %v2158 = vpop.f32.mrf.mxu0
  %2159 = vdwg.mxu0
  %v2160 = vadd.f32 %v1138, %v1141
  %v2161 = vadd.f32 %v2160, %v1146
  %v2162 = vadd.f32 %v2161, %v1149
  %v2163 = vadd.f32 %v2162, %v1154
  %v2164 = vadd.f32 %v2163, %v1157
  %v2165 = vadd.f32 %v2164, %v1162
  %v2166 = vadd.f32 %v2165, %v1165
  %v2167 = vadd.f32 %v2166, %v1170
  %v2168 = vadd.f32 %v2167, %v1173
  %v2169 = vadd.f32 %v2168, %v1178
  %v2170 = vadd.f32 %v2169, %v1181
  %v2171 = vadd.f32 %v2170, %v1186
  %v2172 = vadd.f32 %v2171, %v1189
  %v2173 = vadd.f32 %v2172, %v1194
  %v2174 = vadd.f32 %v2173, %v1197
  %v2175 = vadd.f32 %v2174, %v1202
  %v2176 = vadd.f32 %v2175, %v1205
  %v2177 = vadd.f32 %v2176, %v1210
  %v2178 = vadd.f32 %v2177, %v1213
  %v2179 = vadd.f32 %v2178, %v1218
  %v2180 = vadd.f32 %v2179, %v1221
  %v2181 = vadd.f32 %v2180, %v1226
  %v2182 = vadd.f32 %v2181, %v1229
  %v2183 = vadd.f32 %v2182, %v1234
  %v2184 = vadd.f32 %v2183, %v1237
  %v2185 = vadd.f32 %v2184, %v1242
  %v2186 = vadd.f32 %v2185, %v1245
  %v2187 = vadd.f32 %v2186, %v1250
  %v2188 = vadd.f32 %v2187, %v1253
  %v2189 = vadd.f32 %v2188, %v1258
  %v2190 = vadd.f32 %v2189, %v1261
  %v2191 = vadd.f32 %v2190, %v1266
  %v2192 = vadd.f32 %v2191, %v1269
  %v2193 = vadd.f32 %v2192, %v1274
  %v2194 = vadd.f32 %v2193, %v1277
  %v2195 = vadd.f32 %v2194, %v1282
  %v2196 = vadd.f32 %v2195, %v1285
  %v2197 = vadd.f32 %v2196, %v1290
  %v2198 = vadd.f32 %v2197, %v1293
  %v2199 = vadd.f32 %v2198, %v1298
  %v2200 = vadd.f32 %v2199, %v1301
  %v2201 = vadd.f32 %v2200, %v1306
  %v2202 = vadd.f32 %v2201, %v1309
  %v2203 = vadd.f32 %v2202, %v1314
  %v2204 = vadd.f32 %v2203, %v1317
  %v2205 = vadd.f32 %v2204, %v1322
  %v2206 = vadd.f32 %v2205, %v1325
  %v2207 = vadd.f32 %v2206, %v1330
  %v2208 = vadd.f32 %v2207, %v1333
  %v2209 = vadd.f32 %v2208, %v1338
  %v2210 = vadd.f32 %v2209, %v1341
  %v2211 = vadd.f32 %v2210, %v1346
  %v2212 = vadd.f32 %v2211, %v1349
  %v2213 = vadd.f32 %v2212, %v1354
  %v2214 = vadd.f32 %v2213, %v1357
  %v2215 = vadd.f32 %v2214, %v1362
  %v2216 = vadd.f32 %v2215, %v1365
  %v2217 = vadd.f32 %v2216, %v1370
  %v2218 = vadd.f32 %v2217, %v1373
  %v2219 = vadd.f32 %v2218, %v1378
  %v2220 = vadd.f32 %v2219, %v1381
  %v2221 = vadd.f32 %v2220, %v1386
  %v2222 = vadd.f32 %v2221, %v1389
  %v2223 = vadd.f32 %v2222, %v1394
  %v2224 = vadd.f32 %v2223, %v1397
  %v2225 = vadd.f32 %v2224, %v1402
  %v2226 = vadd.f32 %v2225, %v1405
  %v2227 = vadd.f32 %v2226, %v1410
  %v2228 = vadd.f32 %v2227, %v1413
  %v2229 = vadd.f32 %v2228, %v1418
  %v2230 = vadd.f32 %v2229, %v1421
  %v2231 = vadd.f32 %v2230, %v1426
  %v2232 = vadd.f32 %v2231, %v1429
  %v2233 = vadd.f32 %v2232, %v1434
  %v2234 = vadd.f32 %v2233, %v1437
  %v2235 = vadd.f32 %v2234, %v1442
  %v2236 = vadd.f32 %v2235, %v1445
  %v2237 = vadd.f32 %v2236, %v1450
  %v2238 = vadd.f32 %v2237, %v1453
  %v2239 = vadd.f32 %v2238, %v1458
  %v2240 = vadd.f32 %v2239, %v1461
  %v2241 = vadd.f32 %v2240, %v1466
  %v2242 = vadd.f32 %v2241, %v1469
  %v2243 = vadd.f32 %v2242, %v1474
  %v2244 = vadd.f32 %v2243, %v1477
  %v2245 = vadd.f32 %v2244, %v1482
  %v2246 = vadd.f32 %v2245, %v1485
  %v2247 = vadd.f32 %v2246, %v1490
  %v2248 = vadd.f32 %v2247, %v1493
  %v2249 = vadd.f32 %v2248, %v1498
  %v2250 = vadd.f32 %v2249, %v1501
  %v2251 = vadd.f32 %v2250, %v1506
  %v2252 = vadd.f32 %v2251, %v1509
  %v2253 = vadd.f32 %v2252, %v1514
  %v2254 = vadd.f32 %v2253, %v1517
  %v2255 = vadd.f32 %v2254, %v1522
  %v2256 = vadd.f32 %v2255, %v1525
  %v2257 = vadd.f32 %v2256, %v1530
  %v2258 = vadd.f32 %v2257, %v1533
  %v2259 = vadd.f32 %v2258, %v1538
  %v2260 = vadd.f32 %v2259, %v1541
  %v2261 = vadd.f32 %v2260, %v1546
  %v2262 = vadd.f32 %v2261, %v1549
  %v2263 = vadd.f32 %v2262, %v1554
  %v2264 = vadd.f32 %v2263, %v1557
  %v2265 = vadd.f32 %v2264, %v1562
  %v2266 = vadd.f32 %v2265, %v1565
  %v2267 = vadd.f32 %v2266, %v1570
  %v2268 = vadd.f32 %v2267, %v1573
  %v2269 = vadd.f32 %v2268, %v1578
  %v2270 = vadd.f32 %v2269, %v1581
  %v2271 = vadd.f32 %v2270, %v1586
  %v2272 = vadd.f32 %v2271, %v1589
  %v2273 = vadd.f32 %v2272, %v1594
  %v2274 = vadd.f32 %v2273, %v1597
  %v2275 = vadd.f32 %v2274, %v1602
  %v2276 = vadd.f32 %v2275, %v1605
  %v2277 = vadd.f32 %v2276, %v1610
  %v2278 = vadd.f32 %v2277, %v1613
  %v2279 = vadd.f32 %v2278, %v1618
  %v2280 = vadd.f32 %v2279, %v1621
  %v2281 = vadd.f32 %v2280, %v1626
  %v2282 = vadd.f32 %v2281, %v1629
  %v2283 = vadd.f32 %v2282, %v1634
  %v2284 = vadd.f32 %v2283, %v1637
  %v2285 = vadd.f32 %v2284, %v1642
  %v2286 = vadd.f32 %v2285, %v1645
  %v2287 = vadd.f32 %v2286, %v1650
  %v2288 = vadd.f32 %v2287, %v1653
  %v2289 = vadd.f32 %v2288, %v1658
  %v2290 = vadd.f32 %v2289, %v1661
  %v2291 = vadd.f32 %v2290, %v1666
  %v2292 = vadd.f32 %v2291, %v1669
  %v2293 = vadd.f32 %v2292, %v1674
  %v2294 = vadd.f32 %v2293, %v1677
  %v2295 = vadd.f32 %v2294, %v1682
  %v2296 = vadd.f32 %v2295, %v1685
  %v2297 = vadd.f32 %v2296, %v1690
  %v2298 = vadd.f32 %v2297, %v1693
  %v2299 = vadd.f32 %v2298, %v1698
  %v2300 = vadd.f32 %v2299, %v1701
  %v2301 = vadd.f32 %v2300, %v1706
  %v2302 = vadd.f32 %v2301, %v1709
  %v2303 = vadd.f32 %v2302, %v1714
  %v2304 = vadd.f32 %v2303, %v1717
  %v2305 = vadd.f32 %v2304, %v1722
  %v2306 = vadd.f32 %v2305, %v1725
  %v2307 = vadd.f32 %v2306, %v1730
  %v2308 = vadd.f32 %v2307, %v1733
  %v2309 = vadd.f32 %v2308, %v1738
  %v2310 = vadd.f32 %v2309, %v1741
  %v2311 = vadd.f32 %v2310, %v1746
  %v2312 = vadd.f32 %v2311, %v1749
  %v2313 = vadd.f32 %v2312, %v1754
  %v2314 = vadd.f32 %v2313, %v1757
  %v2315 = vadd.f32 %v2314, %v1762
  %v2316 = vadd.f32 %v2315, %v1765
  %v2317 = vadd.f32 %v2316, %v1770
  %v2318 = vadd.f32 %v2317, %v1773
  %v2319 = vadd.f32 %v2318, %v1778
  %v2320 = vadd.f32 %v2319, %v1781
  %v2321 = vadd.f32 %v2320, %v1786
  %v2322 = vadd.f32 %v2321, %v1789
  %v2323 = vadd.f32 %v2322, %v1794
  %v2324 = vadd.f32 %v2323, %v1797
  %v2325 = vadd.f32 %v2324, %v1802
  %v2326 = vadd.f32 %v2325, %v1805
  %v2327 = vadd.f32 %v2326, %v1810
  %v2328 = vadd.f32 %v2327, %v1813
  %v2329 = vadd.f32 %v2328, %v1818
  %v2330 = vadd.f32 %v2329, %v1821
  %v2331 = vadd.f32 %v2330, %v1826
  %v2332 = vadd.f32 %v2331, %v1829
  %v2333 = vadd.f32 %v2332, %v1834
  %v2334 = vadd.f32 %v2333, %v1837
  %v2335 = vadd.f32 %v2334, %v1842
  %v2336 = vadd.f32 %v2335, %v1845
  %v2337 = vadd.f32 %v2336, %v1850
  %v2338 = vadd.f32 %v2337, %v1853
  %v2339 = vadd.f32 %v2338, %v1858
  %v2340 = vadd.f32 %v2339, %v1861
  %v2341 = vadd.f32 %v2340, %v1866
  %v2342 = vadd.f32 %v2341, %v1869
  %v2343 = vadd.f32 %v2342, %v1874
  %v2344 = vadd.f32 %v2343, %v1877
  %v2345 = vadd.f32 %v2344, %v1882
  %v2346 = vadd.f32 %v2345, %v1885
  %v2347 = vadd.f32 %v2346, %v1890
  %v2348 = vadd.f32 %v2347, %v1893
  %v2349 = vadd.f32 %v2348, %v1898
  %v2350 = vadd.f32 %v2349, %v1901
  %v2351 = vadd.f32 %v2350, %v1906
  %v2352 = vadd.f32 %v2351, %v1909
  %v2353 = vadd.f32 %v2352, %v1914
  %v2354 = vadd.f32 %v2353, %v1917
  %v2355 = vadd.f32 %v2354, %v1922
  %v2356 = vadd.f32 %v2355, %v1925
  %v2357 = vadd.f32 %v2356, %v1930
  %v2358 = vadd.f32 %v2357, %v1933
  %v2359 = vadd.f32 %v2358, %v1938
  %v2360 = vadd.f32 %v2359, %v1941
  %v2361 = vadd.f32 %v2360, %v1946
  %v2362 = vadd.f32 %v2361, %v1949
  %v2363 = vadd.f32 %v2362, %v1954
  %v2364 = vadd.f32 %v2363, %v1957
  %v2365 = vadd.f32 %v2364, %v1962
  %v2366 = vadd.f32 %v2365, %v1965
  %v2367 = vadd.f32 %v2366, %v1970
  %v2368 = vadd.f32 %v2367, %v1973
  %v2369 = vadd.f32 %v2368, %v1978
  %v2370 = vadd.f32 %v2369, %v1981
  %v2371 = vadd.f32 %v2370, %v1986
  %v2372 = vadd.f32 %v2371, %v1989
  %v2373 = vadd.f32 %v2372, %v1994
  %v2374 = vadd.f32 %v2373, %v1997
  %v2375 = vadd.f32 %v2374, %v2002
  %v2376 = vadd.f32 %v2375, %v2005
  %v2377 = vadd.f32 %v2376, %v2010
  %v2378 = vadd.f32 %v2377, %v2013
  %v2379 = vadd.f32 %v2378, %v2018
  %v2380 = vadd.f32 %v2379, %v2021
  %v2381 = vadd.f32 %v2380, %v2026
  %v2382 = vadd.f32 %v2381, %v2029
  %v2383 = vadd.f32 %v2382, %v2034
  %v2384 = vadd.f32 %v2383, %v2037
  %v2385 = vadd.f32 %v2384, %v2042
  %v2386 = vadd.f32 %v2385, %v2045
  %v2387 = vadd.f32 %v2386, %v2050
  %v2388 = vadd.f32 %v2387, %v2053
  %v2389 = vadd.f32 %v2388, %v2058
  %v2390 = vadd.f32 %v2389, %v2061
  %v2391 = vadd.f32 %v2390, %v2066
  %v2392 = vadd.f32 %v2391, %v2069
  %v2393 = vadd.f32 %v2392, %v2074
  %v2394 = vadd.f32 %v2393, %v2077
  %v2395 = vadd.f32 %v2394, %v2082
  %v2396 = vadd.f32 %v2395, %v2085
  %v2397 = vadd.f32 %v2396, %v2090
  %v2398 = vadd.f32 %v2397, %v2093
  %v2399 = vadd.f32 %v2398, %v2098
  %v2400 = vadd.f32 %v2399, %v2101
  %v2401 = vadd.f32 %v2400, %v2106
  %v2402 = vadd.f32 %v2401, %v2109
  %v2403 = vadd.f32 %v2402, %v2114
  %v2404 = vadd.f32 %v2403, %v2117
  %v2405 = vadd.f32 %v2404, %v2122
  %v2406 = vadd.f32 %v2405, %v2125
  %v2407 = vadd.f32 %v2406, %v2130
  %v2408 = vadd.f32 %v2407, %v2133
  %v2409 = vadd.f32 %v2408, %v2138
  %v2410 = vadd.f32 %v2409, %v2141
  %v2411 = vadd.f32 %v2410, %v2146
  %v2412 = vadd.f32 %v2411, %v2149
  %v2413 = vadd.f32 %v2412, %v2154
  %v2414 = vadd.f32 %v2413, %v2157
  %v2415 = vrot.slane %v2414, 4
  %v2416 = vadd.f32 %v2414, %v2415
  %v2417 = vrot.slane %v2416, 2
  %v2418 = vadd.f32 %v2416, %v2417
  %v2419 = vrot.slane %v2418, 1
  %v2420 = vadd.f32 %v2418, %v2419
  %v2421 = vmul.f32 %v2420, 0.00048828125
  %v2422 = vmul.f32 %v1138, %v1138
  %v2423 = vmul.f32 %v1141, %v1141
  %v2424 = vmul.f32 %v1146, %v1146
  %v2425 = vmul.f32 %v1149, %v1149
  %v2426 = vmul.f32 %v1154, %v1154
  %v2427 = vmul.f32 %v1157, %v1157
  %v2428 = vmul.f32 %v1162, %v1162
  %v2429 = vmul.f32 %v1165, %v1165
  %v2430 = vmul.f32 %v1170, %v1170
  %v2431 = vmul.f32 %v1173, %v1173
  %v2432 = vmul.f32 %v1178, %v1178
  %v2433 = vmul.f32 %v1181, %v1181
  %v2434 = vmul.f32 %v1186, %v1186
  %v2435 = vmul.f32 %v1189, %v1189
  %v2436 = vmul.f32 %v1194, %v1194
  %v2437 = vmul.f32 %v1197, %v1197
  %v2438 = vmul.f32 %v1202, %v1202
  %v2439 = vmul.f32 %v1205, %v1205
  %v2440 = vmul.f32 %v1210, %v1210
  %v2441 = vmul.f32 %v1213, %v1213
  %v2442 = vmul.f32 %v1218, %v1218
  %v2443 = vmul.f32 %v1221, %v1221
  %v2444 = vmul.f32 %v1226, %v1226
  %v2445 = vmul.f32 %v1229, %v1229
  %v2446 = vmul.f32 %v1234, %v1234
  %v2447 = vmul.f32 %v1237, %v1237
  %v2448 = vmul.f32 %v1242, %v1242
  %v2449 = vmul.f32 %v1245, %v1245
  %v2450 = vmul.f32 %v1250, %v1250
  %v2451 = vmul.f32 %v1253, %v1253
  %v2452 = vmul.f32 %v1258, %v1258
  %v2453 = vmul.f32 %v1261, %v1261
  %v2454 = vmul.f32 %v1266, %v1266
  %v2455 = vmul.f32 %v1269, %v1269
  %v2456 = vmul.f32 %v1274, %v1274
  %v2457 = vmul.f32 %v1277, %v1277
  %v2458 = vmul.f32 %v1282, %v1282
  %v2459 = vmul.f32 %v1285, %v1285
  %v2460 = vmul.f32 %v1290, %v1290
  %v2461 = vmul.f32 %v1293, %v1293
  %v2462 = vmul.f32 %v1298, %v1298
  %v2463 = vmul.f32 %v1301, %v1301
  %v2464 = vmul.f32 %v1306, %v1306
  %v2465 = vmul.f32 %v1309, %v1309
  %v2466 = vmul.f32 %v1314, %v1314
  %v2467 = vmul.f32 %v1317, %v1317
  %v2468 = vmul.f32 %v1322, %v1322
  %v2469 = vmul.f32 %v1325, %v1325
  %v2470 = vmul.f32 %v1330, %v1330
  %v2471 = vmul.f32 %v1333, %v1333
  %v2472 = vmul.f32 %v1338, %v1338
  %v2473 = vmul.f32 %v1341, %v1341
  %v2474 = vmul.f32 %v1346, %v1346
  %v2475 = vmul.f32 %v1349, %v1349
  %v2476 = vmul.f32 %v1354, %v1354
  %v2477 = vmul.f32 %v1357, %v1357
  %v2478 = vmul.f32 %v1362, %v1362
  %v2479 = vmul.f32 %v1365, %v1365
  %v2480 = vmul.f32 %v1370, %v1370
  %v2481 = vmul.f32 %v1373, %v1373
  %v2482 = vmul.f32 %v1378, %v1378
  %v2483 = vmul.f32 %v1381, %v1381
  %v2484 = vmul.f32 %v1386, %v1386
  %v2485 = vmul.f32 %v1389, %v1389
  %v2486 = vmul.f32 %v1394, %v1394
  %v2487 = vmul.f32 %v1397, %v1397
  %v2488 = vmul.f32 %v1402, %v1402
  %v2489 = vmul.f32 %v1405, %v1405
  %v2490 = vmul.f32 %v1410, %v1410
  %v2491 = vmul.f32 %v1413, %v1413
  %v2492 = vmul.f32 %v1418, %v1418
  %v2493 = vmul.f32 %v1421, %v1421
  %v2494 = vmul.f32 %v1426, %v1426
  %v2495 = vmul.f32 %v1429, %v1429
  %v2496 = vmul.f32 %v1434, %v1434
  %v2497 = vmul.f32 %v1437, %v1437
  %v2498 = vmul.f32 %v1442, %v1442
  %v2499 = vmul.f32 %v1445, %v1445
  %v2500 = vmul.f32 %v1450, %v1450
  %v2501 = vmul.f32 %v1453, %v1453
  %v2502 = vmul.f32 %v1458, %v1458
  %v2503 = vmul.f32 %v1461, %v1461
  %v2504 = vmul.f32 %v1466, %v1466
  %v2505 = vmul.f32 %v1469, %v1469
  %v2506 = vmul.f32 %v1474, %v1474
  %v2507 = vmul.f32 %v1477, %v1477
  %v2508 = vmul.f32 %v1482, %v1482
  %v2509 = vmul.f32 %v1485, %v1485
  %v2510 = vmul.f32 %v1490, %v1490
  %v2511 = vmul.f32 %v1493, %v1493
  %v2512 = vmul.f32 %v1498, %v1498
  %v2513 = vmul.f32 %v1501, %v1501
  %v2514 = vmul.f32 %v1506, %v1506
  %v2515 = vmul.f32 %v1509, %v1509
  %v2516 = vmul.f32 %v1514, %v1514
  %v2517 = vmul.f32 %v1517, %v1517
  %v2518 = vmul.f32 %v1522, %v1522
  %v2519 = vmul.f32 %v1525, %v1525
  %v2520 = vmul.f32 %v1530, %v1530
  %v2521 = vmul.f32 %v1533, %v1533
  %v2522 = vmul.f32 %v1538, %v1538
  %v2523 = vmul.f32 %v1541, %v1541
  %v2524 = vmul.f32 %v1546, %v1546
  %v2525 = vmul.f32 %v1549, %v1549
  %v2526 = vmul.f32 %v1554, %v1554
  %v2527 = vmul.f32 %v1557, %v1557
  %v2528 = vmul.f32 %v1562, %v1562
  %v2529 = vmul.f32 %v1565, %v1565
  %v2530 = vmul.f32 %v1570, %v1570
  %v2531 = vmul.f32 %v1573, %v1573
  %v2532 = vmul.f32 %v1578, %v1578
  %v2533 = vmul.f32 %v1581, %v1581
  %v2534 = vmul.f32 %v1586, %v1586
  %v2535 = vmul.f32 %v1589, %v1589
  %v2536 = vmul.f32 %v1594, %v1594
  %v2537 = vmul.f32 %v1597, %v1597
  %v2538 = vmul.f32 %v1602, %v1602
  %v2539 = vmul.f32 %v1605, %v1605
  %v2540 = vmul.f32 %v1610, %v1610
  %v2541 = vmul.f32 %v1613, %v1613
  %v2542 = vmul.f32 %v1618, %v1618
  %v2543 = vmul.f32 %v1621, %v1621
  %v2544 = vmul.f32 %v1626, %v1626
  %v2545 = vmul.f32 %v1629, %v1629
  %v2546 = vmul.f32 %v1634, %v1634
  %v2547 = vmul.f32 %v1637, %v1637
  %v2548 = vmul.f32 %v1642, %v1642
  %v2549 = vmul.f32 %v1645, %v1645
  %v2550 = vmul.f32 %v1650, %v1650
  %v2551 = vmul.f32 %v1653, %v1653
  %v2552 = vmul.f32 %v1658, %v1658
  %v2553 = vmul.f32 %v1661, %v1661
  %v2554 = vmul.f32 %v1666, %v1666
  %v2555 = vmul.f32 %v1669, %v1669
  %v2556 = vmul.f32 %v1674, %v1674
  %v2557 = vmul.f32 %v1677, %v1677
  %v2558 = vmul.f32 %v1682, %v1682
  %v2559 = vmul.f32 %v1685, %v1685
  %v2560 = vmul.f32 %v1690, %v1690
  %v2561 = vmul.f32 %v1693, %v1693
  %v2562 = vmul.f32 %v1698, %v1698
  %v2563 = vmul.f32 %v1701, %v1701
  %v2564 = vmul.f32 %v1706, %v1706
  %v2565 = vmul.f32 %v1709, %v1709
  %v2566 = vmul.f32 %v1714, %v1714
  %v2567 = vmul.f32 %v1717, %v1717
  %v2568 = vmul.f32 %v1722, %v1722
  %v2569 = vmul.f32 %v1725, %v1725
  %v2570 = vmul.f32 %v1730, %v1730
  %v2571 = vmul.f32 %v1733, %v1733
  %v2572 = vmul.f32 %v1738, %v1738
  %v2573 = vmul.f32 %v1741, %v1741
  %v2574 = vmul.f32 %v1746, %v1746
  %v2575 = vmul.f32 %v1749, %v1749
  %v2576 = vmul.f32 %v1754, %v1754
  %v2577 = vmul.f32 %v1757, %v1757
  %v2578 = vmul.f32 %v1762, %v1762
  %v2579 = vmul.f32 %v1765, %v1765
  %v2580 = vmul.f32 %v1770, %v1770
  %v2581 = vmul.f32 %v1773, %v1773
  %v2582 = vmul.f32 %v1778, %v1778
  %v2583 = vmul.f32 %v1781, %v1781
  %v2584 = vmul.f32 %v1786, %v1786
  %v2585 = vmul.f32 %v1789, %v1789
  %v2586 = vmul.f32 %v1794, %v1794
  %v2587 = vmul.f32 %v1797, %v1797
  %v2588 = vmul.f32 %v1802, %v1802
  %v2589 = vmul.f32 %v1805, %v1805
  %v2590 = vmul.f32 %v1810, %v1810
  %v2591 = vmul.f32 %v1813, %v1813
  %v2592 = vmul.f32 %v1818, %v1818
  %v2593 = vmul.f32 %v1821, %v1821
  %v2594 = vmul.f32 %v1826, %v1826
  %v2595 = vmul.f32 %v1829, %v1829
  %v2596 = vmul.f32 %v1834, %v1834
  %v2597 = vmul.f32 %v1837, %v1837
  %v2598 = vmul.f32 %v1842, %v1842
  %v2599 = vmul.f32 %v1845, %v1845
  %v2600 = vmul.f32 %v1850, %v1850
  %v2601 = vmul.f32 %v1853, %v1853
  %v2602 = vmul.f32 %v1858, %v1858
  %v2603 = vmul.f32 %v1861, %v1861
  %v2604 = vmul.f32 %v1866, %v1866
  %v2605 = vmul.f32 %v1869, %v1869
  %v2606 = vmul.f32 %v1874, %v1874
  %v2607 = vmul.f32 %v1877, %v1877
  %v2608 = vmul.f32 %v1882, %v1882
  %v2609 = vmul.f32 %v1885, %v1885
  %v2610 = vmul.f32 %v1890, %v1890
  %v2611 = vmul.f32 %v1893, %v1893
  %v2612 = vmul.f32 %v1898, %v1898
  %v2613 = vmul.f32 %v1901, %v1901
  %v2614 = vmul.f32 %v1906, %v1906
  %v2615 = vmul.f32 %v1909, %v1909
  %v2616 = vmul.f32 %v1914, %v1914
  %v2617 = vmul.f32 %v1917, %v1917
  %v2618 = vmul.f32 %v1922, %v1922
  %v2619 = vmul.f32 %v1925, %v1925
  %v2620 = vmul.f32 %v1930, %v1930
  %v2621 = vmul.f32 %v1933, %v1933
  %v2622 = vmul.f32 %v1938, %v1938
  %v2623 = vmul.f32 %v1941, %v1941
  %v2624 = vmul.f32 %v1946, %v1946
  %v2625 = vmul.f32 %v1949, %v1949
  %v2626 = vmul.f32 %v1954, %v1954
  %v2627 = vmul.f32 %v1957, %v1957
  %v2628 = vmul.f32 %v1962, %v1962
  %v2629 = vmul.f32 %v1965, %v1965
  %v2630 = vmul.f32 %v1970, %v1970
  %v2631 = vmul.f32 %v1973, %v1973
  %v2632 = vmul.f32 %v1978, %v1978
  %v2633 = vmul.f32 %v1981, %v1981
  %v2634 = vmul.f32 %v1986, %v1986
  %v2635 = vmul.f32 %v1989, %v1989
  %v2636 = vmul.f32 %v1994, %v1994
  %v2637 = vmul.f32 %v1997, %v1997
  %v2638 = vmul.f32 %v2002, %v2002
  %v2639 = vmul.f32 %v2005, %v2005
  %v2640 = vmul.f32 %v2010, %v2010
  %v2641 = vmul.f32 %v2013, %v2013
  %v2642 = vmul.f32 %v2018, %v2018
  %v2643 = vmul.f32 %v2021, %v2021
  %v2644 = vmul.f32 %v2026, %v2026
  %v2645 = vmul.f32 %v2029, %v2029
  %v2646 = vmul.f32 %v2034, %v2034
  %v2647 = vmul.f32 %v2037, %v2037
  %v2648 = vmul.f32 %v2042, %v2042
  %v2649 = vmul.f32 %v2045, %v2045
  %v2650 = vmul.f32 %v2050, %v2050
  %v2651 = vmul.f32 %v2053, %v2053
  %v2652 = vmul.f32 %v2058, %v2058
  %v2653 = vmul.f32 %v2061, %v2061
  %v2654 = vmul.f32 %v2066, %v2066
  %v2655 = vmul.f32 %v2069, %v2069
  %v2656 = vmul.f32 %v2074, %v2074
  %v2657 = vmul.f32 %v2077, %v2077
  %v2658 = vmul.f32 %v2082, %v2082
  %v2659 = vmul.f32 %v2085, %v2085
  %v2660 = vmul.f32 %v2090, %v2090
  %v2661 = vmul.f32 %v2093, %v2093
  %v2662 = vmul.f32 %v2098, %v2098
  %v2663 = vmul.f32 %v2101, %v2101
  %v2664 = vmul.f32 %v2106, %v2106
  %v2665 = vmul.f32 %v2109, %v2109
  %v2666 = vmul.f32 %v2114, %v2114
  %v2667 = vmul.f32 %v2117, %v2117
  %v2668 = vmul.f32 %v2122, %v2122
  %v2669 = vmul.f32 %v2125, %v2125
  %v2670 = vmul.f32 %v2130, %v2130
  %v2671 = vmul.f32 %v2133, %v2133
  %v2672 = vmul.f32 %v2138, %v2138
  %v2673 = vmul.f32 %v2141, %v2141
  %v2674 = vmul.f32 %v2146, %v2146
  %v2675 = vmul.f32 %v2149, %v2149
  %v2676 = vmul.f32 %v2154, %v2154
  %v2677 = vmul.f32 %v2157, %v2157
  %v2678 = vadd.f32 %v2422, %v2423
  %v2679 = vadd.f32 %v2678, %v2424
  %v2680 = vadd.f32 %v2679, %v2425
  %v2681 = vadd.f32 %v2680, %v2426
  %v2682 = vadd.f32 %v2681, %v2427
  %v2683 = vadd.f32 %v2682, %v2428
  %v2684 = vadd.f32 %v2683, %v2429
  %v2685 = vadd.f32 %v2684, %v2430
  %v2686 = vadd.f32 %v2685, %v2431
  %v2687 = vadd.f32 %v2686, %v2432
  %v2688 = vadd.f32 %v2687, %v2433
  %v2689 = vadd.f32 %v2688, %v2434
  %v2690 = vadd.f32 %v2689, %v2435
  %v2691 = vadd.f32 %v2690, %v2436
  %v2692 = vadd.f32 %v2691, %v2437
  %v2693 = vadd.f32 %v2692, %v2438
  %v2694 = vadd.f32 %v2693, %v2439
  %v2695 = vadd.f32 %v2694, %v2440
  %v2696 = vadd.f32 %v2695, %v2441
  %v2697 = vadd.f32 %v2696, %v2442
  %v2698 = vadd.f32 %v2697, %v2443
  %v2699 = vadd.f32 %v2698, %v2444
  %v2700 = vadd.f32 %v2699, %v2445
  %v2701 = vadd.f32 %v2700, %v2446
  %v2702 = vadd.f32 %v2701, %v2447
  %v2703 = vadd.f32 %v2702, %v2448
  %v2704 = vadd.f32 %v2703, %v2449
  %v2705 = vadd.f32 %v2704, %v2450
  %v2706 = vadd.f32 %v2705, %v2451
  %v2707 = vadd.f32 %v2706, %v2452
  %v2708 = vadd.f32 %v2707, %v2453
  %v2709 = vadd.f32 %v2708, %v2454
  %v2710 = vadd.f32 %v2709, %v2455
  %v2711 = vadd.f32 %v2710, %v2456
  %v2712 = vadd.f32 %v2711, %v2457
  %v2713 = vadd.f32 %v2712, %v2458
  %v2714 = vadd.f32 %v2713, %v2459
  %v2715 = vadd.f32 %v2714, %v2460
  %v2716 = vadd.f32 %v2715, %v2461
  %v2717 = vadd.f32 %v2716, %v2462
  %v2718 = vadd.f32 %v2717, %v2463
  %v2719 = vadd.f32 %v2718, %v2464
  %v2720 = vadd.f32 %v2719, %v2465
  %v2721 = vadd.f32 %v2720, %v2466
  %v2722 = vadd.f32 %v2721, %v2467
  %v2723 = vadd.f32 %v2722, %v2468
  %v2724 = vadd.f32 %v2723, %v2469
  %v2725 = vadd.f32 %v2724, %v2470
  %v2726 = vadd.f32 %v2725, %v2471
  %v2727 = vadd.f32 %v2726, %v2472
  %v2728 = vadd.f32 %v2727, %v2473
  %v2729 = vadd.f32 %v2728, %v2474
  %v2730 = vadd.f32 %v2729, %v2475
  %v2731 = vadd.f32 %v2730, %v2476
  %v2732 = vadd.f32 %v2731, %v2477
  %v2733 = vadd.f32 %v2732, %v2478
  %v2734 = vadd.f32 %v2733, %v2479
  %v2735 = vadd.f32 %v2734, %v2480
  %v2736 = vadd.f32 %v2735, %v2481
  %v2737 = vadd.f32 %v2736, %v2482
  %v2738 = vadd.f32 %v2737, %v2483
  %v2739 = vadd.f32 %v2738, %v2484
  %v2740 = vadd.f32 %v2739, %v2485
  %v2741 = vadd.f32 %v2740, %v2486
  %v2742 = vadd.f32 %v2741, %v2487
  %v2743 = vadd.f32 %v2742, %v2488
  %v2744 = vadd.f32 %v2743, %v2489
  %v2745 = vadd.f32 %v2744, %v2490
  %v2746 = vadd.f32 %v2745, %v2491
  %v2747 = vadd.f32 %v2746, %v2492
  %v2748 = vadd.f32 %v2747, %v2493
  %v2749 = vadd.f32 %v2748, %v2494
  %v2750 = vadd.f32 %v2749, %v2495
  %v2751 = vadd.f32 %v2750, %v2496
  %v2752 = vadd.f32 %v2751, %v2497
  %v2753 = vadd.f32 %v2752, %v2498
  %v2754 = vadd.f32 %v2753, %v2499
  %v2755 = vadd.f32 %v2754, %v2500
  %v2756 = vadd.f32 %v2755, %v2501
  %v2757 = vadd.f32 %v2756, %v2502
  %v2758 = vadd.f32 %v2757, %v2503
  %v2759 = vadd.f32 %v2758, %v2504
  %v2760 = vadd.f32 %v2759, %v2505
  %v2761 = vadd.f32 %v2760, %v2506
  %v2762 = vadd.f32 %v2761, %v2507
  %v2763 = vadd.f32 %v2762, %v2508
  %v2764 = vadd.f32 %v2763, %v2509
  %v2765 = vadd.f32 %v2764, %v2510
  %v2766 = vadd.f32 %v2765, %v2511
  %v2767 = vadd.f32 %v2766, %v2512
  %v2768 = vadd.f32 %v2767, %v2513
  %v2769 = vadd.f32 %v2768, %v2514
  %v2770 = vadd.f32 %v2769, %v2515
  %v2771 = vadd.f32 %v2770, %v2516
  %v2772 = vadd.f32 %v2771, %v2517
  %v2773 = vadd.f32 %v2772, %v2518
  %v2774 = vadd.f32 %v2773, %v2519
  %v2775 = vadd.f32 %v2774, %v2520
  %v2776 = vadd.f32 %v2775, %v2521
  %v2777 = vadd.f32 %v2776, %v2522
  %v2778 = vadd.f32 %v2777, %v2523
  %v2779 = vadd.f32 %v2778, %v2524
  %v2780 = vadd.f32 %v2779, %v2525
  %v2781 = vadd.f32 %v2780, %v2526
  %v2782 = vadd.f32 %v2781, %v2527
  %v2783 = vadd.f32 %v2782, %v2528
  %v2784 = vadd.f32 %v2783, %v2529
  %v2785 = vadd.f32 %v2784, %v2530
  %v2786 = vadd.f32 %v2785, %v2531
  %v2787 = vadd.f32 %v2786, %v2532
  %v2788 = vadd.f32 %v2787, %v2533
  %v2789 = vadd.f32 %v2788, %v2534
  %v2790 = vadd.f32 %v2789, %v2535
  %v2791 = vadd.f32 %v2790, %v2536
  %v2792 = vadd.f32 %v2791, %v2537
  %v2793 = vadd.f32 %v2792, %v2538
  %v2794 = vadd.f32 %v2793, %v2539
  %v2795 = vadd.f32 %v2794, %v2540
  %v2796 = vadd.f32 %v2795, %v2541
  %v2797 = vadd.f32 %v2796, %v2542
  %v2798 = vadd.f32 %v2797, %v2543
  %v2799 = vadd.f32 %v2798, %v2544
  %v2800 = vadd.f32 %v2799, %v2545
  %v2801 = vadd.f32 %v2800, %v2546
  %v2802 = vadd.f32 %v2801, %v2547
  %v2803 = vadd.f32 %v2802, %v2548
  %v2804 = vadd.f32 %v2803, %v2549
  %v2805 = vadd.f32 %v2804, %v2550
  %v2806 = vadd.f32 %v2805, %v2551
  %v2807 = vadd.f32 %v2806, %v2552
  %v2808 = vadd.f32 %v2807, %v2553
  %v2809 = vadd.f32 %v2808, %v2554
  %v2810 = vadd.f32 %v2809, %v2555
  %v2811 = vadd.f32 %v2810, %v2556
  %v2812 = vadd.f32 %v2811, %v2557
  %v2813 = vadd.f32 %v2812, %v2558
  %v2814 = vadd.f32 %v2813, %v2559
  %v2815 = vadd.f32 %v2814, %v2560
  %v2816 = vadd.f32 %v2815, %v2561
  %v2817 = vadd.f32 %v2816, %v2562
  %v2818 = vadd.f32 %v2817, %v2563
  %v2819 = vadd.f32 %v2818, %v2564
  %v2820 = vadd.f32 %v2819, %v2565
  %v2821 = vadd.f32 %v2820, %v2566
  %v2822 = vadd.f32 %v2821, %v2567
  %v2823 = vadd.f32 %v2822, %v2568
  %v2824 = vadd.f32 %v2823, %v2569
  %v2825 = vadd.f32 %v2824, %v2570
  %v2826 = vadd.f32 %v2825, %v2571
  %v2827 = vadd.f32 %v2826, %v2572
  %v2828 = vadd.f32 %v2827, %v2573
  %v2829 = vadd.f32 %v2828, %v2574
  %v2830 = vadd.f32 %v2829, %v2575
  %v2831 = vadd.f32 %v2830, %v2576
  %v2832 = vadd.f32 %v2831, %v2577
  %v2833 = vadd.f32 %v2832, %v2578
  %v2834 = vadd.f32 %v2833, %v2579
  %v2835 = vadd.f32 %v2834, %v2580
  %v2836 = vadd.f32 %v2835, %v2581
  %v2837 = vadd.f32 %v2836, %v2582
  %v2838 = vadd.f32 %v2837, %v2583
  %v2839 = vadd.f32 %v2838, %v2584
  %v2840 = vadd.f32 %v2839, %v2585
  %v2841 = vadd.f32 %v2840, %v2586
  %v2842 = vadd.f32 %v2841, %v2587
  %v2843 = vadd.f32 %v2842, %v2588
  %v2844 = vadd.f32 %v2843, %v2589
  %v2845 = vadd.f32 %v2844, %v2590
  %v2846 = vadd.f32 %v2845, %v2591
  %v2847 = vadd.f32 %v2846, %v2592
  %v2848 = vadd.f32 %v2847, %v2593
  %v2849 = vadd.f32 %v2848, %v2594
  %v2850 = vadd.f32 %v2849, %v2595
  %v2851 = vadd.f32 %v2850, %v2596
  %v2852 = vadd.f32 %v2851, %v2597
  %v2853 = vadd.f32 %v2852, %v2598
  %v2854 = vadd.f32 %v2853, %v2599
  %v2855 = vadd.f32 %v2854, %v2600
  %v2856 = vadd.f32 %v2855, %v2601
  %v2857 = vadd.f32 %v2856, %v2602
  %v2858 = vadd.f32 %v2857, %v2603
  %v2859 = vadd.f32 %v2858, %v2604
  %v2860 = vadd.f32 %v2859, %v2605
  %v2861 = vadd.f32 %v2860, %v2606
  %v2862 = vadd.f32 %v2861, %v2607
  %v2863 = vadd.f32 %v2862, %v2608
  %v2864 = vadd.f32 %v2863, %v2609
  %v2865 = vadd.f32 %v2864, %v2610
  %v2866 = vadd.f32 %v2865, %v2611
  %v2867 = vadd.f32 %v2866, %v2612
  %v2868 = vadd.f32 %v2867, %v2613
  %v2869 = vadd.f32 %v2868, %v2614
  %v2870 = vadd.f32 %v2869, %v2615
  %v2871 = vadd.f32 %v2870, %v2616
  %v2872 = vadd.f32 %v2871, %v2617
  %v2873 = vadd.f32 %v2872, %v2618
  %v2874 = vadd.f32 %v2873, %v2619
  %v2875 = vadd.f32 %v2874, %v2620
  %v2876 = vadd.f32 %v2875, %v2621
  %v2877 = vadd.f32 %v2876, %v2622
  %v2878 = vadd.f32 %v2877, %v2623
  %v2879 = vadd.f32 %v2878, %v2624
  %v2880 = vadd.f32 %v2879, %v2625
  %v2881 = vadd.f32 %v2880, %v2626
  %v2882 = vadd.f32 %v2881, %v2627
  %v2883 = vadd.f32 %v2882, %v2628
  %v2884 = vadd.f32 %v2883, %v2629
  %v2885 = vadd.f32 %v2884, %v2630
  %v2886 = vadd.f32 %v2885, %v2631
  %v2887 = vadd.f32 %v2886, %v2632
  %v2888 = vadd.f32 %v2887, %v2633
  %v2889 = vadd.f32 %v2888, %v2634
  %v2890 = vadd.f32 %v2889, %v2635
  %v2891 = vadd.f32 %v2890, %v2636
  %v2892 = vadd.f32 %v2891, %v2637
  %v2893 = vadd.f32 %v2892, %v2638
  %v2894 = vadd.f32 %v2893, %v2639
  %v2895 = vadd.f32 %v2894, %v2640
  %v2896 = vadd.f32 %v2895, %v2641
  %v2897 = vadd.f32 %v2896, %v2642
  %v2898 = vadd.f32 %v2897, %v2643
  %v2899 = vadd.f32 %v2898, %v2644
  %v2900 = vadd.f32 %v2899, %v2645
  %v2901 = vadd.f32 %v2900, %v2646
  %v2902 = vadd.f32 %v2901, %v2647
  %v2903 = vadd.f32 %v2902, %v2648
  %v2904 = vadd.f32 %v2903, %v2649
  %v2905 = vadd.f32 %v2904, %v2650
  %v2906 = vadd.f32 %v2905, %v2651
  %v2907 = vadd.f32 %v2906, %v2652
  %v2908 = vadd.f32 %v2907, %v2653
  %v2909 = vadd.f32 %v2908, %v2654
  %v2910 = vadd.f32 %v2909, %v2655
  %v2911 = vadd.f32 %v2910, %v2656
  %v2912 = vadd.f32 %v2911, %v2657
  %v2913 = vadd.f32 %v2912, %v2658
  %v2914 = vadd.f32 %v2913, %v2659
  %v2915 = vadd.f32 %v2914, %v2660
  %v2916 = vadd.f32 %v2915, %v2661
  %v2917 = vadd.f32 %v2916, %v2662
  %v2918 = vadd.f32 %v2917, %v2663
  %v2919 = vadd.f32 %v2918, %v2664
  %v2920 = vadd.f32 %v2919, %v2665
  %v2921 = vadd.f32 %v2920, %v2666
  %v2922 = vadd.f32 %v2921, %v2667
  %v2923 = vadd.f32 %v2922, %v2668
  %v2924 = vadd.f32 %v2923, %v2669
  %v2925 = vadd.f32 %v2924, %v2670
  %v2926 = vadd.f32 %v2925, %v2671
  %v2927 = vadd.f32 %v2926, %v2672
  %v2928 = vadd.f32 %v2927, %v2673
  %v2929 = vadd.f32 %v2928, %v2674
  %v2930 = vadd.f32 %v2929, %v2675
  %v2931 = vadd.f32 %v2930, %v2676
  %v2932 = vadd.f32 %v2931, %v2677
  %v2933 = vrot.slane %v2932, 4
  %v2934 = vadd.f32 %v2932, %v2933
  %v2935 = vrot.slane %v2934, 2
  %v2936 = vadd.f32 %v2934, %v2935
  %v2937 = vrot.slane %v2936, 1
  %v2938 = vadd.f32 %v2936, %v2937
  %v2939 = vmul.f32 %v2938, 0.00048828125
  %v2940 = vmul.f32 %v2421, %v2421
  %v2941 = vsub.f32 %v2939, %v2940
  %v2942 = vmax.f32 %v2941, 0.0
  %v2943 = vld [vmem:[%s2] sm:$0x1]
  %v2944 = vld [vmem:[%s2 + $0x1] sm:$0x1]
  %v2945 = vadd.f32 %v2942, 1e-05
  %v2946 = vrsqrt.pop %v2945
  %v2947 = vmul.f32 %v2943, %v2946
  %v2948 = vmul.f32 %v2421, %v2947
  %v2949 = vsub.f32 %v2944, %v2948
  %v2950 = vlaneseq
  %v2951 = vshrl.u32 %v2950, 7
  %v2952 = vsub.s32 0, %v2951
  %v2953 = vrot.slane %v2947, %v2952
  %v2954 = vmul.f32 %v1138, %v2953
  %v2955 = vmul.f32 %v1141, %v2953
  %v2956 = vmul.f32 %v1146, %v2953
  %v2957 = vmul.f32 %v1149, %v2953
  %v2958 = vmul.f32 %v1154, %v2953
  %v2959 = vmul.f32 %v1157, %v2953
  %v2960 = vmul.f32 %v1162, %v2953
  %v2961 = vmul.f32 %v1165, %v2953
  %v2962 = vmul.f32 %v1170, %v2953
  %v2963 = vmul.f32 %v1173, %v2953
  %v2964 = vmul.f32 %v1178, %v2953
  %v2965 = vmul.f32 %v1181, %v2953
  %v2966 = vmul.f32 %v1186, %v2953
  %v2967 = vmul.f32 %v1189, %v2953
  %v2968 = vmul.f32 %v1194, %v2953
  %v2969 = vmul.f32 %v1197, %v2953
  %v2970 = vmul.f32 %v1202, %v2953
  %v2971 = vmul.f32 %v1205, %v2953
  %v2972 = vmul.f32 %v1210, %v2953
  %v2973 = vmul.f32 %v1213, %v2953
  %v2974 = vmul.f32 %v1218, %v2953
  %v2975 = vmul.f32 %v1221, %v2953
  %v2976 = vmul.f32 %v1226, %v2953
  %v2977 = vmul.f32 %v1229, %v2953
  %v2978 = vmul.f32 %v1234, %v2953
  %v2979 = vmul.f32 %v1237, %v2953
  %v2980 = vmul.f32 %v1242, %v2953
  %v2981 = vmul.f32 %v1245, %v2953
  %v2982 = vmul.f32 %v1250, %v2953
  %v2983 = vmul.f32 %v1253, %v2953
  %v2984 = vmul.f32 %v1258, %v2953
  %v2985 = vmul.f32 %v1261, %v2953
  %v2986 = vmul.f32 %v1266, %v2953
  %v2987 = vmul.f32 %v1269, %v2953
  %v2988 = vmul.f32 %v1274, %v2953
  %v2989 = vmul.f32 %v1277, %v2953
  %v2990 = vmul.f32 %v1282, %v2953
  %v2991 = vmul.f32 %v1285, %v2953
  %v2992 = vmul.f32 %v1290, %v2953
  %v2993 = vmul.f32 %v1293, %v2953
  %v2994 = vmul.f32 %v1298, %v2953
  %v2995 = vmul.f32 %v1301, %v2953
  %v2996 = vmul.f32 %v1306, %v2953
  %v2997 = vmul.f32 %v1309, %v2953
  %v2998 = vmul.f32 %v1314, %v2953
  %v2999 = vmul.f32 %v1317, %v2953
  %v3000 = vmul.f32 %v1322, %v2953
  %v3001 = vmul.f32 %v1325, %v2953
  %v3002 = vmul.f32 %v1330, %v2953
  %v3003 = vmul.f32 %v1333, %v2953
  %v3004 = vmul.f32 %v1338, %v2953
  %v3005 = vmul.f32 %v1341, %v2953
  %v3006 = vmul.f32 %v1346, %v2953
  %v3007 = vmul.f32 %v1349, %v2953
  %v3008 = vmul.f32 %v1354, %v2953
  %v3009 = vmul.f32 %v1357, %v2953
  %v3010 = vmul.f32 %v1362, %v2953
  %v3011 = vmul.f32 %v1365, %v2953
  %v3012 = vmul.f32 %v1370, %v2953
  %v3013 = vmul.f32 %v1373, %v2953
  %v3014 = vmul.f32 %v1378, %v2953
  %v3015 = vmul.f32 %v1381, %v2953
  %v3016 = vmul.f32 %v1386, %v2953
  %v3017 = vmul.f32 %v1389, %v2953
  %v3018 = vmul.f32 %v1394, %v2953
  %v3019 = vmul.f32 %v1397, %v2953
  %v3020 = vmul.f32 %v1402, %v2953
  %v3021 = vmul.f32 %v1405, %v2953
  %v3022 = vmul.f32 %v1410, %v2953
  %v3023 = vmul.f32 %v1413, %v2953
  %v3024 = vmul.f32 %v1418, %v2953
  %v3025 = vmul.f32 %v1421, %v2953
  %v3026 = vmul.f32 %v1426, %v2953
  %v3027 = vmul.f32 %v1429, %v2953
  %v3028 = vmul.f32 %v1434, %v2953
  %v3029 = vmul.f32 %v1437, %v2953
  %v3030 = vmul.f32 %v1442, %v2953
  %v3031 = vmul.f32 %v1445, %v2953
  %v3032 = vmul.f32 %v1450, %v2953
  %v3033 = vmul.f32 %v1453, %v2953
  %v3034 = vmul.f32 %v1458, %v2953
  %v3035 = vmul.f32 %v1461, %v2953
  %v3036 = vmul.f32 %v1466, %v2953
  %v3037 = vmul.f32 %v1469, %v2953
  %v3038 = vmul.f32 %v1474, %v2953
  %v3039 = vmul.f32 %v1477, %v2953
  %v3040 = vmul.f32 %v1482, %v2953
  %v3041 = vmul.f32 %v1485, %v2953
  %v3042 = vmul.f32 %v1490, %v2953
  %v3043 = vmul.f32 %v1493, %v2953
  %v3044 = vmul.f32 %v1498, %v2953
  %v3045 = vmul.f32 %v1501, %v2953
  %v3046 = vmul.f32 %v1506, %v2953
  %v3047 = vmul.f32 %v1509, %v2953
  %v3048 = vmul.f32 %v1514, %v2953
  %v3049 = vmul.f32 %v1517, %v2953
  %v3050 = vmul.f32 %v1522, %v2953
  %v3051 = vmul.f32 %v1525, %v2953
  %v3052 = vmul.f32 %v1530, %v2953
  %v3053 = vmul.f32 %v1533, %v2953
  %v3054 = vmul.f32 %v1538, %v2953
  %v3055 = vmul.f32 %v1541, %v2953
  %v3056 = vmul.f32 %v1546, %v2953
  %v3057 = vmul.f32 %v1549, %v2953
  %v3058 = vmul.f32 %v1554, %v2953
  %v3059 = vmul.f32 %v1557, %v2953
  %v3060 = vmul.f32 %v1562, %v2953
  %v3061 = vmul.f32 %v1565, %v2953
  %v3062 = vmul.f32 %v1570, %v2953
  %v3063 = vmul.f32 %v1573, %v2953
  %v3064 = vmul.f32 %v1578, %v2953
  %v3065 = vmul.f32 %v1581, %v2953
  %v3066 = vmul.f32 %v1586, %v2953
  %v3067 = vmul.f32 %v1589, %v2953
  %v3068 = vmul.f32 %v1594, %v2953
  %v3069 = vmul.f32 %v1597, %v2953
  %v3070 = vmul.f32 %v1602, %v2953
  %v3071 = vmul.f32 %v1605, %v2953
  %v3072 = vmul.f32 %v1610, %v2953
  %v3073 = vmul.f32 %v1613, %v2953
  %v3074 = vmul.f32 %v1618, %v2953
  %v3075 = vmul.f32 %v1621, %v2953
  %v3076 = vmul.f32 %v1626, %v2953
  %v3077 = vmul.f32 %v1629, %v2953
  %v3078 = vmul.f32 %v1634, %v2953
  %v3079 = vmul.f32 %v1637, %v2953
  %v3080 = vmul.f32 %v1642, %v2953
  %v3081 = vmul.f32 %v1645, %v2953
  %v3082 = vmul.f32 %v1650, %v2953
  %v3083 = vmul.f32 %v1653, %v2953
  %v3084 = vmul.f32 %v1658, %v2953
  %v3085 = vmul.f32 %v1661, %v2953
  %v3086 = vmul.f32 %v1666, %v2953
  %v3087 = vmul.f32 %v1669, %v2953
  %v3088 = vmul.f32 %v1674, %v2953
  %v3089 = vmul.f32 %v1677, %v2953
  %v3090 = vmul.f32 %v1682, %v2953
  %v3091 = vmul.f32 %v1685, %v2953
  %v3092 = vmul.f32 %v1690, %v2953
  %v3093 = vmul.f32 %v1693, %v2953
  %v3094 = vmul.f32 %v1698, %v2953
  %v3095 = vmul.f32 %v1701, %v2953
  %v3096 = vmul.f32 %v1706, %v2953
  %v3097 = vmul.f32 %v1709, %v2953
  %v3098 = vmul.f32 %v1714, %v2953
  %v3099 = vmul.f32 %v1717, %v2953
  %v3100 = vmul.f32 %v1722, %v2953
  %v3101 = vmul.f32 %v1725, %v2953
  %v3102 = vmul.f32 %v1730, %v2953
  %v3103 = vmul.f32 %v1733, %v2953
  %v3104 = vmul.f32 %v1738, %v2953
  %v3105 = vmul.f32 %v1741, %v2953
  %v3106 = vmul.f32 %v1746, %v2953
  %v3107 = vmul.f32 %v1749, %v2953
  %v3108 = vmul.f32 %v1754, %v2953
  %v3109 = vmul.f32 %v1757, %v2953
  %v3110 = vmul.f32 %v1762, %v2953
  %v3111 = vmul.f32 %v1765, %v2953
  %v3112 = vmul.f32 %v1770, %v2953
  %v3113 = vmul.f32 %v1773, %v2953
  %v3114 = vmul.f32 %v1778, %v2953
  %v3115 = vmul.f32 %v1781, %v2953
  %v3116 = vmul.f32 %v1786, %v2953
  %v3117 = vmul.f32 %v1789, %v2953
  %v3118 = vmul.f32 %v1794, %v2953
  %v3119 = vmul.f32 %v1797, %v2953
  %v3120 = vmul.f32 %v1802, %v2953
  %v3121 = vmul.f32 %v1805, %v2953
  %v3122 = vmul.f32 %v1810, %v2953
  %v3123 = vmul.f32 %v1813, %v2953
  %v3124 = vmul.f32 %v1818, %v2953
  %v3125 = vmul.f32 %v1821, %v2953
  %v3126 = vmul.f32 %v1826, %v2953
  %v3127 = vmul.f32 %v1829, %v2953
  %v3128 = vmul.f32 %v1834, %v2953
  %v3129 = vmul.f32 %v1837, %v2953
  %v3130 = vmul.f32 %v1842, %v2953
  %v3131 = vmul.f32 %v1845, %v2953
  %v3132 = vmul.f32 %v1850, %v2953
  %v3133 = vmul.f32 %v1853, %v2953
  %v3134 = vmul.f32 %v1858, %v2953
  %v3135 = vmul.f32 %v1861, %v2953
  %v3136 = vmul.f32 %v1866, %v2953
  %v3137 = vmul.f32 %v1869, %v2953
  %v3138 = vmul.f32 %v1874, %v2953
  %v3139 = vmul.f32 %v1877, %v2953
  %v3140 = vmul.f32 %v1882, %v2953
  %v3141 = vmul.f32 %v1885, %v2953
  %v3142 = vmul.f32 %v1890, %v2953
  %v3143 = vmul.f32 %v1893, %v2953
  %v3144 = vmul.f32 %v1898, %v2953
  %v3145 = vmul.f32 %v1901, %v2953
  %v3146 = vmul.f32 %v1906, %v2953
  %v3147 = vmul.f32 %v1909, %v2953
  %v3148 = vmul.f32 %v1914, %v2953
  %v3149 = vmul.f32 %v1917, %v2953
  %v3150 = vmul.f32 %v1922, %v2953
  %v3151 = vmul.f32 %v1925, %v2953
  %v3152 = vmul.f32 %v1930, %v2953
  %v3153 = vmul.f32 %v1933, %v2953
  %v3154 = vmul.f32 %v1938, %v2953
  %v3155 = vmul.f32 %v1941, %v2953
  %v3156 = vmul.f32 %v1946, %v2953
  %v3157 = vmul.f32 %v1949, %v2953
  %v3158 = vmul.f32 %v1954, %v2953
  %v3159 = vmul.f32 %v1957, %v2953
  %v3160 = vmul.f32 %v1962, %v2953
  %v3161 = vmul.f32 %v1965, %v2953
  %v3162 = vmul.f32 %v1970, %v2953
  %v3163 = vmul.f32 %v1973, %v2953
  %v3164 = vmul.f32 %v1978, %v2953
  %v3165 = vmul.f32 %v1981, %v2953
  %v3166 = vmul.f32 %v1986, %v2953
  %v3167 = vmul.f32 %v1989, %v2953
  %v3168 = vmul.f32 %v1994, %v2953
  %v3169 = vmul.f32 %v1997, %v2953
  %v3170 = vmul.f32 %v2002, %v2953
  %v3171 = vmul.f32 %v2005, %v2953
  %v3172 = vmul.f32 %v2010, %v2953
  %v3173 = vmul.f32 %v2013, %v2953
  %v3174 = vmul.f32 %v2018, %v2953
  %v3175 = vmul.f32 %v2021, %v2953
  %v3176 = vmul.f32 %v2026, %v2953
  %v3177 = vmul.f32 %v2029, %v2953
  %v3178 = vmul.f32 %v2034, %v2953
  %v3179 = vmul.f32 %v2037, %v2953
  %v3180 = vmul.f32 %v2042, %v2953
  %v3181 = vmul.f32 %v2045, %v2953
  %v3182 = vmul.f32 %v2050, %v2953
  %v3183 = vmul.f32 %v2053, %v2953
  %v3184 = vmul.f32 %v2058, %v2953
  %v3185 = vmul.f32 %v2061, %v2953
  %v3186 = vmul.f32 %v2066, %v2953
  %v3187 = vmul.f32 %v2069, %v2953
  %v3188 = vmul.f32 %v2074, %v2953
  %v3189 = vmul.f32 %v2077, %v2953
  %v3190 = vmul.f32 %v2082, %v2953
  %v3191 = vmul.f32 %v2085, %v2953
  %v3192 = vmul.f32 %v2090, %v2953
  %v3193 = vmul.f32 %v2093, %v2953
  %v3194 = vmul.f32 %v2098, %v2953
  %v3195 = vmul.f32 %v2101, %v2953
  %v3196 = vmul.f32 %v2106, %v2953
  %v3197 = vmul.f32 %v2109, %v2953
  %v3198 = vmul.f32 %v2114, %v2953
  %v3199 = vmul.f32 %v2117, %v2953
  %v3200 = vmul.f32 %v2122, %v2953
  %v3201 = vmul.f32 %v2125, %v2953
  %v3202 = vmul.f32 %v2130, %v2953
  %v3203 = vmul.f32 %v2133, %v2953
  %v3204 = vmul.f32 %v2138, %v2953
  %v3205 = vmul.f32 %v2141, %v2953
  %v3206 = vmul.f32 %v2146, %v2953
  %v3207 = vmul.f32 %v2149, %v2953
  %v3208 = vmul.f32 %v2154, %v2953
  %v3209 = vmul.f32 %v2157, %v2953
  %v3210 = vlaneseq
  %v3211 = vshrl.u32 %v3210, 7
  %v3212 = vsub.s32 0, %v3211
  %v3213 = vrot.slane %v2949, %v3212
  %v3214 = vadd.f32 %v2954, %v3213
  %v3215 = vadd.f32 %v2955, %v3213
  %v3216 = vadd.f32 %v2956, %v3213
  %v3217 = vadd.f32 %v2957, %v3213
  %v3218 = vadd.f32 %v2958, %v3213
  %v3219 = vadd.f32 %v2959, %v3213
  %v3220 = vadd.f32 %v2960, %v3213
  %v3221 = vadd.f32 %v2961, %v3213
  %v3222 = vadd.f32 %v2962, %v3213
  %v3223 = vadd.f32 %v2963, %v3213
  %v3224 = vadd.f32 %v2964, %v3213
  %v3225 = vadd.f32 %v2965, %v3213
  %v3226 = vadd.f32 %v2966, %v3213
  %v3227 = vadd.f32 %v2967, %v3213
  %v3228 = vadd.f32 %v2968, %v3213
  %v3229 = vadd.f32 %v2969, %v3213
  %v3230 = vadd.f32 %v2970, %v3213
  %v3231 = vadd.f32 %v2971, %v3213
  %v3232 = vadd.f32 %v2972, %v3213
  %v3233 = vadd.f32 %v2973, %v3213
  %v3234 = vadd.f32 %v2974, %v3213
  %v3235 = vadd.f32 %v2975, %v3213
  %v3236 = vadd.f32 %v2976, %v3213
  %v3237 = vadd.f32 %v2977, %v3213
  %v3238 = vadd.f32 %v2978, %v3213
  %v3239 = vadd.f32 %v2979, %v3213
  %v3240 = vadd.f32 %v2980, %v3213
  %v3241 = vadd.f32 %v2981, %v3213
  %v3242 = vadd.f32 %v2982, %v3213
  %v3243 = vadd.f32 %v2983, %v3213
  %v3244 = vadd.f32 %v2984, %v3213
  %v3245 = vadd.f32 %v2985, %v3213
  %v3246 = vadd.f32 %v2986, %v3213
  %v3247 = vadd.f32 %v2987, %v3213
  %v3248 = vadd.f32 %v2988, %v3213
  %v3249 = vadd.f32 %v2989, %v3213
  %v3250 = vadd.f32 %v2990, %v3213
  %v3251 = vadd.f32 %v2991, %v3213
  %v3252 = vadd.f32 %v2992, %v3213
  %v3253 = vadd.f32 %v2993, %v3213
  %v3254 = vadd.f32 %v2994, %v3213
  %v3255 = vadd.f32 %v2995, %v3213
  %v3256 = vadd.f32 %v2996, %v3213
  %v3257 = vadd.f32 %v2997, %v3213
  %v3258 = vadd.f32 %v2998, %v3213
  %v3259 = vadd.f32 %v2999, %v3213
  %v3260 = vadd.f32 %v3000, %v3213
  %v3261 = vadd.f32 %v3001, %v3213
  %v3262 = vadd.f32 %v3002, %v3213
  %v3263 = vadd.f32 %v3003, %v3213
  %v3264 = vadd.f32 %v3004, %v3213
  %v3265 = vadd.f32 %v3005, %v3213
  %v3266 = vadd.f32 %v3006, %v3213
  %v3267 = vadd.f32 %v3007, %v3213
  %v3268 = vadd.f32 %v3008, %v3213
  %v3269 = vadd.f32 %v3009, %v3213
  %v3270 = vadd.f32 %v3010, %v3213
  %v3271 = vadd.f32 %v3011, %v3213
  %v3272 = vadd.f32 %v3012, %v3213
  %v3273 = vadd.f32 %v3013, %v3213
  %v3274 = vadd.f32 %v3014, %v3213
  %v3275 = vadd.f32 %v3015, %v3213
  %v3276 = vadd.f32 %v3016, %v3213
  %v3277 = vadd.f32 %v3017, %v3213
  %v3278 = vadd.f32 %v3018, %v3213
  %v3279 = vadd.f32 %v3019, %v3213
  %v3280 = vadd.f32 %v3020, %v3213
  %v3281 = vadd.f32 %v3021, %v3213
  %v3282 = vadd.f32 %v3022, %v3213
  %v3283 = vadd.f32 %v3023, %v3213
  %v3284 = vadd.f32 %v3024, %v3213
  %v3285 = vadd.f32 %v3025, %v3213
  %v3286 = vadd.f32 %v3026, %v3213
  %v3287 = vadd.f32 %v3027, %v3213
  %v3288 = vadd.f32 %v3028, %v3213
  %v3289 = vadd.f32 %v3029, %v3213
  %v3290 = vadd.f32 %v3030, %v3213
  %v3291 = vadd.f32 %v3031, %v3213
  %v3292 = vadd.f32 %v3032, %v3213
  %v3293 = vadd.f32 %v3033, %v3213
  %v3294 = vadd.f32 %v3034, %v3213
  %v3295 = vadd.f32 %v3035, %v3213
  %v3296 = vadd.f32 %v3036, %v3213
  %v3297 = vadd.f32 %v3037, %v3213
  %v3298 = vadd.f32 %v3038, %v3213
  %v3299 = vadd.f32 %v3039, %v3213
  %v3300 = vadd.f32 %v3040, %v3213
  %v3301 = vadd.f32 %v3041, %v3213
  %v3302 = vadd.f32 %v3042, %v3213
  %v3303 = vadd.f32 %v3043, %v3213
  %v3304 = vadd.f32 %v3044, %v3213
  %v3305 = vadd.f32 %v3045, %v3213
  %v3306 = vadd.f32 %v3046, %v3213
  %v3307 = vadd.f32 %v3047, %v3213
  %v3308 = vadd.f32 %v3048, %v3213
  %v3309 = vadd.f32 %v3049, %v3213
  %v3310 = vadd.f32 %v3050, %v3213
  %v3311 = vadd.f32 %v3051, %v3213
  %v3312 = vadd.f32 %v3052, %v3213
  %v3313 = vadd.f32 %v3053, %v3213
  %v3314 = vadd.f32 %v3054, %v3213
  %v3315 = vadd.f32 %v3055, %v3213
  %v3316 = vadd.f32 %v3056, %v3213
  %v3317 = vadd.f32 %v3057, %v3213
  %v3318 = vadd.f32 %v3058, %v3213
  %v3319 = vadd.f32 %v3059, %v3213
  %v3320 = vadd.f32 %v3060, %v3213
  %v3321 = vadd.f32 %v3061, %v3213
  %v3322 = vadd.f32 %v3062, %v3213
  %v3323 = vadd.f32 %v3063, %v3213
  %v3324 = vadd.f32 %v3064, %v3213
  %v3325 = vadd.f32 %v3065, %v3213
  %v3326 = vadd.f32 %v3066, %v3213
  %v3327 = vadd.f32 %v3067, %v3213
  %v3328 = vadd.f32 %v3068, %v3213
  %v3329 = vadd.f32 %v3069, %v3213
  %v3330 = vadd.f32 %v3070, %v3213
  %v3331 = vadd.f32 %v3071, %v3213
  %v3332 = vadd.f32 %v3072, %v3213
  %v3333 = vadd.f32 %v3073, %v3213
  %v3334 = vadd.f32 %v3074, %v3213
  %v3335 = vadd.f32 %v3075, %v3213
  %v3336 = vadd.f32 %v3076, %v3213
  %v3337 = vadd.f32 %v3077, %v3213
  %v3338 = vadd.f32 %v3078, %v3213
  %v3339 = vadd.f32 %v3079, %v3213
  %v3340 = vadd.f32 %v3080, %v3213
  %v3341 = vadd.f32 %v3081, %v3213
  %v3342 = vadd.f32 %v3082, %v3213
  %v3343 = vadd.f32 %v3083, %v3213
  %v3344 = vadd.f32 %v3084, %v3213
  %v3345 = vadd.f32 %v3085, %v3213
  %v3346 = vadd.f32 %v3086, %v3213
  %v3347 = vadd.f32 %v3087, %v3213
  %v3348 = vadd.f32 %v3088, %v3213
  %v3349 = vadd.f32 %v3089, %v3213
  %v3350 = vadd.f32 %v3090, %v3213
  %v3351 = vadd.f32 %v3091, %v3213
  %v3352 = vadd.f32 %v3092, %v3213
  %v3353 = vadd.f32 %v3093, %v3213
  %v3354 = vadd.f32 %v3094, %v3213
  %v3355 = vadd.f32 %v3095, %v3213
  %v3356 = vadd.f32 %v3096, %v3213
  %v3357 = vadd.f32 %v3097, %v3213
  %v3358 = vadd.f32 %v3098, %v3213
  %v3359 = vadd.f32 %v3099, %v3213
  %v3360 = vadd.f32 %v3100, %v3213
  %v3361 = vadd.f32 %v3101, %v3213
  %v3362 = vadd.f32 %v3102, %v3213
  %v3363 = vadd.f32 %v3103, %v3213
  %v3364 = vadd.f32 %v3104, %v3213
  %v3365 = vadd.f32 %v3105, %v3213
  %v3366 = vadd.f32 %v3106, %v3213
  %v3367 = vadd.f32 %v3107, %v3213
  %v3368 = vadd.f32 %v3108, %v3213
  %v3369 = vadd.f32 %v3109, %v3213
  %v3370 = vadd.f32 %v3110, %v3213
  %v3371 = vadd.f32 %v3111, %v3213
  %v3372 = vadd.f32 %v3112, %v3213
  %v3373 = vadd.f32 %v3113, %v3213
  %v3374 = vadd.f32 %v3114, %v3213
  %v3375 = vadd.f32 %v3115, %v3213
  %v3376 = vadd.f32 %v3116, %v3213
  %v3377 = vadd.f32 %v3117, %v3213
  %v3378 = vadd.f32 %v3118, %v3213
  %v3379 = vadd.f32 %v3119, %v3213
  %v3380 = vadd.f32 %v3120, %v3213
  %v3381 = vadd.f32 %v3121, %v3213
  %v3382 = vadd.f32 %v3122, %v3213
  %v3383 = vadd.f32 %v3123, %v3213
  %v3384 = vadd.f32 %v3124, %v3213
  %v3385 = vadd.f32 %v3125, %v3213
  %v3386 = vadd.f32 %v3126, %v3213
  %v3387 = vadd.f32 %v3127, %v3213
  %v3388 = vadd.f32 %v3128, %v3213
  %v3389 = vadd.f32 %v3129, %v3213
  %v3390 = vadd.f32 %v3130, %v3213
  %v3391 = vadd.f32 %v3131, %v3213
  %v3392 = vadd.f32 %v3132, %v3213
  %v3393 = vadd.f32 %v3133, %v3213
  %v3394 = vadd.f32 %v3134, %v3213
  %v3395 = vadd.f32 %v3135, %v3213
  %v3396 = vadd.f32 %v3136, %v3213
  %v3397 = vadd.f32 %v3137, %v3213
  %v3398 = vadd.f32 %v3138, %v3213
  %v3399 = vadd.f32 %v3139, %v3213
  %v3400 = vadd.f32 %v3140, %v3213
  %v3401 = vadd.f32 %v3141, %v3213
  %v3402 = vadd.f32 %v3142, %v3213
  %v3403 = vadd.f32 %v3143, %v3213
  %v3404 = vadd.f32 %v3144, %v3213
  %v3405 = vadd.f32 %v3145, %v3213
  %v3406 = vadd.f32 %v3146, %v3213
  %v3407 = vadd.f32 %v3147, %v3213
  %v3408 = vadd.f32 %v3148, %v3213
  %v3409 = vadd.f32 %v3149, %v3213
  %v3410 = vadd.f32 %v3150, %v3213
  %v3411 = vadd.f32 %v3151, %v3213
  %v3412 = vadd.f32 %v3152, %v3213
  %v3413 = vadd.f32 %v3153, %v3213
  %v3414 = vadd.f32 %v3154, %v3213
  %v3415 = vadd.f32 %v3155, %v3213
  %v3416 = vadd.f32 %v3156, %v3213
  %v3417 = vadd.f32 %v3157, %v3213
  %v3418 = vadd.f32 %v3158, %v3213
  %v3419 = vadd.f32 %v3159, %v3213
  %v3420 = vadd.f32 %v3160, %v3213
  %v3421 = vadd.f32 %v3161, %v3213
  %v3422 = vadd.f32 %v3162, %v3213
  %v3423 = vadd.f32 %v3163, %v3213
  %v3424 = vadd.f32 %v3164, %v3213
  %v3425 = vadd.f32 %v3165, %v3213
  %v3426 = vadd.f32 %v3166, %v3213
  %v3427 = vadd.f32 %v3167, %v3213
  %v3428 = vadd.f32 %v3168, %v3213
  %v3429 = vadd.f32 %v3169, %v3213
  %v3430 = vadd.f32 %v3170, %v3213
  %v3431 = vadd.f32 %v3171, %v3213
  %v3432 = vadd.f32 %v3172, %v3213
  %v3433 = vadd.f32 %v3173, %v3213
  %v3434 = vadd.f32 %v3174, %v3213
  %v3435 = vadd.f32 %v3175, %v3213
  %v3436 = vadd.f32 %v3176, %v3213
  %v3437 = vadd.f32 %v3177, %v3213
  %v3438 = vadd.f32 %v3178, %v3213
  %v3439 = vadd.f32 %v3179, %v3213
  %v3440 = vadd.f32 %v3180, %v3213
  %v3441 = vadd.f32 %v3181, %v3213
  %v3442 = vadd.f32 %v3182, %v3213
  %v3443 = vadd.f32 %v3183, %v3213
  %v3444 = vadd.f32 %v3184, %v3213
  %v3445 = vadd.f32 %v3185, %v3213
  %v3446 = vadd.f32 %v3186, %v3213
  %v3447 = vadd.f32 %v3187, %v3213
  %v3448 = vadd.f32 %v3188, %v3213
  %v3449 = vadd.f32 %v3189, %v3213
  %v3450 = vadd.f32 %v3190, %v3213
  %v3451 = vadd.f32 %v3191, %v3213
  %v3452 = vadd.f32 %v3192, %v3213
  %v3453 = vadd.f32 %v3193, %v3213
  %v3454 = vadd.f32 %v3194, %v3213
  %v3455 = vadd.f32 %v3195, %v3213
  %v3456 = vadd.f32 %v3196, %v3213
  %v3457 = vadd.f32 %v3197, %v3213
  %v3458 = vadd.f32 %v3198, %v3213
  %v3459 = vadd.f32 %v3199, %v3213
  %v3460 = vadd.f32 %v3200, %v3213
  %v3461 = vadd.f32 %v3201, %v3213
  %v3462 = vadd.f32 %v3202, %v3213
  %v3463 = vadd.f32 %v3203, %v3213
  %v3464 = vadd.f32 %v3204, %v3213
  %v3465 = vadd.f32 %v3205, %v3213
  %v3466 = vadd.f32 %v3206, %v3213
  %v3467 = vadd.f32 %v3207, %v3213
  %v3468 = vadd.f32 %v3208, %v3213
  %v3469 = vadd.f32 %v3209, %v3213
  %vm3470 = vcmp.gt.f32.partialorder %v3214, 0.0
  %vm3471 = vcmp.gt.f32.partialorder %v3215, 0.0
  %vm3472 = vcmp.gt.f32.partialorder %v3216, 0.0
  %vm3473 = vcmp.gt.f32.partialorder %v3217, 0.0
  %vm3474 = vcmp.gt.f32.partialorder %v3218, 0.0
  %vm3475 = vcmp.gt.f32.partialorder %v3219, 0.0
  %vm3476 = vcmp.gt.f32.partialorder %v3220, 0.0
  %vm3477 = vcmp.gt.f32.partialorder %v3221, 0.0
  %vm3478 = vcmp.gt.f32.partialorder %v3222, 0.0
  %vm3479 = vcmp.gt.f32.partialorder %v3223, 0.0
  %vm3480 = vcmp.gt.f32.partialorder %v3224, 0.0
  %vm3481 = vcmp.gt.f32.partialorder %v3225, 0.0
  %vm3482 = vcmp.gt.f32.partialorder %v3226, 0.0
  %vm3483 = vcmp.gt.f32.partialorder %v3227, 0.0
  %vm3484 = vcmp.gt.f32.partialorder %v3228, 0.0
  %vm3485 = vcmp.gt.f32.partialorder %v3229, 0.0
  %vm3486 = vcmp.gt.f32.partialorder %v3230, 0.0
  %vm3487 = vcmp.gt.f32.partialorder %v3231, 0.0
  %vm3488 = vcmp.gt.f32.partialorder %v3232, 0.0
  %vm3489 = vcmp.gt.f32.partialorder %v3233, 0.0
  %vm3490 = vcmp.gt.f32.partialorder %v3234, 0.0
  %vm3491 = vcmp.gt.f32.partialorder %v3235, 0.0
  %vm3492 = vcmp.gt.f32.partialorder %v3236, 0.0
  %vm3493 = vcmp.gt.f32.partialorder %v3237, 0.0
  %vm3494 = vcmp.gt.f32.partialorder %v3238, 0.0
  %vm3495 = vcmp.gt.f32.partialorder %v3239, 0.0
  %vm3496 = vcmp.gt.f32.partialorder %v3240, 0.0
  %vm3497 = vcmp.gt.f32.partialorder %v3241, 0.0
  %vm3498 = vcmp.gt.f32.partialorder %v3242, 0.0
  %vm3499 = vcmp.gt.f32.partialorder %v3243, 0.0
  %vm3500 = vcmp.gt.f32.partialorder %v3244, 0.0
  %vm3501 = vcmp.gt.f32.partialorder %v3245, 0.0
  %vm3502 = vcmp.gt.f32.partialorder %v3246, 0.0
  %vm3503 = vcmp.gt.f32.partialorder %v3247, 0.0
  %vm3504 = vcmp.gt.f32.partialorder %v3248, 0.0
  %vm3505 = vcmp.gt.f32.partialorder %v3249, 0.0
  %vm3506 = vcmp.gt.f32.partialorder %v3250, 0.0
  %vm3507 = vcmp.gt.f32.partialorder %v3251, 0.0
  %vm3508 = vcmp.gt.f32.partialorder %v3252, 0.0
  %vm3509 = vcmp.gt.f32.partialorder %v3253, 0.0
  %vm3510 = vcmp.gt.f32.partialorder %v3254, 0.0
  %vm3511 = vcmp.gt.f32.partialorder %v3255, 0.0
  %vm3512 = vcmp.gt.f32.partialorder %v3256, 0.0
  %vm3513 = vcmp.gt.f32.partialorder %v3257, 0.0
  %vm3514 = vcmp.gt.f32.partialorder %v3258, 0.0
  %vm3515 = vcmp.gt.f32.partialorder %v3259, 0.0
  %vm3516 = vcmp.gt.f32.partialorder %v3260, 0.0
  %vm3517 = vcmp.gt.f32.partialorder %v3261, 0.0
  %vm3518 = vcmp.gt.f32.partialorder %v3262, 0.0
  %vm3519 = vcmp.gt.f32.partialorder %v3263, 0.0
  %vm3520 = vcmp.gt.f32.partialorder %v3264, 0.0
  %vm3521 = vcmp.gt.f32.partialorder %v3265, 0.0
  %vm3522 = vcmp.gt.f32.partialorder %v3266, 0.0
  %vm3523 = vcmp.gt.f32.partialorder %v3267, 0.0
  %vm3524 = vcmp.gt.f32.partialorder %v3268, 0.0
  %vm3525 = vcmp.gt.f32.partialorder %v3269, 0.0
  %vm3526 = vcmp.gt.f32.partialorder %v3270, 0.0
  %vm3527 = vcmp.gt.f32.partialorder %v3271, 0.0
  %vm3528 = vcmp.gt.f32.partialorder %v3272, 0.0
  %vm3529 = vcmp.gt.f32.partialorder %v3273, 0.0
  %vm3530 = vcmp.gt.f32.partialorder %v3274, 0.0
  %vm3531 = vcmp.gt.f32.partialorder %v3275, 0.0
  %vm3532 = vcmp.gt.f32.partialorder %v3276, 0.0
  %vm3533 = vcmp.gt.f32.partialorder %v3277, 0.0
  %vm3534 = vcmp.gt.f32.partialorder %v3278, 0.0
  %vm3535 = vcmp.gt.f32.partialorder %v3279, 0.0
  %vm3536 = vcmp.gt.f32.partialorder %v3280, 0.0
  %vm3537 = vcmp.gt.f32.partialorder %v3281, 0.0
  %vm3538 = vcmp.gt.f32.partialorder %v3282, 0.0
  %vm3539 = vcmp.gt.f32.partialorder %v3283, 0.0
  %vm3540 = vcmp.gt.f32.partialorder %v3284, 0.0
  %vm3541 = vcmp.gt.f32.partialorder %v3285, 0.0
  %vm3542 = vcmp.gt.f32.partialorder %v3286, 0.0
  %vm3543 = vcmp.gt.f32.partialorder %v3287, 0.0
  %vm3544 = vcmp.gt.f32.partialorder %v3288, 0.0
  %vm3545 = vcmp.gt.f32.partialorder %v3289, 0.0
  %vm3546 = vcmp.gt.f32.partialorder %v3290, 0.0
  %vm3547 = vcmp.gt.f32.partialorder %v3291, 0.0
  %vm3548 = vcmp.gt.f32.partialorder %v3292, 0.0
  %vm3549 = vcmp.gt.f32.partialorder %v3293, 0.0
  %vm3550 = vcmp.gt.f32.partialorder %v3294, 0.0
  %vm3551 = vcmp.gt.f32.partialorder %v3295, 0.0
  %vm3552 = vcmp.gt.f32.partialorder %v3296, 0.0
  %vm3553 = vcmp.gt.f32.partialorder %v3297, 0.0
  %vm3554 = vcmp.gt.f32.partialorder %v3298, 0.0
  %vm3555 = vcmp.gt.f32.partialorder %v3299, 0.0
  %vm3556 = vcmp.gt.f32.partialorder %v3300, 0.0
  %vm3557 = vcmp.gt.f32.partialorder %v3301, 0.0
  %vm3558 = vcmp.gt.f32.partialorder %v3302, 0.0
  %vm3559 = vcmp.gt.f32.partialorder %v3303, 0.0
  %vm3560 = vcmp.gt.f32.partialorder %v3304, 0.0
  %vm3561 = vcmp.gt.f32.partialorder %v3305, 0.0
  %vm3562 = vcmp.gt.f32.partialorder %v3306, 0.0
  %vm3563 = vcmp.gt.f32.partialorder %v3307, 0.0
  %vm3564 = vcmp.gt.f32.partialorder %v3308, 0.0
  %vm3565 = vcmp.gt.f32.partialorder %v3309, 0.0
  %vm3566 = vcmp.gt.f32.partialorder %v3310, 0.0
  %vm3567 = vcmp.gt.f32.partialorder %v3311, 0.0
  %vm3568 = vcmp.gt.f32.partialorder %v3312, 0.0
  %vm3569 = vcmp.gt.f32.partialorder %v3313, 0.0
  %vm3570 = vcmp.gt.f32.partialorder %v3314, 0.0
  %vm3571 = vcmp.gt.f32.partialorder %v3315, 0.0
  %vm3572 = vcmp.gt.f32.partialorder %v3316, 0.0
  %vm3573 = vcmp.gt.f32.partialorder %v3317, 0.0
  %vm3574 = vcmp.gt.f32.partialorder %v3318, 0.0
  %vm3575 = vcmp.gt.f32.partialorder %v3319, 0.0
  %vm3576 = vcmp.gt.f32.partialorder %v3320, 0.0
  %vm3577 = vcmp.gt.f32.partialorder %v3321, 0.0
  %vm3578 = vcmp.gt.f32.partialorder %v3322, 0.0
  %vm3579 = vcmp.gt.f32.partialorder %v3323, 0.0
  %vm3580 = vcmp.gt.f32.partialorder %v3324, 0.0
  %vm3581 = vcmp.gt.f32.partialorder %v3325, 0.0
  %vm3582 = vcmp.gt.f32.partialorder %v3326, 0.0
  %vm3583 = vcmp.gt.f32.partialorder %v3327, 0.0
  %vm3584 = vcmp.gt.f32.partialorder %v3328, 0.0
  %vm3585 = vcmp.gt.f32.partialorder %v3329, 0.0
  %vm3586 = vcmp.gt.f32.partialorder %v3330, 0.0
  %vm3587 = vcmp.gt.f32.partialorder %v3331, 0.0
  %vm3588 = vcmp.gt.f32.partialorder %v3332, 0.0
  %vm3589 = vcmp.gt.f32.partialorder %v3333, 0.0
  %vm3590 = vcmp.gt.f32.partialorder %v3334, 0.0
  %vm3591 = vcmp.gt.f32.partialorder %v3335, 0.0
  %vm3592 = vcmp.gt.f32.partialorder %v3336, 0.0
  %vm3593 = vcmp.gt.f32.partialorder %v3337, 0.0
  %vm3594 = vcmp.gt.f32.partialorder %v3338, 0.0
  %vm3595 = vcmp.gt.f32.partialorder %v3339, 0.0
  %vm3596 = vcmp.gt.f32.partialorder %v3340, 0.0
  %vm3597 = vcmp.gt.f32.partialorder %v3341, 0.0
  %vm3598 = vcmp.gt.f32.partialorder %v3342, 0.0
  %vm3599 = vcmp.gt.f32.partialorder %v3343, 0.0
  %vm3600 = vcmp.gt.f32.partialorder %v3344, 0.0
  %vm3601 = vcmp.gt.f32.partialorder %v3345, 0.0
  %vm3602 = vcmp.gt.f32.partialorder %v3346, 0.0
  %vm3603 = vcmp.gt.f32.partialorder %v3347, 0.0
  %vm3604 = vcmp.gt.f32.partialorder %v3348, 0.0
  %vm3605 = vcmp.gt.f32.partialorder %v3349, 0.0
  %vm3606 = vcmp.gt.f32.partialorder %v3350, 0.0
  %vm3607 = vcmp.gt.f32.partialorder %v3351, 0.0
  %vm3608 = vcmp.gt.f32.partialorder %v3352, 0.0
  %vm3609 = vcmp.gt.f32.partialorder %v3353, 0.0
  %vm3610 = vcmp.gt.f32.partialorder %v3354, 0.0
  %vm3611 = vcmp.gt.f32.partialorder %v3355, 0.0
  %vm3612 = vcmp.gt.f32.partialorder %v3356, 0.0
  %vm3613 = vcmp.gt.f32.partialorder %v3357, 0.0
  %vm3614 = vcmp.gt.f32.partialorder %v3358, 0.0
  %vm3615 = vcmp.gt.f32.partialorder %v3359, 0.0
  %vm3616 = vcmp.gt.f32.partialorder %v3360, 0.0
  %vm3617 = vcmp.gt.f32.partialorder %v3361, 0.0
  %vm3618 = vcmp.gt.f32.partialorder %v3362, 0.0
  %vm3619 = vcmp.gt.f32.partialorder %v3363, 0.0
  %vm3620 = vcmp.gt.f32.partialorder %v3364, 0.0
  %vm3621 = vcmp.gt.f32.partialorder %v3365, 0.0
  %vm3622 = vcmp.gt.f32.partialorder %v3366, 0.0
  %vm3623 = vcmp.gt.f32.partialorder %v3367, 0.0
  %vm3624 = vcmp.gt.f32.partialorder %v3368, 0.0
  %vm3625 = vcmp.gt.f32.partialorder %v3369, 0.0
  %vm3626 = vcmp.gt.f32.partialorder %v3370, 0.0
  %vm3627 = vcmp.gt.f32.partialorder %v3371, 0.0
  %vm3628 = vcmp.gt.f32.partialorder %v3372, 0.0
  %vm3629 = vcmp.gt.f32.partialorder %v3373, 0.0
  %vm3630 = vcmp.gt.f32.partialorder %v3374, 0.0
  %vm3631 = vcmp.gt.f32.partialorder %v3375, 0.0
  %vm3632 = vcmp.gt.f32.partialorder %v3376, 0.0
  %vm3633 = vcmp.gt.f32.partialorder %v3377, 0.0
  %vm3634 = vcmp.gt.f32.partialorder %v3378, 0.0
  %vm3635 = vcmp.gt.f32.partialorder %v3379, 0.0
  %vm3636 = vcmp.gt.f32.partialorder %v3380, 0.0
  %vm3637 = vcmp.gt.f32.partialorder %v3381, 0.0
  %vm3638 = vcmp.gt.f32.partialorder %v3382, 0.0
  %vm3639 = vcmp.gt.f32.partialorder %v3383, 0.0
  %vm3640 = vcmp.gt.f32.partialorder %v3384, 0.0
  %vm3641 = vcmp.gt.f32.partialorder %v3385, 0.0
  %vm3642 = vcmp.gt.f32.partialorder %v3386, 0.0
  %vm3643 = vcmp.gt.f32.partialorder %v3387, 0.0
  %vm3644 = vcmp.gt.f32.partialorder %v3388, 0.0
  %vm3645 = vcmp.gt.f32.partialorder %v3389, 0.0
  %vm3646 = vcmp.gt.f32.partialorder %v3390, 0.0
  %vm3647 = vcmp.gt.f32.partialorder %v3391, 0.0
  %vm3648 = vcmp.gt.f32.partialorder %v3392, 0.0
  %vm3649 = vcmp.gt.f32.partialorder %v3393, 0.0
  %vm3650 = vcmp.gt.f32.partialorder %v3394, 0.0
  %vm3651 = vcmp.gt.f32.partialorder %v3395, 0.0
  %vm3652 = vcmp.gt.f32.partialorder %v3396, 0.0
  %vm3653 = vcmp.gt.f32.partialorder %v3397, 0.0
  %vm3654 = vcmp.gt.f32.partialorder %v3398, 0.0
  %vm3655 = vcmp.gt.f32.partialorder %v3399, 0.0
  %vm3656 = vcmp.gt.f32.partialorder %v3400, 0.0
  %vm3657 = vcmp.gt.f32.partialorder %v3401, 0.0
  %vm3658 = vcmp.gt.f32.partialorder %v3402, 0.0
  %vm3659 = vcmp.gt.f32.partialorder %v3403, 0.0
  %vm3660 = vcmp.gt.f32.partialorder %v3404, 0.0
  %vm3661 = vcmp.gt.f32.partialorder %v3405, 0.0
  %vm3662 = vcmp.gt.f32.partialorder %v3406, 0.0
  %vm3663 = vcmp.gt.f32.partialorder %v3407, 0.0
  %vm3664 = vcmp.gt.f32.partialorder %v3408, 0.0
  %vm3665 = vcmp.gt.f32.partialorder %v3409, 0.0
  %vm3666 = vcmp.gt.f32.partialorder %v3410, 0.0
  %vm3667 = vcmp.gt.f32.partialorder %v3411, 0.0
  %vm3668 = vcmp.gt.f32.partialorder %v3412, 0.0
  %vm3669 = vcmp.gt.f32.partialorder %v3413, 0.0
  %vm3670 = vcmp.gt.f32.partialorder %v3414, 0.0
  %vm3671 = vcmp.gt.f32.partialorder %v3415, 0.0
  %vm3672 = vcmp.gt.f32.partialorder %v3416, 0.0
  %vm3673 = vcmp.gt.f32.partialorder %v3417, 0.0
  %vm3674 = vcmp.gt.f32.partialorder %v3418, 0.0
  %vm3675 = vcmp.gt.f32.partialorder %v3419, 0.0
  %vm3676 = vcmp.gt.f32.partialorder %v3420, 0.0
  %vm3677 = vcmp.gt.f32.partialorder %v3421, 0.0
  %vm3678 = vcmp.gt.f32.partialorder %v3422, 0.0
  %vm3679 = vcmp.gt.f32.partialorder %v3423, 0.0
  %vm3680 = vcmp.gt.f32.partialorder %v3424, 0.0
  %vm3681 = vcmp.gt.f32.partialorder %v3425, 0.0
  %vm3682 = vcmp.gt.f32.partialorder %v3426, 0.0
  %vm3683 = vcmp.gt.f32.partialorder %v3427, 0.0
  %vm3684 = vcmp.gt.f32.partialorder %v3428, 0.0
  %vm3685 = vcmp.gt.f32.partialorder %v3429, 0.0
  %vm3686 = vcmp.gt.f32.partialorder %v3430, 0.0
  %vm3687 = vcmp.gt.f32.partialorder %v3431, 0.0
  %vm3688 = vcmp.gt.f32.partialorder %v3432, 0.0
  %vm3689 = vcmp.gt.f32.partialorder %v3433, 0.0
  %vm3690 = vcmp.gt.f32.partialorder %v3434, 0.0
  %vm3691 = vcmp.gt.f32.partialorder %v3435, 0.0
  %vm3692 = vcmp.gt.f32.partialorder %v3436, 0.0
  %vm3693 = vcmp.gt.f32.partialorder %v3437, 0.0
  %vm3694 = vcmp.gt.f32.partialorder %v3438, 0.0
  %vm3695 = vcmp.gt.f32.partialorder %v3439, 0.0
  %vm3696 = vcmp.gt.f32.partialorder %v3440, 0.0
  %vm3697 = vcmp.gt.f32.partialorder %v3441, 0.0
  %vm3698 = vcmp.gt.f32.partialorder %v3442, 0.0
  %vm3699 = vcmp.gt.f32.partialorder %v3443, 0.0
  %vm3700 = vcmp.gt.f32.partialorder %v3444, 0.0
  %vm3701 = vcmp.gt.f32.partialorder %v3445, 0.0
  %vm3702 = vcmp.gt.f32.partialorder %v3446, 0.0
  %vm3703 = vcmp.gt.f32.partialorder %v3447, 0.0
  %vm3704 = vcmp.gt.f32.partialorder %v3448, 0.0
  %vm3705 = vcmp.gt.f32.partialorder %v3449, 0.0
  %vm3706 = vcmp.gt.f32.partialorder %v3450, 0.0
  %vm3707 = vcmp.gt.f32.partialorder %v3451, 0.0
  %vm3708 = vcmp.gt.f32.partialorder %v3452, 0.0
  %vm3709 = vcmp.gt.f32.partialorder %v3453, 0.0
  %vm3710 = vcmp.gt.f32.partialorder %v3454, 0.0
  %vm3711 = vcmp.gt.f32.partialorder %v3455, 0.0
  %vm3712 = vcmp.gt.f32.partialorder %v3456, 0.0
  %vm3713 = vcmp.gt.f32.partialorder %v3457, 0.0
  %vm3714 = vcmp.gt.f32.partialorder %v3458, 0.0
  %vm3715 = vcmp.gt.f32.partialorder %v3459, 0.0
  %vm3716 = vcmp.gt.f32.partialorder %v3460, 0.0
  %vm3717 = vcmp.gt.f32.partialorder %v3461, 0.0
  %vm3718 = vcmp.gt.f32.partialorder %v3462, 0.0
  %vm3719 = vcmp.gt.f32.partialorder %v3463, 0.0
  %vm3720 = vcmp.gt.f32.partialorder %v3464, 0.0
  %vm3721 = vcmp.gt.f32.partialorder %v3465, 0.0
  %vm3722 = vcmp.gt.f32.partialorder %v3466, 0.0
  %vm3723 = vcmp.gt.f32.partialorder %v3467, 0.0
  %vm3724 = vcmp.gt.f32.partialorder %v3468, 0.0
  %vm3725 = vcmp.gt.f32.partialorder %v3469, 0.0
  %v3726 = vmul.f32 %v3214, 0.2
  %v3727 = vmul.f32 %v3215, 0.2
  %v3728 = vmul.f32 %v3216, 0.2
  %v3729 = vmul.f32 %v3217, 0.2
  %v3730 = vmul.f32 %v3218, 0.2
  %v3731 = vmul.f32 %v3219, 0.2
  %v3732 = vmul.f32 %v3220, 0.2
  %v3733 = vmul.f32 %v3221, 0.2
  %v3734 = vmul.f32 %v3222, 0.2
  %v3735 = vmul.f32 %v3223, 0.2
  %v3736 = vmul.f32 %v3224, 0.2
  %v3737 = vmul.f32 %v3225, 0.2
  %v3738 = vmul.f32 %v3226, 0.2
  %v3739 = vmul.f32 %v3227, 0.2
  %v3740 = vmul.f32 %v3228, 0.2
  %v3741 = vmul.f32 %v3229, 0.2
  %v3742 = vmul.f32 %v3230, 0.2
  %v3743 = vmul.f32 %v3231, 0.2
  %v3744 = vmul.f32 %v3232, 0.2
  %v3745 = vmul.f32 %v3233, 0.2
  %v3746 = vmul.f32 %v3234, 0.2
  %v3747 = vmul.f32 %v3235, 0.2
  %v3748 = vmul.f32 %v3236, 0.2
  %v3749 = vmul.f32 %v3237, 0.2
  %v3750 = vmul.f32 %v3238, 0.2
  %v3751 = vmul.f32 %v3239, 0.2
  %v3752 = vmul.f32 %v3240, 0.2
  %v3753 = vmul.f32 %v3241, 0.2
  %v3754 = vmul.f32 %v3242, 0.2
  %v3755 = vmul.f32 %v3243, 0.2
  %v3756 = vmul.f32 %v3244, 0.2
  %v3757 = vmul.f32 %v3245, 0.2
  %v3758 = vmul.f32 %v3246, 0.2
  %v3759 = vmul.f32 %v3247, 0.2
  %v3760 = vmul.f32 %v3248, 0.2
  %v3761 = vmul.f32 %v3249, 0.2
  %v3762 = vmul.f32 %v3250, 0.2
  %v3763 = vmul.f32 %v3251, 0.2
  %v3764 = vmul.f32 %v3252, 0.2
  %v3765 = vmul.f32 %v3253, 0.2
  %v3766 = vmul.f32 %v3254, 0.2
  %v3767 = vmul.f32 %v3255, 0.2
  %v3768 = vmul.f32 %v3256, 0.2
  %v3769 = vmul.f32 %v3257, 0.2
  %v3770 = vmul.f32 %v3258, 0.2
  %v3771 = vmul.f32 %v3259, 0.2
  %v3772 = vmul.f32 %v3260, 0.2
  %v3773 = vmul.f32 %v3261, 0.2
  %v3774 = vmul.f32 %v3262, 0.2
  %v3775 = vmul.f32 %v3263, 0.2
  %v3776 = vmul.f32 %v3264, 0.2
  %v3777 = vmul.f32 %v3265, 0.2
  %v3778 = vmul.f32 %v3266, 0.2
  %v3779 = vmul.f32 %v3267, 0.2
  %v3780 = vmul.f32 %v3268, 0.2
  %v3781 = vmul.f32 %v3269, 0.2
  %v3782 = vmul.f32 %v3270, 0.2
  %v3783 = vmul.f32 %v3271, 0.2
  %v3784 = vmul.f32 %v3272, 0.2
  %v3785 = vmul.f32 %v3273, 0.2
  %v3786 = vmul.f32 %v3274, 0.2
  %v3787 = vmul.f32 %v3275, 0.2
  %v3788 = vmul.f32 %v3276, 0.2
  %v3789 = vmul.f32 %v3277, 0.2
  %v3790 = vmul.f32 %v3278, 0.2
  %v3791 = vmul.f32 %v3279, 0.2
  %v3792 = vmul.f32 %v3280, 0.2
  %v3793 = vmul.f32 %v3281, 0.2
  %v3794 = vmul.f32 %v3282, 0.2
  %v3795 = vmul.f32 %v3283, 0.2
  %v3796 = vmul.f32 %v3284, 0.2
  %v3797 = vmul.f32 %v3285, 0.2
  %v3798 = vmul.f32 %v3286, 0.2
  %v3799 = vmul.f32 %v3287, 0.2
  %v3800 = vmul.f32 %v3288, 0.2
  %v3801 = vmul.f32 %v3289, 0.2
  %v3802 = vmul.f32 %v3290, 0.2
  %v3803 = vmul.f32 %v3291, 0.2
  %v3804 = vmul.f32 %v3292, 0.2
  %v3805 = vmul.f32 %v3293, 0.2
  %v3806 = vmul.f32 %v3294, 0.2
  %v3807 = vmul.f32 %v3295, 0.2
  %v3808 = vmul.f32 %v3296, 0.2
  %v3809 = vmul.f32 %v3297, 0.2
  %v3810 = vmul.f32 %v3298, 0.2
  %v3811 = vmul.f32 %v3299, 0.2
  %v3812 = vmul.f32 %v3300, 0.2
  %v3813 = vmul.f32 %v3301, 0.2
  %v3814 = vmul.f32 %v3302, 0.2
  %v3815 = vmul.f32 %v3303, 0.2
  %v3816 = vmul.f32 %v3304, 0.2
  %v3817 = vmul.f32 %v3305, 0.2
  %v3818 = vmul.f32 %v3306, 0.2
  %v3819 = vmul.f32 %v3307, 0.2
  %v3820 = vmul.f32 %v3308, 0.2
  %v3821 = vmul.f32 %v3309, 0.2
  %v3822 = vmul.f32 %v3310, 0.2
  %v3823 = vmul.f32 %v3311, 0.2
  %v3824 = vmul.f32 %v3312, 0.2
  %v3825 = vmul.f32 %v3313, 0.2
  %v3826 = vmul.f32 %v3314, 0.2
  %v3827 = vmul.f32 %v3315, 0.2
  %v3828 = vmul.f32 %v3316, 0.2
  %v3829 = vmul.f32 %v3317, 0.2
  %v3830 = vmul.f32 %v3318, 0.2
  %v3831 = vmul.f32 %v3319, 0.2
  %v3832 = vmul.f32 %v3320, 0.2
  %v3833 = vmul.f32 %v3321, 0.2
  %v3834 = vmul.f32 %v3322, 0.2
  %v3835 = vmul.f32 %v3323, 0.2
  %v3836 = vmul.f32 %v3324, 0.2
  %v3837 = vmul.f32 %v3325, 0.2
  %v3838 = vmul.f32 %v3326, 0.2
  %v3839 = vmul.f32 %v3327, 0.2
  %v3840 = vmul.f32 %v3328, 0.2
  %v3841 = vmul.f32 %v3329, 0.2
  %v3842 = vmul.f32 %v3330, 0.2
  %v3843 = vmul.f32 %v3331, 0.2
  %v3844 = vmul.f32 %v3332, 0.2
  %v3845 = vmul.f32 %v3333, 0.2
  %v3846 = vmul.f32 %v3334, 0.2
  %v3847 = vmul.f32 %v3335, 0.2
  %v3848 = vmul.f32 %v3336, 0.2
  %v3849 = vmul.f32 %v3337, 0.2
  %v3850 = vmul.f32 %v3338, 0.2
  %v3851 = vmul.f32 %v3339, 0.2
  %v3852 = vmul.f32 %v3340, 0.2
  %v3853 = vmul.f32 %v3341, 0.2
  %v3854 = vmul.f32 %v3342, 0.2
  %v3855 = vmul.f32 %v3343, 0.2
  %v3856 = vmul.f32 %v3344, 0.2
  %v3857 = vmul.f32 %v3345, 0.2
  %v3858 = vmul.f32 %v3346, 0.2
  %v3859 = vmul.f32 %v3347, 0.2
  %v3860 = vmul.f32 %v3348, 0.2
  %v3861 = vmul.f32 %v3349, 0.2
  %v3862 = vmul.f32 %v3350, 0.2
  %v3863 = vmul.f32 %v3351, 0.2
  %v3864 = vmul.f32 %v3352, 0.2
  %v3865 = vmul.f32 %v3353, 0.2
  %v3866 = vmul.f32 %v3354, 0.2
  %v3867 = vmul.f32 %v3355, 0.2
  %v3868 = vmul.f32 %v3356, 0.2
  %v3869 = vmul.f32 %v3357, 0.2
  %v3870 = vmul.f32 %v3358, 0.2
  %v3871 = vmul.f32 %v3359, 0.2
  %v3872 = vmul.f32 %v3360, 0.2
  %v3873 = vmul.f32 %v3361, 0.2
  %v3874 = vmul.f32 %v3362, 0.2
  %v3875 = vmul.f32 %v3363, 0.2
  %v3876 = vmul.f32 %v3364, 0.2
  %v3877 = vmul.f32 %v3365, 0.2
  %v3878 = vmul.f32 %v3366, 0.2
  %v3879 = vmul.f32 %v3367, 0.2
  %v3880 = vmul.f32 %v3368, 0.2
  %v3881 = vmul.f32 %v3369, 0.2
  %v3882 = vmul.f32 %v3370, 0.2
  %v3883 = vmul.f32 %v3371, 0.2
  %v3884 = vmul.f32 %v3372, 0.2
  %v3885 = vmul.f32 %v3373, 0.2
  %v3886 = vmul.f32 %v3374, 0.2
  %v3887 = vmul.f32 %v3375, 0.2
  %v3888 = vmul.f32 %v3376, 0.2
  %v3889 = vmul.f32 %v3377, 0.2
  %v3890 = vmul.f32 %v3378, 0.2
  %v3891 = vmul.f32 %v3379, 0.2
  %v3892 = vmul.f32 %v3380, 0.2
  %v3893 = vmul.f32 %v3381, 0.2
  %v3894 = vmul.f32 %v3382, 0.2
  %v3895 = vmul.f32 %v3383, 0.2
  %v3896 = vmul.f32 %v3384, 0.2
  %v3897 = vmul.f32 %v3385, 0.2
  %v3898 = vmul.f32 %v3386, 0.2
  %v3899 = vmul.f32 %v3387, 0.2
  %v3900 = vmul.f32 %v3388, 0.2
  %v3901 = vmul.f32 %v3389, 0.2
  %v3902 = vmul.f32 %v3390, 0.2
  %v3903 = vmul.f32 %v3391, 0.2
  %v3904 = vmul.f32 %v3392, 0.2
  %v3905 = vmul.f32 %v3393, 0.2
  %v3906 = vmul.f32 %v3394, 0.2
  %v3907 = vmul.f32 %v3395, 0.2
  %v3908 = vmul.f32 %v3396, 0.2
  %v3909 = vmul.f32 %v3397, 0.2
  %v3910 = vmul.f32 %v3398, 0.2
  %v3911 = vmul.f32 %v3399, 0.2
  %v3912 = vmul.f32 %v3400, 0.2
  %v3913 = vmul.f32 %v3401, 0.2
  %v3914 = vmul.f32 %v3402, 0.2
  %v3915 = vmul.f32 %v3403, 0.2
  %v3916 = vmul.f32 %v3404, 0.2
  %v3917 = vmul.f32 %v3405, 0.2
  %v3918 = vmul.f32 %v3406, 0.2
  %v3919 = vmul.f32 %v3407, 0.2
  %v3920 = vmul.f32 %v3408, 0.2
  %v3921 = vmul.f32 %v3409, 0.2
  %v3922 = vmul.f32 %v3410, 0.2
  %v3923 = vmul.f32 %v3411, 0.2
  %v3924 = vmul.f32 %v3412, 0.2
  %v3925 = vmul.f32 %v3413, 0.2
  %v3926 = vmul.f32 %v3414, 0.2
  %v3927 = vmul.f32 %v3415, 0.2
  %v3928 = vmul.f32 %v3416, 0.2
  %v3929 = vmul.f32 %v3417, 0.2
  %v3930 = vmul.f32 %v3418, 0.2
  %v3931 = vmul.f32 %v3419, 0.2
  %v3932 = vmul.f32 %v3420, 0.2
  %v3933 = vmul.f32 %v3421, 0.2
  %v3934 = vmul.f32 %v3422, 0.2
  %v3935 = vmul.f32 %v3423, 0.2
  %v3936 = vmul.f32 %v3424, 0.2
  %v3937 = vmul.f32 %v3425, 0.2
  %v3938 = vmul.f32 %v3426, 0.2
  %v3939 = vmul.f32 %v3427, 0.2
  %v3940 = vmul.f32 %v3428, 0.2
  %v3941 = vmul.f32 %v3429, 0.2
  %v3942 = vmul.f32 %v3430, 0.2
  %v3943 = vmul.f32 %v3431, 0.2
  %v3944 = vmul.f32 %v3432, 0.2
  %v3945 = vmul.f32 %v3433, 0.2
  %v3946 = vmul.f32 %v3434, 0.2
  %v3947 = vmul.f32 %v3435, 0.2
  %v3948 = vmul.f32 %v3436, 0.2
  %v3949 = vmul.f32 %v3437, 0.2
  %v3950 = vmul.f32 %v3438, 0.2
  %v3951 = vmul.f32 %v3439, 0.2
  %v3952 = vmul.f32 %v3440, 0.2
  %v3953 = vmul.f32 %v3441, 0.2
  %v3954 = vmul.f32 %v3442, 0.2
  %v3955 = vmul.f32 %v3443, 0.2
  %v3956 = vmul.f32 %v3444, 0.2
  %v3957 = vmul.f32 %v3445, 0.2
  %v3958 = vmul.f32 %v3446, 0.2
  %v3959 = vmul.f32 %v3447, 0.2
  %v3960 = vmul.f32 %v3448, 0.2
  %v3961 = vmul.f32 %v3449, 0.2
  %v3962 = vmul.f32 %v3450, 0.2
  %v3963 = vmul.f32 %v3451, 0.2
  %v3964 = vmul.f32 %v3452, 0.2
  %v3965 = vmul.f32 %v3453, 0.2
  %v3966 = vmul.f32 %v3454, 0.2
  %v3967 = vmul.f32 %v3455, 0.2
  %v3968 = vmul.f32 %v3456, 0.2
  %v3969 = vmul.f32 %v3457, 0.2
  %v3970 = vmul.f32 %v3458, 0.2
  %v3971 = vmul.f32 %v3459, 0.2
  %v3972 = vmul.f32 %v3460, 0.2
  %v3973 = vmul.f32 %v3461, 0.2
  %v3974 = vmul.f32 %v3462, 0.2
  %v3975 = vmul.f32 %v3463, 0.2
  %v3976 = vmul.f32 %v3464, 0.2
  %v3977 = vmul.f32 %v3465, 0.2
  %v3978 = vmul.f32 %v3466, 0.2
  %v3979 = vmul.f32 %v3467, 0.2
  %v3980 = vmul.f32 %v3468, 0.2
  %v3981 = vmul.f32 %v3469, 0.2
  %v3982 = vsel %vm3470, %v3214, %v3726
  %v3983 = vsel %vm3471, %v3215, %v3727
  %v3984 = vsel %vm3472, %v3216, %v3728
  %v3985 = vsel %vm3473, %v3217, %v3729
  %v3986 = vsel %vm3474, %v3218, %v3730
  %v3987 = vsel %vm3475, %v3219, %v3731
  %v3988 = vsel %vm3476, %v3220, %v3732
  %v3989 = vsel %vm3477, %v3221, %v3733
  %v3990 = vsel %vm3478, %v3222, %v3734
  %v3991 = vsel %vm3479, %v3223, %v3735
  %v3992 = vsel %vm3480, %v3224, %v3736
  %v3993 = vsel %vm3481, %v3225, %v3737
  %v3994 = vsel %vm3482, %v3226, %v3738
  %v3995 = vsel %vm3483, %v3227, %v3739
  %v3996 = vsel %vm3484, %v3228, %v3740
  %v3997 = vsel %vm3485, %v3229, %v3741
  %v3998 = vsel %vm3486, %v3230, %v3742
  %v3999 = vsel %vm3487, %v3231, %v3743
  %v4000 = vsel %vm3488, %v3232, %v3744
  %v4001 = vsel %vm3489, %v3233, %v3745
  %v4002 = vsel %vm3490, %v3234, %v3746
  %v4003 = vsel %vm3491, %v3235, %v3747
  %v4004 = vsel %vm3492, %v3236, %v3748
  %v4005 = vsel %vm3493, %v3237, %v3749
  %v4006 = vsel %vm3494, %v3238, %v3750
  %v4007 = vsel %vm3495, %v3239, %v3751
  %v4008 = vsel %vm3496, %v3240, %v3752
  %v4009 = vsel %vm3497, %v3241, %v3753
  %v4010 = vsel %vm3498, %v3242, %v3754
  %v4011 = vsel %vm3499, %v3243, %v3755
  %v4012 = vsel %vm3500, %v3244, %v3756
  %v4013 = vsel %vm3501, %v3245, %v3757
  %v4014 = vsel %vm3502, %v3246, %v3758
  %v4015 = vsel %vm3503, %v3247, %v3759
  %v4016 = vsel %vm3504, %v3248, %v3760
  %v4017 = vsel %vm3505, %v3249, %v3761
  %v4018 = vsel %vm3506, %v3250, %v3762
  %v4019 = vsel %vm3507, %v3251, %v3763
  %v4020 = vsel %vm3508, %v3252, %v3764
  %v4021 = vsel %vm3509, %v3253, %v3765
  %v4022 = vsel %vm3510, %v3254, %v3766
  %v4023 = vsel %vm3511, %v3255, %v3767
  %v4024 = vsel %vm3512, %v3256, %v3768
  %v4025 = vsel %vm3513, %v3257, %v3769
  %v4026 = vsel %vm3514, %v3258, %v3770
  %v4027 = vsel %vm3515, %v3259, %v3771
  %v4028 = vsel %vm3516, %v3260, %v3772
  %v4029 = vsel %vm3517, %v3261, %v3773
  %v4030 = vsel %vm3518, %v3262, %v3774
  %v4031 = vsel %vm3519, %v3263, %v3775
  %v4032 = vsel %vm3520, %v3264, %v3776
  %v4033 = vsel %vm3521, %v3265, %v3777
  %v4034 = vsel %vm3522, %v3266, %v3778
  %v4035 = vsel %vm3523, %v3267, %v3779
  %v4036 = vsel %vm3524, %v3268, %v3780
  %v4037 = vsel %vm3525, %v3269, %v3781
  %v4038 = vsel %vm3526, %v3270, %v3782
  %v4039 = vsel %vm3527, %v3271, %v3783
  %v4040 = vsel %vm3528, %v3272, %v3784
  %v4041 = vsel %vm3529, %v3273, %v3785
  %v4042 = vsel %vm3530, %v3274, %v3786
  %v4043 = vsel %vm3531, %v3275, %v3787
  %v4044 = vsel %vm3532, %v3276, %v3788
  %v4045 = vsel %vm3533, %v3277, %v3789
  %v4046 = vsel %vm3534, %v3278, %v3790
  %v4047 = vsel %vm3535, %v3279, %v3791
  %v4048 = vsel %vm3536, %v3280, %v3792
  %v4049 = vsel %vm3537, %v3281, %v3793
  %v4050 = vsel %vm3538, %v3282, %v3794
  %v4051 = vsel %vm3539, %v3283, %v3795
  %v4052 = vsel %vm3540, %v3284, %v3796
  %v4053 = vsel %vm3541, %v3285, %v3797
  %v4054 = vsel %vm3542, %v3286, %v3798
  %v4055 = vsel %vm3543, %v3287, %v3799
  %v4056 = vsel %vm3544, %v3288, %v3800
  %v4057 = vsel %vm3545, %v3289, %v3801
  %v4058 = vsel %vm3546, %v3290, %v3802
  %v4059 = vsel %vm3547, %v3291, %v3803
  %v4060 = vsel %vm3548, %v3292, %v3804
  %v4061 = vsel %vm3549, %v3293, %v3805
  %v4062 = vsel %vm3550, %v3294, %v3806
  %v4063 = vsel %vm3551, %v3295, %v3807
  %v4064 = vsel %vm3552, %v3296, %v3808
  %v4065 = vsel %vm3553, %v3297, %v3809
  %v4066 = vsel %vm3554, %v3298, %v3810
  %v4067 = vsel %vm3555, %v3299, %v3811
  %v4068 = vsel %vm3556, %v3300, %v3812
  %v4069 = vsel %vm3557, %v3301, %v3813
  %v4070 = vsel %vm3558, %v3302, %v3814
  %v4071 = vsel %vm3559, %v3303, %v3815
  %v4072 = vsel %vm3560, %v3304, %v3816
  %v4073 = vsel %vm3561, %v3305, %v3817
  %v4074 = vsel %vm3562, %v3306, %v3818
  %v4075 = vsel %vm3563, %v3307, %v3819
  %v4076 = vsel %vm3564, %v3308, %v3820
  %v4077 = vsel %vm3565, %v3309, %v3821
  %v4078 = vsel %vm3566, %v3310, %v3822
  %v4079 = vsel %vm3567, %v3311, %v3823
  %v4080 = vsel %vm3568, %v3312, %v3824
  %v4081 = vsel %vm3569, %v3313, %v3825
  %v4082 = vsel %vm3570, %v3314, %v3826
  %v4083 = vsel %vm3571, %v3315, %v3827
  %v4084 = vsel %vm3572, %v3316, %v3828
  %v4085 = vsel %vm3573, %v3317, %v3829
  %v4086 = vsel %vm3574, %v3318, %v3830
  %v4087 = vsel %vm3575, %v3319, %v3831
  %v4088 = vsel %vm3576, %v3320, %v3832
  %v4089 = vsel %vm3577, %v3321, %v3833
  %v4090 = vsel %vm3578, %v3322, %v3834
  %v4091 = vsel %vm3579, %v3323, %v3835
  %v4092 = vsel %vm3580, %v3324, %v3836
  %v4093 = vsel %vm3581, %v3325, %v3837
  %v4094 = vsel %vm3582, %v3326, %v3838
  %v4095 = vsel %vm3583, %v3327, %v3839
  %v4096 = vsel %vm3584, %v3328, %v3840
  %v4097 = vsel %vm3585, %v3329, %v3841
  %v4098 = vsel %vm3586, %v3330, %v3842
  %v4099 = vsel %vm3587, %v3331, %v3843
  %v4100 = vsel %vm3588, %v3332, %v3844
  %v4101 = vsel %vm3589, %v3333, %v3845
  %v4102 = vsel %vm3590, %v3334, %v3846
  %v4103 = vsel %vm3591, %v3335, %v3847
  %v4104 = vsel %vm3592, %v3336, %v3848
  %v4105 = vsel %vm3593, %v3337, %v3849
  %v4106 = vsel %vm3594, %v3338, %v3850
  %v4107 = vsel %vm3595, %v3339, %v3851
  %v4108 = vsel %vm3596, %v3340, %v3852
  %v4109 = vsel %vm3597, %v3341, %v3853
  %v4110 = vsel %vm3598, %v3342, %v3854
  %v4111 = vsel %vm3599, %v3343, %v3855
  %v4112 = vsel %vm3600, %v3344, %v3856
  %v4113 = vsel %vm3601, %v3345, %v3857
  %v4114 = vsel %vm3602, %v3346, %v3858
  %v4115 = vsel %vm3603, %v3347, %v3859
  %v4116 = vsel %vm3604, %v3348, %v3860
  %v4117 = vsel %vm3605, %v3349, %v3861
  %v4118 = vsel %vm3606, %v3350, %v3862
  %v4119 = vsel %vm3607, %v3351, %v3863
  %v4120 = vsel %vm3608, %v3352, %v3864
  %v4121 = vsel %vm3609, %v3353, %v3865
  %v4122 = vsel %vm3610, %v3354, %v3866
  %v4123 = vsel %vm3611, %v3355, %v3867
  %v4124 = vsel %vm3612, %v3356, %v3868
  %v4125 = vsel %vm3613, %v3357, %v3869
  %v4126 = vsel %vm3614, %v3358, %v3870
  %v4127 = vsel %vm3615, %v3359, %v3871
  %v4128 = vsel %vm3616, %v3360, %v3872
  %v4129 = vsel %vm3617, %v3361, %v3873
  %v4130 = vsel %vm3618, %v3362, %v3874
  %v4131 = vsel %vm3619, %v3363, %v3875
  %v4132 = vsel %vm3620, %v3364, %v3876
  %v4133 = vsel %vm3621, %v3365, %v3877
  %v4134 = vsel %vm3622, %v3366, %v3878
  %v4135 = vsel %vm3623, %v3367, %v3879
  %v4136 = vsel %vm3624, %v3368, %v3880
  %v4137 = vsel %vm3625, %v3369, %v3881
  %v4138 = vsel %vm3626, %v3370, %v3882
  %v4139 = vsel %vm3627, %v3371, %v3883
  %v4140 = vsel %vm3628, %v3372, %v3884
  %v4141 = vsel %vm3629, %v3373, %v3885
  %v4142 = vsel %vm3630, %v3374, %v3886
  %v4143 = vsel %vm3631, %v3375, %v3887
  %v4144 = vsel %vm3632, %v3376, %v3888
  %v4145 = vsel %vm3633, %v3377, %v3889
  %v4146 = vsel %vm3634, %v3378, %v3890
  %v4147 = vsel %vm3635, %v3379, %v3891
  %v4148 = vsel %vm3636, %v3380, %v3892
  %v4149 = vsel %vm3637, %v3381, %v3893
  %v4150 = vsel %vm3638, %v3382, %v3894
  %v4151 = vsel %vm3639, %v3383, %v3895
  %v4152 = vsel %vm3640, %v3384, %v3896
  %v4153 = vsel %vm3641, %v3385, %v3897
  %v4154 = vsel %vm3642, %v3386, %v3898
  %v4155 = vsel %vm3643, %v3387, %v3899
  %v4156 = vsel %vm3644, %v3388, %v3900
  %v4157 = vsel %vm3645, %v3389, %v3901
  %v4158 = vsel %vm3646, %v3390, %v3902
  %v4159 = vsel %vm3647, %v3391, %v3903
  %v4160 = vsel %vm3648, %v3392, %v3904
  %v4161 = vsel %vm3649, %v3393, %v3905
  %v4162 = vsel %vm3650, %v3394, %v3906
  %v4163 = vsel %vm3651, %v3395, %v3907
  %v4164 = vsel %vm3652, %v3396, %v3908
  %v4165 = vsel %vm3653, %v3397, %v3909
  %v4166 = vsel %vm3654, %v3398, %v3910
  %v4167 = vsel %vm3655, %v3399, %v3911
  %v4168 = vsel %vm3656, %v3400, %v3912
  %v4169 = vsel %vm3657, %v3401, %v3913
  %v4170 = vsel %vm3658, %v3402, %v3914
  %v4171 = vsel %vm3659, %v3403, %v3915
  %v4172 = vsel %vm3660, %v3404, %v3916
  %v4173 = vsel %vm3661, %v3405, %v3917
  %v4174 = vsel %vm3662, %v3406, %v3918
  %v4175 = vsel %vm3663, %v3407, %v3919
  %v4176 = vsel %vm3664, %v3408, %v3920
  %v4177 = vsel %vm3665, %v3409, %v3921
  %v4178 = vsel %vm3666, %v3410, %v3922
  %v4179 = vsel %vm3667, %v3411, %v3923
  %v4180 = vsel %vm3668, %v3412, %v3924
  %v4181 = vsel %vm3669, %v3413, %v3925
  %v4182 = vsel %vm3670, %v3414, %v3926
  %v4183 = vsel %vm3671, %v3415, %v3927
  %v4184 = vsel %vm3672, %v3416, %v3928
  %v4185 = vsel %vm3673, %v3417, %v3929
  %v4186 = vsel %vm3674, %v3418, %v3930
  %v4187 = vsel %vm3675, %v3419, %v3931
  %v4188 = vsel %vm3676, %v3420, %v3932
  %v4189 = vsel %vm3677, %v3421, %v3933
  %v4190 = vsel %vm3678, %v3422, %v3934
  %v4191 = vsel %vm3679, %v3423, %v3935
  %v4192 = vsel %vm3680, %v3424, %v3936
  %v4193 = vsel %vm3681, %v3425, %v3937
  %v4194 = vsel %vm3682, %v3426, %v3938
  %v4195 = vsel %vm3683, %v3427, %v3939
  %v4196 = vsel %vm3684, %v3428, %v3940
  %v4197 = vsel %vm3685, %v3429, %v3941
  %v4198 = vsel %vm3686, %v3430, %v3942
  %v4199 = vsel %vm3687, %v3431, %v3943
  %v4200 = vsel %vm3688, %v3432, %v3944
  %v4201 = vsel %vm3689, %v3433, %v3945
  %v4202 = vsel %vm3690, %v3434, %v3946
  %v4203 = vsel %vm3691, %v3435, %v3947
  %v4204 = vsel %vm3692, %v3436, %v3948
  %v4205 = vsel %vm3693, %v3437, %v3949
  %v4206 = vsel %vm3694, %v3438, %v3950
  %v4207 = vsel %vm3695, %v3439, %v3951
  %v4208 = vsel %vm3696, %v3440, %v3952
  %v4209 = vsel %vm3697, %v3441, %v3953
  %v4210 = vsel %vm3698, %v3442, %v3954
  %v4211 = vsel %vm3699, %v3443, %v3955
  %v4212 = vsel %vm3700, %v3444, %v3956
  %v4213 = vsel %vm3701, %v3445, %v3957
  %v4214 = vsel %vm3702, %v3446, %v3958
  %v4215 = vsel %vm3703, %v3447, %v3959
  %v4216 = vsel %vm3704, %v3448, %v3960
  %v4217 = vsel %vm3705, %v3449, %v3961
  %v4218 = vsel %vm3706, %v3450, %v3962
  %v4219 = vsel %vm3707, %v3451, %v3963
  %v4220 = vsel %vm3708, %v3452, %v3964
  %v4221 = vsel %vm3709, %v3453, %v3965
  %v4222 = vsel %vm3710, %v3454, %v3966
  %v4223 = vsel %vm3711, %v3455, %v3967
  %v4224 = vsel %vm3712, %v3456, %v3968
  %v4225 = vsel %vm3713, %v3457, %v3969
  %v4226 = vsel %vm3714, %v3458, %v3970
  %v4227 = vsel %vm3715, %v3459, %v3971
  %v4228 = vsel %vm3716, %v3460, %v3972
  %v4229 = vsel %vm3717, %v3461, %v3973
  %v4230 = vsel %vm3718, %v3462, %v3974
  %v4231 = vsel %vm3719, %v3463, %v3975
  %v4232 = vsel %vm3720, %v3464, %v3976
  %v4233 = vsel %vm3721, %v3465, %v3977
  %v4234 = vsel %vm3722, %v3466, %v3978
  %v4235 = vsel %vm3723, %v3467, %v3979
  %v4236 = vsel %vm3724, %v3468, %v3980
  %v4237 = vsel %vm3725, %v3469, %v3981
  %v4238 = vpack.c.bf16 %v3983, %v3982
  %v4239 = vpack.c.bf16 %v3985, %v3984
  %v4240 = vpack.c.bf16 %v3987, %v3986
  %v4241 = vpack.c.bf16 %v3989, %v3988
  %v4242 = vpack.c.bf16 %v3991, %v3990
  %v4243 = vpack.c.bf16 %v3993, %v3992
  %v4244 = vpack.c.bf16 %v3995, %v3994
  %v4245 = vpack.c.bf16 %v3997, %v3996
  %v4246 = vpack.c.bf16 %v3999, %v3998
  %v4247 = vpack.c.bf16 %v4001, %v4000
  %v4248 = vpack.c.bf16 %v4003, %v4002
  %v4249 = vpack.c.bf16 %v4005, %v4004
  %v4250 = vpack.c.bf16 %v4007, %v4006
  %v4251 = vpack.c.bf16 %v4009, %v4008
  %v4252 = vpack.c.bf16 %v4011, %v4010
  %v4253 = vpack.c.bf16 %v4013, %v4012
  %v4254 = vpack.c.bf16 %v4015, %v4014
  %v4255 = vpack.c.bf16 %v4017, %v4016
  %v4256 = vpack.c.bf16 %v4019, %v4018
  %v4257 = vpack.c.bf16 %v4021, %v4020
  %v4258 = vpack.c.bf16 %v4023, %v4022
  %v4259 = vpack.c.bf16 %v4025, %v4024
  %v4260 = vpack.c.bf16 %v4027, %v4026
  %v4261 = vpack.c.bf16 %v4029, %v4028
  %v4262 = vpack.c.bf16 %v4031, %v4030
  %v4263 = vpack.c.bf16 %v4033, %v4032
  %v4264 = vpack.c.bf16 %v4035, %v4034
  %v4265 = vpack.c.bf16 %v4037, %v4036
  %v4266 = vpack.c.bf16 %v4039, %v4038
  %v4267 = vpack.c.bf16 %v4041, %v4040
  %v4268 = vpack.c.bf16 %v4043, %v4042
  %v4269 = vpack.c.bf16 %v4045, %v4044
  %v4270 = vpack.c.bf16 %v4047, %v4046
  %v4271 = vpack.c.bf16 %v4049, %v4048
  %v4272 = vpack.c.bf16 %v4051, %v4050
  %v4273 = vpack.c.bf16 %v4053, %v4052
  %v4274 = vpack.c.bf16 %v4055, %v4054
  %v4275 = vpack.c.bf16 %v4057, %v4056
  %v4276 = vpack.c.bf16 %v4059, %v4058
  %v4277 = vpack.c.bf16 %v4061, %v4060
  %v4278 = vpack.c.bf16 %v4063, %v4062
  %v4279 = vpack.c.bf16 %v4065, %v4064
  %v4280 = vpack.c.bf16 %v4067, %v4066
  %v4281 = vpack.c.bf16 %v4069, %v4068
  %v4282 = vpack.c.bf16 %v4071, %v4070
  %v4283 = vpack.c.bf16 %v4073, %v4072
  %v4284 = vpack.c.bf16 %v4075, %v4074
  %v4285 = vpack.c.bf16 %v4077, %v4076
  %v4286 = vpack.c.bf16 %v4079, %v4078
  %v4287 = vpack.c.bf16 %v4081, %v4080
  %v4288 = vpack.c.bf16 %v4083, %v4082
  %v4289 = vpack.c.bf16 %v4085, %v4084
  %v4290 = vpack.c.bf16 %v4087, %v4086
  %v4291 = vpack.c.bf16 %v4089, %v4088
  %v4292 = vpack.c.bf16 %v4091, %v4090
  %v4293 = vpack.c.bf16 %v4093, %v4092
  %v4294 = vpack.c.bf16 %v4095, %v4094
  %v4295 = vpack.c.bf16 %v4097, %v4096
  %v4296 = vpack.c.bf16 %v4099, %v4098
  %v4297 = vpack.c.bf16 %v4101, %v4100
  %v4298 = vpack.c.bf16 %v4103, %v4102
  %v4299 = vpack.c.bf16 %v4105, %v4104
  %v4300 = vpack.c.bf16 %v4107, %v4106
  %v4301 = vpack.c.bf16 %v4109, %v4108
  %v4302 = vpack.c.bf16 %v4111, %v4110
  %v4303 = vpack.c.bf16 %v4113, %v4112
  %v4304 = vpack.c.bf16 %v4115, %v4114
  %v4305 = vpack.c.bf16 %v4117, %v4116
  %v4306 = vpack.c.bf16 %v4119, %v4118
  %v4307 = vpack.c.bf16 %v4121, %v4120
  %v4308 = vpack.c.bf16 %v4123, %v4122
  %v4309 = vpack.c.bf16 %v4125, %v4124
  %v4310 = vpack.c.bf16 %v4127, %v4126
  %v4311 = vpack.c.bf16 %v4129, %v4128
  %v4312 = vpack.c.bf16 %v4131, %v4130
  %v4313 = vpack.c.bf16 %v4133, %v4132
  %v4314 = vpack.c.bf16 %v4135, %v4134
  %v4315 = vpack.c.bf16 %v4137, %v4136
  %v4316 = vpack.c.bf16 %v4139, %v4138
  %v4317 = vpack.c.bf16 %v4141, %v4140
  %v4318 = vpack.c.bf16 %v4143, %v4142
  %v4319 = vpack.c.bf16 %v4145, %v4144
  %v4320 = vpack.c.bf16 %v4147, %v4146
  %v4321 = vpack.c.bf16 %v4149, %v4148
  %v4322 = vpack.c.bf16 %v4151, %v4150
  %v4323 = vpack.c.bf16 %v4153, %v4152
  %v4324 = vpack.c.bf16 %v4155, %v4154
  %v4325 = vpack.c.bf16 %v4157, %v4156
  %v4326 = vpack.c.bf16 %v4159, %v4158
  %v4327 = vpack.c.bf16 %v4161, %v4160
  %v4328 = vpack.c.bf16 %v4163, %v4162
  %v4329 = vpack.c.bf16 %v4165, %v4164
  %v4330 = vpack.c.bf16 %v4167, %v4166
  %v4331 = vpack.c.bf16 %v4169, %v4168
  %v4332 = vpack.c.bf16 %v4171, %v4170
  %v4333 = vpack.c.bf16 %v4173, %v4172
  %v4334 = vpack.c.bf16 %v4175, %v4174
  %v4335 = vpack.c.bf16 %v4177, %v4176
  %v4336 = vpack.c.bf16 %v4179, %v4178
  %v4337 = vpack.c.bf16 %v4181, %v4180
  %v4338 = vpack.c.bf16 %v4183, %v4182
  %v4339 = vpack.c.bf16 %v4185, %v4184
  %v4340 = vpack.c.bf16 %v4187, %v4186
  %v4341 = vpack.c.bf16 %v4189, %v4188
  %v4342 = vpack.c.bf16 %v4191, %v4190
  %v4343 = vpack.c.bf16 %v4193, %v4192
  %v4344 = vpack.c.bf16 %v4195, %v4194
  %v4345 = vpack.c.bf16 %v4197, %v4196
  %v4346 = vpack.c.bf16 %v4199, %v4198
  %v4347 = vpack.c.bf16 %v4201, %v4200
  %v4348 = vpack.c.bf16 %v4203, %v4202
  %v4349 = vpack.c.bf16 %v4205, %v4204
  %v4350 = vpack.c.bf16 %v4207, %v4206
  %v4351 = vpack.c.bf16 %v4209, %v4208
  %v4352 = vpack.c.bf16 %v4211, %v4210
  %v4353 = vpack.c.bf16 %v4213, %v4212
  %v4354 = vpack.c.bf16 %v4215, %v4214
  %v4355 = vpack.c.bf16 %v4217, %v4216
  %v4356 = vpack.c.bf16 %v4219, %v4218
  %v4357 = vpack.c.bf16 %v4221, %v4220
  %v4358 = vpack.c.bf16 %v4223, %v4222
  %v4359 = vpack.c.bf16 %v4225, %v4224
  %v4360 = vpack.c.bf16 %v4227, %v4226
  %v4361 = vpack.c.bf16 %v4229, %v4228
  %v4362 = vpack.c.bf16 %v4231, %v4230
  %v4363 = vpack.c.bf16 %v4233, %v4232
  %v4364 = vpack.c.bf16 %v4235, %v4234
  %v4365 = vpack.c.bf16 %v4237, %v4236
  %v4494 = vunpack.c.l.b16 %v4238
  %v4495 = vunpack.c.h.b16 %v4238
  %v4496 = vunpack.c.l.b16 %v4239
  %v4497 = vunpack.c.h.b16 %v4239
  %v4498 = vunpack.c.l.b16 %v4240
  %v4499 = vunpack.c.h.b16 %v4240
  %v4500 = vunpack.c.l.b16 %v4241
  %v4501 = vunpack.c.h.b16 %v4241
  %v4502 = vunpack.c.l.b16 %v4242
  %v4503 = vunpack.c.h.b16 %v4242
  %v4504 = vunpack.c.l.b16 %v4243
  %v4505 = vunpack.c.h.b16 %v4243
  %v4506 = vunpack.c.l.b16 %v4244
  %v4507 = vunpack.c.h.b16 %v4244
  %v4508 = vunpack.c.l.b16 %v4245
  %v4509 = vunpack.c.h.b16 %v4245
  %v4510 = vunpack.c.l.b16 %v4246
  %v4511 = vunpack.c.h.b16 %v4246
  %v4512 = vunpack.c.l.b16 %v4247
  %v4513 = vunpack.c.h.b16 %v4247
  %v4514 = vunpack.c.l.b16 %v4248
  %v4515 = vunpack.c.h.b16 %v4248
  %v4516 = vunpack.c.l.b16 %v4249
  %v4517 = vunpack.c.h.b16 %v4249
  %v4518 = vunpack.c.l.b16 %v4250
  %v4519 = vunpack.c.h.b16 %v4250
  %v4520 = vunpack.c.l.b16 %v4251
  %v4521 = vunpack.c.h.b16 %v4251
  %v4522 = vunpack.c.l.b16 %v4252
  %v4523 = vunpack.c.h.b16 %v4252
  %v4524 = vunpack.c.l.b16 %v4253
  %v4525 = vunpack.c.h.b16 %v4253
  %v4526 = vunpack.c.l.b16 %v4254
  %v4527 = vunpack.c.h.b16 %v4254
  %v4528 = vunpack.c.l.b16 %v4255
  %v4529 = vunpack.c.h.b16 %v4255
  %v4530 = vunpack.c.l.b16 %v4256
  %v4531 = vunpack.c.h.b16 %v4256
  %v4532 = vunpack.c.l.b16 %v4257
  %v4533 = vunpack.c.h.b16 %v4257
  %v4534 = vunpack.c.l.b16 %v4258
  %v4535 = vunpack.c.h.b16 %v4258
  %v4536 = vunpack.c.l.b16 %v4259
  %v4537 = vunpack.c.h.b16 %v4259
  %v4538 = vunpack.c.l.b16 %v4260
  %v4539 = vunpack.c.h.b16 %v4260
  %v4540 = vunpack.c.l.b16 %v4261
  %v4541 = vunpack.c.h.b16 %v4261
  %v4542 = vunpack.c.l.b16 %v4262
  %v4543 = vunpack.c.h.b16 %v4262
  %v4544 = vunpack.c.l.b16 %v4263
  %v4545 = vunpack.c.h.b16 %v4263
  %v4546 = vunpack.c.l.b16 %v4264
  %v4547 = vunpack.c.h.b16 %v4264
  %v4548 = vunpack.c.l.b16 %v4265
  %v4549 = vunpack.c.h.b16 %v4265
  %v4550 = vunpack.c.l.b16 %v4266
  %v4551 = vunpack.c.h.b16 %v4266
  %v4552 = vunpack.c.l.b16 %v4267
  %v4553 = vunpack.c.h.b16 %v4267
  %v4554 = vunpack.c.l.b16 %v4268
  %v4555 = vunpack.c.h.b16 %v4268
  %v4556 = vunpack.c.l.b16 %v4269
  %v4557 = vunpack.c.h.b16 %v4269
  %v4558 = vunpack.c.l.b16 %v4270
  %v4559 = vunpack.c.h.b16 %v4270
  %v4560 = vunpack.c.l.b16 %v4271
  %v4561 = vunpack.c.h.b16 %v4271
  %v4562 = vunpack.c.l.b16 %v4272
  %v4563 = vunpack.c.h.b16 %v4272
  %v4564 = vunpack.c.l.b16 %v4273
  %v4565 = vunpack.c.h.b16 %v4273
  %v4566 = vunpack.c.l.b16 %v4274
  %v4567 = vunpack.c.h.b16 %v4274
  %v4568 = vunpack.c.l.b16 %v4275
  %v4569 = vunpack.c.h.b16 %v4275
  %v4570 = vunpack.c.l.b16 %v4276
  %v4571 = vunpack.c.h.b16 %v4276
  %v4572 = vunpack.c.l.b16 %v4277
  %v4573 = vunpack.c.h.b16 %v4277
  %v4574 = vunpack.c.l.b16 %v4278
  %v4575 = vunpack.c.h.b16 %v4278
  %v4576 = vunpack.c.l.b16 %v4279
  %v4577 = vunpack.c.h.b16 %v4279
  %v4578 = vunpack.c.l.b16 %v4280
  %v4579 = vunpack.c.h.b16 %v4280
  %v4580 = vunpack.c.l.b16 %v4281
  %v4581 = vunpack.c.h.b16 %v4281
  %v4582 = vunpack.c.l.b16 %v4282
  %v4583 = vunpack.c.h.b16 %v4282
  %v4584 = vunpack.c.l.b16 %v4283
  %v4585 = vunpack.c.h.b16 %v4283
  %v4586 = vunpack.c.l.b16 %v4284
  %v4587 = vunpack.c.h.b16 %v4284
  %v4588 = vunpack.c.l.b16 %v4285
  %v4589 = vunpack.c.h.b16 %v4285
  %v4590 = vunpack.c.l.b16 %v4286
  %v4591 = vunpack.c.h.b16 %v4286
  %v4592 = vunpack.c.l.b16 %v4287
  %v4593 = vunpack.c.h.b16 %v4287
  %v4594 = vunpack.c.l.b16 %v4288
  %v4595 = vunpack.c.h.b16 %v4288
  %v4596 = vunpack.c.l.b16 %v4289
  %v4597 = vunpack.c.h.b16 %v4289
  %v4598 = vunpack.c.l.b16 %v4290
  %v4599 = vunpack.c.h.b16 %v4290
  %v4600 = vunpack.c.l.b16 %v4291
  %v4601 = vunpack.c.h.b16 %v4291
  %v4602 = vunpack.c.l.b16 %v4292
  %v4603 = vunpack.c.h.b16 %v4292
  %v4604 = vunpack.c.l.b16 %v4293
  %v4605 = vunpack.c.h.b16 %v4293
  %v4606 = vunpack.c.l.b16 %v4294
  %v4607 = vunpack.c.h.b16 %v4294
  %v4608 = vunpack.c.l.b16 %v4295
  %v4609 = vunpack.c.h.b16 %v4295
  %v4610 = vunpack.c.l.b16 %v4296
  %v4611 = vunpack.c.h.b16 %v4296
  %v4612 = vunpack.c.l.b16 %v4297
  %v4613 = vunpack.c.h.b16 %v4297
  %v4614 = vunpack.c.l.b16 %v4298
  %v4615 = vunpack.c.h.b16 %v4298
  %v4616 = vunpack.c.l.b16 %v4299
  %v4617 = vunpack.c.h.b16 %v4299
  %v4618 = vunpack.c.l.b16 %v4300
  %v4619 = vunpack.c.h.b16 %v4300
  %v4620 = vunpack.c.l.b16 %v4301
  %v4621 = vunpack.c.h.b16 %v4301
  %v4622 = vunpack.c.l.b16 %v4302
  %v4623 = vunpack.c.h.b16 %v4302
  %v4624 = vunpack.c.l.b16 %v4303
  %v4625 = vunpack.c.h.b16 %v4303
  %v4626 = vunpack.c.l.b16 %v4304
  %v4627 = vunpack.c.h.b16 %v4304
  %v4628 = vunpack.c.l.b16 %v4305
  %v4629 = vunpack.c.h.b16 %v4305
  %v4630 = vunpack.c.l.b16 %v4306
  %v4631 = vunpack.c.h.b16 %v4306
  %v4632 = vunpack.c.l.b16 %v4307
  %v4633 = vunpack.c.h.b16 %v4307
  %v4634 = vunpack.c.l.b16 %v4308
  %v4635 = vunpack.c.h.b16 %v4308
  %v4636 = vunpack.c.l.b16 %v4309
  %v4637 = vunpack.c.h.b16 %v4309
  %v4638 = vunpack.c.l.b16 %v4310
  %v4639 = vunpack.c.h.b16 %v4310
  %v4640 = vunpack.c.l.b16 %v4311
  %v4641 = vunpack.c.h.b16 %v4311
  %v4642 = vunpack.c.l.b16 %v4312
  %v4643 = vunpack.c.h.b16 %v4312
  %v4644 = vunpack.c.l.b16 %v4313
  %v4645 = vunpack.c.h.b16 %v4313
  %v4646 = vunpack.c.l.b16 %v4314
  %v4647 = vunpack.c.h.b16 %v4314
  %v4648 = vunpack.c.l.b16 %v4315
  %v4649 = vunpack.c.h.b16 %v4315
  %v4650 = vunpack.c.l.b16 %v4316
  %v4651 = vunpack.c.h.b16 %v4316
  %v4652 = vunpack.c.l.b16 %v4317
  %v4653 = vunpack.c.h.b16 %v4317
  %v4654 = vunpack.c.l.b16 %v4318
  %v4655 = vunpack.c.h.b16 %v4318
  %v4656 = vunpack.c.l.b16 %v4319
  %v4657 = vunpack.c.h.b16 %v4319
  %v4658 = vunpack.c.l.b16 %v4320
  %v4659 = vunpack.c.h.b16 %v4320
  %v4660 = vunpack.c.l.b16 %v4321
  %v4661 = vunpack.c.h.b16 %v4321
  %v4662 = vunpack.c.l.b16 %v4322
  %v4663 = vunpack.c.h.b16 %v4322
  %v4664 = vunpack.c.l.b16 %v4323
  %v4665 = vunpack.c.h.b16 %v4323
  %v4666 = vunpack.c.l.b16 %v4324
  %v4667 = vunpack.c.h.b16 %v4324
  %v4668 = vunpack.c.l.b16 %v4325
  %v4669 = vunpack.c.h.b16 %v4325
  %v4670 = vunpack.c.l.b16 %v4326
  %v4671 = vunpack.c.h.b16 %v4326
  %v4672 = vunpack.c.l.b16 %v4327
  %v4673 = vunpack.c.h.b16 %v4327
  %v4674 = vunpack.c.l.b16 %v4328
  %v4675 = vunpack.c.h.b16 %v4328
  %v4676 = vunpack.c.l.b16 %v4329
  %v4677 = vunpack.c.h.b16 %v4329
  %v4678 = vunpack.c.l.b16 %v4330
  %v4679 = vunpack.c.h.b16 %v4330
  %v4680 = vunpack.c.l.b16 %v4331
  %v4681 = vunpack.c.h.b16 %v4331
  %v4682 = vunpack.c.l.b16 %v4332
  %v4683 = vunpack.c.h.b16 %v4332
  %v4684 = vunpack.c.l.b16 %v4333
  %v4685 = vunpack.c.h.b16 %v4333
  %v4686 = vunpack.c.l.b16 %v4334
  %v4687 = vunpack.c.h.b16 %v4334
  %v4688 = vunpack.c.l.b16 %v4335
  %v4689 = vunpack.c.h.b16 %v4335
  %v4690 = vunpack.c.l.b16 %v4336
  %v4691 = vunpack.c.h.b16 %v4336
  %v4692 = vunpack.c.l.b16 %v4337
  %v4693 = vunpack.c.h.b16 %v4337
  %v4694 = vunpack.c.l.b16 %v4338
  %v4695 = vunpack.c.h.b16 %v4338
  %v4696 = vunpack.c.l.b16 %v4339
  %v4697 = vunpack.c.h.b16 %v4339
  %v4698 = vunpack.c.l.b16 %v4340
  %v4699 = vunpack.c.h.b16 %v4340
  %v4700 = vunpack.c.l.b16 %v4341
  %v4701 = vunpack.c.h.b16 %v4341
  %v4702 = vunpack.c.l.b16 %v4342
  %v4703 = vunpack.c.h.b16 %v4342
  %v4704 = vunpack.c.l.b16 %v4343
  %v4705 = vunpack.c.h.b16 %v4343
  %v4706 = vunpack.c.l.b16 %v4344
  %v4707 = vunpack.c.h.b16 %v4344
  %v4708 = vunpack.c.l.b16 %v4345
  %v4709 = vunpack.c.h.b16 %v4345
  %v4710 = vunpack.c.l.b16 %v4346
  %v4711 = vunpack.c.h.b16 %v4346
  %v4712 = vunpack.c.l.b16 %v4347
  %v4713 = vunpack.c.h.b16 %v4347
  %v4714 = vunpack.c.l.b16 %v4348
  %v4715 = vunpack.c.h.b16 %v4348
  %v4716 = vunpack.c.l.b16 %v4349
  %v4717 = vunpack.c.h.b16 %v4349
  %v4718 = vunpack.c.l.b16 %v4350
  %v4719 = vunpack.c.h.b16 %v4350
  %v4720 = vunpack.c.l.b16 %v4351
  %v4721 = vunpack.c.h.b16 %v4351
  %v4722 = vunpack.c.l.b16 %v4352
  %v4723 = vunpack.c.h.b16 %v4352
  %v4724 = vunpack.c.l.b16 %v4353
  %v4725 = vunpack.c.h.b16 %v4353
  %v4726 = vunpack.c.l.b16 %v4354
  %v4727 = vunpack.c.h.b16 %v4354
  %v4728 = vunpack.c.l.b16 %v4355
  %v4729 = vunpack.c.h.b16 %v4355
  %v4730 = vunpack.c.l.b16 %v4356
  %v4731 = vunpack.c.h.b16 %v4356
  %v4732 = vunpack.c.l.b16 %v4357
  %v4733 = vunpack.c.h.b16 %v4357
  %v4734 = vunpack.c.l.b16 %v4358
  %v4735 = vunpack.c.h.b16 %v4358
  %v4736 = vunpack.c.l.b16 %v4359
  %v4737 = vunpack.c.h.b16 %v4359
  %v4738 = vunpack.c.l.b16 %v4360
  %v4739 = vunpack.c.h.b16 %v4360
  %v4740 = vunpack.c.l.b16 %v4361
  %v4741 = vunpack.c.h.b16 %v4361
  %v4742 = vunpack.c.l.b16 %v4362
  %v4743 = vunpack.c.h.b16 %v4362
  %v4744 = vunpack.c.l.b16 %v4363
  %v4745 = vunpack.c.h.b16 %v4363
  %v4746 = vunpack.c.l.b16 %v4364
  %v4747 = vunpack.c.h.b16 %v4364
  %v4748 = vunpack.c.l.b16 %v4365
  %v4749 = vunpack.c.h.b16 %v4365
  %v4750 = vpack.c.b16 %v4494, %v4494
  %v4751 = vpack.c.b16 %v4495, %v4495
  %v4752 = vpack.c.b16 %v4496, %v4496
  %v4753 = vpack.c.b16 %v4497, %v4497
  %v4754 = vpack.c.b16 %v4498, %v4498
  %v4755 = vpack.c.b16 %v4499, %v4499
  %v4756 = vpack.c.b16 %v4500, %v4500
  %v4757 = vpack.c.b16 %v4501, %v4501
  %v4758 = vpack.c.b16 %v4502, %v4502
  %v4759 = vpack.c.b16 %v4503, %v4503
  %v4760 = vpack.c.b16 %v4504, %v4504
  %v4761 = vpack.c.b16 %v4505, %v4505
  %v4762 = vpack.c.b16 %v4506, %v4506
  %v4763 = vpack.c.b16 %v4507, %v4507
  %v4764 = vpack.c.b16 %v4508, %v4508
  %v4765 = vpack.c.b16 %v4509, %v4509
  %v4766 = vpack.c.b16 %v4510, %v4510
  %v4767 = vpack.c.b16 %v4511, %v4511
  %v4768 = vpack.c.b16 %v4512, %v4512
  %v4769 = vpack.c.b16 %v4513, %v4513
  %v4770 = vpack.c.b16 %v4514, %v4514
  %v4771 = vpack.c.b16 %v4515, %v4515
  %v4772 = vpack.c.b16 %v4516, %v4516
  %v4773 = vpack.c.b16 %v4517, %v4517
  %v4774 = vpack.c.b16 %v4518, %v4518
  %v4775 = vpack.c.b16 %v4519, %v4519
  %v4776 = vpack.c.b16 %v4520, %v4520
  %v4777 = vpack.c.b16 %v4521, %v4521
  %v4778 = vpack.c.b16 %v4522, %v4522
  %v4779 = vpack.c.b16 %v4523, %v4523
  %v4780 = vpack.c.b16 %v4524, %v4524
  %v4781 = vpack.c.b16 %v4525, %v4525
  %v4782 = vpack.c.b16 %v4526, %v4526
  %v4783 = vpack.c.b16 %v4527, %v4527
  %v4784 = vpack.c.b16 %v4528, %v4528
  %v4785 = vpack.c.b16 %v4529, %v4529
  %v4786 = vpack.c.b16 %v4530, %v4530
  %v4787 = vpack.c.b16 %v4531, %v4531
  %v4788 = vpack.c.b16 %v4532, %v4532
  %v4789 = vpack.c.b16 %v4533, %v4533
  %v4790 = vpack.c.b16 %v4534, %v4534
  %v4791 = vpack.c.b16 %v4535, %v4535
  %v4792 = vpack.c.b16 %v4536, %v4536
  %v4793 = vpack.c.b16 %v4537, %v4537
  %v4794 = vpack.c.b16 %v4538, %v4538
  %v4795 = vpack.c.b16 %v4539, %v4539
  %v4796 = vpack.c.b16 %v4540, %v4540
  %v4797 = vpack.c.b16 %v4541, %v4541
  %v4798 = vpack.c.b16 %v4542, %v4542
  %v4799 = vpack.c.b16 %v4543, %v4543
  %v4800 = vpack.c.b16 %v4544, %v4544
  %v4801 = vpack.c.b16 %v4545, %v4545
  %v4802 = vpack.c.b16 %v4546, %v4546
  %v4803 = vpack.c.b16 %v4547, %v4547
  %v4804 = vpack.c.b16 %v4548, %v4548
  %v4805 = vpack.c.b16 %v4549, %v4549
  %v4806 = vpack.c.b16 %v4550, %v4550
  %v4807 = vpack.c.b16 %v4551, %v4551
  %v4808 = vpack.c.b16 %v4552, %v4552
  %v4809 = vpack.c.b16 %v4553, %v4553
  %v4810 = vpack.c.b16 %v4554, %v4554
  %v4811 = vpack.c.b16 %v4555, %v4555
  %v4812 = vpack.c.b16 %v4556, %v4556
  %v4813 = vpack.c.b16 %v4557, %v4557
  %v4814 = vpack.c.b16 %v4558, %v4558
  %v4815 = vpack.c.b16 %v4559, %v4559
  %v4816 = vpack.c.b16 %v4560, %v4560
  %v4817 = vpack.c.b16 %v4561, %v4561
  %v4818 = vpack.c.b16 %v4562, %v4562
  %v4819 = vpack.c.b16 %v4563, %v4563
  %v4820 = vpack.c.b16 %v4564, %v4564
  %v4821 = vpack.c.b16 %v4565, %v4565
  %v4822 = vpack.c.b16 %v4566, %v4566
  %v4823 = vpack.c.b16 %v4567, %v4567
  %v4824 = vpack.c.b16 %v4568, %v4568
  %v4825 = vpack.c.b16 %v4569, %v4569
  %v4826 = vpack.c.b16 %v4570, %v4570
  %v4827 = vpack.c.b16 %v4571, %v4571
  %v4828 = vpack.c.b16 %v4572, %v4572
  %v4829 = vpack.c.b16 %v4573, %v4573
  %v4830 = vpack.c.b16 %v4574, %v4574
  %v4831 = vpack.c.b16 %v4575, %v4575
  %v4832 = vpack.c.b16 %v4576, %v4576
  %v4833 = vpack.c.b16 %v4577, %v4577
  %v4834 = vpack.c.b16 %v4578, %v4578
  %v4835 = vpack.c.b16 %v4579, %v4579
  %v4836 = vpack.c.b16 %v4580, %v4580
  %v4837 = vpack.c.b16 %v4581, %v4581
  %v4838 = vpack.c.b16 %v4582, %v4582
  %v4839 = vpack.c.b16 %v4583, %v4583
  %v4840 = vpack.c.b16 %v4584, %v4584
  %v4841 = vpack.c.b16 %v4585, %v4585
  %v4842 = vpack.c.b16 %v4586, %v4586
  %v4843 = vpack.c.b16 %v4587, %v4587
  %v4844 = vpack.c.b16 %v4588, %v4588
  %v4845 = vpack.c.b16 %v4589, %v4589
  %v4846 = vpack.c.b16 %v4590, %v4590
  %v4847 = vpack.c.b16 %v4591, %v4591
  %v4848 = vpack.c.b16 %v4592, %v4592
  %v4849 = vpack.c.b16 %v4593, %v4593
  %v4850 = vpack.c.b16 %v4594, %v4594
  %v4851 = vpack.c.b16 %v4595, %v4595
  %v4852 = vpack.c.b16 %v4596, %v4596
  %v4853 = vpack.c.b16 %v4597, %v4597
  %v4854 = vpack.c.b16 %v4598, %v4598
  %v4855 = vpack.c.b16 %v4599, %v4599
  %v4856 = vpack.c.b16 %v4600, %v4600
  %v4857 = vpack.c.b16 %v4601, %v4601
  %v4858 = vpack.c.b16 %v4602, %v4602
  %v4859 = vpack.c.b16 %v4603, %v4603
  %v4860 = vpack.c.b16 %v4604, %v4604
  %v4861 = vpack.c.b16 %v4605, %v4605
  %v4862 = vpack.c.b16 %v4606, %v4606
  %v4863 = vpack.c.b16 %v4607, %v4607
  %v4864 = vpack.c.b16 %v4608, %v4608
  %v4865 = vpack.c.b16 %v4609, %v4609
  %v4866 = vpack.c.b16 %v4610, %v4610
  %v4867 = vpack.c.b16 %v4611, %v4611
  %v4868 = vpack.c.b16 %v4612, %v4612
  %v4869 = vpack.c.b16 %v4613, %v4613
  %v4870 = vpack.c.b16 %v4614, %v4614
  %v4871 = vpack.c.b16 %v4615, %v4615
  %v4872 = vpack.c.b16 %v4616, %v4616
  %v4873 = vpack.c.b16 %v4617, %v4617
  %v4874 = vpack.c.b16 %v4618, %v4618
  %v4875 = vpack.c.b16 %v4619, %v4619
  %v4876 = vpack.c.b16 %v4620, %v4620
  %v4877 = vpack.c.b16 %v4621, %v4621
  %v4878 = vpack.c.b16 %v4622, %v4622
  %v4879 = vpack.c.b16 %v4623, %v4623
  %v4880 = vpack.c.b16 %v4624, %v4624
  %v4881 = vpack.c.b16 %v4625, %v4625
  %v4882 = vpack.c.b16 %v4626, %v4626
  %v4883 = vpack.c.b16 %v4627, %v4627
  %v4884 = vpack.c.b16 %v4628, %v4628
  %v4885 = vpack.c.b16 %v4629, %v4629
  %v4886 = vpack.c.b16 %v4630, %v4630
  %v4887 = vpack.c.b16 %v4631, %v4631
  %v4888 = vpack.c.b16 %v4632, %v4632
  %v4889 = vpack.c.b16 %v4633, %v4633
  %v4890 = vpack.c.b16 %v4634, %v4634
  %v4891 = vpack.c.b16 %v4635, %v4635
  %v4892 = vpack.c.b16 %v4636, %v4636
  %v4893 = vpack.c.b16 %v4637, %v4637
  %v4894 = vpack.c.b16 %v4638, %v4638
  %v4895 = vpack.c.b16 %v4639, %v4639
  %v4896 = vpack.c.b16 %v4640, %v4640
  %v4897 = vpack.c.b16 %v4641, %v4641
  %v4898 = vpack.c.b16 %v4642, %v4642
  %v4899 = vpack.c.b16 %v4643, %v4643
  %v4900 = vpack.c.b16 %v4644, %v4644
  %v4901 = vpack.c.b16 %v4645, %v4645
  %v4902 = vpack.c.b16 %v4646, %v4646
  %v4903 = vpack.c.b16 %v4647, %v4647
  %v4904 = vpack.c.b16 %v4648, %v4648
  %v4905 = vpack.c.b16 %v4649, %v4649
  %v4906 = vpack.c.b16 %v4650, %v4650
  %v4907 = vpack.c.b16 %v4651, %v4651
  %v4908 = vpack.c.b16 %v4652, %v4652
  %v4909 = vpack.c.b16 %v4653, %v4653
  %v4910 = vpack.c.b16 %v4654, %v4654
  %v4911 = vpack.c.b16 %v4655, %v4655
  %v4912 = vpack.c.b16 %v4656, %v4656
  %v4913 = vpack.c.b16 %v4657, %v4657
  %v4914 = vpack.c.b16 %v4658, %v4658
  %v4915 = vpack.c.b16 %v4659, %v4659
  %v4916 = vpack.c.b16 %v4660, %v4660
  %v4917 = vpack.c.b16 %v4661, %v4661
  %v4918 = vpack.c.b16 %v4662, %v4662
  %v4919 = vpack.c.b16 %v4663, %v4663
  %v4920 = vpack.c.b16 %v4664, %v4664
  %v4921 = vpack.c.b16 %v4665, %v4665
  %v4922 = vpack.c.b16 %v4666, %v4666
  %v4923 = vpack.c.b16 %v4667, %v4667
  %v4924 = vpack.c.b16 %v4668, %v4668
  %v4925 = vpack.c.b16 %v4669, %v4669
  %v4926 = vpack.c.b16 %v4670, %v4670
  %v4927 = vpack.c.b16 %v4671, %v4671
  %v4928 = vpack.c.b16 %v4672, %v4672
  %v4929 = vpack.c.b16 %v4673, %v4673
  %v4930 = vpack.c.b16 %v4674, %v4674
  %v4931 = vpack.c.b16 %v4675, %v4675
  %v4932 = vpack.c.b16 %v4676, %v4676
  %v4933 = vpack.c.b16 %v4677, %v4677
  %v4934 = vpack.c.b16 %v4678, %v4678
  %v4935 = vpack.c.b16 %v4679, %v4679
  %v4936 = vpack.c.b16 %v4680, %v4680
  %v4937 = vpack.c.b16 %v4681, %v4681
  %v4938 = vpack.c.b16 %v4682, %v4682
  %v4939 = vpack.c.b16 %v4683, %v4683
  %v4940 = vpack.c.b16 %v4684, %v4684
  %v4941 = vpack.c.b16 %v4685, %v4685
  %v4942 = vpack.c.b16 %v4686, %v4686
  %v4943 = vpack.c.b16 %v4687, %v4687
  %v4944 = vpack.c.b16 %v4688, %v4688
  %v4945 = vpack.c.b16 %v4689, %v4689
  %v4946 = vpack.c.b16 %v4690, %v4690
  %v4947 = vpack.c.b16 %v4691, %v4691
  %v4948 = vpack.c.b16 %v4692, %v4692
  %v4949 = vpack.c.b16 %v4693, %v4693
  %v4950 = vpack.c.b16 %v4694, %v4694
  %v4951 = vpack.c.b16 %v4695, %v4695
  %v4952 = vpack.c.b16 %v4696, %v4696
  %v4953 = vpack.c.b16 %v4697, %v4697
  %v4954 = vpack.c.b16 %v4698, %v4698
  %v4955 = vpack.c.b16 %v4699, %v4699
  %v4956 = vpack.c.b16 %v4700, %v4700
  %v4957 = vpack.c.b16 %v4701, %v4701
  %v4958 = vpack.c.b16 %v4702, %v4702
  %v4959 = vpack.c.b16 %v4703, %v4703
  %v4960 = vpack.c.b16 %v4704, %v4704
  %v4961 = vpack.c.b16 %v4705, %v4705
  %v4962 = vpack.c.b16 %v4706, %v4706
  %v4963 = vpack.c.b16 %v4707, %v4707
  %v4964 = vpack.c.b16 %v4708, %v4708
  %v4965 = vpack.c.b16 %v4709, %v4709
  %v4966 = vpack.c.b16 %v4710, %v4710
  %v4967 = vpack.c.b16 %v4711, %v4711
  %v4968 = vpack.c.b16 %v4712, %v4712
  %v4969 = vpack.c.b16 %v4713, %v4713
  %v4970 = vpack.c.b16 %v4714, %v4714
  %v4971 = vpack.c.b16 %v4715, %v4715
  %v4972 = vpack.c.b16 %v4716, %v4716
  %v4973 = vpack.c.b16 %v4717, %v4717
  %v4974 = vpack.c.b16 %v4718, %v4718
  %v4975 = vpack.c.b16 %v4719, %v4719
  %v4976 = vpack.c.b16 %v4720, %v4720
  %v4977 = vpack.c.b16 %v4721, %v4721
  %v4978 = vpack.c.b16 %v4722, %v4722
  %v4979 = vpack.c.b16 %v4723, %v4723
  %v4980 = vpack.c.b16 %v4724, %v4724
  %v4981 = vpack.c.b16 %v4725, %v4725
  %v4982 = vpack.c.b16 %v4726, %v4726
  %v4983 = vpack.c.b16 %v4727, %v4727
  %v4984 = vpack.c.b16 %v4728, %v4728
  %v4985 = vpack.c.b16 %v4729, %v4729
  %v4986 = vpack.c.b16 %v4730, %v4730
  %v4987 = vpack.c.b16 %v4731, %v4731
  %v4988 = vpack.c.b16 %v4732, %v4732
  %v4989 = vpack.c.b16 %v4733, %v4733
  %v4990 = vpack.c.b16 %v4734, %v4734
  %v4991 = vpack.c.b16 %v4735, %v4735
  %v4992 = vpack.c.b16 %v4736, %v4736
  %v4993 = vpack.c.b16 %v4737, %v4737
  %v4994 = vpack.c.b16 %v4738, %v4738
  %v4995 = vpack.c.b16 %v4739, %v4739
  %v4996 = vpack.c.b16 %v4740, %v4740
  %v4997 = vpack.c.b16 %v4741, %v4741
  %v4998 = vpack.c.b16 %v4742, %v4742
  %v4999 = vpack.c.b16 %v4743, %v4743
  %v5000 = vpack.c.b16 %v4744, %v4744
  %v5001 = vpack.c.b16 %v4745, %v4745
  %v5002 = vpack.c.b16 %v4746, %v4746
  %v5003 = vpack.c.b16 %v4747, %v4747
  %v5004 = vpack.c.b16 %v4748, %v4748
  %v5005 = vpack.c.b16 %v4749, %v4749
  %5262 = vst [vmem:[%s3] sm:$0xf] %v4750
  %5263 = vst [vmem:[%s3 + $0x4] sm:$0xf] %v4751
  %5264 = vst [vmem:[%s3 + $0x8] sm:$0xf] %v4752
  %5265 = vst [vmem:[%s3 + $0xc] sm:$0xf] %v4753
  %5266 = vst [vmem:[%s3 + $0x10] sm:$0xf] %v4754
  %5267 = vst [vmem:[%s3 + $0x14] sm:$0xf] %v4755
  %5268 = vst [vmem:[%s3 + $0x18] sm:$0xf] %v4756
  %5269 = vst [vmem:[%s3 + $0x1c] sm:$0xf] %v4757
  %5270 = vst [vmem:[%s3 + $0x20] sm:$0xf] %v4758
  %5271 = vst [vmem:[%s3 + $0x24] sm:$0xf] %v4759
  %5272 = vst [vmem:[%s3 + $0x28] sm:$0xf] %v4760
  %5273 = vst [vmem:[%s3 + $0x2c] sm:$0xf] %v4761
  %5274 = vst [vmem:[%s3 + $0x30] sm:$0xf] %v4762
  %5275 = vst [vmem:[%s3 + $0x34] sm:$0xf] %v4763
  %5276 = vst [vmem:[%s3 + $0x38] sm:$0xf] %v4764
  %5277 = vst [vmem:[%s3 + $0x3c] sm:$0xf] %v4765
  %5278 = vst [vmem:[%s3 + $0x40] sm:$0xf] %v4766
  %5279 = vst [vmem:[%s3 + $0x44] sm:$0xf] %v4767
  %5280 = vst [vmem:[%s3 + $0x48] sm:$0xf] %v4768
  %5281 = vst [vmem:[%s3 + $0x4c] sm:$0xf] %v4769
  %5282 = vst [vmem:[%s3 + $0x50] sm:$0xf] %v4770
  %5283 = vst [vmem:[%s3 + $0x54] sm:$0xf] %v4771
  %5284 = vst [vmem:[%s3 + $0x58] sm:$0xf] %v4772
  %5285 = vst [vmem:[%s3 + $0x5c] sm:$0xf] %v4773
  %5286 = vst [vmem:[%s3 + $0x60] sm:$0xf] %v4774
  %5287 = vst [vmem:[%s3 + $0x64] sm:$0xf] %v4775
  %5288 = vst [vmem:[%s3 + $0x68] sm:$0xf] %v4776
  %5289 = vst [vmem:[%s3 + $0x6c] sm:$0xf] %v4777
  %5290 = vst [vmem:[%s3 + $0x70] sm:$0xf] %v4778
  %5291 = vst [vmem:[%s3 + $0x74] sm:$0xf] %v4779
  %5292 = vst [vmem:[%s3 + $0x78] sm:$0xf] %v4780
  %5293 = vst [vmem:[%s3 + $0x7c] sm:$0xf] %v4781
  %5294 = vst [vmem:[%s3 + $0x80] sm:$0xf] %v4782
  %5295 = vst [vmem:[%s3 + $0x84] sm:$0xf] %v4783
  %5296 = vst [vmem:[%s3 + $0x88] sm:$0xf] %v4784
  %5297 = vst [vmem:[%s3 + $0x8c] sm:$0xf] %v4785
  %5298 = vst [vmem:[%s3 + $0x90] sm:$0xf] %v4786
  %5299 = vst [vmem:[%s3 + $0x94] sm:$0xf] %v4787
  %5300 = vst [vmem:[%s3 + $0x98] sm:$0xf] %v4788
  %5301 = vst [vmem:[%s3 + $0x9c] sm:$0xf] %v4789
  %5302 = vst [vmem:[%s3 + $0xa0] sm:$0xf] %v4790
  %5303 = vst [vmem:[%s3 + $0xa4] sm:$0xf] %v4791
  %5304 = vst [vmem:[%s3 + $0xa8] sm:$0xf] %v4792
  %5305 = vst [vmem:[%s3 + $0xac] sm:$0xf] %v4793
  %5306 = vst [vmem:[%s3 + $0xb0] sm:$0xf] %v4794
  %5307 = vst [vmem:[%s3 + $0xb4] sm:$0xf] %v4795
  %5308 = vst [vmem:[%s3 + $0xb8] sm:$0xf] %v4796
  %5309 = vst [vmem:[%s3 + $0xbc] sm:$0xf] %v4797
  %5310 = vst [vmem:[%s3 + $0xc0] sm:$0xf] %v4798
  %5311 = vst [vmem:[%s3 + $0xc4] sm:$0xf] %v4799
  %5312 = vst [vmem:[%s3 + $0xc8] sm:$0xf] %v4800
  %5313 = vst [vmem:[%s3 + $0xcc] sm:$0xf] %v4801
  %5314 = vst [vmem:[%s3 + $0xd0] sm:$0xf] %v4802
  %5315 = vst [vmem:[%s3 + $0xd4] sm:$0xf] %v4803
  %5316 = vst [vmem:[%s3 + $0xd8] sm:$0xf] %v4804
  %5317 = vst [vmem:[%s3 + $0xdc] sm:$0xf] %v4805
  %5318 = vst [vmem:[%s3 + $0xe0] sm:$0xf] %v4806
  %5319 = vst [vmem:[%s3 + $0xe4] sm:$0xf] %v4807
  %5320 = vst [vmem:[%s3 + $0xe8] sm:$0xf] %v4808
  %5321 = vst [vmem:[%s3 + $0xec] sm:$0xf] %v4809
  %5322 = vst [vmem:[%s3 + $0xf0] sm:$0xf] %v4810
  %5323 = vst [vmem:[%s3 + $0xf4] sm:$0xf] %v4811
  %5324 = vst [vmem:[%s3 + $0xf8] sm:$0xf] %v4812
  %5325 = vst [vmem:[%s3 + $0xfc] sm:$0xf] %v4813
  %5326 = vst [vmem:[%s3 + $0x100] sm:$0xf] %v4814
  %5327 = vst [vmem:[%s3 + $0x104] sm:$0xf] %v4815
  %5328 = vst [vmem:[%s3 + $0x108] sm:$0xf] %v4816
  %5329 = vst [vmem:[%s3 + $0x10c] sm:$0xf] %v4817
  %5330 = vst [vmem:[%s3 + $0x110] sm:$0xf] %v4818
  %5331 = vst [vmem:[%s3 + $0x114] sm:$0xf] %v4819
  %5332 = vst [vmem:[%s3 + $0x118] sm:$0xf] %v4820
  %5333 = vst [vmem:[%s3 + $0x11c] sm:$0xf] %v4821
  %5334 = vst [vmem:[%s3 + $0x120] sm:$0xf] %v4822
  %5335 = vst [vmem:[%s3 + $0x124] sm:$0xf] %v4823
  %5336 = vst [vmem:[%s3 + $0x128] sm:$0xf] %v4824
  %5337 = vst [vmem:[%s3 + $0x12c] sm:$0xf] %v4825
  %5338 = vst [vmem:[%s3 + $0x130] sm:$0xf] %v4826
  %5339 = vst [vmem:[%s3 + $0x134] sm:$0xf] %v4827
  %5340 = vst [vmem:[%s3 + $0x138] sm:$0xf] %v4828
  %5341 = vst [vmem:[%s3 + $0x13c] sm:$0xf] %v4829
  %5342 = vst [vmem:[%s3 + $0x140] sm:$0xf] %v4830
  %5343 = vst [vmem:[%s3 + $0x144] sm:$0xf] %v4831
  %5344 = vst [vmem:[%s3 + $0x148] sm:$0xf] %v4832
  %5345 = vst [vmem:[%s3 + $0x14c] sm:$0xf] %v4833
  %5346 = vst [vmem:[%s3 + $0x150] sm:$0xf] %v4834
  %5347 = vst [vmem:[%s3 + $0x154] sm:$0xf] %v4835
  %5348 = vst [vmem:[%s3 + $0x158] sm:$0xf] %v4836
  %5349 = vst [vmem:[%s3 + $0x15c] sm:$0xf] %v4837
  %5350 = vst [vmem:[%s3 + $0x160] sm:$0xf] %v4838
  %5351 = vst [vmem:[%s3 + $0x164] sm:$0xf] %v4839
  %5352 = vst [vmem:[%s3 + $0x168] sm:$0xf] %v4840
  %5353 = vst [vmem:[%s3 + $0x16c] sm:$0xf] %v4841
  %5354 = vst [vmem:[%s3 + $0x170] sm:$0xf] %v4842
  %5355 = vst [vmem:[%s3 + $0x174] sm:$0xf] %v4843
  %5356 = vst [vmem:[%s3 + $0x178] sm:$0xf] %v4844
  %5357 = vst [vmem:[%s3 + $0x17c] sm:$0xf] %v4845
  %5358 = vst [vmem:[%s3 + $0x180] sm:$0xf] %v4846
  %5359 = vst [vmem:[%s3 + $0x184] sm:$0xf] %v4847
  %5360 = vst [vmem:[%s3 + $0x188] sm:$0xf] %v4848
  %5361 = vst [vmem:[%s3 + $0x18c] sm:$0xf] %v4849
  %5362 = vst [vmem:[%s3 + $0x190] sm:$0xf] %v4850
  %5363 = vst [vmem:[%s3 + $0x194] sm:$0xf] %v4851
  %5364 = vst [vmem:[%s3 + $0x198] sm:$0xf] %v4852
  %5365 = vst [vmem:[%s3 + $0x19c] sm:$0xf] %v4853
  %5366 = vst [vmem:[%s3 + $0x1a0] sm:$0xf] %v4854
  %5367 = vst [vmem:[%s3 + $0x1a4] sm:$0xf] %v4855
  %5368 = vst [vmem:[%s3 + $0x1a8] sm:$0xf] %v4856
  %5369 = vst [vmem:[%s3 + $0x1ac] sm:$0xf] %v4857
  %5370 = vst [vmem:[%s3 + $0x1b0] sm:$0xf] %v4858
  %5371 = vst [vmem:[%s3 + $0x1b4] sm:$0xf] %v4859
  %5372 = vst [vmem:[%s3 + $0x1b8] sm:$0xf] %v4860
  %5373 = vst [vmem:[%s3 + $0x1bc] sm:$0xf] %v4861
  %5374 = vst [vmem:[%s3 + $0x1c0] sm:$0xf] %v4862
  %5375 = vst [vmem:[%s3 + $0x1c4] sm:$0xf] %v4863
  %5376 = vst [vmem:[%s3 + $0x1c8] sm:$0xf] %v4864
  %5377 = vst [vmem:[%s3 + $0x1cc] sm:$0xf] %v4865
  %5378 = vst [vmem:[%s3 + $0x1d0] sm:$0xf] %v4866
  %5379 = vst [vmem:[%s3 + $0x1d4] sm:$0xf] %v4867
  %5380 = vst [vmem:[%s3 + $0x1d8] sm:$0xf] %v4868
  %5381 = vst [vmem:[%s3 + $0x1dc] sm:$0xf] %v4869
  %5382 = vst [vmem:[%s3 + $0x1e0] sm:$0xf] %v4870
  %5383 = vst [vmem:[%s3 + $0x1e4] sm:$0xf] %v4871
  %5384 = vst [vmem:[%s3 + $0x1e8] sm:$0xf] %v4872
  %5385 = vst [vmem:[%s3 + $0x1ec] sm:$0xf] %v4873
  %5386 = vst [vmem:[%s3 + $0x1f0] sm:$0xf] %v4874
  %5387 = vst [vmem:[%s3 + $0x1f4] sm:$0xf] %v4875
  %5388 = vst [vmem:[%s3 + $0x1f8] sm:$0xf] %v4876
  %5389 = vst [vmem:[%s3 + $0x1fc] sm:$0xf] %v4877
  %5390 = vst [vmem:[%s3 + $0x200] sm:$0xf] %v4878
  %5391 = vst [vmem:[%s3 + $0x204] sm:$0xf] %v4879
  %5392 = vst [vmem:[%s3 + $0x208] sm:$0xf] %v4880
  %5393 = vst [vmem:[%s3 + $0x20c] sm:$0xf] %v4881
  %5394 = vst [vmem:[%s3 + $0x210] sm:$0xf] %v4882
  %5395 = vst [vmem:[%s3 + $0x214] sm:$0xf] %v4883
  %5396 = vst [vmem:[%s3 + $0x218] sm:$0xf] %v4884
  %5397 = vst [vmem:[%s3 + $0x21c] sm:$0xf] %v4885
  %5398 = vst [vmem:[%s3 + $0x220] sm:$0xf] %v4886
  %5399 = vst [vmem:[%s3 + $0x224] sm:$0xf] %v4887
  %5400 = vst [vmem:[%s3 + $0x228] sm:$0xf] %v4888
  %5401 = vst [vmem:[%s3 + $0x22c] sm:$0xf] %v4889
  %5402 = vst [vmem:[%s3 + $0x230] sm:$0xf] %v4890
  %5403 = vst [vmem:[%s3 + $0x234] sm:$0xf] %v4891
  %5404 = vst [vmem:[%s3 + $0x238] sm:$0xf] %v4892
  %5405 = vst [vmem:[%s3 + $0x23c] sm:$0xf] %v4893
  %5406 = vst [vmem:[%s3 + $0x240] sm:$0xf] %v4894
  %5407 = vst [vmem:[%s3 + $0x244] sm:$0xf] %v4895
  %5408 = vst [vmem:[%s3 + $0x248] sm:$0xf] %v4896
  %5409 = vst [vmem:[%s3 + $0x24c] sm:$0xf] %v4897
  %5410 = vst [vmem:[%s3 + $0x250] sm:$0xf] %v4898
  %5411 = vst [vmem:[%s3 + $0x254] sm:$0xf] %v4899
  %5412 = vst [vmem:[%s3 + $0x258] sm:$0xf] %v4900
  %5413 = vst [vmem:[%s3 + $0x25c] sm:$0xf] %v4901
  %5414 = vst [vmem:[%s3 + $0x260] sm:$0xf] %v4902
  %5415 = vst [vmem:[%s3 + $0x264] sm:$0xf] %v4903
  %5416 = vst [vmem:[%s3 + $0x268] sm:$0xf] %v4904
  %5417 = vst [vmem:[%s3 + $0x26c] sm:$0xf] %v4905
  %5418 = vst [vmem:[%s3 + $0x270] sm:$0xf] %v4906
  %5419 = vst [vmem:[%s3 + $0x274] sm:$0xf] %v4907
  %5420 = vst [vmem:[%s3 + $0x278] sm:$0xf] %v4908
  %5421 = vst [vmem:[%s3 + $0x27c] sm:$0xf] %v4909
  %5422 = vst [vmem:[%s3 + $0x280] sm:$0xf] %v4910
  %5423 = vst [vmem:[%s3 + $0x284] sm:$0xf] %v4911
  %5424 = vst [vmem:[%s3 + $0x288] sm:$0xf] %v4912
  %5425 = vst [vmem:[%s3 + $0x28c] sm:$0xf] %v4913
  %5426 = vst [vmem:[%s3 + $0x290] sm:$0xf] %v4914
  %5427 = vst [vmem:[%s3 + $0x294] sm:$0xf] %v4915
  %5428 = vst [vmem:[%s3 + $0x298] sm:$0xf] %v4916
  %5429 = vst [vmem:[%s3 + $0x29c] sm:$0xf] %v4917
  %5430 = vst [vmem:[%s3 + $0x2a0] sm:$0xf] %v4918
  %5431 = vst [vmem:[%s3 + $0x2a4] sm:$0xf] %v4919
  %5432 = vst [vmem:[%s3 + $0x2a8] sm:$0xf] %v4920
  %5433 = vst [vmem:[%s3 + $0x2ac] sm:$0xf] %v4921
  %5434 = vst [vmem:[%s3 + $0x2b0] sm:$0xf] %v4922
  %5435 = vst [vmem:[%s3 + $0x2b4] sm:$0xf] %v4923
  %5436 = vst [vmem:[%s3 + $0x2b8] sm:$0xf] %v4924
  %5437 = vst [vmem:[%s3 + $0x2bc] sm:$0xf] %v4925
  %5438 = vst [vmem:[%s3 + $0x2c0] sm:$0xf] %v4926
  %5439 = vst [vmem:[%s3 + $0x2c4] sm:$0xf] %v4927
  %5440 = vst [vmem:[%s3 + $0x2c8] sm:$0xf] %v4928
  %5441 = vst [vmem:[%s3 + $0x2cc] sm:$0xf] %v4929
  %5442 = vst [vmem:[%s3 + $0x2d0] sm:$0xf] %v4930
  %5443 = vst [vmem:[%s3 + $0x2d4] sm:$0xf] %v4931
  %5444 = vst [vmem:[%s3 + $0x2d8] sm:$0xf] %v4932
  %5445 = vst [vmem:[%s3 + $0x2dc] sm:$0xf] %v4933
  %5446 = vst [vmem:[%s3 + $0x2e0] sm:$0xf] %v4934
  %5447 = vst [vmem:[%s3 + $0x2e4] sm:$0xf] %v4935
  %5448 = vst [vmem:[%s3 + $0x2e8] sm:$0xf] %v4936
  %5449 = vst [vmem:[%s3 + $0x2ec] sm:$0xf] %v4937
  %5450 = vst [vmem:[%s3 + $0x2f0] sm:$0xf] %v4938
  %5451 = vst [vmem:[%s3 + $0x2f4] sm:$0xf] %v4939
  %5452 = vst [vmem:[%s3 + $0x2f8] sm:$0xf] %v4940
  %5453 = vst [vmem:[%s3 + $0x2fc] sm:$0xf] %v4941
  %5454 = vst [vmem:[%s3 + $0x300] sm:$0xf] %v4942
  %5455 = vst [vmem:[%s3 + $0x304] sm:$0xf] %v4943
  %5456 = vst [vmem:[%s3 + $0x308] sm:$0xf] %v4944
  %5457 = vst [vmem:[%s3 + $0x30c] sm:$0xf] %v4945
  %5458 = vst [vmem:[%s3 + $0x310] sm:$0xf] %v4946
  %5459 = vst [vmem:[%s3 + $0x314] sm:$0xf] %v4947
  %5460 = vst [vmem:[%s3 + $0x318] sm:$0xf] %v4948
  %5461 = vst [vmem:[%s3 + $0x31c] sm:$0xf] %v4949
  %5462 = vst [vmem:[%s3 + $0x320] sm:$0xf] %v4950
  %5463 = vst [vmem:[%s3 + $0x324] sm:$0xf] %v4951
  %5464 = vst [vmem:[%s3 + $0x328] sm:$0xf] %v4952
  %5465 = vst [vmem:[%s3 + $0x32c] sm:$0xf] %v4953
  %5466 = vst [vmem:[%s3 + $0x330] sm:$0xf] %v4954
  %5467 = vst [vmem:[%s3 + $0x334] sm:$0xf] %v4955
  %5468 = vst [vmem:[%s3 + $0x338] sm:$0xf] %v4956
  %5469 = vst [vmem:[%s3 + $0x33c] sm:$0xf] %v4957
  %5470 = vst [vmem:[%s3 + $0x340] sm:$0xf] %v4958
  %5471 = vst [vmem:[%s3 + $0x344] sm:$0xf] %v4959
  %5472 = vst [vmem:[%s3 + $0x348] sm:$0xf] %v4960
  %5473 = vst [vmem:[%s3 + $0x34c] sm:$0xf] %v4961
  %5474 = vst [vmem:[%s3 + $0x350] sm:$0xf] %v4962
  %5475 = vst [vmem:[%s3 + $0x354] sm:$0xf] %v4963
  %5476 = vst [vmem:[%s3 + $0x358] sm:$0xf] %v4964
  %5477 = vst [vmem:[%s3 + $0x35c] sm:$0xf] %v4965
  %5478 = vst [vmem:[%s3 + $0x360] sm:$0xf] %v4966
  %5479 = vst [vmem:[%s3 + $0x364] sm:$0xf] %v4967
  %5480 = vst [vmem:[%s3 + $0x368] sm:$0xf] %v4968
  %5481 = vst [vmem:[%s3 + $0x36c] sm:$0xf] %v4969
  %5482 = vst [vmem:[%s3 + $0x370] sm:$0xf] %v4970
  %5483 = vst [vmem:[%s3 + $0x374] sm:$0xf] %v4971
  %5484 = vst [vmem:[%s3 + $0x378] sm:$0xf] %v4972
  %5485 = vst [vmem:[%s3 + $0x37c] sm:$0xf] %v4973
  %5486 = vst [vmem:[%s3 + $0x380] sm:$0xf] %v4974
  %5487 = vst [vmem:[%s3 + $0x384] sm:$0xf] %v4975
  %5488 = vst [vmem:[%s3 + $0x388] sm:$0xf] %v4976
  %5489 = vst [vmem:[%s3 + $0x38c] sm:$0xf] %v4977
  %5490 = vst [vmem:[%s3 + $0x390] sm:$0xf] %v4978
  %5491 = vst [vmem:[%s3 + $0x394] sm:$0xf] %v4979
  %5492 = vst [vmem:[%s3 + $0x398] sm:$0xf] %v4980
  %5493 = vst [vmem:[%s3 + $0x39c] sm:$0xf] %v4981
  %5494 = vst [vmem:[%s3 + $0x3a0] sm:$0xf] %v4982
  %5495 = vst [vmem:[%s3 + $0x3a4] sm:$0xf] %v4983
  %5496 = vst [vmem:[%s3 + $0x3a8] sm:$0xf] %v4984
  %5497 = vst [vmem:[%s3 + $0x3ac] sm:$0xf] %v4985
  %5498 = vst [vmem:[%s3 + $0x3b0] sm:$0xf] %v4986
  %5499 = vst [vmem:[%s3 + $0x3b4] sm:$0xf] %v4987
  %5500 = vst [vmem:[%s3 + $0x3b8] sm:$0xf] %v4988
  %5501 = vst [vmem:[%s3 + $0x3bc] sm:$0xf] %v4989
  %5502 = vst [vmem:[%s3 + $0x3c0] sm:$0xf] %v4990
  %5503 = vst [vmem:[%s3 + $0x3c4] sm:$0xf] %v4991
  %5504 = vst [vmem:[%s3 + $0x3c8] sm:$0xf] %v4992
  %5505 = vst [vmem:[%s3 + $0x3cc] sm:$0xf] %v4993
  %5506 = vst [vmem:[%s3 + $0x3d0] sm:$0xf] %v4994
  %5507 = vst [vmem:[%s3 + $0x3d4] sm:$0xf] %v4995
  %5508 = vst [vmem:[%s3 + $0x3d8] sm:$0xf] %v4996
  %5509 = vst [vmem:[%s3 + $0x3dc] sm:$0xf] %v4997
  %5510 = vst [vmem:[%s3 + $0x3e0] sm:$0xf] %v4998
  %5511 = vst [vmem:[%s3 + $0x3e4] sm:$0xf] %v4999
  %5512 = vst [vmem:[%s3 + $0x3e8] sm:$0xf] %v5000
  %5513 = vst [vmem:[%s3 + $0x3ec] sm:$0xf] %v5001
  %5514 = vst [vmem:[%s3 + $0x3f0] sm:$0xf] %v5002
  %5515 = vst [vmem:[%s3 + $0x3f4] sm:$0xf] %v5003
  %5516 = vst [vmem:[%s3 + $0x3f8] sm:$0xf] %v5004
  %5517 = vst [vmem:[%s3 + $0x3fc] sm:$0xf] %v5005
  // Predicated region
  $region14: #{discriminator_forward.5} parent=0 // pred_check
    _
  $region15: #{discriminator_forward.5} parent=0 // pred_check_branch
    %5519 = sbr.rel (0) target = $region17
  $region16: #{discriminator_forward.5} parent=0 // pred_region
    _
  $region17: #{discriminator_forward.5} parent=0 // pred_fallthru
    _
  // Predicated region
  $region18: #{discriminator_forward.5} parent=0 // pred_check
    _
  $region19: #{discriminator_forward.5} parent=0 // pred_check_branch
    %5521 = sbr.rel (0) target = $region21
  $region20: #{discriminator_forward.5} parent=0 // pred_region
    _
  $region21: #{discriminator_forward.5} parent=0 // pred_fallthru
    _

// kernel: discriminator_forward.6
$region0: #{discriminator_forward.6}
  #allocation0 [shape = 'u32[]', space=smem, size = 0x4, offset = 0x4, fixed_abs, tag = 'smem constant byte address 0x4 - core index']
  #allocation1 [shape = 'u32[144,128]{1,0:T(1,128)}', space=vmem, size = 0x12000, scoped, tag = 'internal scratch']
  %s0 = inlined_call_operand.vmem [shape: bf16[512,128], index: 0, kind: input, shape index: {}]
  %s1 = inlined_call_operand.vmem [shape: bf16[128,128], index: 1, kind: input, shape index: {}]
  %s2 = inlined_call_operand.vmem [shape: f32[8,128], index: 2, kind: input, shape index: {}]
  %s3 = inlined_call_operand.vmem [shape: bf16[512,128], index: 3, kind: output, shape index: {}]
  %s4 = sld [smem:[#allocation0]]
  $region22: #{discriminator_forward.6} parent=0
    _
  %s6 = ssub.s32 1, %s4
  %s7 = scalar_select 0, %s6, %s4
  // Predicated region
  $region2: #{discriminator_forward.6} parent=0 // pred_check
    _
  $region3: #{discriminator_forward.6} parent=0 // pred_check_branch
    %9 = sbr.rel (0) target = $region5
  $region4: #{discriminator_forward.6} parent=0 // pred_region
    _
  $region5: #{discriminator_forward.6} parent=0 // pred_fallthru
    _
  // Predicated region
  $region6: #{discriminator_forward.6} parent=0 // pred_check
    _
  $region7: #{discriminator_forward.6} parent=0 // pred_check_branch
    %11 = sbr.rel (0) target = $region9
  $region8: #{discriminator_forward.6} parent=0 // pred_region
    _
  $region9: #{discriminator_forward.6} parent=0 // pred_fallthru
    _
  // Predicated region
  $region10: #{discriminator_forward.6} parent=0 // pred_check
    _
  $region11: #{discriminator_forward.6} parent=0 // pred_check_branch
    %13 = sbr.rel (0) target = $region13
  $region12: #{discriminator_forward.6} parent=0 // pred_region
    _
  $region13: #{discriminator_forward.6} parent=0 // pred_fallthru
    _
  %v15 = vld [vmem:[%s0] sm:$0xf]
  %v16 = vld [vmem:[%s0 + $0x4] sm:$0xf]
  %v17 = vld [vmem:[%s0 + $0x8] sm:$0xf]
  %v18 = vld [vmem:[%s0 + $0xc] sm:$0xf]
  %v19 = vld [vmem:[%s0 + $0x10] sm:$0xf]
  %v20 = vld [vmem:[%s0 + $0x14] sm:$0xf]
  %v21 = vld [vmem:[%s0 + $0x18] sm:$0xf]
  %v22 = vld [vmem:[%s0 + $0x1c] sm:$0xf]
  %v23 = vld [vmem:[%s0 + $0x20] sm:$0xf]
  %v24 = vld [vmem:[%s0 + $0x24] sm:$0xf]
  %v25 = vld [vmem:[%s0 + $0x28] sm:$0xf]
  %v26 = vld [vmem:[%s0 + $0x2c] sm:$0xf]
  %v27 = vld [vmem:[%s0 + $0x30] sm:$0xf]
  %v28 = vld [vmem:[%s0 + $0x34] sm:$0xf]
  %v29 = vld [vmem:[%s0 + $0x38] sm:$0xf]
  %v30 = vld [vmem:[%s0 + $0x3c] sm:$0xf]
  %v31 = vld [vmem:[%s0 + $0x40] sm:$0xf]
  %v32 = vld [vmem:[%s0 + $0x44] sm:$0xf]
  %v33 = vld [vmem:[%s0 + $0x48] sm:$0xf]
  %v34 = vld [vmem:[%s0 + $0x4c] sm:$0xf]
  %v35 = vld [vmem:[%s0 + $0x50] sm:$0xf]
  %v36 = vld [vmem:[%s0 + $0x54] sm:$0xf]
  %v37 = vld [vmem:[%s0 + $0x58] sm:$0xf]
  %v38 = vld [vmem:[%s0 + $0x5c] sm:$0xf]
  %v39 = vld [vmem:[%s0 + $0x60] sm:$0xf]
  %v40 = vld [vmem:[%s0 + $0x64] sm:$0xf]
  %v41 = vld [vmem:[%s0 + $0x68] sm:$0xf]
  %v42 = vld [vmem:[%s0 + $0x6c] sm:$0xf]
  %v43 = vld [vmem:[%s0 + $0x70] sm:$0xf]
  %v44 = vld [vmem:[%s0 + $0x74] sm:$0xf]
  %v45 = vld [vmem:[%s0 + $0x78] sm:$0xf]
  %v46 = vld [vmem:[%s0 + $0x7c] sm:$0xf]
  %v47 = vld [vmem:[%s0 + $0x80] sm:$0xf]
  %v48 = vld [vmem:[%s0 + $0x84] sm:$0xf]
  %v49 = vld [vmem:[%s0 + $0x88] sm:$0xf]
  %v50 = vld [vmem:[%s0 + $0x8c] sm:$0xf]
  %v51 = vld [vmem:[%s0 + $0x90] sm:$0xf]
  %v52 = vld [vmem:[%s0 + $0x94] sm:$0xf]
  %v53 = vld [vmem:[%s0 + $0x98] sm:$0xf]
  %v54 = vld [vmem:[%s0 + $0x9c] sm:$0xf]
  %v55 = vld [vmem:[%s0 + $0xa0] sm:$0xf]
  %v56 = vld [vmem:[%s0 + $0xa4] sm:$0xf]
  %v57 = vld [vmem:[%s0 + $0xa8] sm:$0xf]
  %v58 = vld [vmem:[%s0 + $0xac] sm:$0xf]
  %v59 = vld [vmem:[%s0 + $0xb0] sm:$0xf]
  %v60 = vld [vmem:[%s0 + $0xb4] sm:$0xf]
  %v61 = vld [vmem:[%s0 + $0xb8] sm:$0xf]
  %v62 = vld [vmem:[%s0 + $0xbc] sm:$0xf]
  %v63 = vld [vmem:[%s0 + $0xc0] sm:$0xf]
  %v64 = vld [vmem:[%s0 + $0xc4] sm:$0xf]
  %v65 = vld [vmem:[%s0 + $0xc8] sm:$0xf]
  %v66 = vld [vmem:[%s0 + $0xcc] sm:$0xf]
  %v67 = vld [vmem:[%s0 + $0xd0] sm:$0xf]
  %v68 = vld [vmem:[%s0 + $0xd4] sm:$0xf]
  %v69 = vld [vmem:[%s0 + $0xd8] sm:$0xf]
  %v70 = vld [vmem:[%s0 + $0xdc] sm:$0xf]
  %v71 = vld [vmem:[%s0 + $0xe0] sm:$0xf]
  %v72 = vld [vmem:[%s0 + $0xe4] sm:$0xf]
  %v73 = vld [vmem:[%s0 + $0xe8] sm:$0xf]
  %v74 = vld [vmem:[%s0 + $0xec] sm:$0xf]
  %v75 = vld [vmem:[%s0 + $0xf0] sm:$0xf]
  %v76 = vld [vmem:[%s0 + $0xf4] sm:$0xf]
  %v77 = vld [vmem:[%s0 + $0xf8] sm:$0xf]
  %v78 = vld [vmem:[%s0 + $0xfc] sm:$0xf]
  %v79 = vld [vmem:[%s1] sm:$0xf]
  %v80 = vld [vmem:[%s1 + $0x4] sm:$0xf]
  %v81 = vld [vmem:[%s1 + $0x8] sm:$0xf]
  %v82 = vld [vmem:[%s1 + $0xc] sm:$0xf]
  %v83 = vld [vmem:[%s1 + $0x10] sm:$0xf]
  %v84 = vld [vmem:[%s1 + $0x14] sm:$0xf]
  %v85 = vld [vmem:[%s1 + $0x18] sm:$0xf]
  %v86 = vld [vmem:[%s1 + $0x1c] sm:$0xf]
  %v87 = vld [vmem:[%s1 + $0x20] sm:$0xf]
  %v88 = vld [vmem:[%s1 + $0x24] sm:$0xf]
  %v89 = vld [vmem:[%s1 + $0x28] sm:$0xf]
  %v90 = vld [vmem:[%s1 + $0x2c] sm:$0xf]
  %v91 = vld [vmem:[%s1 + $0x30] sm:$0xf]
  %v92 = vld [vmem:[%s1 + $0x34] sm:$0xf]
  %v93 = vld [vmem:[%s1 + $0x38] sm:$0xf]
  %v94 = vld [vmem:[%s1 + $0x3c] sm:$0xf]
  %v159 = vunpack.c.l.b16 %v15
  %v160 = vunpack.c.l.b16 %v16
  %v161 = vunpack.c.l.b16 %v17
  %v162 = vunpack.c.l.b16 %v18
  %v163 = vunpack.c.l.b16 %v19
  %v164 = vunpack.c.l.b16 %v20
  %v165 = vunpack.c.l.b16 %v21
  %v166 = vunpack.c.l.b16 %v22
  %v167 = vunpack.c.l.b16 %v23
  %v168 = vunpack.c.l.b16 %v24
  %v169 = vunpack.c.l.b16 %v25
  %v170 = vunpack.c.l.b16 %v26
  %v171 = vunpack.c.l.b16 %v27
  %v172 = vunpack.c.l.b16 %v28
  %v173 = vunpack.c.l.b16 %v29
  %v174 = vunpack.c.l.b16 %v30
  %v175 = vunpack.c.l.b16 %v31
  %v176 = vunpack.c.l.b16 %v32
  %v177 = vunpack.c.l.b16 %v33
  %v178 = vunpack.c.l.b16 %v34
  %v179 = vunpack.c.l.b16 %v35
  %v180 = vunpack.c.l.b16 %v36
  %v181 = vunpack.c.l.b16 %v37
  %v182 = vunpack.c.l.b16 %v38
  %v183 = vunpack.c.l.b16 %v39
  %v184 = vunpack.c.l.b16 %v40
  %v185 = vunpack.c.l.b16 %v41
  %v186 = vunpack.c.l.b16 %v42
  %v187 = vunpack.c.l.b16 %v43
  %v188 = vunpack.c.l.b16 %v44
  %v189 = vunpack.c.l.b16 %v45
  %v190 = vunpack.c.l.b16 %v46
  %v191 = vunpack.c.l.b16 %v47
  %v192 = vunpack.c.l.b16 %v48
  %v193 = vunpack.c.l.b16 %v49
  %v194 = vunpack.c.l.b16 %v50
  %v195 = vunpack.c.l.b16 %v51
  %v196 = vunpack.c.l.b16 %v52
  %v197 = vunpack.c.l.b16 %v53
  %v198 = vunpack.c.l.b16 %v54
  %v199 = vunpack.c.l.b16 %v55
  %v200 = vunpack.c.l.b16 %v56
  %v201 = vunpack.c.l.b16 %v57
  %v202 = vunpack.c.l.b16 %v58
  %v203 = vunpack.c.l.b16 %v59
  %v204 = vunpack.c.l.b16 %v60
  %v205 = vunpack.c.l.b16 %v61
  %v206 = vunpack.c.l.b16 %v62
  %v207 = vunpack.c.l.b16 %v63
  %v208 = vunpack.c.l.b16 %v64
  %v209 = vunpack.c.l.b16 %v65
  %v210 = vunpack.c.l.b16 %v66
  %v211 = vunpack.c.l.b16 %v67
  %v212 = vunpack.c.l.b16 %v68
  %v213 = vunpack.c.l.b16 %v69
  %v214 = vunpack.c.l.b16 %v70
  %v215 = vunpack.c.l.b16 %v71
  %v216 = vunpack.c.l.b16 %v72
  %v217 = vunpack.c.l.b16 %v73
  %v218 = vunpack.c.l.b16 %v74
  %v219 = vunpack.c.l.b16 %v75
  %v220 = vunpack.c.l.b16 %v76
  %v221 = vunpack.c.l.b16 %v77
  %v222 = vunpack.c.l.b16 %v78
  %v223 = vpack.c.b16 %v160, %v159
  %v224 = vpack.c.b16 %v162, %v161
  %v225 = vpack.c.b16 %v164, %v163
  %v226 = vpack.c.b16 %v166, %v165
  %v227 = vpack.c.b16 %v168, %v167
  %v228 = vpack.c.b16 %v170, %v169
  %v229 = vpack.c.b16 %v172, %v171
  %v230 = vpack.c.b16 %v174, %v173
  %v231 = vpack.c.b16 %v176, %v175
  %v232 = vpack.c.b16 %v178, %v177
  %v233 = vpack.c.b16 %v180, %v179
  %v234 = vpack.c.b16 %v182, %v181
  %v235 = vpack.c.b16 %v184, %v183
  %v236 = vpack.c.b16 %v186, %v185
  %v237 = vpack.c.b16 %v188, %v187
  %v238 = vpack.c.b16 %v190, %v189
  %v239 = vpack.c.b16 %v192, %v191
  %v240 = vpack.c.b16 %v194, %v193
  %v241 = vpack.c.b16 %v196, %v195
  %v242 = vpack.c.b16 %v198, %v197
  %v243 = vpack.c.b16 %v200, %v199
  %v244 = vpack.c.b16 %v202, %v201
  %v245 = vpack.c.b16 %v204, %v203
  %v246 = vpack.c.b16 %v206, %v205
  %v247 = vpack.c.b16 %v208, %v207
  %v248 = vpack.c.b16 %v210, %v209
  %v249 = vpack.c.b16 %v212, %v211
  %v250 = vpack.c.b16 %v214, %v213
  %v251 = vpack.c.b16 %v216, %v215
  %v252 = vpack.c.b16 %v218, %v217
  %v253 = vpack.c.b16 %v220, %v219
  %v254 = vpack.c.b16 %v222, %v221
  %v303 = vunpack.c.l.b16 %v79
  %v304 = vunpack.c.l.b16 %v80
  %v305 = vunpack.c.l.b16 %v81
  %v306 = vunpack.c.l.b16 %v82
  %v307 = vunpack.c.l.b16 %v83
  %v308 = vunpack.c.l.b16 %v84
  %v309 = vunpack.c.l.b16 %v85
  %v310 = vunpack.c.l.b16 %v86
  %v311 = vunpack.c.l.b16 %v87
  %v312 = vunpack.c.l.b16 %v88
  %v313 = vunpack.c.l.b16 %v89
  %v314 = vunpack.c.l.b16 %v90
  %v315 = vunpack.c.l.b16 %v91
  %v316 = vunpack.c.l.b16 %v92
  %v317 = vunpack.c.l.b16 %v93
  %v318 = vunpack.c.l.b16 %v94
  %v319 = vpack.c.b16 %v304, %v303
  %v320 = vpack.c.b16 %v306, %v305
  %v321 = vpack.c.b16 %v308, %v307
  %v322 = vpack.c.b16 %v310, %v309
  %v323 = vpack.c.b16 %v312, %v311
  %v324 = vpack.c.b16 %v314, %v313
  %v325 = vpack.c.b16 %v316, %v315
  %v326 = vpack.c.b16 %v318, %v317
  %335 = vmatprep.subr.bf16.mxu0 0
  %336 = vmatpush1.bf16.msra.mxu0 %v326
  %337 = vmatprep.subr.bf16.mxu0 0
  %338 = vmatpush1.bf16.msra.mxu0 %v325
  %339 = vmatprep.subr.bf16.mxu0 0
  %340 = vmatpush1.bf16.msra.mxu0 %v324
  %341 = vmatprep.subr.bf16.mxu0 0
  %342 = vmatpush1.bf16.msra.mxu0 %v323
  %343 = vmatprep.subr.bf16.mxu0 0
  %344 = vmatpush1.bf16.msra.mxu0 %v322
  %345 = vmatprep.subr.bf16.mxu0 0
  %346 = vmatpush1.bf16.msra.mxu0 %v321
  %347 = vmatprep.subr.bf16.mxu0 0
  %348 = vmatpush1.bf16.msra.mxu0 %v320
  %349 = vmatprep.subr.bf16.mxu0 0
  %350 = vmatpush1.bf16.msra.mxu0 %v319
  %351 = vmatprep.subr.bf16.mxu0 0
  %352 = vmatpush2.bf16.msra.mxu0 0
  %353 = vmatprep.subr.bf16.mxu0 0
  %354 = vmatpush2.bf16.msra.mxu0 0
  %355 = vmatprep.subr.bf16.mxu0 0
  %356 = vmatpush2.bf16.msra.mxu0 0
  %357 = vmatprep.subr.bf16.mxu0 0
  %358 = vmatpush2.bf16.msra.mxu0 0
  %359 = vmatprep.subr.bf16.mxu0 0
  %360 = vmatpush2.bf16.msra.mxu0 0
  %361 = vmatprep.subr.bf16.mxu0 0
  %362 = vmatpush2.bf16.msra.mxu0 0
  %363 = vmatprep.subr.bf16.mxu0 0
  %364 = vmatpush2.bf16.msra.mxu0 0
  %365 = vmatprep.subr.bf16.mxu0 0
  %366 = vmatpush2.bf16.msra.mxu0 0
  %367 = vmatprep.mubr.bf16.mxu0 0
  %368 = vmatmul.mubr.bf16.gmra.mxu0 %v223
  %v369 = vpop.f32.mrf.mxu0
  %v370 = vadd.f32 0.0, %v369
  %v371 = vpop.f32.mrf.mxu0
  %v372 = vpop.f32.mrf.mxu0
  %v373 = vadd.f32 0.0, %v372
  %v374 = vpop.f32.mrf.mxu0
  %375 = vmatprep.mubr.bf16.mxu0 0
  %376 = vmatmul.mubr.bf16.gmra.mxu0 %v224
  %v377 = vpop.f32.mrf.mxu0
  %v378 = vadd.f32 0.0, %v377
  %v379 = vpop.f32.mrf.mxu0
  %v380 = vpop.f32.mrf.mxu0
  %v381 = vadd.f32 0.0, %v380
  %v382 = vpop.f32.mrf.mxu0
  %383 = vmatprep.mubr.bf16.mxu0 0
  %384 = vmatmul.mubr.bf16.gmra.mxu0 %v225
  %v385 = vpop.f32.mrf.mxu0
  %v386 = vadd.f32 0.0, %v385
  %v387 = vpop.f32.mrf.mxu0
  %v388 = vpop.f32.mrf.mxu0
  %v389 = vadd.f32 0.0, %v388
  %v390 = vpop.f32.mrf.mxu0
  %391 = vmatprep.mubr.bf16.mxu0 0
  %392 = vmatmul.mubr.bf16.gmra.mxu0 %v226
  %v393 = vpop.f32.mrf.mxu0
  %v394 = vadd.f32 0.0, %v393
  %v395 = vpop.f32.mrf.mxu0
  %v396 = vpop.f32.mrf.mxu0
  %v397 = vadd.f32 0.0, %v396
  %v398 = vpop.f32.mrf.mxu0
  %399 = vmatprep.mubr.bf16.mxu0 0
  %400 = vmatmul.mubr.bf16.gmra.mxu0 %v227
  %v401 = vpop.f32.mrf.mxu0
  %v402 = vadd.f32 0.0, %v401
  %v403 = vpop.f32.mrf.mxu0
  %v404 = vpop.f32.mrf.mxu0
  %v405 = vadd.f32 0.0, %v404
  %v406 = vpop.f32.mrf.mxu0
  %407 = vmatprep.mubr.bf16.mxu0 0
  %408 = vmatmul.mubr.bf16.gmra.mxu0 %v228
  %v409 = vpop.f32.mrf.mxu0
  %v410 = vadd.f32 0.0, %v409
  %v411 = vpop.f32.mrf.mxu0
  %v412 = vpop.f32.mrf.mxu0
  %v413 = vadd.f32 0.0, %v412
  %v414 = vpop.f32.mrf.mxu0
  %415 = vmatprep.mubr.bf16.mxu0 0
  %416 = vmatmul.mubr.bf16.gmra.mxu0 %v229
  %v417 = vpop.f32.mrf.mxu0
  %v418 = vadd.f32 0.0, %v417
  %v419 = vpop.f32.mrf.mxu0
  %v420 = vpop.f32.mrf.mxu0
  %v421 = vadd.f32 0.0, %v420
  %v422 = vpop.f32.mrf.mxu0
  %423 = vmatprep.mubr.bf16.mxu0 0
  %424 = vmatmul.mubr.bf16.gmra.mxu0 %v230
  %v425 = vpop.f32.mrf.mxu0
  %v426 = vadd.f32 0.0, %v425
  %v427 = vpop.f32.mrf.mxu0
  %v428 = vpop.f32.mrf.mxu0
  %v429 = vadd.f32 0.0, %v428
  %v430 = vpop.f32.mrf.mxu0
  %431 = vmatprep.mubr.bf16.mxu0 0
  %432 = vmatmul.mubr.bf16.gmra.mxu0 %v231
  %v433 = vpop.f32.mrf.mxu0
  %v434 = vadd.f32 0.0, %v433
  %v435 = vpop.f32.mrf.mxu0
  %v436 = vpop.f32.mrf.mxu0
  %v437 = vadd.f32 0.0, %v436
  %v438 = vpop.f32.mrf.mxu0
  %439 = vmatprep.mubr.bf16.mxu0 0
  %440 = vmatmul.mubr.bf16.gmra.mxu0 %v232
  %v441 = vpop.f32.mrf.mxu0
  %v442 = vadd.f32 0.0, %v441
  %v443 = vpop.f32.mrf.mxu0
  %v444 = vpop.f32.mrf.mxu0
  %v445 = vadd.f32 0.0, %v444
  %v446 = vpop.f32.mrf.mxu0
  %447 = vmatprep.mubr.bf16.mxu0 0
  %448 = vmatmul.mubr.bf16.gmra.mxu0 %v233
  %v449 = vpop.f32.mrf.mxu0
  %v450 = vadd.f32 0.0, %v449
  %v451 = vpop.f32.mrf.mxu0
  %v452 = vpop.f32.mrf.mxu0
  %v453 = vadd.f32 0.0, %v452
  %v454 = vpop.f32.mrf.mxu0
  %455 = vmatprep.mubr.bf16.mxu0 0
  %456 = vmatmul.mubr.bf16.gmra.mxu0 %v234
  %v457 = vpop.f32.mrf.mxu0
  %v458 = vadd.f32 0.0, %v457
  %v459 = vpop.f32.mrf.mxu0
  %v460 = vpop.f32.mrf.mxu0
  %v461 = vadd.f32 0.0, %v460
  %v462 = vpop.f32.mrf.mxu0
  %463 = vmatprep.mubr.bf16.mxu0 0
  %464 = vmatmul.mubr.bf16.gmra.mxu0 %v235
  %v465 = vpop.f32.mrf.mxu0
  %v466 = vadd.f32 0.0, %v465
  %v467 = vpop.f32.mrf.mxu0
  %v468 = vpop.f32.mrf.mxu0
  %v469 = vadd.f32 0.0, %v468
  %v470 = vpop.f32.mrf.mxu0
  %471 = vmatprep.mubr.bf16.mxu0 0
  %472 = vmatmul.mubr.bf16.gmra.mxu0 %v236
  %v473 = vpop.f32.mrf.mxu0
  %v474 = vadd.f32 0.0, %v473
  %v475 = vpop.f32.mrf.mxu0
  %v476 = vpop.f32.mrf.mxu0
  %v477 = vadd.f32 0.0, %v476
  %v478 = vpop.f32.mrf.mxu0
  %479 = vmatprep.mubr.bf16.mxu0 0
  %480 = vmatmul.mubr.bf16.gmra.mxu0 %v237
  %v481 = vpop.f32.mrf.mxu0
  %v482 = vadd.f32 0.0, %v481
  %v483 = vpop.f32.mrf.mxu0
  %v484 = vpop.f32.mrf.mxu0
  %v485 = vadd.f32 0.0, %v484
  %v486 = vpop.f32.mrf.mxu0
  %487 = vmatprep.mubr.bf16.mxu0 0
  %488 = vmatmul.mubr.bf16.gmra.mxu0 %v238
  %v489 = vpop.f32.mrf.mxu0
  %v490 = vadd.f32 0.0, %v489
  %v491 = vpop.f32.mrf.mxu0
  %v492 = vpop.f32.mrf.mxu0
  %v493 = vadd.f32 0.0, %v492
  %v494 = vpop.f32.mrf.mxu0
  %495 = vmatprep.mubr.bf16.mxu0 0
  %496 = vmatmul.mubr.bf16.gmra.mxu0 %v239
  %v497 = vpop.f32.mrf.mxu0
  %v498 = vadd.f32 0.0, %v497
  %v499 = vpop.f32.mrf.mxu0
  %v500 = vpop.f32.mrf.mxu0
  %v501 = vadd.f32 0.0, %v500
  %v502 = vpop.f32.mrf.mxu0
  %503 = vmatprep.mubr.bf16.mxu0 0
  %504 = vmatmul.mubr.bf16.gmra.mxu0 %v240
  %v505 = vpop.f32.mrf.mxu0
  %v506 = vadd.f32 0.0, %v505
  %v507 = vpop.f32.mrf.mxu0
  %v508 = vpop.f32.mrf.mxu0
  %v509 = vadd.f32 0.0, %v508
  %v510 = vpop.f32.mrf.mxu0
  %511 = vmatprep.mubr.bf16.mxu0 0
  %512 = vmatmul.mubr.bf16.gmra.mxu0 %v241
  %v513 = vpop.f32.mrf.mxu0
  %v514 = vadd.f32 0.0, %v513
  %v515 = vpop.f32.mrf.mxu0
  %v516 = vpop.f32.mrf.mxu0
  %v517 = vadd.f32 0.0, %v516
  %v518 = vpop.f32.mrf.mxu0
  %519 = vmatprep.mubr.bf16.mxu0 0
  %520 = vmatmul.mubr.bf16.gmra.mxu0 %v242
  %v521 = vpop.f32.mrf.mxu0
  %v522 = vadd.f32 0.0, %v521
  %v523 = vpop.f32.mrf.mxu0
  %v524 = vpop.f32.mrf.mxu0
  %v525 = vadd.f32 0.0, %v524
  %v526 = vpop.f32.mrf.mxu0
  %527 = vmatprep.mubr.bf16.mxu0 0
  %528 = vmatmul.mubr.bf16.gmra.mxu0 %v243
  %v529 = vpop.f32.mrf.mxu0
  %v530 = vadd.f32 0.0, %v529
  %v531 = vpop.f32.mrf.mxu0
  %v532 = vpop.f32.mrf.mxu0
  %v533 = vadd.f32 0.0, %v532
  %v534 = vpop.f32.mrf.mxu0
  %535 = vmatprep.mubr.bf16.mxu0 0
  %536 = vmatmul.mubr.bf16.gmra.mxu0 %v244
  %v537 = vpop.f32.mrf.mxu0
  %v538 = vadd.f32 0.0, %v537
  %v539 = vpop.f32.mrf.mxu0
  %v540 = vpop.f32.mrf.mxu0
  %v541 = vadd.f32 0.0, %v540
  %v542 = vpop.f32.mrf.mxu0
  %543 = vmatprep.mubr.bf16.mxu0 0
  %544 = vmatmul.mubr.bf16.gmra.mxu0 %v245
  %v545 = vpop.f32.mrf.mxu0
  %v546 = vadd.f32 0.0, %v545
  %v547 = vpop.f32.mrf.mxu0
  %v548 = vpop.f32.mrf.mxu0
  %v549 = vadd.f32 0.0, %v548
  %v550 = vpop.f32.mrf.mxu0
  %551 = vmatprep.mubr.bf16.mxu0 0
  %552 = vmatmul.mubr.bf16.gmra.mxu0 %v246
  %v553 = vpop.f32.mrf.mxu0
  %v554 = vadd.f32 0.0, %v553
  %v555 = vpop.f32.mrf.mxu0
  %v556 = vpop.f32.mrf.mxu0
  %v557 = vadd.f32 0.0, %v556
  %v558 = vpop.f32.mrf.mxu0
  %559 = vmatprep.mubr.bf16.mxu0 0
  %560 = vmatmul.mubr.bf16.gmra.mxu0 %v247
  %v561 = vpop.f32.mrf.mxu0
  %v562 = vadd.f32 0.0, %v561
  %v563 = vpop.f32.mrf.mxu0
  %v564 = vpop.f32.mrf.mxu0
  %v565 = vadd.f32 0.0, %v564
  %v566 = vpop.f32.mrf.mxu0
  %567 = vmatprep.mubr.bf16.mxu0 0
  %568 = vmatmul.mubr.bf16.gmra.mxu0 %v248
  %v569 = vpop.f32.mrf.mxu0
  %v570 = vadd.f32 0.0, %v569
  %v571 = vpop.f32.mrf.mxu0
  %v572 = vpop.f32.mrf.mxu0
  %v573 = vadd.f32 0.0, %v572
  %v574 = vpop.f32.mrf.mxu0
  %575 = vmatprep.mubr.bf16.mxu0 0
  %576 = vmatmul.mubr.bf16.gmra.mxu0 %v249
  %v577 = vpop.f32.mrf.mxu0
  %v578 = vadd.f32 0.0, %v577
  %v579 = vpop.f32.mrf.mxu0
  %v580 = vpop.f32.mrf.mxu0
  %v581 = vadd.f32 0.0, %v580
  %v582 = vpop.f32.mrf.mxu0
  %583 = vmatprep.mubr.bf16.mxu0 0
  %584 = vmatmul.mubr.bf16.gmra.mxu0 %v250
  %v585 = vpop.f32.mrf.mxu0
  %v586 = vadd.f32 0.0, %v585
  %v587 = vpop.f32.mrf.mxu0
  %v588 = vpop.f32.mrf.mxu0
  %v589 = vadd.f32 0.0, %v588
  %v590 = vpop.f32.mrf.mxu0
  %591 = vmatprep.mubr.bf16.mxu0 0
  %592 = vmatmul.mubr.bf16.gmra.mxu0 %v251
  %v593 = vpop.f32.mrf.mxu0
  %v594 = vadd.f32 0.0, %v593
  %v595 = vpop.f32.mrf.mxu0
  %v596 = vpop.f32.mrf.mxu0
  %v597 = vadd.f32 0.0, %v596
  %v598 = vpop.f32.mrf.mxu0
  %599 = vmatprep.mubr.bf16.mxu0 0
  %600 = vmatmul.mubr.bf16.gmra.mxu0 %v252
  %v601 = vpop.f32.mrf.mxu0
  %v602 = vadd.f32 0.0, %v601
  %v603 = vpop.f32.mrf.mxu0
  %v604 = vpop.f32.mrf.mxu0
  %v605 = vadd.f32 0.0, %v604
  %v606 = vpop.f32.mrf.mxu0
  %607 = vmatprep.mubr.bf16.mxu0 0
  %608 = vmatmul.mubr.bf16.gmra.mxu0 %v253
  %v609 = vpop.f32.mrf.mxu0
  %v610 = vadd.f32 0.0, %v609
  %v611 = vpop.f32.mrf.mxu0
  %v612 = vpop.f32.mrf.mxu0
  %v613 = vadd.f32 0.0, %v612
  %v614 = vpop.f32.mrf.mxu0
  %615 = vmatprep.mubr.bf16.mxu0 0
  %616 = vmatmul.mubr.bf16.gmra.mxu0 %v254
  %v617 = vpop.f32.mrf.mxu0
  %v618 = vadd.f32 0.0, %v617
  %v619 = vpop.f32.mrf.mxu0
  %v620 = vpop.f32.mrf.mxu0
  %v621 = vadd.f32 0.0, %v620
  %v622 = vpop.f32.mrf.mxu0
  %623 = vdwg.mxu0
  %v624 = vadd.f32 %v370, %v373
  %v625 = vadd.f32 %v624, %v378
  %v626 = vadd.f32 %v625, %v381
  %v627 = vadd.f32 %v626, %v386
  %v628 = vadd.f32 %v627, %v389
  %v629 = vadd.f32 %v628, %v394
  %v630 = vadd.f32 %v629, %v397
  %v631 = vadd.f32 %v630, %v402
  %v632 = vadd.f32 %v631, %v405
  %v633 = vadd.f32 %v632, %v410
  %v634 = vadd.f32 %v633, %v413
  %v635 = vadd.f32 %v634, %v418
  %v636 = vadd.f32 %v635, %v421
  %v637 = vadd.f32 %v636, %v426
  %v638 = vadd.f32 %v637, %v429
  %v639 = vadd.f32 %v638, %v434
  %v640 = vadd.f32 %v639, %v437
  %v641 = vadd.f32 %v640, %v442
  %v642 = vadd.f32 %v641, %v445
  %v643 = vadd.f32 %v642, %v450
  %v644 = vadd.f32 %v643, %v453
  %v645 = vadd.f32 %v644, %v458
  %v646 = vadd.f32 %v645, %v461
  %v647 = vadd.f32 %v646, %v466
  %v648 = vadd.f32 %v647, %v469
  %v649 = vadd.f32 %v648, %v474
  %v650 = vadd.f32 %v649, %v477
  %v651 = vadd.f32 %v650, %v482
  %v652 = vadd.f32 %v651, %v485
  %v653 = vadd.f32 %v652, %v490
  %v654 = vadd.f32 %v653, %v493
  %v655 = vadd.f32 %v654, %v498
  %v656 = vadd.f32 %v655, %v501
  %v657 = vadd.f32 %v656, %v506
  %v658 = vadd.f32 %v657, %v509
  %v659 = vadd.f32 %v658, %v514
  %v660 = vadd.f32 %v659, %v517
  %v661 = vadd.f32 %v660, %v522
  %v662 = vadd.f32 %v661, %v525
  %v663 = vadd.f32 %v662, %v530
  %v664 = vadd.f32 %v663, %v533
  %v665 = vadd.f32 %v664, %v538
  %v666 = vadd.f32 %v665, %v541
  %v667 = vadd.f32 %v666, %v546
  %v668 = vadd.f32 %v667, %v549
  %v669 = vadd.f32 %v668, %v554
  %v670 = vadd.f32 %v669, %v557
  %v671 = vadd.f32 %v670, %v562
  %v672 = vadd.f32 %v671, %v565
  %v673 = vadd.f32 %v672, %v570
  %v674 = vadd.f32 %v673, %v573
  %v675 = vadd.f32 %v674, %v578
  %v676 = vadd.f32 %v675, %v581
  %v677 = vadd.f32 %v676, %v586
  %v678 = vadd.f32 %v677, %v589
  %v679 = vadd.f32 %v678, %v594
  %v680 = vadd.f32 %v679, %v597
  %v681 = vadd.f32 %v680, %v602
  %v682 = vadd.f32 %v681, %v605
  %v683 = vadd.f32 %v682, %v610
  %v684 = vadd.f32 %v683, %v613
  %v685 = vadd.f32 %v684, %v618
  %v686 = vadd.f32 %v685, %v621
  %v687 = vrot.slane %v686, 4
  %v688 = vadd.f32 %v686, %v687
  %v689 = vrot.slane %v688, 2
  %v690 = vadd.f32 %v688, %v689
  %v691 = vrot.slane %v690, 1
  %v692 = vadd.f32 %v690, %v691
  %v693 = vmul.f32 %v692, 0.001953125
  %v694 = vmul.f32 %v370, %v370
  %v695 = vmul.f32 %v373, %v373
  %v696 = vmul.f32 %v378, %v378
  %v697 = vmul.f32 %v381, %v381
  %v698 = vmul.f32 %v386, %v386
  %v699 = vmul.f32 %v389, %v389
  %v700 = vmul.f32 %v394, %v394
  %v701 = vmul.f32 %v397, %v397
  %v702 = vmul.f32 %v402, %v402
  %v703 = vmul.f32 %v405, %v405
  %v704 = vmul.f32 %v410, %v410
  %v705 = vmul.f32 %v413, %v413
  %v706 = vmul.f32 %v418, %v418
  %v707 = vmul.f32 %v421, %v421
  %v708 = vmul.f32 %v426, %v426
  %v709 = vmul.f32 %v429, %v429
  %v710 = vmul.f32 %v434, %v434
  %v711 = vmul.f32 %v437, %v437
  %v712 = vmul.f32 %v442, %v442
  %v713 = vmul.f32 %v445, %v445
  %v714 = vmul.f32 %v450, %v450
  %v715 = vmul.f32 %v453, %v453
  %v716 = vmul.f32 %v458, %v458
  %v717 = vmul.f32 %v461, %v461
  %v718 = vmul.f32 %v466, %v466
  %v719 = vmul.f32 %v469, %v469
  %v720 = vmul.f32 %v474, %v474
  %v721 = vmul.f32 %v477, %v477
  %v722 = vmul.f32 %v482, %v482
  %v723 = vmul.f32 %v485, %v485
  %v724 = vmul.f32 %v490, %v490
  %v725 = vmul.f32 %v493, %v493
  %v726 = vmul.f32 %v498, %v498
  %v727 = vmul.f32 %v501, %v501
  %v728 = vmul.f32 %v506, %v506
  %v729 = vmul.f32 %v509, %v509
  %v730 = vmul.f32 %v514, %v514
  %v731 = vmul.f32 %v517, %v517
  %v732 = vmul.f32 %v522, %v522
  %v733 = vmul.f32 %v525, %v525
  %v734 = vmul.f32 %v530, %v530
  %v735 = vmul.f32 %v533, %v533
  %v736 = vmul.f32 %v538, %v538
  %v737 = vmul.f32 %v541, %v541
  %v738 = vmul.f32 %v546, %v546
  %v739 = vmul.f32 %v549, %v549
  %v740 = vmul.f32 %v554, %v554
  %v741 = vmul.f32 %v557, %v557
  %v742 = vmul.f32 %v562, %v562
  %v743 = vmul.f32 %v565, %v565
  %v744 = vmul.f32 %v570, %v570
  %v745 = vmul.f32 %v573, %v573
  %v746 = vmul.f32 %v578, %v578
  %v747 = vmul.f32 %v581, %v581
  %v748 = vmul.f32 %v586, %v586
  %v749 = vmul.f32 %v589, %v589
  %v750 = vmul.f32 %v594, %v594
  %v751 = vmul.f32 %v597, %v597
  %v752 = vmul.f32 %v602, %v602
  %v753 = vmul.f32 %v605, %v605
  %v754 = vmul.f32 %v610, %v610
  %v755 = vmul.f32 %v613, %v613
  %v756 = vmul.f32 %v618, %v618
  %v757 = vmul.f32 %v621, %v621
  %v758 = vadd.f32 %v694, %v695
  %v759 = vadd.f32 %v758, %v696
  %v760 = vadd.f32 %v759, %v697
  %v761 = vadd.f32 %v760, %v698
  %v762 = vadd.f32 %v761, %v699
  %v763 = vadd.f32 %v762, %v700
  %v764 = vadd.f32 %v763, %v701
  %v765 = vadd.f32 %v764, %v702
  %v766 = vadd.f32 %v765, %v703
  %v767 = vadd.f32 %v766, %v704
  %v768 = vadd.f32 %v767, %v705
  %v769 = vadd.f32 %v768, %v706
  %v770 = vadd.f32 %v769, %v707
  %v771 = vadd.f32 %v770, %v708
  %v772 = vadd.f32 %v771, %v709
  %v773 = vadd.f32 %v772, %v710
  %v774 = vadd.f32 %v773, %v711
  %v775 = vadd.f32 %v774, %v712
  %v776 = vadd.f32 %v775, %v713
  %v777 = vadd.f32 %v776, %v714
  %v778 = vadd.f32 %v777, %v715
  %v779 = vadd.f32 %v778, %v716
  %v780 = vadd.f32 %v779, %v717
  %v781 = vadd.f32 %v780, %v718
  %v782 = vadd.f32 %v781, %v719
  %v783 = vadd.f32 %v782, %v720
  %v784 = vadd.f32 %v783, %v721
  %v785 = vadd.f32 %v784, %v722
  %v786 = vadd.f32 %v785, %v723
  %v787 = vadd.f32 %v786, %v724
  %v788 = vadd.f32 %v787, %v725
  %v789 = vadd.f32 %v788, %v726
  %v790 = vadd.f32 %v789, %v727
  %v791 = vadd.f32 %v790, %v728
  %v792 = vadd.f32 %v791, %v729
  %v793 = vadd.f32 %v792, %v730
  %v794 = vadd.f32 %v793, %v731
  %v795 = vadd.f32 %v794, %v732
  %v796 = vadd.f32 %v795, %v733
  %v797 = vadd.f32 %v796, %v734
  %v798 = vadd.f32 %v797, %v735
  %v799 = vadd.f32 %v798, %v736
  %v800 = vadd.f32 %v799, %v737
  %v801 = vadd.f32 %v800, %v738
  %v802 = vadd.f32 %v801, %v739
  %v803 = vadd.f32 %v802, %v740
  %v804 = vadd.f32 %v803, %v741
  %v805 = vadd.f32 %v804, %v742
  %v806 = vadd.f32 %v805, %v743
  %v807 = vadd.f32 %v806, %v744
  %v808 = vadd.f32 %v807, %v745
  %v809 = vadd.f32 %v808, %v746
  %v810 = vadd.f32 %v809, %v747
  %v811 = vadd.f32 %v810, %v748
  %v812 = vadd.f32 %v811, %v749
  %v813 = vadd.f32 %v812, %v750
  %v814 = vadd.f32 %v813, %v751
  %v815 = vadd.f32 %v814, %v752
  %v816 = vadd.f32 %v815, %v753
  %v817 = vadd.f32 %v816, %v754
  %v818 = vadd.f32 %v817, %v755
  %v819 = vadd.f32 %v818, %v756
  %v820 = vadd.f32 %v819, %v757
  %v821 = vrot.slane %v820, 4
  %v822 = vadd.f32 %v820, %v821
  %v823 = vrot.slane %v822, 2
  %v824 = vadd.f32 %v822, %v823
  %v825 = vrot.slane %v824, 1
  %v826 = vadd.f32 %v824, %v825
  %v827 = vmul.f32 %v826, 0.001953125
  %v828 = vmul.f32 %v693, %v693
  %v829 = vsub.f32 %v827, %v828
  %v830 = vmax.f32 %v829, 0.0
  %v831 = vld [vmem:[%s2] sm:$0x1]
  %v832 = vld [vmem:[%s2 + $0x1] sm:$0x1]
  %v833 = vadd.f32 %v830, 1e-05
  %v834 = vrsqrt.pop %v833
  %v835 = vmul.f32 %v831, %v834
  %v836 = vmul.f32 %v693, %v835
  %v837 = vsub.f32 %v832, %v836
  %v838 = vlaneseq
  %v839 = vshrl.u32 %v838, 7
  %v840 = vsub.s32 0, %v839
  %v841 = vrot.slane %v835, %v840
  %v842 = vmul.f32 %v370, %v841
  %v843 = vmul.f32 %v373, %v841
  %v844 = vmul.f32 %v378, %v841
  %v845 = vmul.f32 %v381, %v841
  %v846 = vmul.f32 %v386, %v841
  %v847 = vmul.f32 %v389, %v841
  %v848 = vmul.f32 %v394, %v841
  %v849 = vmul.f32 %v397, %v841
  %v850 = vmul.f32 %v402, %v841
  %v851 = vmul.f32 %v405, %v841
  %v852 = vmul.f32 %v410, %v841
  %v853 = vmul.f32 %v413, %v841
  %v854 = vmul.f32 %v418, %v841
  %v855 = vmul.f32 %v421, %v841
  %v856 = vmul.f32 %v426, %v841
  %v857 = vmul.f32 %v429, %v841
  %v858 = vmul.f32 %v434, %v841
  %v859 = vmul.f32 %v437, %v841
  %v860 = vmul.f32 %v442, %v841
  %v861 = vmul.f32 %v445, %v841
  %v862 = vmul.f32 %v450, %v841
  %v863 = vmul.f32 %v453, %v841
  %v864 = vmul.f32 %v458, %v841
  %v865 = vmul.f32 %v461, %v841
  %v866 = vmul.f32 %v466, %v841
  %v867 = vmul.f32 %v469, %v841
  %v868 = vmul.f32 %v474, %v841
  %v869 = vmul.f32 %v477, %v841
  %v870 = vmul.f32 %v482, %v841
  %v871 = vmul.f32 %v485, %v841
  %v872 = vmul.f32 %v490, %v841
  %v873 = vmul.f32 %v493, %v841
  %v874 = vmul.f32 %v498, %v841
  %v875 = vmul.f32 %v501, %v841
  %v876 = vmul.f32 %v506, %v841
  %v877 = vmul.f32 %v509, %v841
  %v878 = vmul.f32 %v514, %v841
  %v879 = vmul.f32 %v517, %v841
  %v880 = vmul.f32 %v522, %v841
  %v881 = vmul.f32 %v525, %v841
  %v882 = vmul.f32 %v530, %v841
  %v883 = vmul.f32 %v533, %v841
  %v884 = vmul.f32 %v538, %v841
  %v885 = vmul.f32 %v541, %v841
  %v886 = vmul.f32 %v546, %v841
  %v887 = vmul.f32 %v549, %v841
  %v888 = vmul.f32 %v554, %v841
  %v889 = vmul.f32 %v557, %v841
  %v890 = vmul.f32 %v562, %v841
  %v891 = vmul.f32 %v565, %v841
  %v892 = vmul.f32 %v570, %v841
  %v893 = vmul.f32 %v573, %v841
  %v894 = vmul.f32 %v578, %v841
  %v895 = vmul.f32 %v581, %v841
  %v896 = vmul.f32 %v586, %v841
  %v897 = vmul.f32 %v589, %v841
  %v898 = vmul.f32 %v594, %v841
  %v899 = vmul.f32 %v597, %v841
  %v900 = vmul.f32 %v602, %v841
  %v901 = vmul.f32 %v605, %v841
  %v902 = vmul.f32 %v610, %v841
  %v903 = vmul.f32 %v613, %v841
  %v904 = vmul.f32 %v618, %v841
  %v905 = vmul.f32 %v621, %v841
  %v906 = vlaneseq
  %v907 = vshrl.u32 %v906, 7
  %v908 = vsub.s32 0, %v907
  %v909 = vrot.slane %v837, %v908
  %v910 = vadd.f32 %v842, %v909
  %v911 = vadd.f32 %v843, %v909
  %v912 = vadd.f32 %v844, %v909
  %v913 = vadd.f32 %v845, %v909
  %v914 = vadd.f32 %v846, %v909
  %v915 = vadd.f32 %v847, %v909
  %v916 = vadd.f32 %v848, %v909
  %v917 = vadd.f32 %v849, %v909
  %v918 = vadd.f32 %v850, %v909
  %v919 = vadd.f32 %v851, %v909
  %v920 = vadd.f32 %v852, %v909
  %v921 = vadd.f32 %v853, %v909
  %v922 = vadd.f32 %v854, %v909
  %v923 = vadd.f32 %v855, %v909
  %v924 = vadd.f32 %v856, %v909
  %v925 = vadd.f32 %v857, %v909
  %v926 = vadd.f32 %v858, %v909
  %v927 = vadd.f32 %v859, %v909
  %v928 = vadd.f32 %v860, %v909
  %v929 = vadd.f32 %v861, %v909
  %v930 = vadd.f32 %v862, %v909
  %v931 = vadd.f32 %v863, %v909
  %v932 = vadd.f32 %v864, %v909
  %v933 = vadd.f32 %v865, %v909
  %v934 = vadd.f32 %v866, %v909
  %v935 = vadd.f32 %v867, %v909
  %v936 = vadd.f32 %v868, %v909
  %v937 = vadd.f32 %v869, %v909
  %v938 = vadd.f32 %v870, %v909
  %v939 = vadd.f32 %v871, %v909
  %v940 = vadd.f32 %v872, %v909
  %v941 = vadd.f32 %v873, %v909
  %v942 = vadd.f32 %v874, %v909
  %v943 = vadd.f32 %v875, %v909
  %v944 = vadd.f32 %v876, %v909
  %v945 = vadd.f32 %v877, %v909
  %v946 = vadd.f32 %v878, %v909
  %v947 = vadd.f32 %v879, %v909
  %v948 = vadd.f32 %v880, %v909
  %v949 = vadd.f32 %v881, %v909
  %v950 = vadd.f32 %v882, %v909
  %v951 = vadd.f32 %v883, %v909
  %v952 = vadd.f32 %v884, %v909
  %v953 = vadd.f32 %v885, %v909
  %v954 = vadd.f32 %v886, %v909
  %v955 = vadd.f32 %v887, %v909
  %v956 = vadd.f32 %v888, %v909
  %v957 = vadd.f32 %v889, %v909
  %v958 = vadd.f32 %v890, %v909
  %v959 = vadd.f32 %v891, %v909
  %v960 = vadd.f32 %v892, %v909
  %v961 = vadd.f32 %v893, %v909
  %v962 = vadd.f32 %v894, %v909
  %v963 = vadd.f32 %v895, %v909
  %v964 = vadd.f32 %v896, %v909
  %v965 = vadd.f32 %v897, %v909
  %v966 = vadd.f32 %v898, %v909
  %v967 = vadd.f32 %v899, %v909
  %v968 = vadd.f32 %v900, %v909
  %v969 = vadd.f32 %v901, %v909
  %v970 = vadd.f32 %v902, %v909
  %v971 = vadd.f32 %v903, %v909
  %v972 = vadd.f32 %v904, %v909
  %v973 = vadd.f32 %v905, %v909
  %vm974 = vcmp.gt.f32.partialorder %v910, 0.0
  %vm975 = vcmp.gt.f32.partialorder %v911, 0.0
  %vm976 = vcmp.gt.f32.partialorder %v912, 0.0
  %vm977 = vcmp.gt.f32.partialorder %v913, 0.0
  %vm978 = vcmp.gt.f32.partialorder %v914, 0.0
  %vm979 = vcmp.gt.f32.partialorder %v915, 0.0
  %vm980 = vcmp.gt.f32.partialorder %v916, 0.0
  %vm981 = vcmp.gt.f32.partialorder %v917, 0.0
  %vm982 = vcmp.gt.f32.partialorder %v918, 0.0
  %vm983 = vcmp.gt.f32.partialorder %v919, 0.0
  %vm984 = vcmp.gt.f32.partialorder %v920, 0.0
  %vm985 = vcmp.gt.f32.partialorder %v921, 0.0
  %vm986 = vcmp.gt.f32.partialorder %v922, 0.0
  %vm987 = vcmp.gt.f32.partialorder %v923, 0.0
  %vm988 = vcmp.gt.f32.partialorder %v924, 0.0
  %vm989 = vcmp.gt.f32.partialorder %v925, 0.0
  %vm990 = vcmp.gt.f32.partialorder %v926, 0.0
  %vm991 = vcmp.gt.f32.partialorder %v927, 0.0
  %vm992 = vcmp.gt.f32.partialorder %v928, 0.0
  %vm993 = vcmp.gt.f32.partialorder %v929, 0.0
  %vm994 = vcmp.gt.f32.partialorder %v930, 0.0
  %vm995 = vcmp.gt.f32.partialorder %v931, 0.0
  %vm996 = vcmp.gt.f32.partialorder %v932, 0.0
  %vm997 = vcmp.gt.f32.partialorder %v933, 0.0
  %vm998 = vcmp.gt.f32.partialorder %v934, 0.0
  %vm999 = vcmp.gt.f32.partialorder %v935, 0.0
  %vm1000 = vcmp.gt.f32.partialorder %v936, 0.0
  %vm1001 = vcmp.gt.f32.partialorder %v937, 0.0
  %vm1002 = vcmp.gt.f32.partialorder %v938, 0.0
  %vm1003 = vcmp.gt.f32.partialorder %v939, 0.0
  %vm1004 = vcmp.gt.f32.partialorder %v940, 0.0
  %vm1005 = vcmp.gt.f32.partialorder %v941, 0.0
  %vm1006 = vcmp.gt.f32.partialorder %v942, 0.0
  %vm1007 = vcmp.gt.f32.partialorder %v943, 0.0
  %vm1008 = vcmp.gt.f32.partialorder %v944, 0.0
  %vm1009 = vcmp.gt.f32.partialorder %v945, 0.0
  %vm1010 = vcmp.gt.f32.partialorder %v946, 0.0
  %vm1011 = vcmp.gt.f32.partialorder %v947, 0.0
  %vm1012 = vcmp.gt.f32.partialorder %v948, 0.0
  %vm1013 = vcmp.gt.f32.partialorder %v949, 0.0
  %vm1014 = vcmp.gt.f32.partialorder %v950, 0.0
  %vm1015 = vcmp.gt.f32.partialorder %v951, 0.0
  %vm1016 = vcmp.gt.f32.partialorder %v952, 0.0
  %vm1017 = vcmp.gt.f32.partialorder %v953, 0.0
  %vm1018 = vcmp.gt.f32.partialorder %v954, 0.0
  %vm1019 = vcmp.gt.f32.partialorder %v955, 0.0
  %vm1020 = vcmp.gt.f32.partialorder %v956, 0.0
  %vm1021 = vcmp.gt.f32.partialorder %v957, 0.0
  %vm1022 = vcmp.gt.f32.partialorder %v958, 0.0
  %vm1023 = vcmp.gt.f32.partialorder %v959, 0.0
  %vm1024 = vcmp.gt.f32.partialorder %v960, 0.0
  %vm1025 = vcmp.gt.f32.partialorder %v961, 0.0
  %vm1026 = vcmp.gt.f32.partialorder %v962, 0.0
  %vm1027 = vcmp.gt.f32.partialorder %v963, 0.0
  %vm1028 = vcmp.gt.f32.partialorder %v964, 0.0
  %vm1029 = vcmp.gt.f32.partialorder %v965, 0.0
  %vm1030 = vcmp.gt.f32.partialorder %v966, 0.0
  %vm1031 = vcmp.gt.f32.partialorder %v967, 0.0
  %vm1032 = vcmp.gt.f32.partialorder %v968, 0.0
  %vm1033 = vcmp.gt.f32.partialorder %v969, 0.0
  %vm1034 = vcmp.gt.f32.partialorder %v970, 0.0
  %vm1035 = vcmp.gt.f32.partialorder %v971, 0.0
  %vm1036 = vcmp.gt.f32.partialorder %v972, 0.0
  %vm1037 = vcmp.gt.f32.partialorder %v973, 0.0
  %v1038 = vmul.f32 %v910, 0.2
  %v1039 = vmul.f32 %v911, 0.2
  %v1040 = vmul.f32 %v912, 0.2
  %v1041 = vmul.f32 %v913, 0.2
  %v1042 = vmul.f32 %v914, 0.2
  %v1043 = vmul.f32 %v915, 0.2
  %v1044 = vmul.f32 %v916, 0.2
  %v1045 = vmul.f32 %v917, 0.2
  %v1046 = vmul.f32 %v918, 0.2
  %v1047 = vmul.f32 %v919, 0.2
  %v1048 = vmul.f32 %v920, 0.2
  %v1049 = vmul.f32 %v921, 0.2
  %v1050 = vmul.f32 %v922, 0.2
  %v1051 = vmul.f32 %v923, 0.2
  %v1052 = vmul.f32 %v924, 0.2
  %v1053 = vmul.f32 %v925, 0.2
  %v1054 = vmul.f32 %v926, 0.2
  %v1055 = vmul.f32 %v927, 0.2
  %v1056 = vmul.f32 %v928, 0.2
  %v1057 = vmul.f32 %v929, 0.2
  %v1058 = vmul.f32 %v930, 0.2
  %v1059 = vmul.f32 %v931, 0.2
  %v1060 = vmul.f32 %v932, 0.2
  %v1061 = vmul.f32 %v933, 0.2
  %v1062 = vmul.f32 %v934, 0.2
  %v1063 = vmul.f32 %v935, 0.2
  %v1064 = vmul.f32 %v936, 0.2
  %v1065 = vmul.f32 %v937, 0.2
  %v1066 = vmul.f32 %v938, 0.2
  %v1067 = vmul.f32 %v939, 0.2
  %v1068 = vmul.f32 %v940, 0.2
  %v1069 = vmul.f32 %v941, 0.2
  %v1070 = vmul.f32 %v942, 0.2
  %v1071 = vmul.f32 %v943, 0.2
  %v1072 = vmul.f32 %v944, 0.2
  %v1073 = vmul.f32 %v945, 0.2
  %v1074 = vmul.f32 %v946, 0.2
  %v1075 = vmul.f32 %v947, 0.2
  %v1076 = vmul.f32 %v948, 0.2
  %v1077 = vmul.f32 %v949, 0.2
  %v1078 = vmul.f32 %v950, 0.2
  %v1079 = vmul.f32 %v951, 0.2
  %v1080 = vmul.f32 %v952, 0.2
  %v1081 = vmul.f32 %v953, 0.2
  %v1082 = vmul.f32 %v954, 0.2
  %v1083 = vmul.f32 %v955, 0.2
  %v1084 = vmul.f32 %v956, 0.2
  %v1085 = vmul.f32 %v957, 0.2
  %v1086 = vmul.f32 %v958, 0.2
  %v1087 = vmul.f32 %v959, 0.2
  %v1088 = vmul.f32 %v960, 0.2
  %v1089 = vmul.f32 %v961, 0.2
  %v1090 = vmul.f32 %v962, 0.2
  %v1091 = vmul.f32 %v963, 0.2
  %v1092 = vmul.f32 %v964, 0.2
  %v1093 = vmul.f32 %v965, 0.2
  %v1094 = vmul.f32 %v966, 0.2
  %v1095 = vmul.f32 %v967, 0.2
  %v1096 = vmul.f32 %v968, 0.2
  %v1097 = vmul.f32 %v969, 0.2
  %v1098 = vmul.f32 %v970, 0.2
  %v1099 = vmul.f32 %v971, 0.2
  %v1100 = vmul.f32 %v972, 0.2
  %v1101 = vmul.f32 %v973, 0.2
  %v1102 = vsel %vm974, %v910, %v1038
  %v1103 = vsel %vm975, %v911, %v1039
  %v1104 = vsel %vm976, %v912, %v1040
  %v1105 = vsel %vm977, %v913, %v1041
  %v1106 = vsel %vm978, %v914, %v1042
  %v1107 = vsel %vm979, %v915, %v1043
  %v1108 = vsel %vm980, %v916, %v1044
  %v1109 = vsel %vm981, %v917, %v1045
  %v1110 = vsel %vm982, %v918, %v1046
  %v1111 = vsel %vm983, %v919, %v1047
  %v1112 = vsel %vm984, %v920, %v1048
  %v1113 = vsel %vm985, %v921, %v1049
  %v1114 = vsel %vm986, %v922, %v1050
  %v1115 = vsel %vm987, %v923, %v1051
  %v1116 = vsel %vm988, %v924, %v1052
  %v1117 = vsel %vm989, %v925, %v1053
  %v1118 = vsel %vm990, %v926, %v1054
  %v1119 = vsel %vm991, %v927, %v1055
  %v1120 = vsel %vm992, %v928, %v1056
  %v1121 = vsel %vm993, %v929, %v1057
  %v1122 = vsel %vm994, %v930, %v1058
  %v1123 = vsel %vm995, %v931, %v1059
  %v1124 = vsel %vm996, %v932, %v1060
  %v1125 = vsel %vm997, %v933, %v1061
  %v1126 = vsel %vm998, %v934, %v1062
  %v1127 = vsel %vm999, %v935, %v1063
  %v1128 = vsel %vm1000, %v936, %v1064
  %v1129 = vsel %vm1001, %v937, %v1065
  %v1130 = vsel %vm1002, %v938, %v1066
  %v1131 = vsel %vm1003, %v939, %v1067
  %v1132 = vsel %vm1004, %v940, %v1068
  %v1133 = vsel %vm1005, %v941, %v1069
  %v1134 = vsel %vm1006, %v942, %v1070
  %v1135 = vsel %vm1007, %v943, %v1071
  %v1136 = vsel %vm1008, %v944, %v1072
  %v1137 = vsel %vm1009, %v945, %v1073
  %v1138 = vsel %vm1010, %v946, %v1074
  %v1139 = vsel %vm1011, %v947, %v1075
  %v1140 = vsel %vm1012, %v948, %v1076
  %v1141 = vsel %vm1013, %v949, %v1077
  %v1142 = vsel %vm1014, %v950, %v1078
  %v1143 = vsel %vm1015, %v951, %v1079
  %v1144 = vsel %vm1016, %v952, %v1080
  %v1145 = vsel %vm1017, %v953, %v1081
  %v1146 = vsel %vm1018, %v954, %v1082
  %v1147 = vsel %vm1019, %v955, %v1083
  %v1148 = vsel %vm1020, %v956, %v1084
  %v1149 = vsel %vm1021, %v957, %v1085
  %v1150 = vsel %vm1022, %v958, %v1086
  %v1151 = vsel %vm1023, %v959, %v1087
  %v1152 = vsel %vm1024, %v960, %v1088
  %v1153 = vsel %vm1025, %v961, %v1089
  %v1154 = vsel %vm1026, %v962, %v1090
  %v1155 = vsel %vm1027, %v963, %v1091
  %v1156 = vsel %vm1028, %v964, %v1092
  %v1157 = vsel %vm1029, %v965, %v1093
  %v1158 = vsel %vm1030, %v966, %v1094
  %v1159 = vsel %vm1031, %v967, %v1095
  %v1160 = vsel %vm1032, %v968, %v1096
  %v1161 = vsel %vm1033, %v969, %v1097
  %v1162 = vsel %vm1034, %v970, %v1098
  %v1163 = vsel %vm1035, %v971, %v1099
  %v1164 = vsel %vm1036, %v972, %v1100
  %v1165 = vsel %vm1037, %v973, %v1101
  %v1166 = vpack.c.bf16 %v1103, %v1102
  %v1167 = vpack.c.bf16 %v1105, %v1104
  %v1168 = vpack.c.bf16 %v1107, %v1106
  %v1169 = vpack.c.bf16 %v1109, %v1108
  %v1170 = vpack.c.bf16 %v1111, %v1110
  %v1171 = vpack.c.bf16 %v1113, %v1112
  %v1172 = vpack.c.bf16 %v1115, %v1114
  %v1173 = vpack.c.bf16 %v1117, %v1116
  %v1174 = vpack.c.bf16 %v1119, %v1118
  %v1175 = vpack.c.bf16 %v1121, %v1120
  %v1176 = vpack.c.bf16 %v1123, %v1122
  %v1177 = vpack.c.bf16 %v1125, %v1124
  %v1178 = vpack.c.bf16 %v1127, %v1126
  %v1179 = vpack.c.bf16 %v1129, %v1128
  %v1180 = vpack.c.bf16 %v1131, %v1130
  %v1181 = vpack.c.bf16 %v1133, %v1132
  %v1182 = vpack.c.bf16 %v1135, %v1134
  %v1183 = vpack.c.bf16 %v1137, %v1136
  %v1184 = vpack.c.bf16 %v1139, %v1138
  %v1185 = vpack.c.bf16 %v1141, %v1140
  %v1186 = vpack.c.bf16 %v1143, %v1142
  %v1187 = vpack.c.bf16 %v1145, %v1144
  %v1188 = vpack.c.bf16 %v1147, %v1146
  %v1189 = vpack.c.bf16 %v1149, %v1148
  %v1190 = vpack.c.bf16 %v1151, %v1150
  %v1191 = vpack.c.bf16 %v1153, %v1152
  %v1192 = vpack.c.bf16 %v1155, %v1154
  %v1193 = vpack.c.bf16 %v1157, %v1156
  %v1194 = vpack.c.bf16 %v1159, %v1158
  %v1195 = vpack.c.bf16 %v1161, %v1160
  %v1196 = vpack.c.bf16 %v1163, %v1162
  %v1197 = vpack.c.bf16 %v1165, %v1164
  %v1230 = vunpack.c.l.b16 %v1166
  %v1231 = vunpack.c.h.b16 %v1166
  %v1232 = vunpack.c.l.b16 %v1167
  %v1233 = vunpack.c.h.b16 %v1167
  %v1234 = vunpack.c.l.b16 %v1168
  %v1235 = vunpack.c.h.b16 %v1168
  %v1236 = vunpack.c.l.b16 %v1169
  %v1237 = vunpack.c.h.b16 %v1169
  %v1238 = vunpack.c.l.b16 %v1170
  %v1239 = vunpack.c.h.b16 %v1170
  %v1240 = vunpack.c.l.b16 %v1171
  %v1241 = vunpack.c.h.b16 %v1171
  %v1242 = vunpack.c.l.b16 %v1172
  %v1243 = vunpack.c.h.b16 %v1172
  %v1244 = vunpack.c.l.b16 %v1173
  %v1245 = vunpack.c.h.b16 %v1173
  %v1246 = vunpack.c.l.b16 %v1174
  %v1247 = vunpack.c.h.b16 %v1174
  %v1248 = vunpack.c.l.b16 %v1175
  %v1249 = vunpack.c.h.b16 %v1175
  %v1250 = vunpack.c.l.b16 %v1176
  %v1251 = vunpack.c.h.b16 %v1176
  %v1252 = vunpack.c.l.b16 %v1177
  %v1253 = vunpack.c.h.b16 %v1177
  %v1254 = vunpack.c.l.b16 %v1178
  %v1255 = vunpack.c.h.b16 %v1178
  %v1256 = vunpack.c.l.b16 %v1179
  %v1257 = vunpack.c.h.b16 %v1179
  %v1258 = vunpack.c.l.b16 %v1180
  %v1259 = vunpack.c.h.b16 %v1180
  %v1260 = vunpack.c.l.b16 %v1181
  %v1261 = vunpack.c.h.b16 %v1181
  %v1262 = vunpack.c.l.b16 %v1182
  %v1263 = vunpack.c.h.b16 %v1182
  %v1264 = vunpack.c.l.b16 %v1183
  %v1265 = vunpack.c.h.b16 %v1183
  %v1266 = vunpack.c.l.b16 %v1184
  %v1267 = vunpack.c.h.b16 %v1184
  %v1268 = vunpack.c.l.b16 %v1185
  %v1269 = vunpack.c.h.b16 %v1185
  %v1270 = vunpack.c.l.b16 %v1186
  %v1271 = vunpack.c.h.b16 %v1186
  %v1272 = vunpack.c.l.b16 %v1187
  %v1273 = vunpack.c.h.b16 %v1187
  %v1274 = vunpack.c.l.b16 %v1188
  %v1275 = vunpack.c.h.b16 %v1188
  %v1276 = vunpack.c.l.b16 %v1189
  %v1277 = vunpack.c.h.b16 %v1189
  %v1278 = vunpack.c.l.b16 %v1190
  %v1279 = vunpack.c.h.b16 %v1190
  %v1280 = vunpack.c.l.b16 %v1191
  %v1281 = vunpack.c.h.b16 %v1191
  %v1282 = vunpack.c.l.b16 %v1192
  %v1283 = vunpack.c.h.b16 %v1192
  %v1284 = vunpack.c.l.b16 %v1193
  %v1285 = vunpack.c.h.b16 %v1193
  %v1286 = vunpack.c.l.b16 %v1194
  %v1287 = vunpack.c.h.b16 %v1194
  %v1288 = vunpack.c.l.b16 %v1195
  %v1289 = vunpack.c.h.b16 %v1195
  %v1290 = vunpack.c.l.b16 %v1196
  %v1291 = vunpack.c.h.b16 %v1196
  %v1292 = vunpack.c.l.b16 %v1197
  %v1293 = vunpack.c.h.b16 %v1197
  %v1294 = vpack.c.b16 %v1230, %v1230
  %v1295 = vpack.c.b16 %v1231, %v1231
  %v1296 = vpack.c.b16 %v1232, %v1232
  %v1297 = vpack.c.b16 %v1233, %v1233
  %v1298 = vpack.c.b16 %v1234, %v1234
  %v1299 = vpack.c.b16 %v1235, %v1235
  %v1300 = vpack.c.b16 %v1236, %v1236
  %v1301 = vpack.c.b16 %v1237, %v1237
  %v1302 = vpack.c.b16 %v1238, %v1238
  %v1303 = vpack.c.b16 %v1239, %v1239
  %v1304 = vpack.c.b16 %v1240, %v1240
  %v1305 = vpack.c.b16 %v1241, %v1241
  %v1306 = vpack.c.b16 %v1242, %v1242
  %v1307 = vpack.c.b16 %v1243, %v1243
  %v1308 = vpack.c.b16 %v1244, %v1244
  %v1309 = vpack.c.b16 %v1245, %v1245
  %v1310 = vpack.c.b16 %v1246, %v1246
  %v1311 = vpack.c.b16 %v1247, %v1247
  %v1312 = vpack.c.b16 %v1248, %v1248
  %v1313 = vpack.c.b16 %v1249, %v1249
  %v1314 = vpack.c.b16 %v1250, %v1250
  %v1315 = vpack.c.b16 %v1251, %v1251
  %v1316 = vpack.c.b16 %v1252, %v1252
  %v1317 = vpack.c.b16 %v1253, %v1253
  %v1318 = vpack.c.b16 %v1254, %v1254
  %v1319 = vpack.c.b16 %v1255, %v1255
  %v1320 = vpack.c.b16 %v1256, %v1256
  %v1321 = vpack.c.b16 %v1257, %v1257
  %v1322 = vpack.c.b16 %v1258, %v1258
  %v1323 = vpack.c.b16 %v1259, %v1259
  %v1324 = vpack.c.b16 %v1260, %v1260
  %v1325 = vpack.c.b16 %v1261, %v1261
  %v1326 = vpack.c.b16 %v1262, %v1262
  %v1327 = vpack.c.b16 %v1263, %v1263
  %v1328 = vpack.c.b16 %v1264, %v1264
  %v1329 = vpack.c.b16 %v1265, %v1265
  %v1330 = vpack.c.b16 %v1266, %v1266
  %v1331 = vpack.c.b16 %v1267, %v1267
  %v1332 = vpack.c.b16 %v1268, %v1268
  %v1333 = vpack.c.b16 %v1269, %v1269
  %v1334 = vpack.c.b16 %v1270, %v1270
  %v1335 = vpack.c.b16 %v1271, %v1271
  %v1336 = vpack.c.b16 %v1272, %v1272
  %v1337 = vpack.c.b16 %v1273, %v1273
  %v1338 = vpack.c.b16 %v1274, %v1274
  %v1339 = vpack.c.b16 %v1275, %v1275
  %v1340 = vpack.c.b16 %v1276, %v1276
  %v1341 = vpack.c.b16 %v1277, %v1277
  %v1342 = vpack.c.b16 %v1278, %v1278
  %v1343 = vpack.c.b16 %v1279, %v1279
  %v1344 = vpack.c.b16 %v1280, %v1280
  %v1345 = vpack.c.b16 %v1281, %v1281
  %v1346 = vpack.c.b16 %v1282, %v1282
  %v1347 = vpack.c.b16 %v1283, %v1283
  %v1348 = vpack.c.b16 %v1284, %v1284
  %v1349 = vpack.c.b16 %v1285, %v1285
  %v1350 = vpack.c.b16 %v1286, %v1286
  %v1351 = vpack.c.b16 %v1287, %v1287
  %v1352 = vpack.c.b16 %v1288, %v1288
  %v1353 = vpack.c.b16 %v1289, %v1289
  %v1354 = vpack.c.b16 %v1290, %v1290
  %v1355 = vpack.c.b16 %v1291, %v1291
  %v1356 = vpack.c.b16 %v1292, %v1292
  %v1357 = vpack.c.b16 %v1293, %v1293
  %1422 = vst [vmem:[%s3] sm:$0xf] %v1294
  %1423 = vst [vmem:[%s3 + $0x4] sm:$0xf] %v1295
  %1424 = vst [vmem:[%s3 + $0x8] sm:$0xf] %v1296
  %1425 = vst [vmem:[%s3 + $0xc] sm:$0xf] %v1297
  %1426 = vst [vmem:[%s3 + $0x10] sm:$0xf] %v1298
  %1427 = vst [vmem:[%s3 + $0x14] sm:$0xf] %v1299
  %1428 = vst [vmem:[%s3 + $0x18] sm:$0xf] %v1300
  %1429 = vst [vmem:[%s3 + $0x1c] sm:$0xf] %v1301
  %1430 = vst [vmem:[%s3 + $0x20] sm:$0xf] %v1302
  %1431 = vst [vmem:[%s3 + $0x24] sm:$0xf] %v1303
  %1432 = vst [vmem:[%s3 + $0x28] sm:$0xf] %v1304
  %1433 = vst [vmem:[%s3 + $0x2c] sm:$0xf] %v1305
  %1434 = vst [vmem:[%s3 + $0x30] sm:$0xf] %v1306
  %1435 = vst [vmem:[%s3 + $0x34] sm:$0xf] %v1307
  %1436 = vst [vmem:[%s3 + $0x38] sm:$0xf] %v1308
  %1437 = vst [vmem:[%s3 + $0x3c] sm:$0xf] %v1309
  %1438 = vst [vmem:[%s3 + $0x40] sm:$0xf] %v1310
  %1439 = vst [vmem:[%s3 + $0x44] sm:$0xf] %v1311
  %1440 = vst [vmem:[%s3 + $0x48] sm:$0xf] %v1312
  %1441 = vst [vmem:[%s3 + $0x4c] sm:$0xf] %v1313
  %1442 = vst [vmem:[%s3 + $0x50] sm:$0xf] %v1314
  %1443 = vst [vmem:[%s3 + $0x54] sm:$0xf] %v1315
  %1444 = vst [vmem:[%s3 + $0x58] sm:$0xf] %v1316
  %1445 = vst [vmem:[%s3 + $0x5c] sm:$0xf] %v1317
  %1446 = vst [vmem:[%s3 + $0x60] sm:$0xf] %v1318
  %1447 = vst [vmem:[%s3 + $0x64] sm:$0xf] %v1319
  %1448 = vst [vmem:[%s3 + $0x68] sm:$0xf] %v1320
  %1449 = vst [vmem:[%s3 + $0x6c] sm:$0xf] %v1321
  %1450 = vst [vmem:[%s3 + $0x70] sm:$0xf] %v1322
  %1451 = vst [vmem:[%s3 + $0x74] sm:$0xf] %v1323
  %1452 = vst [vmem:[%s3 + $0x78] sm:$0xf] %v1324
  %1453 = vst [vmem:[%s3 + $0x7c] sm:$0xf] %v1325
  %1454 = vst [vmem:[%s3 + $0x80] sm:$0xf] %v1326
  %1455 = vst [vmem:[%s3 + $0x84] sm:$0xf] %v1327
  %1456 = vst [vmem:[%s3 + $0x88] sm:$0xf] %v1328
  %1457 = vst [vmem:[%s3 + $0x8c] sm:$0xf] %v1329
  %1458 = vst [vmem:[%s3 + $0x90] sm:$0xf] %v1330
  %1459 = vst [vmem:[%s3 + $0x94] sm:$0xf] %v1331
  %1460 = vst [vmem:[%s3 + $0x98] sm:$0xf] %v1332
  %1461 = vst [vmem:[%s3 + $0x9c] sm:$0xf] %v1333
  %1462 = vst [vmem:[%s3 + $0xa0] sm:$0xf] %v1334
  %1463 = vst [vmem:[%s3 + $0xa4] sm:$0xf] %v1335
  %1464 = vst [vmem:[%s3 + $0xa8] sm:$0xf] %v1336
  %1465 = vst [vmem:[%s3 + $0xac] sm:$0xf] %v1337
  %1466 = vst [vmem:[%s3 + $0xb0] sm:$0xf] %v1338
  %1467 = vst [vmem:[%s3 + $0xb4] sm:$0xf] %v1339
  %1468 = vst [vmem:[%s3 + $0xb8] sm:$0xf] %v1340
  %1469 = vst [vmem:[%s3 + $0xbc] sm:$0xf] %v1341
  %1470 = vst [vmem:[%s3 + $0xc0] sm:$0xf] %v1342
  %1471 = vst [vmem:[%s3 + $0xc4] sm:$0xf] %v1343
  %1472 = vst [vmem:[%s3 + $0xc8] sm:$0xf] %v1344
  %1473 = vst [vmem:[%s3 + $0xcc] sm:$0xf] %v1345
  %1474 = vst [vmem:[%s3 + $0xd0] sm:$0xf] %v1346
  %1475 = vst [vmem:[%s3 + $0xd4] sm:$0xf] %v1347
  %1476 = vst [vmem:[%s3 + $0xd8] sm:$0xf] %v1348
  %1477 = vst [vmem:[%s3 + $0xdc] sm:$0xf] %v1349
  %1478 = vst [vmem:[%s3 + $0xe0] sm:$0xf] %v1350
  %1479 = vst [vmem:[%s3 + $0xe4] sm:$0xf] %v1351
  %1480 = vst [vmem:[%s3 + $0xe8] sm:$0xf] %v1352
  %1481 = vst [vmem:[%s3 + $0xec] sm:$0xf] %v1353
  %1482 = vst [vmem:[%s3 + $0xf0] sm:$0xf] %v1354
  %1483 = vst [vmem:[%s3 + $0xf4] sm:$0xf] %v1355
  %1484 = vst [vmem:[%s3 + $0xf8] sm:$0xf] %v1356
  %1485 = vst [vmem:[%s3 + $0xfc] sm:$0xf] %v1357
  // Predicated region
  $region14: #{discriminator_forward.6} parent=0 // pred_check
    _
  $region15: #{discriminator_forward.6} parent=0 // pred_check_branch
    %1487 = sbr.rel (0) target = $region17
  $region16: #{discriminator_forward.6} parent=0 // pred_region
    _
  $region17: #{discriminator_forward.6} parent=0 // pred_fallthru
    _
  // Predicated region
  $region18: #{discriminator_forward.6} parent=0 // pred_check
    _
  $region19: #{discriminator_forward.6} parent=0 // pred_check_branch
    %1489 = sbr.rel (0) target = $region21
  $region20: #{discriminator_forward.6} parent=0 // pred_region
    _
  $region21: #{discriminator_forward.6} parent=0 // pred_fallthru
    _

// kernel: discriminator_forward.7
$region0: #{discriminator_forward.7}
  #allocation0 [shape = 'u32[]', space=smem, size = 0x4, offset = 0x4, fixed_abs, tag = 'smem constant byte address 0x4 - core index']
  #allocation1 [shape = 'u32[144,128]{1,0:T(1,128)}', space=vmem, size = 0x12000, scoped, tag = 'internal scratch']
  %s0 = inlined_call_operand.vmem [shape: bf16[128,256], index: 0, kind: input, shape index: {}]
  %s1 = inlined_call_operand.vmem [shape: bf16[256,128], index: 1, kind: input, shape index: {}]
  %s2 = inlined_call_operand.vmem [shape: f32[8,128], index: 2, kind: input, shape index: {}]
  %s3 = inlined_call_operand.vmem [shape: bf16[128,128], index: 3, kind: output, shape index: {}]
  %s4 = sld [smem:[#allocation0]]
  $region22: #{discriminator_forward.7} parent=0
    _
  %s6 = ssub.s32 1, %s4
  %s7 = scalar_select 0, %s6, %s4
  // Predicated region
  $region2: #{discriminator_forward.7} parent=0 // pred_check
    _
  $region3: #{discriminator_forward.7} parent=0 // pred_check_branch
    %9 = sbr.rel (0) target = $region5
  $region4: #{discriminator_forward.7} parent=0 // pred_region
    _
  $region5: #{discriminator_forward.7} parent=0 // pred_fallthru
    _
  // Predicated region
  $region6: #{discriminator_forward.7} parent=0 // pred_check
    _
  $region7: #{discriminator_forward.7} parent=0 // pred_check_branch
    %11 = sbr.rel (0) target = $region9
  $region8: #{discriminator_forward.7} parent=0 // pred_region
    _
  $region9: #{discriminator_forward.7} parent=0 // pred_fallthru
    _
  // Predicated region
  $region10: #{discriminator_forward.7} parent=0 // pred_check
    _
  $region11: #{discriminator_forward.7} parent=0 // pred_check_branch
    %13 = sbr.rel (0) target = $region13
  $region12: #{discriminator_forward.7} parent=0 // pred_region
    _
  $region13: #{discriminator_forward.7} parent=0 // pred_fallthru
    _
  %v15 = vld [vmem:[%s0] sm:$0xff]
  %v16 = vld [vmem:[%s0 + $0x8] sm:$0xff]
  %v17 = vld [vmem:[%s0 + $0x10] sm:$0xff]
  %v18 = vld [vmem:[%s0 + $0x18] sm:$0xff]
  %v19 = vld [vmem:[%s0 + $0x20] sm:$0xff]
  %v20 = vld [vmem:[%s0 + $0x28] sm:$0xff]
  %v21 = vld [vmem:[%s0 + $0x30] sm:$0xff]
  %v22 = vld [vmem:[%s0 + $0x38] sm:$0xff]
  %v23 = vld [vmem:[%s0 + $0x40] sm:$0xff]
  %v24 = vld [vmem:[%s0 + $0x48] sm:$0xff]
  %v25 = vld [vmem:[%s0 + $0x50] sm:$0xff]
  %v26 = vld [vmem:[%s0 + $0x58] sm:$0xff]
  %v27 = vld [vmem:[%s0 + $0x60] sm:$0xff]
  %v28 = vld [vmem:[%s0 + $0x68] sm:$0xff]
  %v29 = vld [vmem:[%s0 + $0x70] sm:$0xff]
  %v30 = vld [vmem:[%s0 + $0x78] sm:$0xff]
  %v31 = vld [vmem:[%s1] sm:$0xf]
  %v32 = vld [vmem:[%s1 + $0x4] sm:$0xf]
  %v33 = vld [vmem:[%s1 + $0x8] sm:$0xf]
  %v34 = vld [vmem:[%s1 + $0xc] sm:$0xf]
  %v35 = vld [vmem:[%s1 + $0x10] sm:$0xf]
  %v36 = vld [vmem:[%s1 + $0x14] sm:$0xf]
  %v37 = vld [vmem:[%s1 + $0x18] sm:$0xf]
  %v38 = vld [vmem:[%s1 + $0x1c] sm:$0xf]
  %v39 = vld [vmem:[%s1 + $0x20] sm:$0xf]
  %v40 = vld [vmem:[%s1 + $0x24] sm:$0xf]
  %v41 = vld [vmem:[%s1 + $0x28] sm:$0xf]
  %v42 = vld [vmem:[%s1 + $0x2c] sm:$0xf]
  %v43 = vld [vmem:[%s1 + $0x30] sm:$0xf]
  %v44 = vld [vmem:[%s1 + $0x34] sm:$0xf]
  %v45 = vld [vmem:[%s1 + $0x38] sm:$0xf]
  %v46 = vld [vmem:[%s1 + $0x3c] sm:$0xf]
  %v47 = vld [vmem:[%s1 + $0x40] sm:$0xf]
  %v48 = vld [vmem:[%s1 + $0x44] sm:$0xf]
  %v49 = vld [vmem:[%s1 + $0x48] sm:$0xf]
  %v50 = vld [vmem:[%s1 + $0x4c] sm:$0xf]
  %v51 = vld [vmem:[%s1 + $0x50] sm:$0xf]
  %v52 = vld [vmem:[%s1 + $0x54] sm:$0xf]
  %v53 = vld [vmem:[%s1 + $0x58] sm:$0xf]
  %v54 = vld [vmem:[%s1 + $0x5c] sm:$0xf]
  %v55 = vld [vmem:[%s1 + $0x60] sm:$0xf]
  %v56 = vld [vmem:[%s1 + $0x64] sm:$0xf]
  %v57 = vld [vmem:[%s1 + $0x68] sm:$0xf]
  %v58 = vld [vmem:[%s1 + $0x6c] sm:$0xf]
  %v59 = vld [vmem:[%s1 + $0x70] sm:$0xf]
  %v60 = vld [vmem:[%s1 + $0x74] sm:$0xf]
  %v61 = vld [vmem:[%s1 + $0x78] sm:$0xf]
  %v62 = vld [vmem:[%s1 + $0x7c] sm:$0xf]
  %v79 = vunpack.c.l.b16 %v15
  %v80 = vunpack.c.h.b16 %v15
  %v81 = vunpack.c.l.b16 %v16
  %v82 = vunpack.c.h.b16 %v16
  %v83 = vunpack.c.l.b16 %v17
  %v84 = vunpack.c.h.b16 %v17
  %v85 = vunpack.c.l.b16 %v18
  %v86 = vunpack.c.h.b16 %v18
  %v87 = vunpack.c.l.b16 %v19
  %v88 = vunpack.c.h.b16 %v19
  %v89 = vunpack.c.l.b16 %v20
  %v90 = vunpack.c.h.b16 %v20
  %v91 = vunpack.c.l.b16 %v21
  %v92 = vunpack.c.h.b16 %v21
  %v93 = vunpack.c.l.b16 %v22
  %v94 = vunpack.c.h.b16 %v22
  %v95 = vunpack.c.l.b16 %v23
  %v96 = vunpack.c.h.b16 %v23
  %v97 = vunpack.c.l.b16 %v24
  %v98 = vunpack.c.h.b16 %v24
  %v99 = vunpack.c.l.b16 %v25
  %v100 = vunpack.c.h.b16 %v25
  %v101 = vunpack.c.l.b16 %v26
  %v102 = vunpack.c.h.b16 %v26
  %v103 = vunpack.c.l.b16 %v27
  %v104 = vunpack.c.h.b16 %v27
  %v105 = vunpack.c.l.b16 %v28
  %v106 = vunpack.c.h.b16 %v28
  %v107 = vunpack.c.l.b16 %v29
  %v108 = vunpack.c.h.b16 %v29
  %v109 = vunpack.c.l.b16 %v30
  %v110 = vunpack.c.h.b16 %v30
  %v111 = vpack.c.b16 %v81, %v79
  %v112 = vpack.c.b16 %v82, %v80
  %v113 = vpack.c.b16 %v85, %v83
  %v114 = vpack.c.b16 %v86, %v84
  %v115 = vpack.c.b16 %v89, %v87
  %v116 = vpack.c.b16 %v90, %v88
  %v117 = vpack.c.b16 %v93, %v91
  %v118 = vpack.c.b16 %v94, %v92
  %v119 = vpack.c.b16 %v97, %v95
  %v120 = vpack.c.b16 %v98, %v96
  %v121 = vpack.c.b16 %v101, %v99
  %v122 = vpack.c.b16 %v102, %v100
  %v123 = vpack.c.b16 %v105, %v103
  %v124 = vpack.c.b16 %v106, %v104
  %v125 = vpack.c.b16 %v109, %v107
  %v126 = vpack.c.b16 %v110, %v108
  %v175 = vunpack.c.l.b16 %v31
  %v176 = vunpack.c.l.b16 %v32
  %v177 = vunpack.c.l.b16 %v33
  %v178 = vunpack.c.l.b16 %v34
  %v179 = vunpack.c.l.b16 %v35
  %v180 = vunpack.c.l.b16 %v36
  %v181 = vunpack.c.l.b16 %v37
  %v182 = vunpack.c.l.b16 %v38
  %v183 = vunpack.c.l.b16 %v39
  %v184 = vunpack.c.l.b16 %v40
  %v185 = vunpack.c.l.b16 %v41
  %v186 = vunpack.c.l.b16 %v42
  %v187 = vunpack.c.l.b16 %v43
  %v188 = vunpack.c.l.b16 %v44
  %v189 = vunpack.c.l.b16 %v45
  %v190 = vunpack.c.l.b16 %v46
  %v191 = vunpack.c.l.b16 %v47
  %v192 = vunpack.c.l.b16 %v48
  %v193 = vunpack.c.l.b16 %v49
  %v194 = vunpack.c.l.b16 %v50
  %v195 = vunpack.c.l.b16 %v51
  %v196 = vunpack.c.l.b16 %v52
  %v197 = vunpack.c.l.b16 %v53
  %v198 = vunpack.c.l.b16 %v54
  %v199 = vunpack.c.l.b16 %v55
  %v200 = vunpack.c.l.b16 %v56
  %v201 = vunpack.c.l.b16 %v57
  %v202 = vunpack.c.l.b16 %v58
  %v203 = vunpack.c.l.b16 %v59
  %v204 = vunpack.c.l.b16 %v60
  %v205 = vunpack.c.l.b16 %v61
  %v206 = vunpack.c.l.b16 %v62
  %v207 = vpack.c.b16 %v176, %v175
  %v208 = vpack.c.b16 %v178, %v177
  %v209 = vpack.c.b16 %v180, %v179
  %v210 = vpack.c.b16 %v182, %v181
  %v211 = vpack.c.b16 %v184, %v183
  %v212 = vpack.c.b16 %v186, %v185
  %v213 = vpack.c.b16 %v188, %v187
  %v214 = vpack.c.b16 %v190, %v189
  %v215 = vpack.c.b16 %v192, %v191
  %v216 = vpack.c.b16 %v194, %v193
  %v217 = vpack.c.b16 %v196, %v195
  %v218 = vpack.c.b16 %v198, %v197
  %v219 = vpack.c.b16 %v200, %v199
  %v220 = vpack.c.b16 %v202, %v201
  %v221 = vpack.c.b16 %v204, %v203
  %v222 = vpack.c.b16 %v206, %v205
  %239 = vmatprep.subr.bf16.mxu0 0
  %240 = vmatpush1.bf16.msra.mxu0 %v214
  %241 = vmatprep.subr.bf16.mxu0 0
  %242 = vmatpush1.bf16.msra.mxu0 %v213
  %243 = vmatprep.subr.bf16.mxu0 0
  %244 = vmatpush1.bf16.msra.mxu0 %v212
  %245 = vmatprep.subr.bf16.mxu0 0
  %246 = vmatpush1.bf16.msra.mxu0 %v211
  %247 = vmatprep.subr.bf16.mxu0 0
  %248 = vmatpush1.bf16.msra.mxu0 %v210
  %249 = vmatprep.subr.bf16.mxu0 0
  %250 = vmatpush1.bf16.msra.mxu0 %v209
  %251 = vmatprep.subr.bf16.mxu0 0
  %252 = vmatpush1.bf16.msra.mxu0 %v208
  %253 = vmatprep.subr.bf16.mxu0 0
  %254 = vmatpush1.bf16.msra.mxu0 %v207
  %255 = vmatprep.subr.bf16.mxu0 0
  %256 = vmatpush2.bf16.msra.mxu0 %v222
  %257 = vmatprep.subr.bf16.mxu0 0
  %258 = vmatpush2.bf16.msra.mxu0 %v221
  %259 = vmatprep.subr.bf16.mxu0 0
  %260 = vmatpush2.bf16.msra.mxu0 %v220
  %261 = vmatprep.subr.bf16.mxu0 0
  %262 = vmatpush2.bf16.msra.mxu0 %v219
  %263 = vmatprep.subr.bf16.mxu0 0
  %264 = vmatpush2.bf16.msra.mxu0 %v218
  %265 = vmatprep.subr.bf16.mxu0 0
  %266 = vmatpush2.bf16.msra.mxu0 %v217
  %267 = vmatprep.subr.bf16.mxu0 0
  %268 = vmatpush2.bf16.msra.mxu0 %v216
  %269 = vmatprep.subr.bf16.mxu0 0
  %270 = vmatpush2.bf16.msra.mxu0 %v215
  %271 = vmatprep.mubr.bf16.mxu0 %v112
  %272 = vmatmul.mubr.bf16.gmra.mxu0 %v111
  %v273 = vpop.f32.mrf.mxu0
  %v274 = vadd.f32 0.0, %v273
  %v275 = vpop.f32.mrf.mxu0
  %v276 = vpop.f32.mrf.mxu0
  %v277 = vadd.f32 0.0, %v276
  %v278 = vpop.f32.mrf.mxu0
  %279 = vmatprep.mubr.bf16.mxu0 %v114
  %280 = vmatmul.mubr.bf16.gmra.mxu0 %v113
  %v281 = vpop.f32.mrf.mxu0
  %v282 = vadd.f32 0.0, %v281
  %v283 = vpop.f32.mrf.mxu0
  %v284 = vpop.f32.mrf.mxu0
  %v285 = vadd.f32 0.0, %v284
  %v286 = vpop.f32.mrf.mxu0
  %287 = vmatprep.mubr.bf16.mxu0 %v116
  %288 = vmatmul.mubr.bf16.gmra.mxu0 %v115
  %v289 = vpop.f32.mrf.mxu0
  %v290 = vadd.f32 0.0, %v289
  %v291 = vpop.f32.mrf.mxu0
  %v292 = vpop.f32.mrf.mxu0
  %v293 = vadd.f32 0.0, %v292
  %v294 = vpop.f32.mrf.mxu0
  %295 = vmatprep.mubr.bf16.mxu0 %v118
  %296 = vmatmul.mubr.bf16.gmra.mxu0 %v117
  %v297 = vpop.f32.mrf.mxu0
  %v298 = vadd.f32 0.0, %v297
  %v299 = vpop.f32.mrf.mxu0
  %v300 = vpop.f32.mrf.mxu0
  %v301 = vadd.f32 0.0, %v300
  %v302 = vpop.f32.mrf.mxu0
  %303 = vmatprep.mubr.bf16.mxu0 %v120
  %304 = vmatmul.mubr.bf16.gmra.mxu0 %v119
  %v305 = vpop.f32.mrf.mxu0
  %v306 = vadd.f32 0.0, %v305
  %v307 = vpop.f32.mrf.mxu0
  %v308 = vpop.f32.mrf.mxu0
  %v309 = vadd.f32 0.0, %v308
  %v310 = vpop.f32.mrf.mxu0
  %311 = vmatprep.mubr.bf16.mxu0 %v122
  %312 = vmatmul.mubr.bf16.gmra.mxu0 %v121
  %v313 = vpop.f32.mrf.mxu0
  %v314 = vadd.f32 0.0, %v313
  %v315 = vpop.f32.mrf.mxu0
  %v316 = vpop.f32.mrf.mxu0
  %v317 = vadd.f32 0.0, %v316
  %v318 = vpop.f32.mrf.mxu0
  %319 = vmatprep.mubr.bf16.mxu0 %v124
  %320 = vmatmul.mubr.bf16.gmra.mxu0 %v123
  %v321 = vpop.f32.mrf.mxu0
  %v322 = vadd.f32 0.0, %v321
  %v323 = vpop.f32.mrf.mxu0
  %v324 = vpop.f32.mrf.mxu0
  %v325 = vadd.f32 0.0, %v324
  %v326 = vpop.f32.mrf.mxu0
  %327 = vmatprep.mubr.bf16.mxu0 %v126
  %328 = vmatmul.mubr.bf16.gmra.mxu0 %v125
  %v329 = vpop.f32.mrf.mxu0
  %v330 = vadd.f32 0.0, %v329
  %v331 = vpop.f32.mrf.mxu0
  %v332 = vpop.f32.mrf.mxu0
  %v333 = vadd.f32 0.0, %v332
  %v334 = vpop.f32.mrf.mxu0
  %335 = vdwg.mxu0
  %v336 = vadd.f32 %v274, %v277
  %v337 = vadd.f32 %v336, %v282
  %v338 = vadd.f32 %v337, %v285
  %v339 = vadd.f32 %v338, %v290
  %v340 = vadd.f32 %v339, %v293
  %v341 = vadd.f32 %v340, %v298
  %v342 = vadd.f32 %v341, %v301
  %v343 = vadd.f32 %v342, %v306
  %v344 = vadd.f32 %v343, %v309
  %v345 = vadd.f32 %v344, %v314
  %v346 = vadd.f32 %v345, %v317
  %v347 = vadd.f32 %v346, %v322
  %v348 = vadd.f32 %v347, %v325
  %v349 = vadd.f32 %v348, %v330
  %v350 = vadd.f32 %v349, %v333
  %v351 = vrot.slane %v350, 4
  %v352 = vadd.f32 %v350, %v351
  %v353 = vrot.slane %v352, 2
  %v354 = vadd.f32 %v352, %v353
  %v355 = vrot.slane %v354, 1
  %v356 = vadd.f32 %v354, %v355
  %v357 = vmul.f32 %v356, 0.0078125
  %v358 = vmul.f32 %v274, %v274
  %v359 = vmul.f32 %v277, %v277
  %v360 = vmul.f32 %v282, %v282
  %v361 = vmul.f32 %v285, %v285
  %v362 = vmul.f32 %v290, %v290
  %v363 = vmul.f32 %v293, %v293
  %v364 = vmul.f32 %v298, %v298
  %v365 = vmul.f32 %v301, %v301
  %v366 = vmul.f32 %v306, %v306
  %v367 = vmul.f32 %v309, %v309
  %v368 = vmul.f32 %v314, %v314
  %v369 = vmul.f32 %v317, %v317
  %v370 = vmul.f32 %v322, %v322
  %v371 = vmul.f32 %v325, %v325
  %v372 = vmul.f32 %v330, %v330
  %v373 = vmul.f32 %v333, %v333
  %v374 = vadd.f32 %v358, %v359
  %v375 = vadd.f32 %v374, %v360
  %v376 = vadd.f32 %v375, %v361
  %v377 = vadd.f32 %v376, %v362
  %v378 = vadd.f32 %v377, %v363
  %v379 = vadd.f32 %v378, %v364
  %v380 = vadd.f32 %v379, %v365
  %v381 = vadd.f32 %v380, %v366
  %v382 = vadd.f32 %v381, %v367
  %v383 = vadd.f32 %v382, %v368
  %v384 = vadd.f32 %v383, %v369
  %v385 = vadd.f32 %v384, %v370
  %v386 = vadd.f32 %v385, %v371
  %v387 = vadd.f32 %v386, %v372
  %v388 = vadd.f32 %v387, %v373
  %v389 = vrot.slane %v388, 4
  %v390 = vadd.f32 %v388, %v389
  %v391 = vrot.slane %v390, 2
  %v392 = vadd.f32 %v390, %v391
  %v393 = vrot.slane %v392, 1
  %v394 = vadd.f32 %v392, %v393
  %v395 = vmul.f32 %v394, 0.0078125
  %v396 = vmul.f32 %v357, %v357
  %v397 = vsub.f32 %v395, %v396
  %v398 = vmax.f32 %v397, 0.0
  %v399 = vld [vmem:[%s2] sm:$0x1]
  %v400 = vld [vmem:[%s2 + $0x1] sm:$0x1]
  %v401 = vadd.f32 %v398, 1e-05
  %v402 = vrsqrt.pop %v401
  %v403 = vmul.f32 %v399, %v402
  %v404 = vmul.f32 %v357, %v403
  %v405 = vsub.f32 %v400, %v404
  %v406 = vlaneseq
  %v407 = vshrl.u32 %v406, 7
  %v408 = vsub.s32 0, %v407
  %v409 = vrot.slane %v403, %v408
  %v410 = vmul.f32 %v274, %v409
  %v411 = vmul.f32 %v277, %v409
  %v412 = vmul.f32 %v282, %v409
  %v413 = vmul.f32 %v285, %v409
  %v414 = vmul.f32 %v290, %v409
  %v415 = vmul.f32 %v293, %v409
  %v416 = vmul.f32 %v298, %v409
  %v417 = vmul.f32 %v301, %v409
  %v418 = vmul.f32 %v306, %v409
  %v419 = vmul.f32 %v309, %v409
  %v420 = vmul.f32 %v314, %v409
  %v421 = vmul.f32 %v317, %v409
  %v422 = vmul.f32 %v322, %v409
  %v423 = vmul.f32 %v325, %v409
  %v424 = vmul.f32 %v330, %v409
  %v425 = vmul.f32 %v333, %v409
  %v426 = vlaneseq
  %v427 = vshrl.u32 %v426, 7
  %v428 = vsub.s32 0, %v427
  %v429 = vrot.slane %v405, %v428
  %v430 = vadd.f32 %v410, %v429
  %v431 = vadd.f32 %v411, %v429
  %v432 = vadd.f32 %v412, %v429
  %v433 = vadd.f32 %v413, %v429
  %v434 = vadd.f32 %v414, %v429
  %v435 = vadd.f32 %v415, %v429
  %v436 = vadd.f32 %v416, %v429
  %v437 = vadd.f32 %v417, %v429
  %v438 = vadd.f32 %v418, %v429
  %v439 = vadd.f32 %v419, %v429
  %v440 = vadd.f32 %v420, %v429
  %v441 = vadd.f32 %v421, %v429
  %v442 = vadd.f32 %v422, %v429
  %v443 = vadd.f32 %v423, %v429
  %v444 = vadd.f32 %v424, %v429
  %v445 = vadd.f32 %v425, %v429
  %vm446 = vcmp.gt.f32.partialorder %v430, 0.0
  %vm447 = vcmp.gt.f32.partialorder %v431, 0.0
  %vm448 = vcmp.gt.f32.partialorder %v432, 0.0
  %vm449 = vcmp.gt.f32.partialorder %v433, 0.0
  %vm450 = vcmp.gt.f32.partialorder %v434, 0.0
  %vm451 = vcmp.gt.f32.partialorder %v435, 0.0
  %vm452 = vcmp.gt.f32.partialorder %v436, 0.0
  %vm453 = vcmp.gt.f32.partialorder %v437, 0.0
  %vm454 = vcmp.gt.f32.partialorder %v438, 0.0
  %vm455 = vcmp.gt.f32.partialorder %v439, 0.0
  %vm456 = vcmp.gt.f32.partialorder %v440, 0.0
  %vm457 = vcmp.gt.f32.partialorder %v441, 0.0
  %vm458 = vcmp.gt.f32.partialorder %v442, 0.0
  %vm459 = vcmp.gt.f32.partialorder %v443, 0.0
  %vm460 = vcmp.gt.f32.partialorder %v444, 0.0
  %vm461 = vcmp.gt.f32.partialorder %v445, 0.0
  %v462 = vmul.f32 %v430, 0.2
  %v463 = vmul.f32 %v431, 0.2
  %v464 = vmul.f32 %v432, 0.2
  %v465 = vmul.f32 %v433, 0.2
  %v466 = vmul.f32 %v434, 0.2
  %v467 = vmul.f32 %v435, 0.2
  %v468 = vmul.f32 %v436, 0.2
  %v469 = vmul.f32 %v437, 0.2
  %v470 = vmul.f32 %v438, 0.2
  %v471 = vmul.f32 %v439, 0.2
  %v472 = vmul.f32 %v440, 0.2
  %v473 = vmul.f32 %v441, 0.2
  %v474 = vmul.f32 %v442, 0.2
  %v475 = vmul.f32 %v443, 0.2
  %v476 = vmul.f32 %v444, 0.2
  %v477 = vmul.f32 %v445, 0.2
  %v478 = vsel %vm446, %v430, %v462
  %v479 = vsel %vm447, %v431, %v463
  %v480 = vsel %vm448, %v432, %v464
  %v481 = vsel %vm449, %v433, %v465
  %v482 = vsel %vm450, %v434, %v466
  %v483 = vsel %vm451, %v435, %v467
  %v484 = vsel %vm452, %v436, %v468
  %v485 = vsel %vm453, %v437, %v469
  %v486 = vsel %vm454, %v438, %v470
  %v487 = vsel %vm455, %v439, %v471
  %v488 = vsel %vm456, %v440, %v472
  %v489 = vsel %vm457, %v441, %v473
  %v490 = vsel %vm458, %v442, %v474
  %v491 = vsel %vm459, %v443, %v475
  %v492 = vsel %vm460, %v444, %v476
  %v493 = vsel %vm461, %v445, %v477
  %v494 = vpack.c.bf16 %v479, %v478
  %v495 = vpack.c.bf16 %v481, %v480
  %v496 = vpack.c.bf16 %v483, %v482
  %v497 = vpack.c.bf16 %v485, %v484
  %v498 = vpack.c.bf16 %v487, %v486
  %v499 = vpack.c.bf16 %v489, %v488
  %v500 = vpack.c.bf16 %v491, %v490
  %v501 = vpack.c.bf16 %v493, %v492
  %v510 = vunpack.c.l.b16 %v494
  %v511 = vunpack.c.h.b16 %v494
  %v512 = vunpack.c.l.b16 %v495
  %v513 = vunpack.c.h.b16 %v495
  %v514 = vunpack.c.l.b16 %v496
  %v515 = vunpack.c.h.b16 %v496
  %v516 = vunpack.c.l.b16 %v497
  %v517 = vunpack.c.h.b16 %v497
  %v518 = vunpack.c.l.b16 %v498
  %v519 = vunpack.c.h.b16 %v498
  %v520 = vunpack.c.l.b16 %v499
  %v521 = vunpack.c.h.b16 %v499
  %v522 = vunpack.c.l.b16 %v500
  %v523 = vunpack.c.h.b16 %v500
  %v524 = vunpack.c.l.b16 %v501
  %v525 = vunpack.c.h.b16 %v501
  %v526 = vpack.c.b16 %v510, %v510
  %v527 = vpack.c.b16 %v511, %v511
  %v528 = vpack.c.b16 %v512, %v512
  %v529 = vpack.c.b16 %v513, %v513
  %v530 = vpack.c.b16 %v514, %v514
  %v531 = vpack.c.b16 %v515, %v515
  %v532 = vpack.c.b16 %v516, %v516
  %v533 = vpack.c.b16 %v517, %v517
  %v534 = vpack.c.b16 %v518, %v518
  %v535 = vpack.c.b16 %v519, %v519
  %v536 = vpack.c.b16 %v520, %v520
  %v537 = vpack.c.b16 %v521, %v521
  %v538 = vpack.c.b16 %v522, %v522
  %v539 = vpack.c.b16 %v523, %v523
  %v540 = vpack.c.b16 %v524, %v524
  %v541 = vpack.c.b16 %v525, %v525
  %558 = vst [vmem:[%s3] sm:$0xf] %v526
  %559 = vst [vmem:[%s3 + $0x4] sm:$0xf] %v527
  %560 = vst [vmem:[%s3 + $0x8] sm:$0xf] %v528
  %561 = vst [vmem:[%s3 + $0xc] sm:$0xf] %v529
  %562 = vst [vmem:[%s3 + $0x10] sm:$0xf] %v530
  %563 = vst [vmem:[%s3 + $0x14] sm:$0xf] %v531
  %564 = vst [vmem:[%s3 + $0x18] sm:$0xf] %v532
  %565 = vst [vmem:[%s3 + $0x1c] sm:$0xf] %v533
  %566 = vst [vmem:[%s3 + $0x20] sm:$0xf] %v534
  %567 = vst [vmem:[%s3 + $0x24] sm:$0xf] %v535
  %568 = vst [vmem:[%s3 + $0x28] sm:$0xf] %v536
  %569 = vst [vmem:[%s3 + $0x2c] sm:$0xf] %v537
  %570 = vst [vmem:[%s3 + $0x30] sm:$0xf] %v538
  %571 = vst [vmem:[%s3 + $0x34] sm:$0xf] %v539
  %572 = vst [vmem:[%s3 + $0x38] sm:$0xf] %v540
  %573 = vst [vmem:[%s3 + $0x3c] sm:$0xf] %v541
  // Predicated region
  $region14: #{discriminator_forward.7} parent=0 // pred_check
    _
  $region15: #{discriminator_forward.7} parent=0 // pred_check_branch
    %575 = sbr.rel (0) target = $region17
  $region16: #{discriminator_forward.7} parent=0 // pred_region
    _
  $region17: #{discriminator_forward.7} parent=0 // pred_fallthru
    _
  // Predicated region
  $region18: #{discriminator_forward.7} parent=0 // pred_check
    _
  $region19: #{discriminator_forward.7} parent=0 // pred_check_branch
    %577 = sbr.rel (0) target = $region21
  $region20: #{discriminator_forward.7} parent=0 // pred_region
    _
  $region21: #{discriminator_forward.7} parent=0 // pred_fallthru
    _

// kernel: discriminator_forward.8
$region0: #{discriminator_forward.8}
  #allocation0 [shape = 'u32[]', space=smem, size = 0x4, offset = 0x4, fixed_abs, tag = 'smem constant byte address 0x4 - core index']
  #allocation1 [shape = 'u32[144,128]{1,0:T(1,128)}', space=vmem, size = 0x12000, scoped, tag = 'internal scratch']
  %s0 = inlined_call_operand.vmem [shape: bf16[32,512], index: 0, kind: input, shape index: {}]
  %s1 = inlined_call_operand.vmem [shape: bf16[512,128], index: 1, kind: input, shape index: {}]
  %s2 = inlined_call_operand.vmem [shape: f32[8,128], index: 2, kind: input, shape index: {}]
  %s3 = inlined_call_operand.vmem [shape: bf16[32,128], index: 3, kind: output, shape index: {}]
  %s4 = sld [smem:[#allocation0]]
  $region22: #{discriminator_forward.8} parent=0
    _
  %s6 = ssub.s32 1, %s4
  %s7 = scalar_select 0, %s6, %s4
  // Predicated region
  $region2: #{discriminator_forward.8} parent=0 // pred_check
    _
  $region3: #{discriminator_forward.8} parent=0 // pred_check_branch
    %9 = sbr.rel (0) target = $region5
  $region4: #{discriminator_forward.8} parent=0 // pred_region
    _
  $region5: #{discriminator_forward.8} parent=0 // pred_fallthru
    _
  // Predicated region
  $region6: #{discriminator_forward.8} parent=0 // pred_check
    _
  $region7: #{discriminator_forward.8} parent=0 // pred_check_branch
    %11 = sbr.rel (0) target = $region9
  $region8: #{discriminator_forward.8} parent=0 // pred_region
    _
  $region9: #{discriminator_forward.8} parent=0 // pred_fallthru
    _
  // Predicated region
  $region10: #{discriminator_forward.8} parent=0 // pred_check
    _
  $region11: #{discriminator_forward.8} parent=0 // pred_check_branch
    %13 = sbr.rel (0) target = $region13
  $region12: #{discriminator_forward.8} parent=0 // pred_region
    _
  $region13: #{discriminator_forward.8} parent=0 // pred_fallthru
    _
  %v15 = vld [vmem:[%s0] sm:$0xff]
  %v16 = vld [vmem:[%s0 + $0x8] sm:$0xff]
  %v17 = vld [vmem:[%s0 + $0x10] sm:$0xff]
  %v18 = vld [vmem:[%s0 + $0x18] sm:$0xff]
  %v19 = vld [vmem:[%s0 + $0x20] sm:$0xff]
  %v20 = vld [vmem:[%s0 + $0x28] sm:$0xff]
  %v21 = vld [vmem:[%s0 + $0x30] sm:$0xff]
  %v22 = vld [vmem:[%s0 + $0x38] sm:$0xff]
  %v23 = vld [vmem:[%s1] sm:$0xf]
  %v24 = vld [vmem:[%s1 + $0x4] sm:$0xf]
  %v25 = vld [vmem:[%s1 + $0x8] sm:$0xf]
  %v26 = vld [vmem:[%s1 + $0xc] sm:$0xf]
  %v27 = vld [vmem:[%s1 + $0x10] sm:$0xf]
  %v28 = vld [vmem:[%s1 + $0x14] sm:$0xf]
  %v29 = vld [vmem:[%s1 + $0x18] sm:$0xf]
  %v30 = vld [vmem:[%s1 + $0x1c] sm:$0xf]
  %v31 = vld [vmem:[%s1 + $0x20] sm:$0xf]
  %v32 = vld [vmem:[%s1 + $0x24] sm:$0xf]
  %v33 = vld [vmem:[%s1 + $0x28] sm:$0xf]
  %v34 = vld [vmem:[%s1 + $0x2c] sm:$0xf]
  %v35 = vld [vmem:[%s1 + $0x30] sm:$0xf]
  %v36 = vld [vmem:[%s1 + $0x34] sm:$0xf]
  %v37 = vld [vmem:[%s1 + $0x38] sm:$0xf]
  %v38 = vld [vmem:[%s1 + $0x3c] sm:$0xf]
  %v39 = vld [vmem:[%s1 + $0x40] sm:$0xf]
  %v40 = vld [vmem:[%s1 + $0x44] sm:$0xf]
  %v41 = vld [vmem:[%s1 + $0x48] sm:$0xf]
  %v42 = vld [vmem:[%s1 + $0x4c] sm:$0xf]
  %v43 = vld [vmem:[%s1 + $0x50] sm:$0xf]
  %v44 = vld [vmem:[%s1 + $0x54] sm:$0xf]
  %v45 = vld [vmem:[%s1 + $0x58] sm:$0xf]
  %v46 = vld [vmem:[%s1 + $0x5c] sm:$0xf]
  %v47 = vld [vmem:[%s1 + $0x60] sm:$0xf]
  %v48 = vld [vmem:[%s1 + $0x64] sm:$0xf]
  %v49 = vld [vmem:[%s1 + $0x68] sm:$0xf]
  %v50 = vld [vmem:[%s1 + $0x6c] sm:$0xf]
  %v51 = vld [vmem:[%s1 + $0x70] sm:$0xf]
  %v52 = vld [vmem:[%s1 + $0x74] sm:$0xf]
  %v53 = vld [vmem:[%s1 + $0x78] sm:$0xf]
  %v54 = vld [vmem:[%s1 + $0x7c] sm:$0xf]
  %v55 = vld [vmem:[%s1 + $0x80] sm:$0xf]
  %v56 = vld [vmem:[%s1 + $0x84] sm:$0xf]
  %v57 = vld [vmem:[%s1 + $0x88] sm:$0xf]
  %v58 = vld [vmem:[%s1 + $0x8c] sm:$0xf]
  %v59 = vld [vmem:[%s1 + $0x90] sm:$0xf]
  %v60 = vld [vmem:[%s1 + $0x94] sm:$0xf]
  %v61 = vld [vmem:[%s1 + $0x98] sm:$0xf]
  %v62 = vld [vmem:[%s1 + $0x9c] sm:$0xf]
  %v63 = vld [vmem:[%s1 + $0xa0] sm:$0xf]
  %v64 = vld [vmem:[%s1 + $0xa4] sm:$0xf]
  %v65 = vld [vmem:[%s1 + $0xa8] sm:$0xf]
  %v66 = vld [vmem:[%s1 + $0xac] sm:$0xf]
  %v67 = vld [vmem:[%s1 + $0xb0] sm:$0xf]
  %v68 = vld [vmem:[%s1 + $0xb4] sm:$0xf]
  %v69 = vld [vmem:[%s1 + $0xb8] sm:$0xf]
  %v70 = vld [vmem:[%s1 + $0xbc] sm:$0xf]
  %v71 = vld [vmem:[%s1 + $0xc0] sm:$0xf]
  %v72 = vld [vmem:[%s1 + $0xc4] sm:$0xf]
  %v73 = vld [vmem:[%s1 + $0xc8] sm:$0xf]
  %v74 = vld [vmem:[%s1 + $0xcc] sm:$0xf]
  %v75 = vld [vmem:[%s1 + $0xd0] sm:$0xf]
  %v76 = vld [vmem:[%s1 + $0xd4] sm:$0xf]
  %v77 = vld [vmem:[%s1 + $0xd8] sm:$0xf]
  %v78 = vld [vmem:[%s1 + $0xdc] sm:$0xf]
  %v79 = vld [vmem:[%s1 + $0xe0] sm:$0xf]
  %v80 = vld [vmem:[%s1 + $0xe4] sm:$0xf]
  %v81 = vld [vmem:[%s1 + $0xe8] sm:$0xf]
  %v82 = vld [vmem:[%s1 + $0xec] sm:$0xf]
  %v83 = vld [vmem:[%s1 + $0xf0] sm:$0xf]
  %v84 = vld [vmem:[%s1 + $0xf4] sm:$0xf]
  %v85 = vld [vmem:[%s1 + $0xf8] sm:$0xf]
  %v86 = vld [vmem:[%s1 + $0xfc] sm:$0xf]
  %v95 = vunpack.c.l.b16 %v15
  %v96 = vunpack.c.h.b16 %v15
  %v97 = vunpack.c.l.b16 %v16
  %v98 = vunpack.c.h.b16 %v16
  %v99 = vunpack.c.l.b16 %v17
  %v100 = vunpack.c.h.b16 %v17
  %v101 = vunpack.c.l.b16 %v18
  %v102 = vunpack.c.h.b16 %v18
  %v103 = vunpack.c.l.b16 %v19
  %v104 = vunpack.c.h.b16 %v19
  %v105 = vunpack.c.l.b16 %v20
  %v106 = vunpack.c.h.b16 %v20
  %v107 = vunpack.c.l.b16 %v21
  %v108 = vunpack.c.h.b16 %v21
  %v109 = vunpack.c.l.b16 %v22
  %v110 = vunpack.c.h.b16 %v22
  %v111 = vpack.c.b16 %v99, %v95
  %v112 = vpack.c.b16 %v100, %v96
  %v113 = vpack.c.b16 %v101, %v97
  %v114 = vpack.c.b16 %v102, %v98
  %v115 = vpack.c.b16 %v107, %v103
  %v116 = vpack.c.b16 %v108, %v104
  %v117 = vpack.c.b16 %v109, %v105
  %v118 = vpack.c.b16 %v110, %v106
  %v191 = vunpack.c.l.b16 %v23
  %v192 = vunpack.c.l.b16 %v24
  %v193 = vunpack.c.l.b16 %v25
  %v194 = vunpack.c.l.b16 %v26
  %v195 = vunpack.c.l.b16 %v27
  %v196 = vunpack.c.l.b16 %v28
  %v197 = vunpack.c.l.b16 %v29
  %v198 = vunpack.c.l.b16 %v30
  %v199 = vunpack.c.l.b16 %v31
  %v200 = vunpack.c.l.b16 %v32
  %v201 = vunpack.c.l.b16 %v33
  %v202 = vunpack.c.l.b16 %v34
  %v203 = vunpack.c.l.b16 %v35
  %v204 = vunpack.c.l.b16 %v36
  %v205 = vunpack.c.l.b16 %v37
  %v206 = vunpack.c.l.b16 %v38
  %v207 = vunpack.c.l.b16 %v39
  %v208 = vunpack.c.l.b16 %v40
  %v209 = vunpack.c.l.b16 %v41
  %v210 = vunpack.c.l.b16 %v42
  %v211 = vunpack.c.l.b16 %v43
  %v212 = vunpack.c.l.b16 %v44
  %v213 = vunpack.c.l.b16 %v45
  %v214 = vunpack.c.l.b16 %v46
  %v215 = vunpack.c.l.b16 %v47
  %v216 = vunpack.c.l.b16 %v48
  %v217 = vunpack.c.l.b16 %v49
  %v218 = vunpack.c.l.b16 %v50
  %v219 = vunpack.c.l.b16 %v51
  %v220 = vunpack.c.l.b16 %v52
  %v221 = vunpack.c.l.b16 %v53
  %v222 = vunpack.c.l.b16 %v54
  %v223 = vunpack.c.l.b16 %v55
  %v224 = vunpack.c.l.b16 %v56
  %v225 = vunpack.c.l.b16 %v57
  %v226 = vunpack.c.l.b16 %v58
  %v227 = vunpack.c.l.b16 %v59
  %v228 = vunpack.c.l.b16 %v60
  %v229 = vunpack.c.l.b16 %v61
  %v230 = vunpack.c.l.b16 %v62
  %v231 = vunpack.c.l.b16 %v63
  %v232 = vunpack.c.l.b16 %v64
  %v233 = vunpack.c.l.b16 %v65
  %v234 = vunpack.c.l.b16 %v66
  %v235 = vunpack.c.l.b16 %v67
  %v236 = vunpack.c.l.b16 %v68
  %v237 = vunpack.c.l.b16 %v69
  %v238 = vunpack.c.l.b16 %v70
  %v239 = vunpack.c.l.b16 %v71
  %v240 = vunpack.c.l.b16 %v72
  %v241 = vunpack.c.l.b16 %v73
  %v242 = vunpack.c.l.b16 %v74
  %v243 = vunpack.c.l.b16 %v75
  %v244 = vunpack.c.l.b16 %v76
  %v245 = vunpack.c.l.b16 %v77
  %v246 = vunpack.c.l.b16 %v78
  %v247 = vunpack.c.l.b16 %v79
  %v248 = vunpack.c.l.b16 %v80
  %v249 = vunpack.c.l.b16 %v81
  %v250 = vunpack.c.l.b16 %v82
  %v251 = vunpack.c.l.b16 %v83
  %v252 = vunpack.c.l.b16 %v84
  %v253 = vunpack.c.l.b16 %v85
  %v254 = vunpack.c.l.b16 %v86
  %v255 = vpack.c.b16 %v192, %v191
  %v256 = vpack.c.b16 %v194, %v193
  %v257 = vpack.c.b16 %v196, %v195
  %v258 = vpack.c.b16 %v198, %v197
  %v259 = vpack.c.b16 %v200, %v199
  %v260 = vpack.c.b16 %v202, %v201
  %v261 = vpack.c.b16 %v204, %v203
  %v262 = vpack.c.b16 %v206, %v205
  %v263 = vpack.c.b16 %v208, %v207
  %v264 = vpack.c.b16 %v210, %v209
  %v265 = vpack.c.b16 %v212, %v211
  %v266 = vpack.c.b16 %v214, %v213
  %v267 = vpack.c.b16 %v216, %v215
  %v268 = vpack.c.b16 %v218, %v217
  %v269 = vpack.c.b16 %v220, %v219
  %v270 = vpack.c.b16 %v222, %v221
  %v271 = vpack.c.b16 %v224, %v223
  %v272 = vpack.c.b16 %v226, %v225
  %v273 = vpack.c.b16 %v228, %v227
  %v274 = vpack.c.b16 %v230, %v229
  %v275 = vpack.c.b16 %v232, %v231
  %v276 = vpack.c.b16 %v234, %v233
  %v277 = vpack.c.b16 %v236, %v235
  %v278 = vpack.c.b16 %v238, %v237
  %v279 = vpack.c.b16 %v240, %v239
  %v280 = vpack.c.b16 %v242, %v241
  %v281 = vpack.c.b16 %v244, %v243
  %v282 = vpack.c.b16 %v246, %v245
  %v283 = vpack.c.b16 %v248, %v247
  %v284 = vpack.c.b16 %v250, %v249
  %v285 = vpack.c.b16 %v252, %v251
  %v286 = vpack.c.b16 %v254, %v253
  %319 = vmatprep.subr.bf16.mxu0 0
  %320 = vmatpush1.bf16.msra.mxu0 %v262
  %321 = vmatprep.subr.bf16.mxu0 0
  %322 = vmatpush1.bf16.msra.mxu0 %v261
  %323 = vmatprep.subr.bf16.mxu0 0
  %324 = vmatpush1.bf16.msra.mxu0 %v260
  %325 = vmatprep.subr.bf16.mxu0 0
  %326 = vmatpush1.bf16.msra.mxu0 %v259
  %327 = vmatprep.subr.bf16.mxu0 0
  %328 = vmatpush1.bf16.msra.mxu0 %v258
  %329 = vmatprep.subr.bf16.mxu0 0
  %330 = vmatpush1.bf16.msra.mxu0 %v257
  %331 = vmatprep.subr.bf16.mxu0 0
  %332 = vmatpush1.bf16.msra.mxu0 %v256
  %333 = vmatprep.subr.bf16.mxu0 0
  %334 = vmatpush1.bf16.msra.mxu0 %v255
  %335 = vmatprep.subr.bf16.mxu0 0
  %336 = vmatpush2.bf16.msra.mxu0 %v270
  %337 = vmatprep.subr.bf16.mxu0 0
  %338 = vmatpush2.bf16.msra.mxu0 %v269
  %339 = vmatprep.subr.bf16.mxu0 0
  %340 = vmatpush2.bf16.msra.mxu0 %v268
  %341 = vmatprep.subr.bf16.mxu0 0
  %342 = vmatpush2.bf16.msra.mxu0 %v267
  %343 = vmatprep.subr.bf16.mxu0 0
  %344 = vmatpush2.bf16.msra.mxu0 %v266
  %345 = vmatprep.subr.bf16.mxu0 0
  %346 = vmatpush2.bf16.msra.mxu0 %v265
  %347 = vmatprep.subr.bf16.mxu0 0
  %348 = vmatpush2.bf16.msra.mxu0 %v264
  %349 = vmatprep.subr.bf16.mxu0 0
  %350 = vmatpush2.bf16.msra.mxu0 %v263
  %351 = vmatprep.mubr.bf16.mxu0 %v112
  %352 = vmatmul.mubr.bf16.gmra.mxu0 %v111
  %v353 = vpop.f32.mrf.mxu0
  %v354 = vadd.f32 0.0, %v353
  %v355 = vpop.f32.mrf.mxu0
  %v356 = vpop.f32.mrf.mxu0
  %v357 = vadd.f32 0.0, %v356
  %v358 = vpop.f32.mrf.mxu0
  %359 = vmatprep.mubr.bf16.mxu0 %v116
  %360 = vmatmul.mubr.bf16.gmra.mxu0 %v115
  %v361 = vpop.f32.mrf.mxu0
  %v362 = vadd.f32 0.0, %v361
  %v363 = vpop.f32.mrf.mxu0
  %v364 = vpop.f32.mrf.mxu0
  %v365 = vadd.f32 0.0, %v364
  %v366 = vpop.f32.mrf.mxu0
  %367 = vdwg.mxu0
  %368 = vmatprep.subr.bf16.mxu0 0
  %369 = vmatpush1.bf16.msra.mxu0 %v278
  %370 = vmatprep.subr.bf16.mxu0 0
  %371 = vmatpush1.bf16.msra.mxu0 %v277
  %372 = vmatprep.subr.bf16.mxu0 0
  %373 = vmatpush1.bf16.msra.mxu0 %v276
  %374 = vmatprep.subr.bf16.mxu0 0
  %375 = vmatpush1.bf16.msra.mxu0 %v275
  %376 = vmatprep.subr.bf16.mxu0 0
  %377 = vmatpush1.bf16.msra.mxu0 %v274
  %378 = vmatprep.subr.bf16.mxu0 0
  %379 = vmatpush1.bf16.msra.mxu0 %v273
  %380 = vmatprep.subr.bf16.mxu0 0
  %381 = vmatpush1.bf16.msra.mxu0 %v272
  %382 = vmatprep.subr.bf16.mxu0 0
  %383 = vmatpush1.bf16.msra.mxu0 %v271
  %384 = vmatprep.subr.bf16.mxu0 0
  %385 = vmatpush2.bf16.msra.mxu0 %v286
  %386 = vmatprep.subr.bf16.mxu0 0
  %387 = vmatpush2.bf16.msra.mxu0 %v285
  %388 = vmatprep.subr.bf16.mxu0 0
  %389 = vmatpush2.bf16.msra.mxu0 %v284
  %390 = vmatprep.subr.bf16.mxu0 0
  %391 = vmatpush2.bf16.msra.mxu0 %v283
  %392 = vmatprep.subr.bf16.mxu0 0
  %393 = vmatpush2.bf16.msra.mxu0 %v282
  %394 = vmatprep.subr.bf16.mxu0 0
  %395 = vmatpush2.bf16.msra.mxu0 %v281
  %396 = vmatprep.subr.bf16.mxu0 0
  %397 = vmatpush2.bf16.msra.mxu0 %v280
  %398 = vmatprep.subr.bf16.mxu0 0
  %399 = vmatpush2.bf16.msra.mxu0 %v279
  %400 = vmatprep.mubr.bf16.mxu0 %v114
  %401 = vmatmul.mubr.bf16.gmra.mxu0 %v113
  %v402 = vpop.f32.mrf.mxu0
  %v403 = vadd.f32 %v354, %v402
  %v404 = vpop.f32.mrf.mxu0
  %v405 = vpop.f32.mrf.mxu0
  %v406 = vadd.f32 %v357, %v405
  %v407 = vpop.f32.mrf.mxu0
  %408 = vmatprep.mubr.bf16.mxu0 %v118
  %409 = vmatmul.mubr.bf16.gmra.mxu0 %v117
  %v410 = vpop.f32.mrf.mxu0
  %v411 = vadd.f32 %v362, %v410
  %v412 = vpop.f32.mrf.mxu0
  %v413 = vpop.f32.mrf.mxu0
  %v414 = vadd.f32 %v365, %v413
  %v415 = vpop.f32.mrf.mxu0
  %416 = vdwg.mxu0
  %v417 = vadd.f32 %v403, %v406
  %v418 = vadd.f32 %v417, %v411
  %v419 = vadd.f32 %v418, %v414
  %v420 = vrot.slane %v419, 4
  %v421 = vadd.f32 %v419, %v420
  %v422 = vrot.slane %v421, 2
  %v423 = vadd.f32 %v421, %v422
  %v424 = vrot.slane %v423, 1
  %v425 = vadd.f32 %v423, %v424
  %v426 = vmul.f32 %v425, 0.03125
  %v427 = vmul.f32 %v403, %v403
  %v428 = vmul.f32 %v406, %v406
  %v429 = vmul.f32 %v411, %v411
  %v430 = vmul.f32 %v414, %v414
  %v431 = vadd.f32 %v427, %v428
  %v432 = vadd.f32 %v431, %v429
  %v433 = vadd.f32 %v432, %v430
  %v434 = vrot.slane %v433, 4
  %v435 = vadd.f32 %v433, %v434
  %v436 = vrot.slane %v435, 2
  %v437 = vadd.f32 %v435, %v436
  %v438 = vrot.slane %v437, 1
  %v439 = vadd.f32 %v437, %v438
  %v440 = vmul.f32 %v439, 0.03125
  %v441 = vmul.f32 %v426, %v426
  %v442 = vsub.f32 %v440, %v441
  %v443 = vmax.f32 %v442, 0.0
  %v444 = vld [vmem:[%s2] sm:$0x1]
  %v445 = vld [vmem:[%s2 + $0x1] sm:$0x1]
  %v446 = vadd.f32 %v443, 1e-05
  %v447 = vrsqrt.pop %v446
  %v448 = vmul.f32 %v444, %v447
  %v449 = vmul.f32 %v426, %v448
  %v450 = vsub.f32 %v445, %v449
  %v451 = vlaneseq
  %v452 = vshrl.u32 %v451, 7
  %v453 = vsub.s32 0, %v452
  %v454 = vrot.slane %v448, %v453
  %v455 = vmul.f32 %v403, %v454
  %v456 = vmul.f32 %v406, %v454
  %v457 = vmul.f32 %v411, %v454
  %v458 = vmul.f32 %v414, %v454
  %v459 = vlaneseq
  %v460 = vshrl.u32 %v459, 7
  %v461 = vsub.s32 0, %v460
  %v462 = vrot.slane %v450, %v461
  %v463 = vadd.f32 %v455, %v462
  %v464 = vadd.f32 %v456, %v462
  %v465 = vadd.f32 %v457, %v462
  %v466 = vadd.f32 %v458, %v462
  %vm467 = vcmp.gt.f32.partialorder %v463, 0.0
  %vm468 = vcmp.gt.f32.partialorder %v464, 0.0
  %vm469 = vcmp.gt.f32.partialorder %v465, 0.0
  %vm470 = vcmp.gt.f32.partialorder %v466, 0.0
  %v471 = vmul.f32 %v463, 0.2
  %v472 = vmul.f32 %v464, 0.2
  %v473 = vmul.f32 %v465, 0.2
  %v474 = vmul.f32 %v466, 0.2
  %v475 = vsel %vm467, %v463, %v471
  %v476 = vsel %vm468, %v464, %v472
  %v477 = vsel %vm469, %v465, %v473
  %v478 = vsel %vm470, %v466, %v474
  %v479 = vpack.c.bf16 %v476, %v475
  %v480 = vpack.c.bf16 %v478, %v477
  %v483 = vunpack.c.l.b16 %v479
  %v484 = vunpack.c.h.b16 %v479
  %v485 = vunpack.c.l.b16 %v480
  %v486 = vunpack.c.h.b16 %v480
  %v487 = vpack.c.b16 %v483, %v483
  %v488 = vpack.c.b16 %v484, %v484
  %v489 = vpack.c.b16 %v485, %v485
  %v490 = vpack.c.b16 %v486, %v486
  %495 = vst [vmem:[%s3] sm:$0xf] %v487
  %496 = vst [vmem:[%s3 + $0x4] sm:$0xf] %v488
  %497 = vst [vmem:[%s3 + $0x8] sm:$0xf] %v489
  %498 = vst [vmem:[%s3 + $0xc] sm:$0xf] %v490
  // Predicated region
  $region14: #{discriminator_forward.8} parent=0 // pred_check
    _
  $region15: #{discriminator_forward.8} parent=0 // pred_check_branch
    %500 = sbr.rel (0) target = $region17
  $region16: #{discriminator_forward.8} parent=0 // pred_region
    _
  $region17: #{discriminator_forward.8} parent=0 // pred_fallthru
    _
  // Predicated region
  $region18: #{discriminator_forward.8} parent=0 // pred_check
    _
  $region19: #{discriminator_forward.8} parent=0 // pred_check_branch
    %502 = sbr.rel (0) target = $region21
  $region20: #{discriminator_forward.8} parent=0 // pred_region
    _
  $region21: #{discriminator_forward.8} parent=0 // pred_fallthru
    _

// kernel: discriminator_forward.9
$region0: #{discriminator_forward.9}
  #allocation0 [shape = 'u32[]', space=smem, size = 0x4, offset = 0x4, fixed_abs, tag = 'smem constant byte address 0x4 - core index']
  #allocation1 [shape = 'u32[144,128]{1,0:T(1,128)}', space=vmem, size = 0x12000, scoped, tag = 'internal scratch']
  %s0 = inlined_call_operand.vmem [shape: bf16[8,1024], index: 0, kind: input, shape index: {}]
  %s1 = inlined_call_operand.vmem [shape: bf16[1024,128], index: 1, kind: input, shape index: {}]
  %s2 = inlined_call_operand.vmem [shape: f32[8,128], index: 2, kind: input, shape index: {}]
  %s3 = inlined_call_operand.vmem [shape: f32[8,128], index: 3, kind: output, shape index: {}]
  %s4 = sld [smem:[#allocation0]]
  $region22: #{discriminator_forward.9} parent=0
    _
  %s6 = ssub.s32 1, %s4
  %s7 = scalar_select 0, %s6, %s4
  // Predicated region
  $region2: #{discriminator_forward.9} parent=0 // pred_check
    _
  $region3: #{discriminator_forward.9} parent=0 // pred_check_branch
    %9 = sbr.rel (0) target = $region5
  $region4: #{discriminator_forward.9} parent=0 // pred_region
    _
  $region5: #{discriminator_forward.9} parent=0 // pred_fallthru
    _
  // Predicated region
  $region6: #{discriminator_forward.9} parent=0 // pred_check
    _
  $region7: #{discriminator_forward.9} parent=0 // pred_check_branch
    %11 = sbr.rel (0) target = $region9
  $region8: #{discriminator_forward.9} parent=0 // pred_region
    _
  $region9: #{discriminator_forward.9} parent=0 // pred_fallthru
    _
  // Predicated region
  $region10: #{discriminator_forward.9} parent=0 // pred_check
    _
  $region11: #{discriminator_forward.9} parent=0 // pred_check_branch
    %13 = sbr.rel (0) target = $region13
  $region12: #{discriminator_forward.9} parent=0 // pred_region
    _
  $region13: #{discriminator_forward.9} parent=0 // pred_fallthru
    _
  %v15 = vld [vmem:[%s0] sm:$0xff]
  %v16 = vld [vmem:[%s0 + $0x8] sm:$0xff]
  %v17 = vld [vmem:[%s0 + $0x10] sm:$0xff]
  %v18 = vld [vmem:[%s0 + $0x18] sm:$0xff]
  %v19 = vld [vmem:[%s1] sm:$0xf]
  %v20 = vld [vmem:[%s1 + $0x4] sm:$0xf]
  %v21 = vld [vmem:[%s1 + $0x8] sm:$0xf]
  %v22 = vld [vmem:[%s1 + $0xc] sm:$0xf]
  %v23 = vld [vmem:[%s1 + $0x10] sm:$0xf]
  %v24 = vld [vmem:[%s1 + $0x14] sm:$0xf]
  %v25 = vld [vmem:[%s1 + $0x18] sm:$0xf]
  %v26 = vld [vmem:[%s1 + $0x1c] sm:$0xf]
  %v27 = vld [vmem:[%s1 + $0x20] sm:$0xf]
  %v28 = vld [vmem:[%s1 + $0x24] sm:$0xf]
  %v29 = vld [vmem:[%s1 + $0x28] sm:$0xf]
  %v30 = vld [vmem:[%s1 + $0x2c] sm:$0xf]
  %v31 = vld [vmem:[%s1 + $0x30] sm:$0xf]
  %v32 = vld [vmem:[%s1 + $0x34] sm:$0xf]
  %v33 = vld [vmem:[%s1 + $0x38] sm:$0xf]
  %v34 = vld [vmem:[%s1 + $0x3c] sm:$0xf]
  %v35 = vld [vmem:[%s1 + $0x40] sm:$0xf]
  %v36 = vld [vmem:[%s1 + $0x44] sm:$0xf]
  %v37 = vld [vmem:[%s1 + $0x48] sm:$0xf]
  %v38 = vld [vmem:[%s1 + $0x4c] sm:$0xf]
  %v39 = vld [vmem:[%s1 + $0x50] sm:$0xf]
  %v40 = vld [vmem:[%s1 + $0x54] sm:$0xf]
  %v41 = vld [vmem:[%s1 + $0x58] sm:$0xf]
  %v42 = vld [vmem:[%s1 + $0x5c] sm:$0xf]
  %v43 = vld [vmem:[%s1 + $0x60] sm:$0xf]
  %v44 = vld [vmem:[%s1 + $0x64] sm:$0xf]
  %v45 = vld [vmem:[%s1 + $0x68] sm:$0xf]
  %v46 = vld [vmem:[%s1 + $0x6c] sm:$0xf]
  %v47 = vld [vmem:[%s1 + $0x70] sm:$0xf]
  %v48 = vld [vmem:[%s1 + $0x74] sm:$0xf]
  %v49 = vld [vmem:[%s1 + $0x78] sm:$0xf]
  %v50 = vld [vmem:[%s1 + $0x7c] sm:$0xf]
  %v51 = vld [vmem:[%s1 + $0x80] sm:$0xf]
  %v52 = vld [vmem:[%s1 + $0x84] sm:$0xf]
  %v53 = vld [vmem:[%s1 + $0x88] sm:$0xf]
  %v54 = vld [vmem:[%s1 + $0x8c] sm:$0xf]
  %v55 = vld [vmem:[%s1 + $0x90] sm:$0xf]
  %v56 = vld [vmem:[%s1 + $0x94] sm:$0xf]
  %v57 = vld [vmem:[%s1 + $0x98] sm:$0xf]
  %v58 = vld [vmem:[%s1 + $0x9c] sm:$0xf]
  %v59 = vld [vmem:[%s1 + $0xa0] sm:$0xf]
  %v60 = vld [vmem:[%s1 + $0xa4] sm:$0xf]
  %v61 = vld [vmem:[%s1 + $0xa8] sm:$0xf]
  %v62 = vld [vmem:[%s1 + $0xac] sm:$0xf]
  %v63 = vld [vmem:[%s1 + $0xb0] sm:$0xf]
  %v64 = vld [vmem:[%s1 + $0xb4] sm:$0xf]
  %v65 = vld [vmem:[%s1 + $0xb8] sm:$0xf]
  %v66 = vld [vmem:[%s1 + $0xbc] sm:$0xf]
  %v67 = vld [vmem:[%s1 + $0xc0] sm:$0xf]
  %v68 = vld [vmem:[%s1 + $0xc4] sm:$0xf]
  %v69 = vld [vmem:[%s1 + $0xc8] sm:$0xf]
  %v70 = vld [vmem:[%s1 + $0xcc] sm:$0xf]
  %v71 = vld [vmem:[%s1 + $0xd0] sm:$0xf]
  %v72 = vld [vmem:[%s1 + $0xd4] sm:$0xf]
  %v73 = vld [vmem:[%s1 + $0xd8] sm:$0xf]
  %v74 = vld [vmem:[%s1 + $0xdc] sm:$0xf]
  %v75 = vld [vmem:[%s1 + $0xe0] sm:$0xf]
  %v76 = vld [vmem:[%s1 + $0xe4] sm:$0xf]
  %v77 = vld [vmem:[%s1 + $0xe8] sm:$0xf]
  %v78 = vld [vmem:[%s1 + $0xec] sm:$0xf]
  %v79 = vld [vmem:[%s1 + $0xf0] sm:$0xf]
  %v80 = vld [vmem:[%s1 + $0xf4] sm:$0xf]
  %v81 = vld [vmem:[%s1 + $0xf8] sm:$0xf]
  %v82 = vld [vmem:[%s1 + $0xfc] sm:$0xf]
  %v83 = vld [vmem:[%s1 + $0x100] sm:$0xf]
  %v84 = vld [vmem:[%s1 + $0x104] sm:$0xf]
  %v85 = vld [vmem:[%s1 + $0x108] sm:$0xf]
  %v86 = vld [vmem:[%s1 + $0x10c] sm:$0xf]
  %v87 = vld [vmem:[%s1 + $0x110] sm:$0xf]
  %v88 = vld [vmem:[%s1 + $0x114] sm:$0xf]
  %v89 = vld [vmem:[%s1 + $0x118] sm:$0xf]
  %v90 = vld [vmem:[%s1 + $0x11c] sm:$0xf]
  %v91 = vld [vmem:[%s1 + $0x120] sm:$0xf]
  %v92 = vld [vmem:[%s1 + $0x124] sm:$0xf]
  %v93 = vld [vmem:[%s1 + $0x128] sm:$0xf]
  %v94 = vld [vmem:[%s1 + $0x12c] sm:$0xf]
  %v95 = vld [vmem:[%s1 + $0x130] sm:$0xf]
  %v96 = vld [vmem:[%s1 + $0x134] sm:$0xf]
  %v97 = vld [vmem:[%s1 + $0x138] sm:$0xf]
  %v98 = vld [vmem:[%s1 + $0x13c] sm:$0xf]
  %v99 = vld [vmem:[%s1 + $0x140] sm:$0xf]
  %v100 = vld [vmem:[%s1 + $0x144] sm:$0xf]
  %v101 = vld [vmem:[%s1 + $0x148] sm:$0xf]
  %v102 = vld [vmem:[%s1 + $0x14c] sm:$0xf]
  %v103 = vld [vmem:[%s1 + $0x150] sm:$0xf]
  %v104 = vld [vmem:[%s1 + $0x154] sm:$0xf]
  %v105 = vld [vmem:[%s1 + $0x158] sm:$0xf]
  %v106 = vld [vmem:[%s1 + $0x15c] sm:$0xf]
  %v107 = vld [vmem:[%s1 + $0x160] sm:$0xf]
  %v108 = vld [vmem:[%s1 + $0x164] sm:$0xf]
  %v109 = vld [vmem:[%s1 + $0x168] sm:$0xf]
  %v110 = vld [vmem:[%s1 + $0x16c] sm:$0xf]
  %v111 = vld [vmem:[%s1 + $0x170] sm:$0xf]
  %v112 = vld [vmem:[%s1 + $0x174] sm:$0xf]
  %v113 = vld [vmem:[%s1 + $0x178] sm:$0xf]
  %v114 = vld [vmem:[%s1 + $0x17c] sm:$0xf]
  %v115 = vld [vmem:[%s1 + $0x180] sm:$0xf]
  %v116 = vld [vmem:[%s1 + $0x184] sm:$0xf]
  %v117 = vld [vmem:[%s1 + $0x188] sm:$0xf]
  %v118 = vld [vmem:[%s1 + $0x18c] sm:$0xf]
  %v119 = vld [vmem:[%s1 + $0x190] sm:$0xf]
  %v120 = vld [vmem:[%s1 + $0x194] sm:$0xf]
  %v121 = vld [vmem:[%s1 + $0x198] sm:$0xf]
  %v122 = vld [vmem:[%s1 + $0x19c] sm:$0xf]
  %v123 = vld [vmem:[%s1 + $0x1a0] sm:$0xf]
  %v124 = vld [vmem:[%s1 + $0x1a4] sm:$0xf]
  %v125 = vld [vmem:[%s1 + $0x1a8] sm:$0xf]
  %v126 = vld [vmem:[%s1 + $0x1ac] sm:$0xf]
  %v127 = vld [vmem:[%s1 + $0x1b0] sm:$0xf]
  %v128 = vld [vmem:[%s1 + $0x1b4] sm:$0xf]
  %v129 = vld [vmem:[%s1 + $0x1b8] sm:$0xf]
  %v130 = vld [vmem:[%s1 + $0x1bc] sm:$0xf]
  %v131 = vld [vmem:[%s1 + $0x1c0] sm:$0xf]
  %v132 = vld [vmem:[%s1 + $0x1c4] sm:$0xf]
  %v133 = vld [vmem:[%s1 + $0x1c8] sm:$0xf]
  %v134 = vld [vmem:[%s1 + $0x1cc] sm:$0xf]
  %v135 = vld [vmem:[%s1 + $0x1d0] sm:$0xf]
  %v136 = vld [vmem:[%s1 + $0x1d4] sm:$0xf]
  %v137 = vld [vmem:[%s1 + $0x1d8] sm:$0xf]
  %v138 = vld [vmem:[%s1 + $0x1dc] sm:$0xf]
  %v139 = vld [vmem:[%s1 + $0x1e0] sm:$0xf]
  %v140 = vld [vmem:[%s1 + $0x1e4] sm:$0xf]
  %v141 = vld [vmem:[%s1 + $0x1e8] sm:$0xf]
  %v142 = vld [vmem:[%s1 + $0x1ec] sm:$0xf]
  %v143 = vld [vmem:[%s1 + $0x1f0] sm:$0xf]
  %v144 = vld [vmem:[%s1 + $0x1f4] sm:$0xf]
  %v145 = vld [vmem:[%s1 + $0x1f8] sm:$0xf]
  %v146 = vld [vmem:[%s1 + $0x1fc] sm:$0xf]
  %v147 = vld [vmem:[%s2] sm:$0x1]
  %v148 = vlaneseq
  %v149 = vshrl.u32 %v148, 7
  %v150 = vsub.s32 0, %v149
  %v151 = vrot.slane %v147, %v150
  %v156 = vunpack.c.l.b16 %v15
  %v157 = vunpack.c.h.b16 %v15
  %v158 = vunpack.c.l.b16 %v16
  %v159 = vunpack.c.h.b16 %v16
  %v160 = vunpack.c.l.b16 %v17
  %v161 = vunpack.c.h.b16 %v17
  %v162 = vunpack.c.l.b16 %v18
  %v163 = vunpack.c.h.b16 %v18
  %v164 = vpack.c.b16 %v156, %v156
  %v165 = vpack.c.b16 %v157, %v157
  %v166 = vpack.c.b16 %v158, %v158
  %v167 = vpack.c.b16 %v159, %v159
  %v168 = vpack.c.b16 %v160, %v160
  %v169 = vpack.c.b16 %v161, %v161
  %v170 = vpack.c.b16 %v162, %v162
  %v171 = vpack.c.b16 %v163, %v163
  %v308 = vunpack.c.l.b16 %v19
  %v309 = vunpack.c.l.b16 %v20
  %v310 = vunpack.c.l.b16 %v21
  %v311 = vunpack.c.l.b16 %v22
  %v312 = vunpack.c.l.b16 %v23
  %v313 = vunpack.c.l.b16 %v24
  %v314 = vunpack.c.l.b16 %v25
  %v315 = vunpack.c.l.b16 %v26
  %v316 = vunpack.c.l.b16 %v27
  %v317 = vunpack.c.l.b16 %v28
  %v318 = vunpack.c.l.b16 %v29
  %v319 = vunpack.c.l.b16 %v30
  %v320 = vunpack.c.l.b16 %v31
  %v321 = vunpack.c.l.b16 %v32
  %v322 = vunpack.c.l.b16 %v33
  %v323 = vunpack.c.l.b16 %v34
  %v324 = vunpack.c.l.b16 %v35
  %v325 = vunpack.c.l.b16 %v36
  %v326 = vunpack.c.l.b16 %v37
  %v327 = vunpack.c.l.b16 %v38
  %v328 = vunpack.c.l.b16 %v39
  %v329 = vunpack.c.l.b16 %v40
  %v330 = vunpack.c.l.b16 %v41
  %v331 = vunpack.c.l.b16 %v42
  %v332 = vunpack.c.l.b16 %v43
  %v333 = vunpack.c.l.b16 %v44
  %v334 = vunpack.c.l.b16 %v45
  %v335 = vunpack.c.l.b16 %v46
  %v336 = vunpack.c.l.b16 %v47
  %v337 = vunpack.c.l.b16 %v48
  %v338 = vunpack.c.l.b16 %v49
  %v339 = vunpack.c.l.b16 %v50
  %v340 = vunpack.c.l.b16 %v51
  %v341 = vunpack.c.l.b16 %v52
  %v342 = vunpack.c.l.b16 %v53
  %v343 = vunpack.c.l.b16 %v54
  %v344 = vunpack.c.l.b16 %v55
  %v345 = vunpack.c.l.b16 %v56
  %v346 = vunpack.c.l.b16 %v57
  %v347 = vunpack.c.l.b16 %v58
  %v348 = vunpack.c.l.b16 %v59
  %v349 = vunpack.c.l.b16 %v60
  %v350 = vunpack.c.l.b16 %v61
  %v351 = vunpack.c.l.b16 %v62
  %v352 = vunpack.c.l.b16 %v63
  %v353 = vunpack.c.l.b16 %v64
  %v354 = vunpack.c.l.b16 %v65
  %v355 = vunpack.c.l.b16 %v66
  %v356 = vunpack.c.l.b16 %v67
  %v357 = vunpack.c.l.b16 %v68
  %v358 = vunpack.c.l.b16 %v69
  %v359 = vunpack.c.l.b16 %v70
  %v360 = vunpack.c.l.b16 %v71
  %v361 = vunpack.c.l.b16 %v72
  %v362 = vunpack.c.l.b16 %v73
  %v363 = vunpack.c.l.b16 %v74
  %v364 = vunpack.c.l.b16 %v75
  %v365 = vunpack.c.l.b16 %v76
  %v366 = vunpack.c.l.b16 %v77
  %v367 = vunpack.c.l.b16 %v78
  %v368 = vunpack.c.l.b16 %v79
  %v369 = vunpack.c.l.b16 %v80
  %v370 = vunpack.c.l.b16 %v81
  %v371 = vunpack.c.l.b16 %v82
  %v372 = vunpack.c.l.b16 %v83
  %v373 = vunpack.c.l.b16 %v84
  %v374 = vunpack.c.l.b16 %v85
  %v375 = vunpack.c.l.b16 %v86
  %v376 = vunpack.c.l.b16 %v87
  %v377 = vunpack.c.l.b16 %v88
  %v378 = vunpack.c.l.b16 %v89
  %v379 = vunpack.c.l.b16 %v90
  %v380 = vunpack.c.l.b16 %v91
  %v381 = vunpack.c.l.b16 %v92
  %v382 = vunpack.c.l.b16 %v93
  %v383 = vunpack.c.l.b16 %v94
  %v384 = vunpack.c.l.b16 %v95
  %v385 = vunpack.c.l.b16 %v96
  %v386 = vunpack.c.l.b16 %v97
  %v387 = vunpack.c.l.b16 %v98
  %v388 = vunpack.c.l.b16 %v99
  %v389 = vunpack.c.l.b16 %v100
  %v390 = vunpack.c.l.b16 %v101
  %v391 = vunpack.c.l.b16 %v102
  %v392 = vunpack.c.l.b16 %v103
  %v393 = vunpack.c.l.b16 %v104
  %v394 = vunpack.c.l.b16 %v105
  %v395 = vunpack.c.l.b16 %v106
  %v396 = vunpack.c.l.b16 %v107
  %v397 = vunpack.c.l.b16 %v108
  %v398 = vunpack.c.l.b16 %v109
  %v399 = vunpack.c.l.b16 %v110
  %v400 = vunpack.c.l.b16 %v111
  %v401 = vunpack.c.l.b16 %v112
  %v402 = vunpack.c.l.b16 %v113
  %v403 = vunpack.c.l.b16 %v114
  %v404 = vunpack.c.l.b16 %v115
  %v405 = vunpack.c.l.b16 %v116
  %v406 = vunpack.c.l.b16 %v117
  %v407 = vunpack.c.l.b16 %v118
  %v408 = vunpack.c.l.b16 %v119
  %v409 = vunpack.c.l.b16 %v120
  %v410 = vunpack.c.l.b16 %v121
  %v411 = vunpack.c.l.b16 %v122
  %v412 = vunpack.c.l.b16 %v123
  %v413 = vunpack.c.l.b16 %v124
  %v414 = vunpack.c.l.b16 %v125
  %v415 = vunpack.c.l.b16 %v126
  %v416 = vunpack.c.l.b16 %v127
  %v417 = vunpack.c.l.b16 %v128
  %v418 = vunpack.c.l.b16 %v129
  %v419 = vunpack.c.l.b16 %v130
  %v420 = vunpack.c.l.b16 %v131
  %v421 = vunpack.c.l.b16 %v132
  %v422 = vunpack.c.l.b16 %v133
  %v423 = vunpack.c.l.b16 %v134
  %v424 = vunpack.c.l.b16 %v135
  %v425 = vunpack.c.l.b16 %v136
  %v426 = vunpack.c.l.b16 %v137
  %v427 = vunpack.c.l.b16 %v138
  %v428 = vunpack.c.l.b16 %v139
  %v429 = vunpack.c.l.b16 %v140
  %v430 = vunpack.c.l.b16 %v141
  %v431 = vunpack.c.l.b16 %v142
  %v432 = vunpack.c.l.b16 %v143
  %v433 = vunpack.c.l.b16 %v144
  %v434 = vunpack.c.l.b16 %v145
  %v435 = vunpack.c.l.b16 %v146
  %v436 = vpack.c.b16 %v309, %v308
  %v437 = vpack.c.b16 %v311, %v310
  %v438 = vpack.c.b16 %v313, %v312
  %v439 = vpack.c.b16 %v315, %v314
  %v440 = vpack.c.b16 %v317, %v316
  %v441 = vpack.c.b16 %v319, %v318
  %v442 = vpack.c.b16 %v321, %v320
  %v443 = vpack.c.b16 %v323, %v322
  %v444 = vpack.c.b16 %v325, %v324
  %v445 = vpack.c.b16 %v327, %v326
  %v446 = vpack.c.b16 %v329, %v328
  %v447 = vpack.c.b16 %v331, %v330
  %v448 = vpack.c.b16 %v333, %v332
  %v449 = vpack.c.b16 %v335, %v334
  %v450 = vpack.c.b16 %v337, %v336
  %v451 = vpack.c.b16 %v339, %v338
  %v452 = vpack.c.b16 %v341, %v340
  %v453 = vpack.c.b16 %v343, %v342
  %v454 = vpack.c.b16 %v345, %v344
  %v455 = vpack.c.b16 %v347, %v346
  %v456 = vpack.c.b16 %v349, %v348
  %v457 = vpack.c.b16 %v351, %v350
  %v458 = vpack.c.b16 %v353, %v352
  %v459 = vpack.c.b16 %v355, %v354
  %v460 = vpack.c.b16 %v357, %v356
  %v461 = vpack.c.b16 %v359, %v358
  %v462 = vpack.c.b16 %v361, %v360
  %v463 = vpack.c.b16 %v363, %v362
  %v464 = vpack.c.b16 %v365, %v364
  %v465 = vpack.c.b16 %v367, %v366
  %v466 = vpack.c.b16 %v369, %v368
  %v467 = vpack.c.b16 %v371, %v370
  %v468 = vpack.c.b16 %v373, %v372
  %v469 = vpack.c.b16 %v375, %v374
  %v470 = vpack.c.b16 %v377, %v376
  %v471 = vpack.c.b16 %v379, %v378
  %v472 = vpack.c.b16 %v381, %v380
  %v473 = vpack.c.b16 %v383, %v382
  %v474 = vpack.c.b16 %v385, %v384
  %v475 = vpack.c.b16 %v387, %v386
  %v476 = vpack.c.b16 %v389, %v388
  %v477 = vpack.c.b16 %v391, %v390
  %v478 = vpack.c.b16 %v393, %v392
  %v479 = vpack.c.b16 %v395, %v394
  %v480 = vpack.c.b16 %v397, %v396
  %v481 = vpack.c.b16 %v399, %v398
  %v482 = vpack.c.b16 %v401, %v400
  %v483 = vpack.c.b16 %v403, %v402
  %v484 = vpack.c.b16 %v405, %v404
  %v485 = vpack.c.b16 %v407, %v406
  %v486 = vpack.c.b16 %v409, %v408
  %v487 = vpack.c.b16 %v411, %v410
  %v488 = vpack.c.b16 %v413, %v412
  %v489 = vpack.c.b16 %v415, %v414
  %v490 = vpack.c.b16 %v417, %v416
  %v491 = vpack.c.b16 %v419, %v418
  %v492 = vpack.c.b16 %v421, %v420
  %v493 = vpack.c.b16 %v423, %v422
  %v494 = vpack.c.b16 %v425, %v424
  %v495 = vpack.c.b16 %v427, %v426
  %v496 = vpack.c.b16 %v429, %v428
  %v497 = vpack.c.b16 %v431, %v430
  %v498 = vpack.c.b16 %v433, %v432
  %v499 = vpack.c.b16 %v435, %v434
  %564 = vmatprep.subr.bf16.mxu0 0
  %565 = vmatpush1.bf16.msra.mxu0 %v443
  %566 = vmatprep.subr.bf16.mxu0 0
  %567 = vmatpush1.bf16.msra.mxu0 %v442
  %568 = vmatprep.subr.bf16.mxu0 0
  %569 = vmatpush1.bf16.msra.mxu0 %v441
  %570 = vmatprep.subr.bf16.mxu0 0
  %571 = vmatpush1.bf16.msra.mxu0 %v440
  %572 = vmatprep.subr.bf16.mxu0 0
  %573 = vmatpush1.bf16.msra.mxu0 %v439
  %574 = vmatprep.subr.bf16.mxu0 0
  %575 = vmatpush1.bf16.msra.mxu0 %v438
  %576 = vmatprep.subr.bf16.mxu0 0
  %577 = vmatpush1.bf16.msra.mxu0 %v437
  %578 = vmatprep.subr.bf16.mxu0 0
  %579 = vmatpush1.bf16.msra.mxu0 %v436
  %580 = vmatprep.subr.bf16.mxu0 0
  %581 = vmatpush2.bf16.msra.mxu0 %v451
  %582 = vmatprep.subr.bf16.mxu0 0
  %583 = vmatpush2.bf16.msra.mxu0 %v450
  %584 = vmatprep.subr.bf16.mxu0 0
  %585 = vmatpush2.bf16.msra.mxu0 %v449
  %586 = vmatprep.subr.bf16.mxu0 0
  %587 = vmatpush2.bf16.msra.mxu0 %v448
  %588 = vmatprep.subr.bf16.mxu0 0
  %589 = vmatpush2.bf16.msra.mxu0 %v447
  %590 = vmatprep.subr.bf16.mxu0 0
  %591 = vmatpush2.bf16.msra.mxu0 %v446
  %592 = vmatprep.subr.bf16.mxu0 0
  %593 = vmatpush2.bf16.msra.mxu0 %v445
  %594 = vmatprep.subr.bf16.mxu0 0
  %595 = vmatpush2.bf16.msra.mxu0 %v444
  %596 = vmatprep.mubr.bf16.mxu0 %v165
  %597 = vmatmul.mubr.bf16.gmra.mxu0 %v164
  %v598 = vpop.f32.mrf.mxu0
  %v599 = vadd.f32 %v151, %v598
  %v600 = vpop.f32.mrf.mxu0
  %v601 = vpop.f32.mrf.mxu0
  %v602 = vpop.f32.mrf.mxu0
  %603 = vdwg.mxu0
  %604 = vmatprep.subr.bf16.mxu0 0
  %605 = vmatpush1.bf16.msra.mxu0 %v459
  %606 = vmatprep.subr.bf16.mxu0 0
  %607 = vmatpush1.bf16.msra.mxu0 %v458
  %608 = vmatprep.subr.bf16.mxu0 0
  %609 = vmatpush1.bf16.msra.mxu0 %v457
  %610 = vmatprep.subr.bf16.mxu0 0
  %611 = vmatpush1.bf16.msra.mxu0 %v456
  %612 = vmatprep.subr.bf16.mxu0 0
  %613 = vmatpush1.bf16.msra.mxu0 %v455
  %614 = vmatprep.subr.bf16.mxu0 0
  %615 = vmatpush1.bf16.msra.mxu0 %v454
  %616 = vmatprep.subr.bf16.mxu0 0
  %617 = vmatpush1.bf16.msra.mxu0 %v453
  %618 = vmatprep.subr.bf16.mxu0 0
  %619 = vmatpush1.bf16.msra.mxu0 %v452
  %620 = vmatprep.subr.bf16.mxu0 0
  %621 = vmatpush2.bf16.msra.mxu0 %v467
  %622 = vmatprep.subr.bf16.mxu0 0
  %623 = vmatpush2.bf16.msra.mxu0 %v466
  %624 = vmatprep.subr.bf16.mxu0 0
  %625 = vmatpush2.bf16.msra.mxu0 %v465
  %626 = vmatprep.subr.bf16.mxu0 0
  %627 = vmatpush2.bf16.msra.mxu0 %v464
  %628 = vmatprep.subr.bf16.mxu0 0
  %629 = vmatpush2.bf16.msra.mxu0 %v463
  %630 = vmatprep.subr.bf16.mxu0 0
  %631 = vmatpush2.bf16.msra.mxu0 %v462
  %632 = vmatprep.subr.bf16.mxu0 0
  %633 = vmatpush2.bf16.msra.mxu0 %v461
  %634 = vmatprep.subr.bf16.mxu0 0
  %635 = vmatpush2.bf16.msra.mxu0 %v460
  %636 = vmatprep.mubr.bf16.mxu0 %v167
  %637 = vmatmul.mubr.bf16.gmra.mxu0 %v166
  %v638 = vpop.f32.mrf.mxu0
  %v639 = vadd.f32 %v599, %v638
  %v640 = vpop.f32.mrf.mxu0
  %v641 = vpop.f32.mrf.mxu0
  %v642 = vpop.f32.mrf.mxu0
  %643 = vdwg.mxu0
  %644 = vmatprep.subr.bf16.mxu0 0
  %645 = vmatpush1.bf16.msra.mxu0 %v475
  %646 = vmatprep.subr.bf16.mxu0 0
  %647 = vmatpush1.bf16.msra.mxu0 %v474
  %648 = vmatprep.subr.bf16.mxu0 0
  %649 = vmatpush1.bf16.msra.mxu0 %v473
  %650 = vmatprep.subr.bf16.mxu0 0
  %651 = vmatpush1.bf16.msra.mxu0 %v472
  %652 = vmatprep.subr.bf16.mxu0 0
  %653 = vmatpush1.bf16.msra.mxu0 %v471
  %654 = vmatprep.subr.bf16.mxu0 0
  %655 = vmatpush1.bf16.msra.mxu0 %v470
  %656 = vmatprep.subr.bf16.mxu0 0
  %657 = vmatpush1.bf16.msra.mxu0 %v469
  %658 = vmatprep.subr.bf16.mxu0 0
  %659 = vmatpush1.bf16.msra.mxu0 %v468
  %660 = vmatprep.subr.bf16.mxu0 0
  %661 = vmatpush2.bf16.msra.mxu0 %v483
  %662 = vmatprep.subr.bf16.mxu0 0
  %663 = vmatpush2.bf16.msra.mxu0 %v482
  %664 = vmatprep.subr.bf16.mxu0 0
  %665 = vmatpush2.bf16.msra.mxu0 %v481
  %666 = vmatprep.subr.bf16.mxu0 0
  %667 = vmatpush2.bf16.msra.mxu0 %v480
  %668 = vmatprep.subr.bf16.mxu0 0
  %669 = vmatpush2.bf16.msra.mxu0 %v479
  %670 = vmatprep.subr.bf16.mxu0 0
  %671 = vmatpush2.bf16.msra.mxu0 %v478
  %672 = vmatprep.subr.bf16.mxu0 0
  %673 = vmatpush2.bf16.msra.mxu0 %v477
  %674 = vmatprep.subr.bf16.mxu0 0
  %675 = vmatpush2.bf16.msra.mxu0 %v476
  %676 = vmatprep.mubr.bf16.mxu0 %v169
  %677 = vmatmul.mubr.bf16.gmra.mxu0 %v168
  %v678 = vpop.f32.mrf.mxu0
  %v679 = vadd.f32 %v639, %v678
  %v680 = vpop.f32.mrf.mxu0
  %v681 = vpop.f32.mrf.mxu0
  %v682 = vpop.f32.mrf.mxu0
  %683 = vdwg.mxu0
  %684 = vmatprep.subr.bf16.mxu0 0
  %685 = vmatpush1.bf16.msra.mxu0 %v491
  %686 = vmatprep.subr.bf16.mxu0 0
  %687 = vmatpush1.bf16.msra.mxu0 %v490
  %688 = vmatprep.subr.bf16.mxu0 0
  %689 = vmatpush1.bf16.msra.mxu0 %v489
  %690 = vmatprep.subr.bf16.mxu0 0
  %691 = vmatpush1.bf16.msra.mxu0 %v488
  %692 = vmatprep.subr.bf16.mxu0 0
  %693 = vmatpush1.bf16.msra.mxu0 %v487
  %694 = vmatprep.subr.bf16.mxu0 0
  %695 = vmatpush1.bf16.msra.mxu0 %v486
  %696 = vmatprep.subr.bf16.mxu0 0
  %697 = vmatpush1.bf16.msra.mxu0 %v485
  %698 = vmatprep.subr.bf16.mxu0 0
  %699 = vmatpush1.bf16.msra.mxu0 %v484
  %700 = vmatprep.subr.bf16.mxu0 0
  %701 = vmatpush2.bf16.msra.mxu0 %v499
  %702 = vmatprep.subr.bf16.mxu0 0
  %703 = vmatpush2.bf16.msra.mxu0 %v498
  %704 = vmatprep.subr.bf16.mxu0 0
  %705 = vmatpush2.bf16.msra.mxu0 %v497
  %706 = vmatprep.subr.bf16.mxu0 0
  %707 = vmatpush2.bf16.msra.mxu0 %v496
  %708 = vmatprep.subr.bf16.mxu0 0
  %709 = vmatpush2.bf16.msra.mxu0 %v495
  %710 = vmatprep.subr.bf16.mxu0 0
  %711 = vmatpush2.bf16.msra.mxu0 %v494
  %712 = vmatprep.subr.bf16.mxu0 0
  %713 = vmatpush2.bf16.msra.mxu0 %v493
  %714 = vmatprep.subr.bf16.mxu0 0
  %715 = vmatpush2.bf16.msra.mxu0 %v492
  %716 = vmatprep.mubr.bf16.mxu0 %v171
  %717 = vmatmul.mubr.bf16.gmra.mxu0 %v170
  %v718 = vpop.f32.mrf.mxu0
  %v719 = vadd.f32 %v679, %v718
  %v720 = vpop.f32.mrf.mxu0
  %v721 = vpop.f32.mrf.mxu0
  %v722 = vpop.f32.mrf.mxu0
  %723 = vdwg.mxu0
  %v724 = vxor.u32 %v719, 2147483648
  %v725 = vmul.f32 %v724, 1.442695
  %v726 = vpow.pop %v725
  %v727 = vadd.f32 %v726, 1.0
  %v728 = vrcp.pop %v727
  %v729 = vmul.f32 1.0, %v728
  %730 = vst [vmem:[%s3] sm:$0xff] %v729
  // Predicated region
  $region14: #{discriminator_forward.9} parent=0 // pred_check
    _
  $region15: #{discriminator_forward.9} parent=0 // pred_check_branch
    %732 = sbr.rel (0) target = $region17
  $region16: #{discriminator_forward.9} parent=0 // pred_region
    _
  $region17: #{discriminator_forward.9} parent=0 // pred_fallthru
    _
  // Predicated region
  $region18: #{discriminator_forward.9} parent=0 // pred_check
    _
  $region19: #{discriminator_forward.9} parent=0 // pred_check_branch
    %734 = sbr.rel (0) target = $region21
  $region20: #{discriminator_forward.9} parent=0 // pred_region
    _
  $region21: #{discriminator_forward.9} parent=0 // pred_fallthru
    _

</llo_original>
